<compile_context>
chip_gen: v7x
topology: tpu7x:2x2x1
jax: 0.10.0
libtpu: 0.0.40
codegen_flags: <defaults>
</compile_context>

<pallas_src>
import functools

import jax
import jax.numpy as jnp
from jax import lax
from jax.experimental import pallas as pl
from jax.experimental.pallas import tpu as pltpu

NEG_SLOPE = 0.01            # nn.LeakyReLU default
BN_EPS = 1e-5               # nn.BatchNorm2d default
VMEM_LIMIT = 32 * 1024 * 1024   # explicit scoped-VMEM budget (fits v5e/v6e/v7x)


# ----------------------------------------------------------------------------
# Kernel 1: per-channel sum / sum-of-squares reduction (single pass), tiled
# over rows with an "arbitrary" grid axis and a resident (2, C) accumulator.
# ----------------------------------------------------------------------------
def _bn_stats_kernel(x_ref, o_ref, acc_ref):
    i = pl.program_id(0)

    @pl.when(i == 0)
    def _():
        acc_ref[...] = jnp.zeros_like(acc_ref)

    x = x_ref[...].astype(jnp.float32)                     # (tm, C)
    acc_ref[0:1, :] += jnp.sum(x, axis=0, keepdims=True)
    acc_ref[1:2, :] += jnp.sum(x * x, axis=0, keepdims=True)

    @pl.when(i == pl.num_programs(0) - 1)
    def _():
        o_ref[...] = acc_ref[...]


def _pick_row_tile(m, cap=1024):
    d = min(m, cap)
    while d >= 8:
        if m % d == 0 and d % 8 == 0:
            return d
        d -= 1
    return m


def bn_stats_pallas(x2d):
    """x2d: (M, C) view.  Returns (2, C): [sum; sum of squares] per channel."""
    M, C = x2d.shape
    tm = _pick_row_tile(M)
    return pl.pallas_call(
        _bn_stats_kernel,
        grid=(M // tm,),
        out_shape=jax.ShapeDtypeStruct((2, C), jnp.float32),
        in_specs=[pl.BlockSpec((tm, C), lambda i: (i, 0))],
        out_specs=pl.BlockSpec((2, C), lambda i: (0, 0)),
        scratch_shapes=[pltpu.VMEM((2, C), jnp.float32)],
        compiler_params=pltpu.CompilerParams(
            dimension_semantics=("arbitrary",),
            vmem_limit_bytes=VMEM_LIMIT),
    )(x2d)


# ----------------------------------------------------------------------------
# Kernel 2: implicit-GEMM 3x3 conv + bias + LeakyReLU, optional fused
# (1x1-conv shortcut + residual add) epilogue.
# ----------------------------------------------------------------------------
def _conv_tap_gemm_kernel(xh_ref, w_ref, b_ref, o_ref, *, K, th, W, compute_dtype):
    # xh_ref: (1, th+2p, W+2p, Cin) halo'd tile   w_ref: (K*K, Cin, Cout)
    Cin = w_ref.shape[1]
    Cout = w_ref.shape[2]
    rows = th * W
    xt = xh_ref[0]                                          # (th+2p, W+2p, Cin)
    acc = jnp.zeros((rows, Cout), jnp.float32)
    for kh in range(K):                                     # 9 taps, unrolled
        for kw in range(K):
            a = xt[kh:kh + th, kw:kw + W, :].reshape(rows, Cin)
            acc = acc + jnp.dot(a.astype(compute_dtype),
                                w_ref[kh * K + kw].astype(compute_dtype),
                                preferred_element_type=jnp.float32)
    acc = acc + b_ref[...]
    acc = jnp.where(acc >= 0, acc, NEG_SLOPE * acc)         # LeakyReLU
    o_ref[0] = acc.astype(o_ref.dtype)


def _conv_tap_gemm_res_kernel(xh_ref, w_ref, b_ref, xs_ref, wc_ref, bc_ref, o_ref,
                              *, K, th, W, compute_dtype):
    Cin = w_ref.shape[1]
    Cout = w_ref.shape[2]
    Cs = wc_ref.shape[0]
    rows = th * W
    xt = xh_ref[0]
    acc = jnp.zeros((rows, Cout), jnp.float32)
    for kh in range(K):
        for kw in range(K):
            a = xt[kh:kh + th, kw:kw + W, :].reshape(rows, Cin)
            acc = acc + jnp.dot(a.astype(compute_dtype),
                                w_ref[kh * K + kw].astype(compute_dtype),
                                preferred_element_type=jnp.float32)
    acc = acc + b_ref[...]
    acc = jnp.where(acc >= 0, acc, NEG_SLOPE * acc)
    # fused 1x1 shortcut on the raw input tile (BN0 already folded into wc/bc)
    xs = xs_ref[0]                                          # (rows, Cs)
    acc = acc + jnp.dot(xs.astype(compute_dtype), wc_ref[...].astype(compute_dtype),
                        preferred_element_type=jnp.float32) + bc_ref[...]
    o_ref[0] = acc.astype(o_ref.dtype)


def conv3x3_lrelu_pallas(x_tiles, w_taps, bias, th, W, K,
                         shortcut=None, compute_dtype=jnp.float32):
    """x_tiles: (G, th+2p, W+2p, Cin) halo'd row tiles; returns (G, th*W, Cout)."""
    G, thh, Wp, Cin = x_tiles.shape
    KK, _, Cout = w_taps.shape
    b2 = bias.reshape(1, Cout).astype(jnp.float32)

    in_specs = [
        pl.BlockSpec((1, thh, Wp, Cin), lambda g: (g, 0, 0, 0)),
        pl.BlockSpec((KK, Cin, Cout), lambda g: (0, 0, 0)),
        pl.BlockSpec((1, Cout), lambda g: (0, 0)),
    ]
    args = [x_tiles, w_taps.astype(jnp.float32), b2]

    if shortcut is None:
        kernel = functools.partial(_conv_tap_gemm_kernel, K=K, th=th, W=W,
                                   compute_dtype=compute_dtype)
    else:
        xs_tiles, wc_mat, bc = shortcut                    # (G, th*W, Cs), (Cs, Cout), (Cout,)
        Cs = wc_mat.shape[0]
        in_specs += [
            pl.BlockSpec((1, th * W, Cs), lambda g: (g, 0, 0)),
            pl.BlockSpec((Cs, Cout), lambda g: (0, 0)),
            pl.BlockSpec((1, Cout), lambda g: (0, 0)),
        ]
        args += [xs_tiles, wc_mat.astype(jnp.float32),
                 bc.reshape(1, Cout).astype(jnp.float32)]
        kernel = functools.partial(_conv_tap_gemm_res_kernel, K=K, th=th, W=W,
                                   compute_dtype=compute_dtype)

    return pl.pallas_call(
        kernel,
        grid=(G,),
        out_shape=jax.ShapeDtypeStruct((G, th * W, Cout), jnp.float32),
        in_specs=in_specs,
        out_specs=pl.BlockSpec((1, th * W, Cout), lambda g: (g, 0, 0)),
        compiler_params=pltpu.CompilerParams(
            dimension_semantics=("parallel",),          # megacore-shardable on v7x
            vmem_limit_bytes=VMEM_LIMIT),
    )(*args)


# ----------------------------------------------------------------------------
# Glue: BN folding, halo-tile construction (all tiny weight-space / layout work)
# ----------------------------------------------------------------------------
def _bn_affine(stats, m, gamma, beta):
    mean = stats[0] / m
    var = stats[1] / m - mean * mean                       # biased var (torch train mode)
    scale = gamma * lax.rsqrt(var + BN_EPS)
    shift = beta - mean * scale
    return scale, shift


def _bn_pad_value(scale, shift):
    # per-channel value v with v*scale + shift == 0, so the BN-folded conv sees
    # exactly 0 at padded border pixels (same as the original zero-padded BN'd input)
    safe = jnp.where(scale == 0, 1.0, scale)
    return jnp.where(scale == 0, 0.0, -shift / safe)


def _fold_bn_into_conv(w_oikk, b_o, scale_ci, shift_ci):
    w_f = w_oikk * scale_ci[None, :, None, None]
    b_f = b_o + jnp.einsum("oikl,i->o", w_oikk, shift_ci)
    return w_f, b_f


def _conv_weight_to_taps(w_oikk):
    """(Cout, Cin, K, K) -> (K*K, Cin, Cout), tap index = kh*K + kw."""
    Cout, Cin, K, _ = w_oikk.shape
    return jnp.transpose(w_oikk, (2, 3, 1, 0)).reshape(K * K, Cin, Cout)


def _halo_row_tiles(x_nhwc, th, p, pad_val_c):
    """Pad spatially with a per-channel constant and gather overlapping row
    tiles: (N,H,W,C) -> (N*nH, th+2p, W+2p, C).  The 2p-row halo duplication
    (~(th+2p)/th HBM overhead) replaces the old K*K (=9x) im2col copy."""
    N, H, W, C = x_nhwc.shape
    nH = H // th
    base = jnp.broadcast_to(pad_val_c.astype(x_nhwc.dtype),
                            (N, H + 2 * p, W + 2 * p, C))
    xp = lax.dynamic_update_slice(base, x_nhwc, (0, p, p, 0))
    rows = jnp.arange(nH)[:, None] * th + jnp.arange(th + 2 * p)[None, :]
    tiles = xp[:, rows]                                    # (N, nH, th+2p, W+2p, C)
    return tiles.reshape(N * nH, th + 2 * p, W + 2 * p, C)


def _pick_h_tile(H, W, target_rows=2048):
    """Largest row-tile th dividing H with ~<=2048 GEMM rows per grid step."""
    th = max(1, min(H, target_rows // max(W, 1)))
    while H % th:
        th -= 1
    return th


# ----------------------------------------------------------------------------
# Full forward pass
# ----------------------------------------------------------------------------
def conv_res_block_forward(x_nchw, params, ksize, compute_dtype=jnp.float32):
    # compute_dtype=jnp.bfloat16 halves HBM/VMEM traffic of the MXU operands on
    # v6e/v7x (f32 accumulate + f32 epilogue are kept either way).
    N, Cin, H, W = x_nchw.shape
    Cout = params["w1"].shape[0]
    K = ksize
    p = (K - 1) // 2
    M = N * H * W

    x_nhwc = jnp.transpose(x_nchw, (0, 2, 3, 1)).astype(jnp.float32)

    th = _pick_h_tile(H, W)
    nH = H // th
    G = N * nH

    # ---- BN0 batch statistics (single-pass sum/sumsq Pallas reduction) ----
    scale0, shift0 = _bn_affine(bn_stats_pallas(x_nhwc.reshape(M, Cin)), M,
                                params["bn0_g"], params["bn0_b"])

    # ---- fold BN0 into conv1 and the 1x1 shortcut (weight-space, tiny) ----
    w1f, b1f = _fold_bn_into_conv(params["w1"], params["b1"], scale0, shift0)
    w1_taps = _conv_weight_to_taps(w1f)                    # (K*K, Cin, Cout)
    wc2d = params["wc"].reshape(Cout, Cin)
    wc_mat = (wc2d * scale0[None, :]).T                    # (Cin, Cout)
    bc_f = params["bc"] + wc2d @ shift0

    # ---- conv1 + LeakyReLU : implicit GEMM over halo'd row tiles ----
    x_tiles = _halo_row_tiles(x_nhwc, th, p, _bn_pad_value(scale0, shift0))
    y1 = conv3x3_lrelu_pallas(x_tiles, w1_taps, b1f, th, W, K,
                              compute_dtype=compute_dtype)  # (G, th*W, Cout)
    y1_nhwc = y1.reshape(N, H, W, Cout)

    # ---- BN1 batch statistics + fold into conv2 ----
    scale1, shift1 = _bn_affine(bn_stats_pallas(y1_nhwc.reshape(M, Cout)), M,
                                params["bn1_g"], params["bn1_b"])
    w2f, b2f = _fold_bn_into_conv(params["w2"], params["b2"], scale1, shift1)
    w2_taps = _conv_weight_to_taps(w2f)

    # ---- conv2 + LeakyReLU, fused 1x1 shortcut + residual add ----
    y1_tiles = _halo_row_tiles(y1_nhwc, th, p, _bn_pad_value(scale1, shift1))
    xs_tiles = x_nhwc.reshape(G, th * W, Cin)              # raw x for the shortcut
    out = conv3x3_lrelu_pallas(y1_tiles, w2_taps, b2f, th, W, K,
                               shortcut=(xs_tiles, wc_mat, bc_f),
                               compute_dtype=compute_dtype)  # (G, th*W, Cout)

    return jnp.transpose(out.reshape(N, H, W, Cout), (0, 3, 1, 2))  # back to NCHW


# ----------------------------------------------------------------------------
# Pure-JAX reference (for self-check)
# ----------------------------------------------------------------------------
def _ref_forward(x_nchw, params, ksize):
    def bn(x, g, b):   # x: NHWC, training-mode batch stats
        mean = x.mean(axis=(0, 1, 2), keepdims=True)
        var = ((x - mean) ** 2).mean(axis=(0, 1, 2), keepdims=True)
        return (x - mean) * lax.rsqrt(var + BN_EPS) * g + b

    def conv(x, w_oikk, b, pad):
        w = jnp.transpose(w_oikk, (2, 3, 1, 0))            # HWIO
        y = lax.conv_general_dilated(
            x, w, (1, 1), [(pad, pad), (pad, pad)],
            dimension_numbers=("NHWC", "HWIO", "NHWC"),
            precision=lax.Precision.HIGHEST)
        return y + b

    def lrelu(x):
        return jnp.where(x >= 0, x, NEG_SLOPE * x)

    p = (ksize - 1) // 2
    x = jnp.transpose(x_nchw, (0, 2, 3, 1))
    x = bn(x, params["bn0_g"], params["bn0_b"])
    y = lrelu(conv(x, params["w1"], params["b1"], p))
    y = bn(y, params["bn1_g"], params["bn1_b"])
    y = lrelu(conv(y, params["w2"], params["b2"], p))
    out = y + conv(x, params["wc"], params["bc"], 0)
    return jnp.transpose(out, (0, 3, 1, 2))


# ----------------------------------------------------------------------------
if __name__ == "__main__":
    N, Cin, Cout, H, W, K = 2, 4, 8, 16, 16, 3

    key = jax.random.PRNGKey(0)
    ks = jax.random.split(key, 12)

    x = jax.random.normal(ks[0], (N, Cin, H, W), jnp.float32)

    params = {
        # BatchNorm2d(in_channels)
        "bn0_g": 1.0 + 0.1 * jax.random.normal(ks[1], (Cin,), jnp.float32),
        "bn0_b": 0.1 * jax.random.normal(ks[2], (Cin,), jnp.float32),
        # Conv2d(in, out, 3, 1, 1)
        "w1": 0.1 * jax.random.normal(ks[3], (Cout, Cin, K, K), jnp.float32),
        "b1": 0.1 * jax.random.normal(ks[4], (Cout,), jnp.float32),
        # BatchNorm2d(out_channels)
        "bn1_g": 1.0 + 0.1 * jax.random.normal(ks[5], (Cout,), jnp.float32),
        "bn1_b": 0.1 * jax.random.normal(ks[6], (Cout,), jnp.float32),
        # Conv2d(out, out, 3, 1, 1)
        "w2": 0.1 * jax.random.normal(ks[7], (Cout, Cout, K, K), jnp.float32),
        "b2": 0.1 * jax.random.normal(ks[8], (Cout,), jnp.float32),
        # shortcut Conv2d(in, out, 1, 1, 0)
        "wc": 0.1 * jax.random.normal(ks[9], (Cout, Cin, 1, 1), jnp.float32),
        "bc": 0.1 * jax.random.normal(ks[10], (Cout,), jnp.float32),
    }
    # TODO(synk): BatchNorm running_mean/running_var (momentum) buffer updates are
    # training-side state mutation, not part of the forward output.

    fwd = jax.jit(functools.partial(conv_res_block_forward, ksize=K))
    out = jax.block_until_ready(fwd(x, params))
    ref = jax.block_until_ready(_ref_forward(x, params, K))

    assert out.shape == (N, Cout, H, W), out.shape
    assert jnp.allclose(out, ref, rtol=1e-2, atol=1e-2), float(
        jnp.max(jnp.abs(out - ref)))

    print("KERNEL_OK")
</pallas_src>

<mosaic_0001>
module attributes {stable_mosaic.version = 11 : i64} {
  func.func @_bn_stats_kernel(%arg0: i32, %arg1: memref<512x4xf32, #tpu.memory_space<vmem>>, %arg2: memref<2x4xf32, #tpu.memory_space<vmem>>, %arg3: memref<2x4xf32, #tpu.memory_space<vmem>>) attributes {dimension_semantics = [#tpu.dimension_semantics<arbitrary>], iteration_bounds = array<i64: 1>, scalar_prefetch = 0 : i64, scratch_operands = 1 : i64, tpu.core_type = #tpu.core_type<tc>, window_params = [{transform_indices = @transform_0, window_bounds = array<i64: 512, 4>}, {pipeline_mode = #tpu.pipeline_mode<synchronous>, transform_indices = @transform_1, window_bounds = array<i64: 2, 4>}]} {
    %c0_i32 = arith.constant 0 : i32
    %0 = arith.cmpi eq, %arg0, %c0_i32 : i32
    %1 = arith.extui %0 : i1 to i32
    %c0_i32_0 = arith.constant 0 : i32
    %2 = arith.cmpi ne, %1, %c0_i32_0 : i32
    scf.if %2 {
      %cst_12 = arith.constant 0.000000e+00 : f32
      %18 = vector.broadcast %cst_12 : f32 to vector<2x4xf32>
      %c0_13 = arith.constant 0 : index
      %c0_14 = arith.constant 0 : index
      %19 = vector.load %arg3[%c0_13, %c0_14] : memref<2x4xf32, #tpu.memory_space<vmem>>, vector<2x4xf32>
      tpu.vector_store %arg3[%c0_13, %c0_14], %18 {strides = array<i32>} : memref<2x4xf32, #tpu.memory_space<vmem>>, vector<2x4xf32>,
    } else {
    }
    %c0 = arith.constant 0 : index
    %c0_1 = arith.constant 0 : index
    %3 = vector.load %arg1[%c0, %c0_1] : memref<512x4xf32, #tpu.memory_space<vmem>>, vector<512x4xf32>
    %c0_2 = arith.constant 0 : index
    %c0_3 = arith.constant 0 : index
    %4 = vector.load %arg3[%c0_2, %c0_3] : memref<2x4xf32, #tpu.memory_space<vmem>>, vector<1x4xf32>
    %cst = arith.constant dense<0.000000e+00> : vector<4xf32>
    %5 = vector.multi_reduction <add>, %3, %cst [0] : vector<512x4xf32> to vector<4xf32>
    %6 = vector.shape_cast %5 : vector<4xf32> to vector<1x4xf32>
    %7 = arith.addf %4, %6 : vector<1x4xf32>
    %c0_4 = arith.constant 0 : index
    %c0_5 = arith.constant 0 : index
    %8 = vector.load %arg3[%c0_4, %c0_5] : memref<2x4xf32, #tpu.memory_space<vmem>>, vector<1x4xf32>
    tpu.vector_store %arg3[%c0_4, %c0_5], %7 {strides = array<i32>} : memref<2x4xf32, #tpu.memory_space<vmem>>, vector<1x4xf32>,
    %c1 = arith.constant 1 : index
    %c0_6 = arith.constant 0 : index
    %9 = vector.load %arg3[%c1, %c0_6] : memref<2x4xf32, #tpu.memory_space<vmem>>, vector<1x4xf32>
    %10 = arith.mulf %3, %3 : vector<512x4xf32>
    %cst_7 = arith.constant dense<0.000000e+00> : vector<4xf32>
    %11 = vector.multi_reduction <add>, %10, %cst_7 [0] : vector<512x4xf32> to vector<4xf32>
    %12 = vector.shape_cast %11 : vector<4xf32> to vector<1x4xf32>
    %13 = arith.addf %9, %12 : vector<1x4xf32>
    %c1_8 = arith.constant 1 : index
    %c0_9 = arith.constant 0 : index
    %14 = vector.load %arg3[%c1_8, %c0_9] : memref<2x4xf32, #tpu.memory_space<vmem>>, vector<1x4xf32>
    tpu.vector_store %arg3[%c1_8, %c0_9], %13 {strides = array<i32>} : memref<2x4xf32, #tpu.memory_space<vmem>>, vector<1x4xf32>,
    %c0_i32_10 = arith.constant 0 : i32
    %15 = arith.cmpi eq, %arg0, %c0_i32_10 : i32
    %16 = arith.extui %15 : i1 to i32
    %c0_i32_11 = arith.constant 0 : i32
    %17 = arith.cmpi ne, %16, %c0_i32_11 : i32
    scf.if %17 {
      %c0_12 = arith.constant 0 : index
      %c0_13 = arith.constant 0 : index
      %18 = vector.load %arg3[%c0_12, %c0_13] : memref<2x4xf32, #tpu.memory_space<vmem>>, vector<2x4xf32>
      %c0_14 = arith.constant 0 : index
      %c0_15 = arith.constant 0 : index
      %19 = vector.load %arg2[%c0_14, %c0_15] : memref<2x4xf32, #tpu.memory_space<vmem>>, vector<2x4xf32>
      tpu.vector_store %arg2[%c0_14, %c0_15], %18 {strides = array<i32>} : memref<2x4xf32, #tpu.memory_space<vmem>>, vector<2x4xf32>,
    } else {
    }
    return
  }
  func.func @transform_0(%arg0: i32) -> (i32, i32) {
    %c0_i32 = arith.constant 0 : i32
    %c0_i32_0 = arith.constant 0 : i32
    return %arg0, %c0_i32 : i32, i32
  }
  func.func @transform_1(%arg0: i32) -> (i32, i32) {
    %c0_i32 = arith.constant 0 : i32
    %c0_i32_0 = arith.constant 0 : i32
    %c0_i32_1 = arith.constant 0 : i32
    return %c0_i32, %c0_i32_0 : i32, i32
  }
}

module attributes {stable_mosaic.version = 11 : i64} {
  func.func @_conv_tap_gemm_kernel(%arg0: i32, %arg1: memref<1x18x18x4xf32, #tpu.memory_space<vmem>>, %arg2: memref<9x4x8xf32, #tpu.memory_space<vmem>>, %arg3: memref<1x8xf32, #tpu.memory_space<vmem>>, %arg4: memref<1x256x8xf32, #tpu.memory_space<vmem>>) attributes {dimension_semantics = [#tpu.dimension_semantics<parallel>], iteration_bounds = array<i64: 2>, scalar_prefetch = 0 : i64, scratch_operands = 0 : i64, tpu.core_type = #tpu.core_type<tc>, window_params = [{transform_indices = @transform_0, window_bounds = array<i64: 1, 18, 18, 4>}, {pipeline_mode = #tpu.pipeline_mode<synchronous>, transform_indices = @transform_1, window_bounds = array<i64: 9, 4, 8>}, {pipeline_mode = #tpu.pipeline_mode<synchronous>, transform_indices = @transform_2, window_bounds = array<i64: 1, 8>}, {transform_indices = @transform_3, window_bounds = array<i64: 1, 256, 8>}]} {
    %c0 = arith.constant 0 : index
    %c0_0 = arith.constant 0 : index
    %c0_1 = arith.constant 0 : index
    %c0_2 = arith.constant 0 : index
    %0 = vector.load %arg1[%c0, %c0_0, %c0_1, %c0_2] : memref<1x18x18x4xf32, #tpu.memory_space<vmem>>, vector<1x18x18x4xf32>
    %1 = vector.shape_cast %0 : vector<1x18x18x4xf32> to vector<18x18x4xf32>
    %cst = arith.constant 0.000000e+00 : f32
    %2 = vector.broadcast %cst : f32 to vector<256x8xf32>
    %3 = vector.extract_strided_slice %1 {offsets = [0, 0, 0], sizes = [16, 16, 4], strides = [1, 1, 1]} : vector<18x18x4xf32> to vector<16x16x4xf32>
    %4 = vector.shape_cast %3 : vector<16x16x4xf32> to vector<256x4xf32>
    %c0_3 = arith.constant 0 : index
    %c0_4 = arith.constant 0 : index
    %c0_5 = arith.constant 0 : index
    %5 = vector.load %arg2[%c0_3, %c0_4, %c0_5] : memref<9x4x8xf32, #tpu.memory_space<vmem>>, vector<1x4x8xf32>
    %6 = vector.shape_cast %5 : vector<1x4x8xf32> to vector<4x8xf32>
    %cst_6 = arith.constant dense<0.000000e+00> : vector<256x8xf32>
    %7 = tpu.matmul %4, %6, %cst_6 {dimension_numbers = #tpu.dot_dimension_numbers<[1], [0], [0], [1], [0, 0, 1, 1], [], []>} : vector<256x4xf32>, vector<4x8xf32>, vector<256x8xf32> -> vector<256x8xf32>
    %8 = arith.addf %2, %7 : vector<256x8xf32>
    %9 = vector.extract_strided_slice %1 {offsets = [0, 1, 0], sizes = [16, 16, 4], strides = [1, 1, 1]} : vector<18x18x4xf32> to vector<16x16x4xf32>
    %10 = vector.shape_cast %9 : vector<16x16x4xf32> to vector<256x4xf32>
    %c1 = arith.constant 1 : index
    %c0_7 = arith.constant 0 : index
    %c0_8 = arith.constant 0 : index
    %11 = vector.load %arg2[%c1, %c0_7, %c0_8] : memref<9x4x8xf32, #tpu.memory_space<vmem>>, vector<1x4x8xf32>
    %12 = vector.shape_cast %11 : vector<1x4x8xf32> to vector<4x8xf32>
    %cst_9 = arith.constant dense<0.000000e+00> : vector<256x8xf32>
    %13 = tpu.matmul %10, %12, %cst_9 {dimension_numbers = #tpu.dot_dimension_numbers<[1], [0], [0], [1], [0, 0, 1, 1], [], []>} : vector<256x4xf32>, vector<4x8xf32>, vector<256x8xf32> -> vector<256x8xf32>
    %14 = arith.addf %8, %13 : vector<256x8xf32>
    %15 = vector.extract_strided_slice %1 {offsets = [0, 2, 0], sizes = [16, 16, 4], strides = [1, 1, 1]} : vector<18x18x4xf32> to vector<16x16x4xf32>
    %16 = vector.shape_cast %15 : vector<16x16x4xf32> to vector<256x4xf32>
    %c2 = arith.constant 2 : index
    %c0_10 = arith.constant 0 : index
    %c0_11 = arith.constant 0 : index
    %17 = vector.load %arg2[%c2, %c0_10, %c0_11] : memref<9x4x8xf32, #tpu.memory_space<vmem>>, vector<1x4x8xf32>
    %18 = vector.shape_cast %17 : vector<1x4x8xf32> to vector<4x8xf32>
    %cst_12 = arith.constant dense<0.000000e+00> : vector<256x8xf32>
    %19 = tpu.matmul %16, %18, %cst_12 {dimension_numbers = #tpu.dot_dimension_numbers<[1], [0], [0], [1], [0, 0, 1, 1], [], []>} : vector<256x4xf32>, vector<4x8xf32>, vector<256x8xf32> -> vector<256x8xf32>
    %20 = arith.addf %14, %19 : vector<256x8xf32>
    %21 = vector.extract_strided_slice %1 {offsets = [1, 0, 0], sizes = [16, 16, 4], strides = [1, 1, 1]} : vector<18x18x4xf32> to vector<16x16x4xf32>
    %22 = vector.shape_cast %21 : vector<16x16x4xf32> to vector<256x4xf32>
    %c3 = arith.constant 3 : index
    %c0_13 = arith.constant 0 : index
    %c0_14 = arith.constant 0 : index
    %23 = vector.load %arg2[%c3, %c0_13, %c0_14] : memref<9x4x8xf32, #tpu.memory_space<vmem>>, vector<1x4x8xf32>
    %24 = vector.shape_cast %23 : vector<1x4x8xf32> to vector<4x8xf32>
    %cst_15 = arith.constant dense<0.000000e+00> : vector<256x8xf32>
    %25 = tpu.matmul %22, %24, %cst_15 {dimension_numbers = #tpu.dot_dimension_numbers<[1], [0], [0], [1], [0, 0, 1, 1], [], []>} : vector<256x4xf32>, vector<4x8xf32>, vector<256x8xf32> -> vector<256x8xf32>
    %26 = arith.addf %20, %25 : vector<256x8xf32>
    %27 = vector.extract_strided_slice %1 {offsets = [1, 1, 0], sizes = [16, 16, 4], strides = [1, 1, 1]} : vector<18x18x4xf32> to vector<16x16x4xf32>
    %28 = vector.shape_cast %27 : vector<16x16x4xf32> to vector<256x4xf32>
    %c4 = arith.constant 4 : index
    %c0_16 = arith.constant 0 : index
    %c0_17 = arith.constant 0 : index
    %29 = vector.load %arg2[%c4, %c0_16, %c0_17] : memref<9x4x8xf32, #tpu.memory_space<vmem>>, vector<1x4x8xf32>
    %30 = vector.shape_cast %29 : vector<1x4x8xf32> to vector<4x8xf32>
    %cst_18 = arith.constant dense<0.000000e+00> : vector<256x8xf32>
    %31 = tpu.matmul %28, %30, %cst_18 {dimension_numbers = #tpu.dot_dimension_numbers<[1], [0], [0], [1], [0, 0, 1, 1], [], []>} : vector<256x4xf32>, vector<4x8xf32>, vector<256x8xf32> -> vector<256x8xf32>
    %32 = arith.addf %26, %31 : vector<256x8xf32>
    %33 = vector.extract_strided_slice %1 {offsets = [1, 2, 0], sizes = [16, 16, 4], strides = [1, 1, 1]} : vector<18x18x4xf32> to vector<16x16x4xf32>
    %34 = vector.shape_cast %33 : vector<16x16x4xf32> to vector<256x4xf32>
    %c5 = arith.constant 5 : index
    %c0_19 = arith.constant 0 : index
    %c0_20 = arith.constant 0 : index
    %35 = vector.load %arg2[%c5, %c0_19, %c0_20] : memref<9x4x8xf32, #tpu.memory_space<vmem>>, vector<1x4x8xf32>
    %36 = vector.shape_cast %35 : vector<1x4x8xf32> to vector<4x8xf32>
    %cst_21 = arith.constant dense<0.000000e+00> : vector<256x8xf32>
    %37 = tpu.matmul %34, %36, %cst_21 {dimension_numbers = #tpu.dot_dimension_numbers<[1], [0], [0], [1], [0, 0, 1, 1], [], []>} : vector<256x4xf32>, vector<4x8xf32>, vector<256x8xf32> -> vector<256x8xf32>
    %38 = arith.addf %32, %37 : vector<256x8xf32>
    %39 = vector.extract_strided_slice %1 {offsets = [2, 0, 0], sizes = [16, 16, 4], strides = [1, 1, 1]} : vector<18x18x4xf32> to vector<16x16x4xf32>
    %40 = vector.shape_cast %39 : vector<16x16x4xf32> to vector<256x4xf32>
    %c6 = arith.constant 6 : index
    %c0_22 = arith.constant 0 : index
    %c0_23 = arith.constant 0 : index
    %41 = vector.load %arg2[%c6, %c0_22, %c0_23] : memref<9x4x8xf32, #tpu.memory_space<vmem>>, vector<1x4x8xf32>
    %42 = vector.shape_cast %41 : vector<1x4x8xf32> to vector<4x8xf32>
    %cst_24 = arith.constant dense<0.000000e+00> : vector<256x8xf32>
    %43 = tpu.matmul %40, %42, %cst_24 {dimension_numbers = #tpu.dot_dimension_numbers<[1], [0], [0], [1], [0, 0, 1, 1], [], []>} : vector<256x4xf32>, vector<4x8xf32>, vector<256x8xf32> -> vector<256x8xf32>
    %44 = arith.addf %38, %43 : vector<256x8xf32>
    %45 = vector.extract_strided_slice %1 {offsets = [2, 1, 0], sizes = [16, 16, 4], strides = [1, 1, 1]} : vector<18x18x4xf32> to vector<16x16x4xf32>
    %46 = vector.shape_cast %45 : vector<16x16x4xf32> to vector<256x4xf32>
    %c7 = arith.constant 7 : index
    %c0_25 = arith.constant 0 : index
    %c0_26 = arith.constant 0 : index
    %47 = vector.load %arg2[%c7, %c0_25, %c0_26] : memref<9x4x8xf32, #tpu.memory_space<vmem>>, vector<1x4x8xf32>
    %48 = vector.shape_cast %47 : vector<1x4x8xf32> to vector<4x8xf32>
    %cst_27 = arith.constant dense<0.000000e+00> : vector<256x8xf32>
    %49 = tpu.matmul %46, %48, %cst_27 {dimension_numbers = #tpu.dot_dimension_numbers<[1], [0], [0], [1], [0, 0, 1, 1], [], []>} : vector<256x4xf32>, vector<4x8xf32>, vector<256x8xf32> -> vector<256x8xf32>
    %50 = arith.addf %44, %49 : vector<256x8xf32>
    %51 = vector.extract_strided_slice %1 {offsets = [2, 2, 0], sizes = [16, 16, 4], strides = [1, 1, 1]} : vector<18x18x4xf32> to vector<16x16x4xf32>
    %52 = vector.shape_cast %51 : vector<16x16x4xf32> to vector<256x4xf32>
    %c8 = arith.constant 8 : index
    %c0_28 = arith.constant 0 : index
    %c0_29 = arith.constant 0 : index
    %53 = vector.load %arg2[%c8, %c0_28, %c0_29] : memref<9x4x8xf32, #tpu.memory_space<vmem>>, vector<1x4x8xf32>
    %54 = vector.shape_cast %53 : vector<1x4x8xf32> to vector<4x8xf32>
    %cst_30 = arith.constant dense<0.000000e+00> : vector<256x8xf32>
    %55 = tpu.matmul %52, %54, %cst_30 {dimension_numbers = #tpu.dot_dimension_numbers<[1], [0], [0], [1], [0, 0, 1, 1], [], []>} : vector<256x4xf32>, vector<4x8xf32>, vector<256x8xf32> -> vector<256x8xf32>
    %56 = arith.addf %50, %55 : vector<256x8xf32>
    %c0_31 = arith.constant 0 : index
    %c0_32 = arith.constant 0 : index
    %57 = vector.load %arg3[%c0_31, %c0_32] : memref<1x8xf32, #tpu.memory_space<vmem>>, vector<1x8xf32>
    %58 = vector.broadcast %57 : vector<1x8xf32> to vector<256x8xf32>
    %59 = arith.addf %56, %58 : vector<256x8xf32>
    %cst_33 = arith.constant 0.000000e+00 : f32
    %60 = vector.broadcast %cst_33 : f32 to vector<256x8xf32>
    %61 = arith.cmpf oge, %59, %60 : vector<256x8xf32>
    %cst_34 = arith.constant 0.00999999977 : f32
    %62 = vector.broadcast %cst_34 : f32 to vector<256x8xf32>
    %63 = arith.mulf %62, %59 : vector<256x8xf32>
    %64 = arith.select %61, %59, %63 : vector<256x8xi1>, vector<256x8xf32>
    %c0_35 = arith.constant 0 : index
    %c0_36 = arith.constant 0 : index
    %c0_37 = arith.constant 0 : index
    %65 = vector.load %arg4[%c0_35, %c0_36, %c0_37] : memref<1x256x8xf32, #tpu.memory_space<vmem>>, vector<1x256x8xf32>
    %66 = vector.shape_cast %65 : vector<1x256x8xf32> to vector<256x8xf32>
    %67 = vector.shape_cast %64 : vector<256x8xf32> to vector<1x256x8xf32>
    tpu.vector_store %arg4[%c0_35, %c0_36, %c0_37], %67 {strides = array<i32>} : memref<1x256x8xf32, #tpu.memory_space<vmem>>, vector<1x256x8xf32>,
    return
  }
  func.func @transform_0(%arg0: i32) -> (i32, i32, i32, i32) {
    %c0_i32 = arith.constant 0 : i32
    %c0_i32_0 = arith.constant 0 : i32
    %c0_i32_1 = arith.constant 0 : i32
    %c0_i32_2 = arith.constant 0 : i32
    return %arg0, %c0_i32, %c0_i32_0, %c0_i32_1 : i32, i32, i32, i32
  }
  func.func @transform_1(%arg0: i32) -> (i32, i32, i32) {
    %c0_i32 = arith.constant 0 : i32
    %c0_i32_0 = arith.constant 0 : i32
    %c0_i32_1 = arith.constant 0 : i32
    %c0_i32_2 = arith.constant 0 : i32
    return %c0_i32, %c0_i32_0, %c0_i32_1 : i32, i32, i32
  }
  func.func @transform_2(%arg0: i32) -> (i32, i32) {
    %c0_i32 = arith.constant 0 : i32
    %c0_i32_0 = arith.constant 0 : i32
    %c0_i32_1 = arith.constant 0 : i32
    return %c0_i32, %c0_i32_0 : i32, i32
  }
  func.func @transform_3(%arg0: i32) -> (i32, i32, i32) {
    %c0_i32 = arith.constant 0 : i32
    %c0_i32_0 = arith.constant 0 : i32
    %c0_i32_1 = arith.constant 0 : i32
    return %arg0, %c0_i32, %c0_i32_0 : i32, i32, i32
  }
}

module attributes {stable_mosaic.version = 11 : i64} {
  func.func @_bn_stats_kernel(%arg0: i32, %arg1: memref<512x8xf32, #tpu.memory_space<vmem>>, %arg2: memref<2x8xf32, #tpu.memory_space<vmem>>, %arg3: memref<2x8xf32, #tpu.memory_space<vmem>>) attributes {dimension_semantics = [#tpu.dimension_semantics<arbitrary>], iteration_bounds = array<i64: 1>, scalar_prefetch = 0 : i64, scratch_operands = 1 : i64, tpu.core_type = #tpu.core_type<tc>, window_params = [{transform_indices = @transform_0, window_bounds = array<i64: 512, 8>}, {pipeline_mode = #tpu.pipeline_mode<synchronous>, transform_indices = @transform_1, window_bounds = array<i64: 2, 8>}]} {
    %c0_i32 = arith.constant 0 : i32
    %0 = arith.cmpi eq, %arg0, %c0_i32 : i32
    %1 = arith.extui %0 : i1 to i32
    %c0_i32_0 = arith.constant 0 : i32
    %2 = arith.cmpi ne, %1, %c0_i32_0 : i32
    scf.if %2 {
      %cst_12 = arith.constant 0.000000e+00 : f32
      %18 = vector.broadcast %cst_12 : f32 to vector<2x8xf32>
      %c0_13 = arith.constant 0 : index
      %c0_14 = arith.constant 0 : index
      %19 = vector.load %arg3[%c0_13, %c0_14] : memref<2x8xf32, #tpu.memory_space<vmem>>, vector<2x8xf32>
      tpu.vector_store %arg3[%c0_13, %c0_14], %18 {strides = array<i32>} : memref<2x8xf32, #tpu.memory_space<vmem>>, vector<2x8xf32>,
    } else {
    }
    %c0 = arith.constant 0 : index
    %c0_1 = arith.constant 0 : index
    %3 = vector.load %arg1[%c0, %c0_1] : memref<512x8xf32, #tpu.memory_space<vmem>>, vector<512x8xf32>
    %c0_2 = arith.constant 0 : index
    %c0_3 = arith.constant 0 : index
    %4 = vector.load %arg3[%c0_2, %c0_3] : memref<2x8xf32, #tpu.memory_space<vmem>>, vector<1x8xf32>
    %cst = arith.constant dense<0.000000e+00> : vector<8xf32>
    %5 = vector.multi_reduction <add>, %3, %cst [0] : vector<512x8xf32> to vector<8xf32>
    %6 = vector.shape_cast %5 : vector<8xf32> to vector<1x8xf32>
    %7 = arith.addf %4, %6 : vector<1x8xf32>
    %c0_4 = arith.constant 0 : index
    %c0_5 = arith.constant 0 : index
    %8 = vector.load %arg3[%c0_4, %c0_5] : memref<2x8xf32, #tpu.memory_space<vmem>>, vector<1x8xf32>
    tpu.vector_store %arg3[%c0_4, %c0_5], %7 {strides = array<i32>} : memref<2x8xf32, #tpu.memory_space<vmem>>, vector<1x8xf32>,
    %c1 = arith.constant 1 : index
    %c0_6 = arith.constant 0 : index
    %9 = vector.load %arg3[%c1, %c0_6] : memref<2x8xf32, #tpu.memory_space<vmem>>, vector<1x8xf32>
    %10 = arith.mulf %3, %3 : vector<512x8xf32>
    %cst_7 = arith.constant dense<0.000000e+00> : vector<8xf32>
    %11 = vector.multi_reduction <add>, %10, %cst_7 [0] : vector<512x8xf32> to vector<8xf32>
    %12 = vector.shape_cast %11 : vector<8xf32> to vector<1x8xf32>
    %13 = arith.addf %9, %12 : vector<1x8xf32>
    %c1_8 = arith.constant 1 : index
    %c0_9 = arith.constant 0 : index
    %14 = vector.load %arg3[%c1_8, %c0_9] : memref<2x8xf32, #tpu.memory_space<vmem>>, vector<1x8xf32>
    tpu.vector_store %arg3[%c1_8, %c0_9], %13 {strides = array<i32>} : memref<2x8xf32, #tpu.memory_space<vmem>>, vector<1x8xf32>,
    %c0_i32_10 = arith.constant 0 : i32
    %15 = arith.cmpi eq, %arg0, %c0_i32_10 : i32
    %16 = arith.extui %15 : i1 to i32
    %c0_i32_11 = arith.constant 0 : i32
    %17 = arith.cmpi ne, %16, %c0_i32_11 : i32
    scf.if %17 {
      %c0_12 = arith.constant 0 : index
      %c0_13 = arith.constant 0 : index
      %18 = vector.load %arg3[%c0_12, %c0_13] : memref<2x8xf32, #tpu.memory_space<vmem>>, vector<2x8xf32>
      %c0_14 = arith.constant 0 : index
      %c0_15 = arith.constant 0 : index
      %19 = vector.load %arg2[%c0_14, %c0_15] : memref<2x8xf32, #tpu.memory_space<vmem>>, vector<2x8xf32>
      tpu.vector_store %arg2[%c0_14, %c0_15], %18 {strides = array<i32>} : memref<2x8xf32, #tpu.memory_space<vmem>>, vector<2x8xf32>,
    } else {
    }
    return
  }
  func.func @transform_0(%arg0: i32) -> (i32, i32) {
    %c0_i32 = arith.constant 0 : i32
    %c0_i32_0 = arith.constant 0 : i32
    return %arg0, %c0_i32 : i32, i32
  }
  func.func @transform_1(%arg0: i32) -> (i32, i32) {
    %c0_i32 = arith.constant 0 : i32
    %c0_i32_0 = arith.constant 0 : i32
    %c0_i32_1 = arith.constant 0 : i32
    return %c0_i32, %c0_i32_0 : i32, i32
  }
}

module attributes {stable_mosaic.version = 11 : i64} {
  func.func @_conv_tap_gemm_res_kernel(%arg0: i32, %arg1: memref<1x18x18x8xf32, #tpu.memory_space<vmem>>, %arg2: memref<9x8x8xf32, #tpu.memory_space<vmem>>, %arg3: memref<1x8xf32, #tpu.memory_space<vmem>>, %arg4: memref<1x256x4xf32, #tpu.memory_space<vmem>>, %arg5: memref<4x8xf32, #tpu.memory_space<vmem>>, %arg6: memref<1x8xf32, #tpu.memory_space<vmem>>, %arg7: memref<1x256x8xf32, #tpu.memory_space<vmem>>) attributes {dimension_semantics = [#tpu.dimension_semantics<parallel>], iteration_bounds = array<i64: 2>, scalar_prefetch = 0 : i64, scratch_operands = 0 : i64, tpu.core_type = #tpu.core_type<tc>, window_params = [{transform_indices = @transform_0, window_bounds = array<i64: 1, 18, 18, 8>}, {pipeline_mode = #tpu.pipeline_mode<synchronous>, transform_indices = @transform_1, window_bounds = array<i64: 9, 8, 8>}, {pipeline_mode = #tpu.pipeline_mode<synchronous>, transform_indices = @transform_2, window_bounds = array<i64: 1, 8>}, {transform_indices = @transform_3, window_bounds = array<i64: 1, 256, 4>}, {pipeline_mode = #tpu.pipeline_mode<synchronous>, transform_indices = @transform_4, window_bounds = array<i64: 4, 8>}, {pipeline_mode = #tpu.pipeline_mode<synchronous>, transform_indices = @transform_5, window_bounds = array<i64: 1, 8>}, {transform_indices = @transform_6, window_bounds = array<i64: 1, 256, 8>}]} {
    %c0 = arith.constant 0 : index
    %c0_0 = arith.constant 0 : index
    %c0_1 = arith.constant 0 : index
    %c0_2 = arith.constant 0 : index
    %0 = vector.load %arg1[%c0, %c0_0, %c0_1, %c0_2] : memref<1x18x18x8xf32, #tpu.memory_space<vmem>>, vector<1x18x18x8xf32>
    %1 = vector.shape_cast %0 : vector<1x18x18x8xf32> to vector<18x18x8xf32>
    %cst = arith.constant 0.000000e+00 : f32
    %2 = vector.broadcast %cst : f32 to vector<256x8xf32>
    %3 = vector.extract_strided_slice %1 {offsets = [0, 0, 0], sizes = [16, 16, 8], strides = [1, 1, 1]} : vector<18x18x8xf32> to vector<16x16x8xf32>
    %4 = vector.shape_cast %3 : vector<16x16x8xf32> to vector<256x8xf32>
    %c0_3 = arith.constant 0 : index
    %c0_4 = arith.constant 0 : index
    %c0_5 = arith.constant 0 : index
    %5 = vector.load %arg2[%c0_3, %c0_4, %c0_5] : memref<9x8x8xf32, #tpu.memory_space<vmem>>, vector<1x8x8xf32>
    %6 = vector.shape_cast %5 : vector<1x8x8xf32> to vector<8x8xf32>
    %cst_6 = arith.constant dense<0.000000e+00> : vector<256x8xf32>
    %7 = tpu.matmul %4, %6, %cst_6 {dimension_numbers = #tpu.dot_dimension_numbers<[1], [0], [0], [1], [0, 0, 1, 1], [], []>} : vector<256x8xf32>, vector<8x8xf32>, vector<256x8xf32> -> vector<256x8xf32>
    %8 = arith.addf %2, %7 : vector<256x8xf32>
    %9 = vector.extract_strided_slice %1 {offsets = [0, 1, 0], sizes = [16, 16, 8], strides = [1, 1, 1]} : vector<18x18x8xf32> to vector<16x16x8xf32>
    %10 = vector.shape_cast %9 : vector<16x16x8xf32> to vector<256x8xf32>
    %c1 = arith.constant 1 : index
    %c0_7 = arith.constant 0 : index
    %c0_8 = arith.constant 0 : index
    %11 = vector.load %arg2[%c1, %c0_7, %c0_8] : memref<9x8x8xf32, #tpu.memory_space<vmem>>, vector<1x8x8xf32>
    %12 = vector.shape_cast %11 : vector<1x8x8xf32> to vector<8x8xf32>
    %cst_9 = arith.constant dense<0.000000e+00> : vector<256x8xf32>
    %13 = tpu.matmul %10, %12, %cst_9 {dimension_numbers = #tpu.dot_dimension_numbers<[1], [0], [0], [1], [0, 0, 1, 1], [], []>} : vector<256x8xf32>, vector<8x8xf32>, vector<256x8xf32> -> vector<256x8xf32>
    %14 = arith.addf %8, %13 : vector<256x8xf32>
    %15 = vector.extract_strided_slice %1 {offsets = [0, 2, 0], sizes = [16, 16, 8], strides = [1, 1, 1]} : vector<18x18x8xf32> to vector<16x16x8xf32>
    %16 = vector.shape_cast %15 : vector<16x16x8xf32> to vector<256x8xf32>
    %c2 = arith.constant 2 : index
    %c0_10 = arith.constant 0 : index
    %c0_11 = arith.constant 0 : index
    %17 = vector.load %arg2[%c2, %c0_10, %c0_11] : memref<9x8x8xf32, #tpu.memory_space<vmem>>, vector<1x8x8xf32>
    %18 = vector.shape_cast %17 : vector<1x8x8xf32> to vector<8x8xf32>
    %cst_12 = arith.constant dense<0.000000e+00> : vector<256x8xf32>
    %19 = tpu.matmul %16, %18, %cst_12 {dimension_numbers = #tpu.dot_dimension_numbers<[1], [0], [0], [1], [0, 0, 1, 1], [], []>} : vector<256x8xf32>, vector<8x8xf32>, vector<256x8xf32> -> vector<256x8xf32>
    %20 = arith.addf %14, %19 : vector<256x8xf32>
    %21 = vector.extract_strided_slice %1 {offsets = [1, 0, 0], sizes = [16, 16, 8], strides = [1, 1, 1]} : vector<18x18x8xf32> to vector<16x16x8xf32>
    %22 = vector.shape_cast %21 : vector<16x16x8xf32> to vector<256x8xf32>
    %c3 = arith.constant 3 : index
    %c0_13 = arith.constant 0 : index
    %c0_14 = arith.constant 0 : index
    %23 = vector.load %arg2[%c3, %c0_13, %c0_14] : memref<9x8x8xf32, #tpu.memory_space<vmem>>, vector<1x8x8xf32>
    %24 = vector.shape_cast %23 : vector<1x8x8xf32> to vector<8x8xf32>
    %cst_15 = arith.constant dense<0.000000e+00> : vector<256x8xf32>
    %25 = tpu.matmul %22, %24, %cst_15 {dimension_numbers = #tpu.dot_dimension_numbers<[1], [0], [0], [1], [0, 0, 1, 1], [], []>} : vector<256x8xf32>, vector<8x8xf32>, vector<256x8xf32> -> vector<256x8xf32>
    %26 = arith.addf %20, %25 : vector<256x8xf32>
    %27 = vector.extract_strided_slice %1 {offsets = [1, 1, 0], sizes = [16, 16, 8], strides = [1, 1, 1]} : vector<18x18x8xf32> to vector<16x16x8xf32>
    %28 = vector.shape_cast %27 : vector<16x16x8xf32> to vector<256x8xf32>
    %c4 = arith.constant 4 : index
    %c0_16 = arith.constant 0 : index
    %c0_17 = arith.constant 0 : index
    %29 = vector.load %arg2[%c4, %c0_16, %c0_17] : memref<9x8x8xf32, #tpu.memory_space<vmem>>, vector<1x8x8xf32>
    %30 = vector.shape_cast %29 : vector<1x8x8xf32> to vector<8x8xf32>
    %cst_18 = arith.constant dense<0.000000e+00> : vector<256x8xf32>
    %31 = tpu.matmul %28, %30, %cst_18 {dimension_numbers = #tpu.dot_dimension_numbers<[1], [0], [0], [1], [0, 0, 1, 1], [], []>} : vector<256x8xf32>, vector<8x8xf32>, vector<256x8xf32> -> vector<256x8xf32>
    %32 = arith.addf %26, %31 : vector<256x8xf32>
    %33 = vector.extract_strided_slice %1 {offsets = [1, 2, 0], sizes = [16, 16, 8], strides = [1, 1, 1]} : vector<18x18x8xf32> to vector<16x16x8xf32>
    %34 = vector.shape_cast %33 : vector<16x16x8xf32> to vector<256x8xf32>
    %c5 = arith.constant 5 : index
    %c0_19 = arith.constant 0 : index
    %c0_20 = arith.constant 0 : index
    %35 = vector.load %arg2[%c5, %c0_19, %c0_20] : memref<9x8x8xf32, #tpu.memory_space<vmem>>, vector<1x8x8xf32>
    %36 = vector.shape_cast %35 : vector<1x8x8xf32> to vector<8x8xf32>
    %cst_21 = arith.constant dense<0.000000e+00> : vector<256x8xf32>
    %37 = tpu.matmul %34, %36, %cst_21 {dimension_numbers = #tpu.dot_dimension_numbers<[1], [0], [0], [1], [0, 0, 1, 1], [], []>} : vector<256x8xf32>, vector<8x8xf32>, vector<256x8xf32> -> vector<256x8xf32>
    %38 = arith.addf %32, %37 : vector<256x8xf32>
    %39 = vector.extract_strided_slice %1 {offsets = [2, 0, 0], sizes = [16, 16, 8], strides = [1, 1, 1]} : vector<18x18x8xf32> to vector<16x16x8xf32>
    %40 = vector.shape_cast %39 : vector<16x16x8xf32> to vector<256x8xf32>
    %c6 = arith.constant 6 : index
    %c0_22 = arith.constant 0 : index
    %c0_23 = arith.constant 0 : index
    %41 = vector.load %arg2[%c6, %c0_22, %c0_23] : memref<9x8x8xf32, #tpu.memory_space<vmem>>, vector<1x8x8xf32>
    %42 = vector.shape_cast %41 : vector<1x8x8xf32> to vector<8x8xf32>
    %cst_24 = arith.constant dense<0.000000e+00> : vector<256x8xf32>
    %43 = tpu.matmul %40, %42, %cst_24 {dimension_numbers = #tpu.dot_dimension_numbers<[1], [0], [0], [1], [0, 0, 1, 1], [], []>} : vector<256x8xf32>, vector<8x8xf32>, vector<256x8xf32> -> vector<256x8xf32>
    %44 = arith.addf %38, %43 : vector<256x8xf32>
    %45 = vector.extract_strided_slice %1 {offsets = [2, 1, 0], sizes = [16, 16, 8], strides = [1, 1, 1]} : vector<18x18x8xf32> to vector<16x16x8xf32>
    %46 = vector.shape_cast %45 : vector<16x16x8xf32> to vector<256x8xf32>
    %c7 = arith.constant 7 : index
    %c0_25 = arith.constant 0 : index
    %c0_26 = arith.constant 0 : index
    %47 = vector.load %arg2[%c7, %c0_25, %c0_26] : memref<9x8x8xf32, #tpu.memory_space<vmem>>, vector<1x8x8xf32>
    %48 = vector.shape_cast %47 : vector<1x8x8xf32> to vector<8x8xf32>
    %cst_27 = arith.constant dense<0.000000e+00> : vector<256x8xf32>
    %49 = tpu.matmul %46, %48, %cst_27 {dimension_numbers = #tpu.dot_dimension_numbers<[1], [0], [0], [1], [0, 0, 1, 1], [], []>} : vector<256x8xf32>, vector<8x8xf32>, vector<256x8xf32> -> vector<256x8xf32>
    %50 = arith.addf %44, %49 : vector<256x8xf32>
    %51 = vector.extract_strided_slice %1 {offsets = [2, 2, 0], sizes = [16, 16, 8], strides = [1, 1, 1]} : vector<18x18x8xf32> to vector<16x16x8xf32>
    %52 = vector.shape_cast %51 : vector<16x16x8xf32> to vector<256x8xf32>
    %c8 = arith.constant 8 : index
    %c0_28 = arith.constant 0 : index
    %c0_29 = arith.constant 0 : index
    %53 = vector.load %arg2[%c8, %c0_28, %c0_29] : memref<9x8x8xf32, #tpu.memory_space<vmem>>, vector<1x8x8xf32>
    %54 = vector.shape_cast %53 : vector<1x8x8xf32> to vector<8x8xf32>
    %cst_30 = arith.constant dense<0.000000e+00> : vector<256x8xf32>
    %55 = tpu.matmul %52, %54, %cst_30 {dimension_numbers = #tpu.dot_dimension_numbers<[1], [0], [0], [1], [0, 0, 1, 1], [], []>} : vector<256x8xf32>, vector<8x8xf32>, vector<256x8xf32> -> vector<256x8xf32>
    %56 = arith.addf %50, %55 : vector<256x8xf32>
    %c0_31 = arith.constant 0 : index
    %c0_32 = arith.constant 0 : index
    %57 = vector.load %arg3[%c0_31, %c0_32] : memref<1x8xf32, #tpu.memory_space<vmem>>, vector<1x8xf32>
    %58 = vector.broadcast %57 : vector<1x8xf32> to vector<256x8xf32>
    %59 = arith.addf %56, %58 : vector<256x8xf32>
    %cst_33 = arith.constant 0.000000e+00 : f32
    %60 = vector.broadcast %cst_33 : f32 to vector<256x8xf32>
    %61 = arith.cmpf oge, %59, %60 : vector<256x8xf32>
    %cst_34 = arith.constant 0.00999999977 : f32
    %62 = vector.broadcast %cst_34 : f32 to vector<256x8xf32>
    %63 = arith.mulf %62, %59 : vector<256x8xf32>
    %64 = arith.select %61, %59, %63 : vector<256x8xi1>, vector<256x8xf32>
    %c0_35 = arith.constant 0 : index
    %c0_36 = arith.constant 0 : index
    %c0_37 = arith.constant 0 : index
    %65 = vector.load %arg4[%c0_35, %c0_36, %c0_37] : memref<1x256x4xf32, #tpu.memory_space<vmem>>, vector<1x256x4xf32>
    %66 = vector.shape_cast %65 : vector<1x256x4xf32> to vector<256x4xf32>
    %c0_38 = arith.constant 0 : index
    %c0_39 = arith.constant 0 : index
    %67 = vector.load %arg5[%c0_38, %c0_39] : memref<4x8xf32, #tpu.memory_space<vmem>>, vector<4x8xf32>
    %cst_40 = arith.constant dense<0.000000e+00> : vector<256x8xf32>
    %68 = tpu.matmul %66, %67, %cst_40 {dimension_numbers = #tpu.dot_dimension_numbers<[1], [0], [0], [1], [0, 0, 1, 1], [], []>} : vector<256x4xf32>, vector<4x8xf32>, vector<256x8xf32> -> vector<256x8xf32>
    %69 = arith.addf %64, %68 : vector<256x8xf32>
    %c0_41 = arith.constant 0 : index
    %c0_42 = arith.constant 0 : index
    %70 = vector.load %arg6[%c0_41, %c0_42] : memref<1x8xf32, #tpu.memory_space<vmem>>, vector<1x8xf32>
    %71 = vector.broadcast %70 : vector<1x8xf32> to vector<256x8xf32>
    %72 = arith.addf %69, %71 : vector<256x8xf32>
    %c0_43 = arith.constant 0 : index
    %c0_44 = arith.constant 0 : index
    %c0_45 = arith.constant 0 : index
    %73 = vector.load %arg7[%c0_43, %c0_44, %c0_45] : memref<1x256x8xf32, #tpu.memory_space<vmem>>, vector<1x256x8xf32>
    %74 = vector.shape_cast %73 : vector<1x256x8xf32> to vector<256x8xf32>
    %75 = vector.shape_cast %72 : vector<256x8xf32> to vector<1x256x8xf32>
    tpu.vector_store %arg7[%c0_43, %c0_44, %c0_45], %75 {strides = array<i32>} : memref<1x256x8xf32, #tpu.memory_space<vmem>>, vector<1x256x8xf32>,
    return
  }
  func.func @transform_0(%arg0: i32) -> (i32, i32, i32, i32) {
    %c0_i32 = arith.constant 0 : i32
    %c0_i32_0 = arith.constant 0 : i32
    %c0_i32_1 = arith.constant 0 : i32
    %c0_i32_2 = arith.constant 0 : i32
    return %arg0, %c0_i32, %c0_i32_0, %c0_i32_1 : i32, i32, i32, i32
  }
  func.func @transform_1(%arg0: i32) -> (i32, i32, i32) {
    %c0_i32 = arith.constant 0 : i32
    %c0_i32_0 = arith.constant 0 : i32
    %c0_i32_1 = arith.constant 0 : i32
    %c0_i32_2 = arith.constant 0 : i32
    return %c0_i32, %c0_i32_0, %c0_i32_1 : i32, i32, i32
  }
  func.func @transform_2(%arg0: i32) -> (i32, i32) {
    %c0_i32 = arith.constant 0 : i32
    %c0_i32_0 = arith.constant 0 : i32
    %c0_i32_1 = arith.constant 0 : i32
    return %c0_i32, %c0_i32_0 : i32, i32
  }
  func.func @transform_3(%arg0: i32) -> (i32, i32, i32) {
    %c0_i32 = arith.constant 0 : i32
    %c0_i32_0 = arith.constant 0 : i32
    %c0_i32_1 = arith.constant 0 : i32
    return %arg0, %c0_i32, %c0_i32_0 : i32, i32, i32
  }
  func.func @transform_4(%arg0: i32) -> (i32, i32) {
    %c0_i32 = arith.constant 0 : i32
    %c0_i32_0 = arith.constant 0 : i32
    %c0_i32_1 = arith.constant 0 : i32
    return %c0_i32, %c0_i32_0 : i32, i32
  }
  func.func @transform_5(%arg0: i32) -> (i32, i32) {
    %c0_i32 = arith.constant 0 : i32
    %c0_i32_0 = arith.constant 0 : i32
    %c0_i32_1 = arith.constant 0 : i32
    return %c0_i32, %c0_i32_0 : i32, i32
  }
  func.func @transform_6(%arg0: i32) -> (i32, i32, i32) {
    %c0_i32 = arith.constant 0 : i32
    %c0_i32_0 = arith.constant 0 : i32
    %c0_i32_1 = arith.constant 0 : i32
    return %arg0, %c0_i32, %c0_i32_0 : i32, i32, i32
  }
}

</mosaic_0001>

<llo_original>
// kernel: conv_res_block_forward.4
$region0: #{conv_res_block_forward.4}
  #allocation0 [shape = 'u32[]', space=smem, size = 0x4, offset = 0x4, fixed_abs, tag = 'smem constant byte address 0x4 - core index']
  #allocation1 [shape = 'u32[144,128]{1,0:T(1,128)}', space=vmem, size = 0x12000, scoped, tag = 'internal scratch']
  #allocation2 [shape = 'f32[2,4]{1,0:T(2,128)}', space=vmem, size = 0x400, scoped, tag = 'scratch operand']
  %s0 = inlined_call_operand.vmem [shape: f32[512,4], index: 0, kind: input, shape index: {}]
  %s1 = inlined_call_operand.vmem [shape: f32[2,4], index: 1, kind: output, shape index: {}]
  %s2 = sld [smem:[#allocation0]]
  $region22: #{conv_res_block_forward.4} parent=0
    _
  %s4 = ssub.s32 1, %s2
  %s5 = scalar_select 0, %s4, %s2
  // Predicated region
  $region2: #{conv_res_block_forward.4} parent=0 // pred_check
    _
  $region3: #{conv_res_block_forward.4} parent=0 // pred_check_branch
    %7 = sbr.rel (0) target = $region5
  $region4: #{conv_res_block_forward.4} parent=0 // pred_region
    _
  $region5: #{conv_res_block_forward.4} parent=0 // pred_fallthru
    _
  %p8 = scmp.eq.s32.totalorder 0, 0
  // Predicated region
  $region6: #{conv_res_block_forward.4} parent=0 // pred_check
    %p9 = pneg %p8
  $region7: #{conv_res_block_forward.4} parent=0 // pred_check_branch
    %11 = sbr.rel (%p9) target = $region9
  $region8: #{conv_res_block_forward.4} parent=0 // pred_region
    %vm12 = vcmask 25600
    %13 = vst.msk [vmem:[#allocation2] sm:$0x3] %vm12, 0.0
  $region9: #{conv_res_block_forward.4} parent=0 // pred_fallthru
    _
  %v14 = vld [vmem:[%s0] sm:$0xff]
  %v15 = vld [vmem:[%s0 + $0x8] sm:$0xff]
  %v16 = vld [vmem:[%s0 + $0x10] sm:$0xff]
  %v17 = vld [vmem:[%s0 + $0x18] sm:$0xff]
  %v18 = vld [vmem:[%s0 + $0x20] sm:$0xff]
  %v19 = vld [vmem:[%s0 + $0x28] sm:$0xff]
  %v20 = vld [vmem:[%s0 + $0x30] sm:$0xff]
  %v21 = vld [vmem:[%s0 + $0x38] sm:$0xff]
  %v22 = vld [vmem:[%s0 + $0x40] sm:$0xff]
  %v23 = vld [vmem:[%s0 + $0x48] sm:$0xff]
  %v24 = vld [vmem:[%s0 + $0x50] sm:$0xff]
  %v25 = vld [vmem:[%s0 + $0x58] sm:$0xff]
  %v26 = vld [vmem:[%s0 + $0x60] sm:$0xff]
  %v27 = vld [vmem:[%s0 + $0x68] sm:$0xff]
  %v28 = vld [vmem:[%s0 + $0x70] sm:$0xff]
  %v29 = vld [vmem:[%s0 + $0x78] sm:$0xff]
  %v30 = vld [vmem:[%s0 + $0x80] sm:$0xff]
  %v31 = vld [vmem:[%s0 + $0x88] sm:$0xff]
  %v32 = vld [vmem:[%s0 + $0x90] sm:$0xff]
  %v33 = vld [vmem:[%s0 + $0x98] sm:$0xff]
  %v34 = vld [vmem:[%s0 + $0xa0] sm:$0xff]
  %v35 = vld [vmem:[%s0 + $0xa8] sm:$0xff]
  %v36 = vld [vmem:[%s0 + $0xb0] sm:$0xff]
  %v37 = vld [vmem:[%s0 + $0xb8] sm:$0xff]
  %v38 = vld [vmem:[%s0 + $0xc0] sm:$0xff]
  %v39 = vld [vmem:[%s0 + $0xc8] sm:$0xff]
  %v40 = vld [vmem:[%s0 + $0xd0] sm:$0xff]
  %v41 = vld [vmem:[%s0 + $0xd8] sm:$0xff]
  %v42 = vld [vmem:[%s0 + $0xe0] sm:$0xff]
  %v43 = vld [vmem:[%s0 + $0xe8] sm:$0xff]
  %v44 = vld [vmem:[%s0 + $0xf0] sm:$0xff]
  %v45 = vld [vmem:[%s0 + $0xf8] sm:$0xff]
  %v46 = vld [vmem:[%s0 + $0x100] sm:$0xff]
  %v47 = vld [vmem:[%s0 + $0x108] sm:$0xff]
  %v48 = vld [vmem:[%s0 + $0x110] sm:$0xff]
  %v49 = vld [vmem:[%s0 + $0x118] sm:$0xff]
  %v50 = vld [vmem:[%s0 + $0x120] sm:$0xff]
  %v51 = vld [vmem:[%s0 + $0x128] sm:$0xff]
  %v52 = vld [vmem:[%s0 + $0x130] sm:$0xff]
  %v53 = vld [vmem:[%s0 + $0x138] sm:$0xff]
  %v54 = vld [vmem:[%s0 + $0x140] sm:$0xff]
  %v55 = vld [vmem:[%s0 + $0x148] sm:$0xff]
  %v56 = vld [vmem:[%s0 + $0x150] sm:$0xff]
  %v57 = vld [vmem:[%s0 + $0x158] sm:$0xff]
  %v58 = vld [vmem:[%s0 + $0x160] sm:$0xff]
  %v59 = vld [vmem:[%s0 + $0x168] sm:$0xff]
  %v60 = vld [vmem:[%s0 + $0x170] sm:$0xff]
  %v61 = vld [vmem:[%s0 + $0x178] sm:$0xff]
  %v62 = vld [vmem:[%s0 + $0x180] sm:$0xff]
  %v63 = vld [vmem:[%s0 + $0x188] sm:$0xff]
  %v64 = vld [vmem:[%s0 + $0x190] sm:$0xff]
  %v65 = vld [vmem:[%s0 + $0x198] sm:$0xff]
  %v66 = vld [vmem:[%s0 + $0x1a0] sm:$0xff]
  %v67 = vld [vmem:[%s0 + $0x1a8] sm:$0xff]
  %v68 = vld [vmem:[%s0 + $0x1b0] sm:$0xff]
  %v69 = vld [vmem:[%s0 + $0x1b8] sm:$0xff]
  %v70 = vld [vmem:[%s0 + $0x1c0] sm:$0xff]
  %v71 = vld [vmem:[%s0 + $0x1c8] sm:$0xff]
  %v72 = vld [vmem:[%s0 + $0x1d0] sm:$0xff]
  %v73 = vld [vmem:[%s0 + $0x1d8] sm:$0xff]
  %v74 = vld [vmem:[%s0 + $0x1e0] sm:$0xff]
  %v75 = vld [vmem:[%s0 + $0x1e8] sm:$0xff]
  %v76 = vld [vmem:[%s0 + $0x1f0] sm:$0xff]
  %v77 = vld [vmem:[%s0 + $0x1f8] sm:$0xff]
  %v78 = vld [vmem:[#allocation2] sm:$0x1]
  %vm79 = vcmask 31744
  %v80 = vsel %vm79, %v14, 0.0
  %v81 = vsel %vm79, %v15, 0.0
  %v82 = vadd.f32 %v80, %v81
  %v83 = vsel %vm79, %v16, 0.0
  %v84 = vadd.f32 %v82, %v83
  %v85 = vsel %vm79, %v17, 0.0
  %v86 = vadd.f32 %v84, %v85
  %v87 = vsel %vm79, %v18, 0.0
  %v88 = vadd.f32 %v86, %v87
  %v89 = vsel %vm79, %v19, 0.0
  %v90 = vadd.f32 %v88, %v89
  %v91 = vsel %vm79, %v20, 0.0
  %v92 = vadd.f32 %v90, %v91
  %v93 = vsel %vm79, %v21, 0.0
  %v94 = vadd.f32 %v92, %v93
  %v95 = vsel %vm79, %v22, 0.0
  %v96 = vadd.f32 %v94, %v95
  %v97 = vsel %vm79, %v23, 0.0
  %v98 = vadd.f32 %v96, %v97
  %v99 = vsel %vm79, %v24, 0.0
  %v100 = vadd.f32 %v98, %v99
  %v101 = vsel %vm79, %v25, 0.0
  %v102 = vadd.f32 %v100, %v101
  %v103 = vsel %vm79, %v26, 0.0
  %v104 = vadd.f32 %v102, %v103
  %v105 = vsel %vm79, %v27, 0.0
  %v106 = vadd.f32 %v104, %v105
  %v107 = vsel %vm79, %v28, 0.0
  %v108 = vadd.f32 %v106, %v107
  %v109 = vsel %vm79, %v29, 0.0
  %v110 = vadd.f32 %v108, %v109
  %v111 = vsel %vm79, %v30, 0.0
  %v112 = vadd.f32 %v110, %v111
  %v113 = vsel %vm79, %v31, 0.0
  %v114 = vadd.f32 %v112, %v113
  %v115 = vsel %vm79, %v32, 0.0
  %v116 = vadd.f32 %v114, %v115
  %v117 = vsel %vm79, %v33, 0.0
  %v118 = vadd.f32 %v116, %v117
  %v119 = vsel %vm79, %v34, 0.0
  %v120 = vadd.f32 %v118, %v119
  %v121 = vsel %vm79, %v35, 0.0
  %v122 = vadd.f32 %v120, %v121
  %v123 = vsel %vm79, %v36, 0.0
  %v124 = vadd.f32 %v122, %v123
  %v125 = vsel %vm79, %v37, 0.0
  %v126 = vadd.f32 %v124, %v125
  %v127 = vsel %vm79, %v38, 0.0
  %v128 = vadd.f32 %v126, %v127
  %v129 = vsel %vm79, %v39, 0.0
  %v130 = vadd.f32 %v128, %v129
  %v131 = vsel %vm79, %v40, 0.0
  %v132 = vadd.f32 %v130, %v131
  %v133 = vsel %vm79, %v41, 0.0
  %v134 = vadd.f32 %v132, %v133
  %v135 = vsel %vm79, %v42, 0.0
  %v136 = vadd.f32 %v134, %v135
  %v137 = vsel %vm79, %v43, 0.0
  %v138 = vadd.f32 %v136, %v137
  %v139 = vsel %vm79, %v44, 0.0
  %v140 = vadd.f32 %v138, %v139
  %v141 = vsel %vm79, %v45, 0.0
  %v142 = vadd.f32 %v140, %v141
  %v143 = vsel %vm79, %v46, 0.0
  %v144 = vadd.f32 %v142, %v143
  %v145 = vsel %vm79, %v47, 0.0
  %v146 = vadd.f32 %v144, %v145
  %v147 = vsel %vm79, %v48, 0.0
  %v148 = vadd.f32 %v146, %v147
  %v149 = vsel %vm79, %v49, 0.0
  %v150 = vadd.f32 %v148, %v149
  %v151 = vsel %vm79, %v50, 0.0
  %v152 = vadd.f32 %v150, %v151
  %v153 = vsel %vm79, %v51, 0.0
  %v154 = vadd.f32 %v152, %v153
  %v155 = vsel %vm79, %v52, 0.0
  %v156 = vadd.f32 %v154, %v155
  %v157 = vsel %vm79, %v53, 0.0
  %v158 = vadd.f32 %v156, %v157
  %v159 = vsel %vm79, %v54, 0.0
  %v160 = vadd.f32 %v158, %v159
  %v161 = vsel %vm79, %v55, 0.0
  %v162 = vadd.f32 %v160, %v161
  %v163 = vsel %vm79, %v56, 0.0
  %v164 = vadd.f32 %v162, %v163
  %v165 = vsel %vm79, %v57, 0.0
  %v166 = vadd.f32 %v164, %v165
  %v167 = vsel %vm79, %v58, 0.0
  %v168 = vadd.f32 %v166, %v167
  %v169 = vsel %vm79, %v59, 0.0
  %v170 = vadd.f32 %v168, %v169
  %v171 = vsel %vm79, %v60, 0.0
  %v172 = vadd.f32 %v170, %v171
  %v173 = vsel %vm79, %v61, 0.0
  %v174 = vadd.f32 %v172, %v173
  %v175 = vsel %vm79, %v62, 0.0
  %v176 = vadd.f32 %v174, %v175
  %v177 = vsel %vm79, %v63, 0.0
  %v178 = vadd.f32 %v176, %v177
  %v179 = vsel %vm79, %v64, 0.0
  %v180 = vadd.f32 %v178, %v179
  %v181 = vsel %vm79, %v65, 0.0
  %v182 = vadd.f32 %v180, %v181
  %v183 = vsel %vm79, %v66, 0.0
  %v184 = vadd.f32 %v182, %v183
  %v185 = vsel %vm79, %v67, 0.0
  %v186 = vadd.f32 %v184, %v185
  %v187 = vsel %vm79, %v68, 0.0
  %v188 = vadd.f32 %v186, %v187
  %v189 = vsel %vm79, %v69, 0.0
  %v190 = vadd.f32 %v188, %v189
  %v191 = vsel %vm79, %v70, 0.0
  %v192 = vadd.f32 %v190, %v191
  %v193 = vsel %vm79, %v71, 0.0
  %v194 = vadd.f32 %v192, %v193
  %v195 = vsel %vm79, %v72, 0.0
  %v196 = vadd.f32 %v194, %v195
  %v197 = vsel %vm79, %v73, 0.0
  %v198 = vadd.f32 %v196, %v197
  %v199 = vsel %vm79, %v74, 0.0
  %v200 = vadd.f32 %v198, %v199
  %v201 = vsel %vm79, %v75, 0.0
  %v202 = vadd.f32 %v200, %v201
  %v203 = vsel %vm79, %v76, 0.0
  %v204 = vadd.f32 %v202, %v203
  %v205 = vsel %vm79, %v77, 0.0
  %v206 = vadd.f32 %v204, %v205
  %v207 = vrot.slane %v206, 4
  %v208 = vadd.f32 %v206, %v207
  %v209 = vrot.slane %v208, 2
  %v210 = vadd.f32 %v208, %v209
  %v211 = vrot.slane %v210, 1
  %v212 = vadd.f32 %v210, %v211
  %v213 = vadd.f32 %v78, %v212
  %vm214 = vcmask 24576
  %215 = vst.msk [vmem:[#allocation2] sm:$0x1] %vm214, %v213
  %v216 = vld [vmem:[#allocation2 + $0x1] sm:$0x1]
  %v217 = vmul.f32 %v14, %v14
  %v218 = vmul.f32 %v15, %v15
  %v219 = vmul.f32 %v16, %v16
  %v220 = vmul.f32 %v17, %v17
  %v221 = vmul.f32 %v18, %v18
  %v222 = vmul.f32 %v19, %v19
  %v223 = vmul.f32 %v20, %v20
  %v224 = vmul.f32 %v21, %v21
  %v225 = vmul.f32 %v22, %v22
  %v226 = vmul.f32 %v23, %v23
  %v227 = vmul.f32 %v24, %v24
  %v228 = vmul.f32 %v25, %v25
  %v229 = vmul.f32 %v26, %v26
  %v230 = vmul.f32 %v27, %v27
  %v231 = vmul.f32 %v28, %v28
  %v232 = vmul.f32 %v29, %v29
  %v233 = vmul.f32 %v30, %v30
  %v234 = vmul.f32 %v31, %v31
  %v235 = vmul.f32 %v32, %v32
  %v236 = vmul.f32 %v33, %v33
  %v237 = vmul.f32 %v34, %v34
  %v238 = vmul.f32 %v35, %v35
  %v239 = vmul.f32 %v36, %v36
  %v240 = vmul.f32 %v37, %v37
  %v241 = vmul.f32 %v38, %v38
  %v242 = vmul.f32 %v39, %v39
  %v243 = vmul.f32 %v40, %v40
  %v244 = vmul.f32 %v41, %v41
  %v245 = vmul.f32 %v42, %v42
  %v246 = vmul.f32 %v43, %v43
  %v247 = vmul.f32 %v44, %v44
  %v248 = vmul.f32 %v45, %v45
  %v249 = vmul.f32 %v46, %v46
  %v250 = vmul.f32 %v47, %v47
  %v251 = vmul.f32 %v48, %v48
  %v252 = vmul.f32 %v49, %v49
  %v253 = vmul.f32 %v50, %v50
  %v254 = vmul.f32 %v51, %v51
  %v255 = vmul.f32 %v52, %v52
  %v256 = vmul.f32 %v53, %v53
  %v257 = vmul.f32 %v54, %v54
  %v258 = vmul.f32 %v55, %v55
  %v259 = vmul.f32 %v56, %v56
  %v260 = vmul.f32 %v57, %v57
  %v261 = vmul.f32 %v58, %v58
  %v262 = vmul.f32 %v59, %v59
  %v263 = vmul.f32 %v60, %v60
  %v264 = vmul.f32 %v61, %v61
  %v265 = vmul.f32 %v62, %v62
  %v266 = vmul.f32 %v63, %v63
  %v267 = vmul.f32 %v64, %v64
  %v268 = vmul.f32 %v65, %v65
  %v269 = vmul.f32 %v66, %v66
  %v270 = vmul.f32 %v67, %v67
  %v271 = vmul.f32 %v68, %v68
  %v272 = vmul.f32 %v69, %v69
  %v273 = vmul.f32 %v70, %v70
  %v274 = vmul.f32 %v71, %v71
  %v275 = vmul.f32 %v72, %v72
  %v276 = vmul.f32 %v73, %v73
  %v277 = vmul.f32 %v74, %v74
  %v278 = vmul.f32 %v75, %v75
  %v279 = vmul.f32 %v76, %v76
  %v280 = vmul.f32 %v77, %v77
  %v281 = vsel %vm79, %v217, 0.0
  %v282 = vsel %vm79, %v218, 0.0
  %v283 = vadd.f32 %v281, %v282
  %v284 = vsel %vm79, %v219, 0.0
  %v285 = vadd.f32 %v283, %v284
  %v286 = vsel %vm79, %v220, 0.0
  %v287 = vadd.f32 %v285, %v286
  %v288 = vsel %vm79, %v221, 0.0
  %v289 = vadd.f32 %v287, %v288
  %v290 = vsel %vm79, %v222, 0.0
  %v291 = vadd.f32 %v289, %v290
  %v292 = vsel %vm79, %v223, 0.0
  %v293 = vadd.f32 %v291, %v292
  %v294 = vsel %vm79, %v224, 0.0
  %v295 = vadd.f32 %v293, %v294
  %v296 = vsel %vm79, %v225, 0.0
  %v297 = vadd.f32 %v295, %v296
  %v298 = vsel %vm79, %v226, 0.0
  %v299 = vadd.f32 %v297, %v298
  %v300 = vsel %vm79, %v227, 0.0
  %v301 = vadd.f32 %v299, %v300
  %v302 = vsel %vm79, %v228, 0.0
  %v303 = vadd.f32 %v301, %v302
  %v304 = vsel %vm79, %v229, 0.0
  %v305 = vadd.f32 %v303, %v304
  %v306 = vsel %vm79, %v230, 0.0
  %v307 = vadd.f32 %v305, %v306
  %v308 = vsel %vm79, %v231, 0.0
  %v309 = vadd.f32 %v307, %v308
  %v310 = vsel %vm79, %v232, 0.0
  %v311 = vadd.f32 %v309, %v310
  %v312 = vsel %vm79, %v233, 0.0
  %v313 = vadd.f32 %v311, %v312
  %v314 = vsel %vm79, %v234, 0.0
  %v315 = vadd.f32 %v313, %v314
  %v316 = vsel %vm79, %v235, 0.0
  %v317 = vadd.f32 %v315, %v316
  %v318 = vsel %vm79, %v236, 0.0
  %v319 = vadd.f32 %v317, %v318
  %v320 = vsel %vm79, %v237, 0.0
  %v321 = vadd.f32 %v319, %v320
  %v322 = vsel %vm79, %v238, 0.0
  %v323 = vadd.f32 %v321, %v322
  %v324 = vsel %vm79, %v239, 0.0
  %v325 = vadd.f32 %v323, %v324
  %v326 = vsel %vm79, %v240, 0.0
  %v327 = vadd.f32 %v325, %v326
  %v328 = vsel %vm79, %v241, 0.0
  %v329 = vadd.f32 %v327, %v328
  %v330 = vsel %vm79, %v242, 0.0
  %v331 = vadd.f32 %v329, %v330
  %v332 = vsel %vm79, %v243, 0.0
  %v333 = vadd.f32 %v331, %v332
  %v334 = vsel %vm79, %v244, 0.0
  %v335 = vadd.f32 %v333, %v334
  %v336 = vsel %vm79, %v245, 0.0
  %v337 = vadd.f32 %v335, %v336
  %v338 = vsel %vm79, %v246, 0.0
  %v339 = vadd.f32 %v337, %v338
  %v340 = vsel %vm79, %v247, 0.0
  %v341 = vadd.f32 %v339, %v340
  %v342 = vsel %vm79, %v248, 0.0
  %v343 = vadd.f32 %v341, %v342
  %v344 = vsel %vm79, %v249, 0.0
  %v345 = vadd.f32 %v343, %v344
  %v346 = vsel %vm79, %v250, 0.0
  %v347 = vadd.f32 %v345, %v346
  %v348 = vsel %vm79, %v251, 0.0
  %v349 = vadd.f32 %v347, %v348
  %v350 = vsel %vm79, %v252, 0.0
  %v351 = vadd.f32 %v349, %v350
  %v352 = vsel %vm79, %v253, 0.0
  %v353 = vadd.f32 %v351, %v352
  %v354 = vsel %vm79, %v254, 0.0
  %v355 = vadd.f32 %v353, %v354
  %v356 = vsel %vm79, %v255, 0.0
  %v357 = vadd.f32 %v355, %v356
  %v358 = vsel %vm79, %v256, 0.0
  %v359 = vadd.f32 %v357, %v358
  %v360 = vsel %vm79, %v257, 0.0
  %v361 = vadd.f32 %v359, %v360
  %v362 = vsel %vm79, %v258, 0.0
  %v363 = vadd.f32 %v361, %v362
  %v364 = vsel %vm79, %v259, 0.0
  %v365 = vadd.f32 %v363, %v364
  %v366 = vsel %vm79, %v260, 0.0
  %v367 = vadd.f32 %v365, %v366
  %v368 = vsel %vm79, %v261, 0.0
  %v369 = vadd.f32 %v367, %v368
  %v370 = vsel %vm79, %v262, 0.0
  %v371 = vadd.f32 %v369, %v370
  %v372 = vsel %vm79, %v263, 0.0
  %v373 = vadd.f32 %v371, %v372
  %v374 = vsel %vm79, %v264, 0.0
  %v375 = vadd.f32 %v373, %v374
  %v376 = vsel %vm79, %v265, 0.0
  %v377 = vadd.f32 %v375, %v376
  %v378 = vsel %vm79, %v266, 0.0
  %v379 = vadd.f32 %v377, %v378
  %v380 = vsel %vm79, %v267, 0.0
  %v381 = vadd.f32 %v379, %v380
  %v382 = vsel %vm79, %v268, 0.0
  %v383 = vadd.f32 %v381, %v382
  %v384 = vsel %vm79, %v269, 0.0
  %v385 = vadd.f32 %v383, %v384
  %v386 = vsel %vm79, %v270, 0.0
  %v387 = vadd.f32 %v385, %v386
  %v388 = vsel %vm79, %v271, 0.0
  %v389 = vadd.f32 %v387, %v388
  %v390 = vsel %vm79, %v272, 0.0
  %v391 = vadd.f32 %v389, %v390
  %v392 = vsel %vm79, %v273, 0.0
  %v393 = vadd.f32 %v391, %v392
  %v394 = vsel %vm79, %v274, 0.0
  %v395 = vadd.f32 %v393, %v394
  %v396 = vsel %vm79, %v275, 0.0
  %v397 = vadd.f32 %v395, %v396
  %v398 = vsel %vm79, %v276, 0.0
  %v399 = vadd.f32 %v397, %v398
  %v400 = vsel %vm79, %v277, 0.0
  %v401 = vadd.f32 %v399, %v400
  %v402 = vsel %vm79, %v278, 0.0
  %v403 = vadd.f32 %v401, %v402
  %v404 = vsel %vm79, %v279, 0.0
  %v405 = vadd.f32 %v403, %v404
  %v406 = vsel %vm79, %v280, 0.0
  %v407 = vadd.f32 %v405, %v406
  %v408 = vrot.slane %v407, 4
  %v409 = vadd.f32 %v407, %v408
  %v410 = vrot.slane %v409, 2
  %v411 = vadd.f32 %v409, %v410
  %v412 = vrot.slane %v411, 1
  %v413 = vadd.f32 %v411, %v412
  %v414 = vadd.f32 %v216, %v413
  %415 = vst.msk [vmem:[#allocation2 + $0x1] sm:$0x1] %vm214, %v414
  // Predicated region
  $region10: #{conv_res_block_forward.4} parent=0 // pred_check
    %p416 = pneg %p8
  $region11: #{conv_res_block_forward.4} parent=0 // pred_check_branch
    %418 = sbr.rel (%p416) target = $region13
  $region12: #{conv_res_block_forward.4} parent=0 // pred_region
    %v419 = vld [vmem:[#allocation2] sm:$0x3]
    %vm420 = vcmask 25600
    %421 = vst.msk [vmem:[%s1] sm:$0x3] %vm420, %v419
  $region13: #{conv_res_block_forward.4} parent=0 // pred_fallthru
    _
  // Predicated region
  $region14: #{conv_res_block_forward.4} parent=0 // pred_check
    _
  $region15: #{conv_res_block_forward.4} parent=0 // pred_check_branch
    %423 = sbr.rel (0) target = $region17
  $region16: #{conv_res_block_forward.4} parent=0 // pred_region
    _
  $region17: #{conv_res_block_forward.4} parent=0 // pred_fallthru
    _
  // Predicated region
  $region18: #{conv_res_block_forward.4} parent=0 // pred_check
    _
  $region19: #{conv_res_block_forward.4} parent=0 // pred_check_branch
    %425 = sbr.rel (0) target = $region21
  $region20: #{conv_res_block_forward.4} parent=0 // pred_region
    _
  $region21: #{conv_res_block_forward.4} parent=0 // pred_fallthru
    _

// kernel: conv_res_block_forward.6
$region0: #{conv_res_block_forward.6}
  #allocation0 [shape = 'u32[]', space=smem, size = 0x4, offset = 0x4, fixed_abs, tag = 'smem constant byte address 0x4 - core index']
  #allocation1 [shape = 'u32[144,128]{1,0:T(1,128)}', space=vmem, size = 0x12000, scoped, tag = 'internal scratch']
  #allocation2 [shape = 'f32[2,8]{1,0:T(2,128)}', space=vmem, size = 0x400, scoped, tag = 'scratch operand']
  %s0 = inlined_call_operand.vmem [shape: f32[512,8], index: 0, kind: input, shape index: {}]
  %s1 = inlined_call_operand.vmem [shape: f32[2,8], index: 1, kind: output, shape index: {}]
  %s2 = sld [smem:[#allocation0]]
  $region22: #{conv_res_block_forward.6} parent=0
    _
  %s4 = ssub.s32 1, %s2
  %s5 = scalar_select 0, %s4, %s2
  // Predicated region
  $region2: #{conv_res_block_forward.6} parent=0 // pred_check
    _
  $region3: #{conv_res_block_forward.6} parent=0 // pred_check_branch
    %7 = sbr.rel (0) target = $region5
  $region4: #{conv_res_block_forward.6} parent=0 // pred_region
    _
  $region5: #{conv_res_block_forward.6} parent=0 // pred_fallthru
    _
  %p8 = scmp.eq.s32.totalorder 0, 0
  // Predicated region
  $region6: #{conv_res_block_forward.6} parent=0 // pred_check
    %p9 = pneg %p8
  $region7: #{conv_res_block_forward.6} parent=0 // pred_check_branch
    %11 = sbr.rel (%p9) target = $region9
  $region8: #{conv_res_block_forward.6} parent=0 // pred_region
    %vm12 = vcmask 58368
    %13 = vst.msk [vmem:[#allocation2] sm:$0x3] %vm12, 0.0
  $region9: #{conv_res_block_forward.6} parent=0 // pred_fallthru
    _
  %v14 = vld [vmem:[%s0] sm:$0xff]
  %v15 = vld [vmem:[%s0 + $0x8] sm:$0xff]
  %v16 = vld [vmem:[%s0 + $0x10] sm:$0xff]
  %v17 = vld [vmem:[%s0 + $0x18] sm:$0xff]
  %v18 = vld [vmem:[%s0 + $0x20] sm:$0xff]
  %v19 = vld [vmem:[%s0 + $0x28] sm:$0xff]
  %v20 = vld [vmem:[%s0 + $0x30] sm:$0xff]
  %v21 = vld [vmem:[%s0 + $0x38] sm:$0xff]
  %v22 = vld [vmem:[%s0 + $0x40] sm:$0xff]
  %v23 = vld [vmem:[%s0 + $0x48] sm:$0xff]
  %v24 = vld [vmem:[%s0 + $0x50] sm:$0xff]
  %v25 = vld [vmem:[%s0 + $0x58] sm:$0xff]
  %v26 = vld [vmem:[%s0 + $0x60] sm:$0xff]
  %v27 = vld [vmem:[%s0 + $0x68] sm:$0xff]
  %v28 = vld [vmem:[%s0 + $0x70] sm:$0xff]
  %v29 = vld [vmem:[%s0 + $0x78] sm:$0xff]
  %v30 = vld [vmem:[%s0 + $0x80] sm:$0xff]
  %v31 = vld [vmem:[%s0 + $0x88] sm:$0xff]
  %v32 = vld [vmem:[%s0 + $0x90] sm:$0xff]
  %v33 = vld [vmem:[%s0 + $0x98] sm:$0xff]
  %v34 = vld [vmem:[%s0 + $0xa0] sm:$0xff]
  %v35 = vld [vmem:[%s0 + $0xa8] sm:$0xff]
  %v36 = vld [vmem:[%s0 + $0xb0] sm:$0xff]
  %v37 = vld [vmem:[%s0 + $0xb8] sm:$0xff]
  %v38 = vld [vmem:[%s0 + $0xc0] sm:$0xff]
  %v39 = vld [vmem:[%s0 + $0xc8] sm:$0xff]
  %v40 = vld [vmem:[%s0 + $0xd0] sm:$0xff]
  %v41 = vld [vmem:[%s0 + $0xd8] sm:$0xff]
  %v42 = vld [vmem:[%s0 + $0xe0] sm:$0xff]
  %v43 = vld [vmem:[%s0 + $0xe8] sm:$0xff]
  %v44 = vld [vmem:[%s0 + $0xf0] sm:$0xff]
  %v45 = vld [vmem:[%s0 + $0xf8] sm:$0xff]
  %v46 = vld [vmem:[%s0 + $0x100] sm:$0xff]
  %v47 = vld [vmem:[%s0 + $0x108] sm:$0xff]
  %v48 = vld [vmem:[%s0 + $0x110] sm:$0xff]
  %v49 = vld [vmem:[%s0 + $0x118] sm:$0xff]
  %v50 = vld [vmem:[%s0 + $0x120] sm:$0xff]
  %v51 = vld [vmem:[%s0 + $0x128] sm:$0xff]
  %v52 = vld [vmem:[%s0 + $0x130] sm:$0xff]
  %v53 = vld [vmem:[%s0 + $0x138] sm:$0xff]
  %v54 = vld [vmem:[%s0 + $0x140] sm:$0xff]
  %v55 = vld [vmem:[%s0 + $0x148] sm:$0xff]
  %v56 = vld [vmem:[%s0 + $0x150] sm:$0xff]
  %v57 = vld [vmem:[%s0 + $0x158] sm:$0xff]
  %v58 = vld [vmem:[%s0 + $0x160] sm:$0xff]
  %v59 = vld [vmem:[%s0 + $0x168] sm:$0xff]
  %v60 = vld [vmem:[%s0 + $0x170] sm:$0xff]
  %v61 = vld [vmem:[%s0 + $0x178] sm:$0xff]
  %v62 = vld [vmem:[%s0 + $0x180] sm:$0xff]
  %v63 = vld [vmem:[%s0 + $0x188] sm:$0xff]
  %v64 = vld [vmem:[%s0 + $0x190] sm:$0xff]
  %v65 = vld [vmem:[%s0 + $0x198] sm:$0xff]
  %v66 = vld [vmem:[%s0 + $0x1a0] sm:$0xff]
  %v67 = vld [vmem:[%s0 + $0x1a8] sm:$0xff]
  %v68 = vld [vmem:[%s0 + $0x1b0] sm:$0xff]
  %v69 = vld [vmem:[%s0 + $0x1b8] sm:$0xff]
  %v70 = vld [vmem:[%s0 + $0x1c0] sm:$0xff]
  %v71 = vld [vmem:[%s0 + $0x1c8] sm:$0xff]
  %v72 = vld [vmem:[%s0 + $0x1d0] sm:$0xff]
  %v73 = vld [vmem:[%s0 + $0x1d8] sm:$0xff]
  %v74 = vld [vmem:[%s0 + $0x1e0] sm:$0xff]
  %v75 = vld [vmem:[%s0 + $0x1e8] sm:$0xff]
  %v76 = vld [vmem:[%s0 + $0x1f0] sm:$0xff]
  %v77 = vld [vmem:[%s0 + $0x1f8] sm:$0xff]
  %v78 = vld [vmem:[#allocation2] sm:$0x1]
  %vm79 = vcmask 64512
  %v80 = vsel %vm79, %v14, 0.0
  %v81 = vsel %vm79, %v15, 0.0
  %v82 = vadd.f32 %v80, %v81
  %v83 = vsel %vm79, %v16, 0.0
  %v84 = vadd.f32 %v82, %v83
  %v85 = vsel %vm79, %v17, 0.0
  %v86 = vadd.f32 %v84, %v85
  %v87 = vsel %vm79, %v18, 0.0
  %v88 = vadd.f32 %v86, %v87
  %v89 = vsel %vm79, %v19, 0.0
  %v90 = vadd.f32 %v88, %v89
  %v91 = vsel %vm79, %v20, 0.0
  %v92 = vadd.f32 %v90, %v91
  %v93 = vsel %vm79, %v21, 0.0
  %v94 = vadd.f32 %v92, %v93
  %v95 = vsel %vm79, %v22, 0.0
  %v96 = vadd.f32 %v94, %v95
  %v97 = vsel %vm79, %v23, 0.0
  %v98 = vadd.f32 %v96, %v97
  %v99 = vsel %vm79, %v24, 0.0
  %v100 = vadd.f32 %v98, %v99
  %v101 = vsel %vm79, %v25, 0.0
  %v102 = vadd.f32 %v100, %v101
  %v103 = vsel %vm79, %v26, 0.0
  %v104 = vadd.f32 %v102, %v103
  %v105 = vsel %vm79, %v27, 0.0
  %v106 = vadd.f32 %v104, %v105
  %v107 = vsel %vm79, %v28, 0.0
  %v108 = vadd.f32 %v106, %v107
  %v109 = vsel %vm79, %v29, 0.0
  %v110 = vadd.f32 %v108, %v109
  %v111 = vsel %vm79, %v30, 0.0
  %v112 = vadd.f32 %v110, %v111
  %v113 = vsel %vm79, %v31, 0.0
  %v114 = vadd.f32 %v112, %v113
  %v115 = vsel %vm79, %v32, 0.0
  %v116 = vadd.f32 %v114, %v115
  %v117 = vsel %vm79, %v33, 0.0
  %v118 = vadd.f32 %v116, %v117
  %v119 = vsel %vm79, %v34, 0.0
  %v120 = vadd.f32 %v118, %v119
  %v121 = vsel %vm79, %v35, 0.0
  %v122 = vadd.f32 %v120, %v121
  %v123 = vsel %vm79, %v36, 0.0
  %v124 = vadd.f32 %v122, %v123
  %v125 = vsel %vm79, %v37, 0.0
  %v126 = vadd.f32 %v124, %v125
  %v127 = vsel %vm79, %v38, 0.0
  %v128 = vadd.f32 %v126, %v127
  %v129 = vsel %vm79, %v39, 0.0
  %v130 = vadd.f32 %v128, %v129
  %v131 = vsel %vm79, %v40, 0.0
  %v132 = vadd.f32 %v130, %v131
  %v133 = vsel %vm79, %v41, 0.0
  %v134 = vadd.f32 %v132, %v133
  %v135 = vsel %vm79, %v42, 0.0
  %v136 = vadd.f32 %v134, %v135
  %v137 = vsel %vm79, %v43, 0.0
  %v138 = vadd.f32 %v136, %v137
  %v139 = vsel %vm79, %v44, 0.0
  %v140 = vadd.f32 %v138, %v139
  %v141 = vsel %vm79, %v45, 0.0
  %v142 = vadd.f32 %v140, %v141
  %v143 = vsel %vm79, %v46, 0.0
  %v144 = vadd.f32 %v142, %v143
  %v145 = vsel %vm79, %v47, 0.0
  %v146 = vadd.f32 %v144, %v145
  %v147 = vsel %vm79, %v48, 0.0
  %v148 = vadd.f32 %v146, %v147
  %v149 = vsel %vm79, %v49, 0.0
  %v150 = vadd.f32 %v148, %v149
  %v151 = vsel %vm79, %v50, 0.0
  %v152 = vadd.f32 %v150, %v151
  %v153 = vsel %vm79, %v51, 0.0
  %v154 = vadd.f32 %v152, %v153
  %v155 = vsel %vm79, %v52, 0.0
  %v156 = vadd.f32 %v154, %v155
  %v157 = vsel %vm79, %v53, 0.0
  %v158 = vadd.f32 %v156, %v157
  %v159 = vsel %vm79, %v54, 0.0
  %v160 = vadd.f32 %v158, %v159
  %v161 = vsel %vm79, %v55, 0.0
  %v162 = vadd.f32 %v160, %v161
  %v163 = vsel %vm79, %v56, 0.0
  %v164 = vadd.f32 %v162, %v163
  %v165 = vsel %vm79, %v57, 0.0
  %v166 = vadd.f32 %v164, %v165
  %v167 = vsel %vm79, %v58, 0.0
  %v168 = vadd.f32 %v166, %v167
  %v169 = vsel %vm79, %v59, 0.0
  %v170 = vadd.f32 %v168, %v169
  %v171 = vsel %vm79, %v60, 0.0
  %v172 = vadd.f32 %v170, %v171
  %v173 = vsel %vm79, %v61, 0.0
  %v174 = vadd.f32 %v172, %v173
  %v175 = vsel %vm79, %v62, 0.0
  %v176 = vadd.f32 %v174, %v175
  %v177 = vsel %vm79, %v63, 0.0
  %v178 = vadd.f32 %v176, %v177
  %v179 = vsel %vm79, %v64, 0.0
  %v180 = vadd.f32 %v178, %v179
  %v181 = vsel %vm79, %v65, 0.0
  %v182 = vadd.f32 %v180, %v181
  %v183 = vsel %vm79, %v66, 0.0
  %v184 = vadd.f32 %v182, %v183
  %v185 = vsel %vm79, %v67, 0.0
  %v186 = vadd.f32 %v184, %v185
  %v187 = vsel %vm79, %v68, 0.0
  %v188 = vadd.f32 %v186, %v187
  %v189 = vsel %vm79, %v69, 0.0
  %v190 = vadd.f32 %v188, %v189
  %v191 = vsel %vm79, %v70, 0.0
  %v192 = vadd.f32 %v190, %v191
  %v193 = vsel %vm79, %v71, 0.0
  %v194 = vadd.f32 %v192, %v193
  %v195 = vsel %vm79, %v72, 0.0
  %v196 = vadd.f32 %v194, %v195
  %v197 = vsel %vm79, %v73, 0.0
  %v198 = vadd.f32 %v196, %v197
  %v199 = vsel %vm79, %v74, 0.0
  %v200 = vadd.f32 %v198, %v199
  %v201 = vsel %vm79, %v75, 0.0
  %v202 = vadd.f32 %v200, %v201
  %v203 = vsel %vm79, %v76, 0.0
  %v204 = vadd.f32 %v202, %v203
  %v205 = vsel %vm79, %v77, 0.0
  %v206 = vadd.f32 %v204, %v205
  %v207 = vrot.slane %v206, 4
  %v208 = vadd.f32 %v206, %v207
  %v209 = vrot.slane %v208, 2
  %v210 = vadd.f32 %v208, %v209
  %v211 = vrot.slane %v210, 1
  %v212 = vadd.f32 %v210, %v211
  %v213 = vadd.f32 %v78, %v212
  %vm214 = vcmask 57344
  %215 = vst.msk [vmem:[#allocation2] sm:$0x1] %vm214, %v213
  %v216 = vld [vmem:[#allocation2 + $0x1] sm:$0x1]
  %v217 = vmul.f32 %v14, %v14
  %v218 = vmul.f32 %v15, %v15
  %v219 = vmul.f32 %v16, %v16
  %v220 = vmul.f32 %v17, %v17
  %v221 = vmul.f32 %v18, %v18
  %v222 = vmul.f32 %v19, %v19
  %v223 = vmul.f32 %v20, %v20
  %v224 = vmul.f32 %v21, %v21
  %v225 = vmul.f32 %v22, %v22
  %v226 = vmul.f32 %v23, %v23
  %v227 = vmul.f32 %v24, %v24
  %v228 = vmul.f32 %v25, %v25
  %v229 = vmul.f32 %v26, %v26
  %v230 = vmul.f32 %v27, %v27
  %v231 = vmul.f32 %v28, %v28
  %v232 = vmul.f32 %v29, %v29
  %v233 = vmul.f32 %v30, %v30
  %v234 = vmul.f32 %v31, %v31
  %v235 = vmul.f32 %v32, %v32
  %v236 = vmul.f32 %v33, %v33
  %v237 = vmul.f32 %v34, %v34
  %v238 = vmul.f32 %v35, %v35
  %v239 = vmul.f32 %v36, %v36
  %v240 = vmul.f32 %v37, %v37
  %v241 = vmul.f32 %v38, %v38
  %v242 = vmul.f32 %v39, %v39
  %v243 = vmul.f32 %v40, %v40
  %v244 = vmul.f32 %v41, %v41
  %v245 = vmul.f32 %v42, %v42
  %v246 = vmul.f32 %v43, %v43
  %v247 = vmul.f32 %v44, %v44
  %v248 = vmul.f32 %v45, %v45
  %v249 = vmul.f32 %v46, %v46
  %v250 = vmul.f32 %v47, %v47
  %v251 = vmul.f32 %v48, %v48
  %v252 = vmul.f32 %v49, %v49
  %v253 = vmul.f32 %v50, %v50
  %v254 = vmul.f32 %v51, %v51
  %v255 = vmul.f32 %v52, %v52
  %v256 = vmul.f32 %v53, %v53
  %v257 = vmul.f32 %v54, %v54
  %v258 = vmul.f32 %v55, %v55
  %v259 = vmul.f32 %v56, %v56
  %v260 = vmul.f32 %v57, %v57
  %v261 = vmul.f32 %v58, %v58
  %v262 = vmul.f32 %v59, %v59
  %v263 = vmul.f32 %v60, %v60
  %v264 = vmul.f32 %v61, %v61
  %v265 = vmul.f32 %v62, %v62
  %v266 = vmul.f32 %v63, %v63
  %v267 = vmul.f32 %v64, %v64
  %v268 = vmul.f32 %v65, %v65
  %v269 = vmul.f32 %v66, %v66
  %v270 = vmul.f32 %v67, %v67
  %v271 = vmul.f32 %v68, %v68
  %v272 = vmul.f32 %v69, %v69
  %v273 = vmul.f32 %v70, %v70
  %v274 = vmul.f32 %v71, %v71
  %v275 = vmul.f32 %v72, %v72
  %v276 = vmul.f32 %v73, %v73
  %v277 = vmul.f32 %v74, %v74
  %v278 = vmul.f32 %v75, %v75
  %v279 = vmul.f32 %v76, %v76
  %v280 = vmul.f32 %v77, %v77
  %v281 = vsel %vm79, %v217, 0.0
  %v282 = vsel %vm79, %v218, 0.0
  %v283 = vadd.f32 %v281, %v282
  %v284 = vsel %vm79, %v219, 0.0
  %v285 = vadd.f32 %v283, %v284
  %v286 = vsel %vm79, %v220, 0.0
  %v287 = vadd.f32 %v285, %v286
  %v288 = vsel %vm79, %v221, 0.0
  %v289 = vadd.f32 %v287, %v288
  %v290 = vsel %vm79, %v222, 0.0
  %v291 = vadd.f32 %v289, %v290
  %v292 = vsel %vm79, %v223, 0.0
  %v293 = vadd.f32 %v291, %v292
  %v294 = vsel %vm79, %v224, 0.0
  %v295 = vadd.f32 %v293, %v294
  %v296 = vsel %vm79, %v225, 0.0
  %v297 = vadd.f32 %v295, %v296
  %v298 = vsel %vm79, %v226, 0.0
  %v299 = vadd.f32 %v297, %v298
  %v300 = vsel %vm79, %v227, 0.0
  %v301 = vadd.f32 %v299, %v300
  %v302 = vsel %vm79, %v228, 0.0
  %v303 = vadd.f32 %v301, %v302
  %v304 = vsel %vm79, %v229, 0.0
  %v305 = vadd.f32 %v303, %v304
  %v306 = vsel %vm79, %v230, 0.0
  %v307 = vadd.f32 %v305, %v306
  %v308 = vsel %vm79, %v231, 0.0
  %v309 = vadd.f32 %v307, %v308
  %v310 = vsel %vm79, %v232, 0.0
  %v311 = vadd.f32 %v309, %v310
  %v312 = vsel %vm79, %v233, 0.0
  %v313 = vadd.f32 %v311, %v312
  %v314 = vsel %vm79, %v234, 0.0
  %v315 = vadd.f32 %v313, %v314
  %v316 = vsel %vm79, %v235, 0.0
  %v317 = vadd.f32 %v315, %v316
  %v318 = vsel %vm79, %v236, 0.0
  %v319 = vadd.f32 %v317, %v318
  %v320 = vsel %vm79, %v237, 0.0
  %v321 = vadd.f32 %v319, %v320
  %v322 = vsel %vm79, %v238, 0.0
  %v323 = vadd.f32 %v321, %v322
  %v324 = vsel %vm79, %v239, 0.0
  %v325 = vadd.f32 %v323, %v324
  %v326 = vsel %vm79, %v240, 0.0
  %v327 = vadd.f32 %v325, %v326
  %v328 = vsel %vm79, %v241, 0.0
  %v329 = vadd.f32 %v327, %v328
  %v330 = vsel %vm79, %v242, 0.0
  %v331 = vadd.f32 %v329, %v330
  %v332 = vsel %vm79, %v243, 0.0
  %v333 = vadd.f32 %v331, %v332
  %v334 = vsel %vm79, %v244, 0.0
  %v335 = vadd.f32 %v333, %v334
  %v336 = vsel %vm79, %v245, 0.0
  %v337 = vadd.f32 %v335, %v336
  %v338 = vsel %vm79, %v246, 0.0
  %v339 = vadd.f32 %v337, %v338
  %v340 = vsel %vm79, %v247, 0.0
  %v341 = vadd.f32 %v339, %v340
  %v342 = vsel %vm79, %v248, 0.0
  %v343 = vadd.f32 %v341, %v342
  %v344 = vsel %vm79, %v249, 0.0
  %v345 = vadd.f32 %v343, %v344
  %v346 = vsel %vm79, %v250, 0.0
  %v347 = vadd.f32 %v345, %v346
  %v348 = vsel %vm79, %v251, 0.0
  %v349 = vadd.f32 %v347, %v348
  %v350 = vsel %vm79, %v252, 0.0
  %v351 = vadd.f32 %v349, %v350
  %v352 = vsel %vm79, %v253, 0.0
  %v353 = vadd.f32 %v351, %v352
  %v354 = vsel %vm79, %v254, 0.0
  %v355 = vadd.f32 %v353, %v354
  %v356 = vsel %vm79, %v255, 0.0
  %v357 = vadd.f32 %v355, %v356
  %v358 = vsel %vm79, %v256, 0.0
  %v359 = vadd.f32 %v357, %v358
  %v360 = vsel %vm79, %v257, 0.0
  %v361 = vadd.f32 %v359, %v360
  %v362 = vsel %vm79, %v258, 0.0
  %v363 = vadd.f32 %v361, %v362
  %v364 = vsel %vm79, %v259, 0.0
  %v365 = vadd.f32 %v363, %v364
  %v366 = vsel %vm79, %v260, 0.0
  %v367 = vadd.f32 %v365, %v366
  %v368 = vsel %vm79, %v261, 0.0
  %v369 = vadd.f32 %v367, %v368
  %v370 = vsel %vm79, %v262, 0.0
  %v371 = vadd.f32 %v369, %v370
  %v372 = vsel %vm79, %v263, 0.0
  %v373 = vadd.f32 %v371, %v372
  %v374 = vsel %vm79, %v264, 0.0
  %v375 = vadd.f32 %v373, %v374
  %v376 = vsel %vm79, %v265, 0.0
  %v377 = vadd.f32 %v375, %v376
  %v378 = vsel %vm79, %v266, 0.0
  %v379 = vadd.f32 %v377, %v378
  %v380 = vsel %vm79, %v267, 0.0
  %v381 = vadd.f32 %v379, %v380
  %v382 = vsel %vm79, %v268, 0.0
  %v383 = vadd.f32 %v381, %v382
  %v384 = vsel %vm79, %v269, 0.0
  %v385 = vadd.f32 %v383, %v384
  %v386 = vsel %vm79, %v270, 0.0
  %v387 = vadd.f32 %v385, %v386
  %v388 = vsel %vm79, %v271, 0.0
  %v389 = vadd.f32 %v387, %v388
  %v390 = vsel %vm79, %v272, 0.0
  %v391 = vadd.f32 %v389, %v390
  %v392 = vsel %vm79, %v273, 0.0
  %v393 = vadd.f32 %v391, %v392
  %v394 = vsel %vm79, %v274, 0.0
  %v395 = vadd.f32 %v393, %v394
  %v396 = vsel %vm79, %v275, 0.0
  %v397 = vadd.f32 %v395, %v396
  %v398 = vsel %vm79, %v276, 0.0
  %v399 = vadd.f32 %v397, %v398
  %v400 = vsel %vm79, %v277, 0.0
  %v401 = vadd.f32 %v399, %v400
  %v402 = vsel %vm79, %v278, 0.0
  %v403 = vadd.f32 %v401, %v402
  %v404 = vsel %vm79, %v279, 0.0
  %v405 = vadd.f32 %v403, %v404
  %v406 = vsel %vm79, %v280, 0.0
  %v407 = vadd.f32 %v405, %v406
  %v408 = vrot.slane %v407, 4
  %v409 = vadd.f32 %v407, %v408
  %v410 = vrot.slane %v409, 2
  %v411 = vadd.f32 %v409, %v410
  %v412 = vrot.slane %v411, 1
  %v413 = vadd.f32 %v411, %v412
  %v414 = vadd.f32 %v216, %v413
  %415 = vst.msk [vmem:[#allocation2 + $0x1] sm:$0x1] %vm214, %v414
  // Predicated region
  $region10: #{conv_res_block_forward.6} parent=0 // pred_check
    %p416 = pneg %p8
  $region11: #{conv_res_block_forward.6} parent=0 // pred_check_branch
    %418 = sbr.rel (%p416) target = $region13
  $region12: #{conv_res_block_forward.6} parent=0 // pred_region
    %v419 = vld [vmem:[#allocation2] sm:$0x3]
    %vm420 = vcmask 58368
    %421 = vst.msk [vmem:[%s1] sm:$0x3] %vm420, %v419
  $region13: #{conv_res_block_forward.6} parent=0 // pred_fallthru
    _
  // Predicated region
  $region14: #{conv_res_block_forward.6} parent=0 // pred_check
    _
  $region15: #{conv_res_block_forward.6} parent=0 // pred_check_branch
    %423 = sbr.rel (0) target = $region17
  $region16: #{conv_res_block_forward.6} parent=0 // pred_region
    _
  $region17: #{conv_res_block_forward.6} parent=0 // pred_fallthru
    _
  // Predicated region
  $region18: #{conv_res_block_forward.6} parent=0 // pred_check
    _
  $region19: #{conv_res_block_forward.6} parent=0 // pred_check_branch
    %425 = sbr.rel (0) target = $region21
  $region20: #{conv_res_block_forward.6} parent=0 // pred_region
    _
  $region21: #{conv_res_block_forward.6} parent=0 // pred_fallthru
    _

// kernel: conv_res_block_forward.5
$region0: #{conv_res_block_forward.5}
  #allocation0 [shape = 'u32[]', space=smem, size = 0x4, offset = 0x4, fixed_abs, tag = 'smem constant byte address 0x4 - core index']
  #allocation1 [shape = 'u32[144,128]{1,0:T(1,128)}', space=vmem, size = 0x12000, scoped, tag = 'internal scratch']
  %s0 = inlined_call_operand.vmem [shape: f32[2,18,18,4], index: 0, kind: input, shape index: {}]
  %s1 = inlined_call_operand.vmem [shape: f32[9,4,8], index: 1, kind: input, shape index: {}]
  %s2 = inlined_call_operand.vmem [shape: f32[1,8], index: 2, kind: input, shape index: {}]
  %s3 = inlined_call_operand.vmem [shape: f32[2,256,8], index: 3, kind: output, shape index: {}]
  %s4 = sld [smem:[#allocation0]]
  $region45: #{conv_res_block_forward.5} parent=0
    _
  %s6 = ssub.s32 1, %s4
  %s7 = scalar_select 0, %s6, %s4
  loop: start=0, step=1, limit=4
  $region2: #{conv_res_block_forward.5} parent=0 // loop_pre_header
    _
  $region3: #{conv_res_block_forward.5} parent=0 // loop_header
    %s9 = sphi 0, %s13
    %p10 = scmp.ge.s32.totalorder %s9, 4
    %s19 = sphi 0, %s21
    %s22 = sphi 0, %s19
    %s23 = sphi 0, %s22
    %s39 = sphi 0, %s23
    %s43 = sphi 0, %s43
    %s45 = sphi 0, %s43
    %s46 = sphi 0, %s45
    %s60 = sphi 0, %s46
    %s64 = sphi 0, %s64
    %s66 = sphi 0, %s64
    %s67 = sphi 0, %s66
    %s81 = sphi 0, %s67
    %s87 = sphi 0, %s89
    %s90 = sphi 0, %s87
    %s91 = sphi 0, %s90
    %s107 = sphi 0, %s91
  $region4: #{conv_res_block_forward.5} parent=0 // loop_header_branch
    %12 = sbr.rel (%p10) target = $region8
  $region5: #{conv_res_block_forward.5} parent=0 // loop_body
    %s14 = ssub.s32 %s9, 1
    %s15 = ssub.s32 %s9, 2
    %s16 = sadd.s32 %s9, 1
    %s17 = ssub.s32 %s9, %s16
    %p18 = scmp.eq.s32.totalorder %s17, 0
    %s20 = sadd.s32 %s19, 1
    %s21 = scalar_select %p18, %s19, %s20
    %p24 = pneg %p18
    %p25 = scmp.eq.s32.totalorder %s9, 1
    %p26 = por %p24, %p25
    %p27 = scmp.ne.s32.totalorder %s19, %s22
    %p28 = scmp.eq.s32.totalorder %s9, 0
    %p29 = por %p27, %p28
    %p30 = scmp.ne.s32.totalorder %s19, %s22
    %p31 = scmp.eq.s32.totalorder %s14, 1
    %p32 = por %p30, %p31
    %p33 = scmp.ne.s32.totalorder %s22, %s23
    %p34 = scmp.eq.s32.totalorder %s14, 0
    %p35 = por %p33, %p34
    %p36 = scmp.ne.s32.totalorder %s22, %s23
    %p37 = scmp.eq.s32.totalorder %s15, 1
    %p38 = por %p36, %p37
    %p40 = scmp.ne.s32.totalorder %s23, %s39
    %p41 = scmp.eq.s32.totalorder %s15, 0
    %p42 = por %p40, %p41
    %s44 = sadd.s32 %s43, 1
    %p47 = scmp.eq.s32.totalorder %s9, 1
    %p48 = scmp.ne.s32.totalorder %s43, %s45
    %p49 = scmp.eq.s32.totalorder %s9, 0
    %p50 = por %p48, %p49
    %p51 = scmp.ne.s32.totalorder %s43, %s45
    %p52 = scmp.eq.s32.totalorder %s14, 1
    %p53 = por %p51, %p52
    %p54 = scmp.ne.s32.totalorder %s45, %s46
    %p55 = scmp.eq.s32.totalorder %s14, 0
    %p56 = por %p54, %p55
    %p57 = scmp.ne.s32.totalorder %s45, %s46
    %p58 = scmp.eq.s32.totalorder %s15, 1
    %p59 = por %p57, %p58
    %p61 = scmp.ne.s32.totalorder %s46, %s60
    %p62 = scmp.eq.s32.totalorder %s15, 0
    %p63 = por %p61, %p62
    %s65 = sadd.s32 %s64, 1
    %p68 = scmp.eq.s32.totalorder %s9, 1
    %p69 = scmp.ne.s32.totalorder %s64, %s66
    %p70 = scmp.eq.s32.totalorder %s9, 0
    %p71 = por %p69, %p70
    %p72 = scmp.ne.s32.totalorder %s64, %s66
    %p73 = scmp.eq.s32.totalorder %s14, 1
    %p74 = por %p72, %p73
    %p75 = scmp.ne.s32.totalorder %s66, %s67
    %p76 = scmp.eq.s32.totalorder %s14, 0
    %p77 = por %p75, %p76
    %p78 = scmp.ne.s32.totalorder %s66, %s67
    %p79 = scmp.eq.s32.totalorder %s15, 1
    %p80 = por %p78, %p79
    %p82 = scmp.ne.s32.totalorder %s67, %s81
    %p83 = scmp.eq.s32.totalorder %s15, 0
    %p84 = por %p82, %p83
    %s85 = ssub.s32 %s9, %s16
    %p86 = scmp.eq.s32.totalorder %s85, 0
    %s88 = sadd.s32 %s87, 1
    %s89 = scalar_select %p86, %s87, %s88
    %p92 = pneg %p86
    %p93 = scmp.eq.s32.totalorder %s9, 1
    %p94 = por %p92, %p93
    %p95 = scmp.ne.s32.totalorder %s87, %s90
    %p96 = scmp.eq.s32.totalorder %s9, 0
    %p97 = por %p95, %p96
    %p98 = scmp.ne.s32.totalorder %s87, %s90
    %p99 = scmp.eq.s32.totalorder %s14, 1
    %p100 = por %p98, %p99
    %p101 = scmp.ne.s32.totalorder %s90, %s91
    %p102 = scmp.eq.s32.totalorder %s14, 0
    %p103 = por %p101, %p102
    %p104 = scmp.ne.s32.totalorder %s90, %s91
    %p105 = scmp.eq.s32.totalorder %s15, 1
    %p106 = por %p104, %p105
    %p108 = scmp.ne.s32.totalorder %s91, %s107
    %p109 = scmp.eq.s32.totalorder %s15, 0
    %p110 = por %p108, %p109
    %p111 = scmp.le.s32.totalorder 1, %s9
    %p112 = scmp.lt.s32.totalorder %s9, 3
    %p113 = pnand %p111, %p112
    %p114 = pneg %p113
    // Predicated region
    $region9: #{conv_res_block_forward.5} parent=5 // pred_check
      _
    $region10: #{conv_res_block_forward.5} parent=5 // pred_check_branch
      %116 = sbr.rel (%p113) target = $region12
    $region11: #{conv_res_block_forward.5} parent=5 // pred_region
      %s117 = ssub.s32 %s9, 1
      // Predicated region
      $region13: #{conv_res_block_forward.5} parent=11 // pred_check
        %p118 = pneg %p56
      $region14: #{conv_res_block_forward.5} parent=11 // pred_check_branch
        %120 = sbr.rel (%p118) target = $region16
      $region15: #{conv_res_block_forward.5} parent=11 // pred_region
        _
      $region16: #{conv_res_block_forward.5} parent=11 // pred_fallthru
        _
      // Predicated region
      $region17: #{conv_res_block_forward.5} parent=11 // pred_check
        %p121 = pneg %p77
      $region18: #{conv_res_block_forward.5} parent=11 // pred_check_branch
        %123 = sbr.rel (%p121) target = $region20
      $region19: #{conv_res_block_forward.5} parent=11 // pred_region
        _
      $region20: #{conv_res_block_forward.5} parent=11 // pred_fallthru
        _
    $region12: #{conv_res_block_forward.5} parent=5 // pred_fallthru
      _
    %p124 = scmp.lt.s32.totalorder %s9, 2
    // Predicated region
    $region21: #{conv_res_block_forward.5} parent=5 // pred_check
      %p125 = pneg %p124
    $region22: #{conv_res_block_forward.5} parent=5 // pred_check_branch
      %127 = sbr.rel (%p125) target = $region24
    $region23: #{conv_res_block_forward.5} parent=5 // pred_region
      // Predicated region
      $region25: #{conv_res_block_forward.5} parent=23 // pred_check
        %p128 = pneg %p29
      $region26: #{conv_res_block_forward.5} parent=23 // pred_check_branch
        %130 = sbr.rel (%p128) target = $region28
      $region27: #{conv_res_block_forward.5} parent=23 // pred_region
        %p131 = scmp.lt.s32.totalorder %s9, 1
        %s132 = scalar_select %p131, %s9, 1
        %s133 = smul.addr %s132, 54
        %s134 = smul.addr %s133, 8
        %s135 = scalar_lea.vmem %s0, %s134
      $region28: #{conv_res_block_forward.5} parent=23 // pred_fallthru
        _
    $region24: #{conv_res_block_forward.5} parent=5 // pred_fallthru
      _
    %p136 = scmp.le.s32.totalorder 1, %s9
    %p137 = scmp.lt.s32.totalorder %s9, 3
    %p138 = pnand %p136, %p137
    %p139 = pneg %p138
    // Predicated region
    $region29: #{conv_res_block_forward.5} parent=5 // pred_check
      _
    $region30: #{conv_res_block_forward.5} parent=5 // pred_check_branch
      %141 = sbr.rel (%p138) target = $region32
    $region31: #{conv_res_block_forward.5} parent=5 // pred_region
      %s142 = ssub.s32 %s9, 1
      %p143 = scmp.lt.s32.totalorder %s14, 1
      %s144 = scalar_select %p143, %s14, 1
      %s145 = smul.addr %s144, 54
      %s146 = smul.addr %s145, 8
      %s147 = scalar_lea.vmem %s0, %s146
      %p148 = pneg %p35
      %p149 = pneg %p32
      %p150 = pneg %p56
      %p151 = pneg %p53
      %p152 = pneg %p77
      %p153 = pneg %p74
      %p154 = pneg %p103
      %p155 = pneg %p100
      %p156 = scmp.lt.s32.totalorder %s14, 1
      %s157 = scalar_select %p156, %s14, 1
      %s158 = smul.addr %s157, 32
      %s159 = smul.addr %s158, 8
      %s160 = scalar_lea.vmem %s3, %s159
      %p161 = scmp.lt.s32.totalorder %s14, 1
      %s162 = scalar_select %p161, %s14, 1
      %s163 = smul.addr %s162, 54
      %s164 = smul.addr %s163, 8
      %s165 = scalar_lea.vmem %s0, %s164
      %p166 = scmp.lt.s32.totalorder %s14, 1
      %s167 = scalar_select %p166, %s14, 1
      %s168 = smul.addr %s167, 32
      %s169 = smul.addr %s168, 8
      %s170 = scalar_lea.vmem %s3, %s169
      %v171 = vld [vmem:[%s165] sm:$0xff]
      %v172 = vld [vmem:[%s165 + $0x8] sm:$0xff]
      %v173 = vld [vmem:[%s165 + $0x10] sm:$0x3]
      %v174 = vld [vmem:[%s165 + $0x18] sm:$0xff]
      %v175 = vld [vmem:[%s165 + $0x20] sm:$0xff]
      %v176 = vld [vmem:[%s165 + $0x28] sm:$0x3]
      %v177 = vld [vmem:[%s165 + $0x30] sm:$0xff]
      %v178 = vld [vmem:[%s165 + $0x38] sm:$0xff]
      %v179 = vld [vmem:[%s165 + $0x40] sm:$0x3]
      %v180 = vld [vmem:[%s165 + $0x48] sm:$0xff]
      %v181 = vld [vmem:[%s165 + $0x50] sm:$0xff]
      %v182 = vld [vmem:[%s165 + $0x58] sm:$0x3]
      %v183 = vld [vmem:[%s165 + $0x60] sm:$0xff]
      %v184 = vld [vmem:[%s165 + $0x68] sm:$0xff]
      %v185 = vld [vmem:[%s165 + $0x70] sm:$0x3]
      %v186 = vld [vmem:[%s165 + $0x78] sm:$0xff]
      %v187 = vld [vmem:[%s165 + $0x80] sm:$0xff]
      %v188 = vld [vmem:[%s165 + $0x88] sm:$0x3]
      %v189 = vld [vmem:[%s165 + $0x90] sm:$0xff]
      %v190 = vld [vmem:[%s165 + $0x98] sm:$0xff]
      %v191 = vld [vmem:[%s165 + $0xa0] sm:$0x3]
      %v192 = vld [vmem:[%s165 + $0xa8] sm:$0xff]
      %v193 = vld [vmem:[%s165 + $0xb0] sm:$0xff]
      %v194 = vld [vmem:[%s165 + $0xb8] sm:$0x3]
      %v195 = vld [vmem:[%s165 + $0xc0] sm:$0xff]
      %v196 = vld [vmem:[%s165 + $0xc8] sm:$0xff]
      %v197 = vld [vmem:[%s165 + $0xd0] sm:$0x3]
      %v198 = vld [vmem:[%s165 + $0xd8] sm:$0xff]
      %v199 = vld [vmem:[%s165 + $0xe0] sm:$0xff]
      %v200 = vld [vmem:[%s165 + $0xe8] sm:$0x3]
      %v201 = vld [vmem:[%s165 + $0xf0] sm:$0xff]
      %v202 = vld [vmem:[%s165 + $0xf8] sm:$0xff]
      %v203 = vld [vmem:[%s165 + $0x100] sm:$0x3]
      %v204 = vld [vmem:[%s165 + $0x108] sm:$0xff]
      %v205 = vld [vmem:[%s165 + $0x110] sm:$0xff]
      %v206 = vld [vmem:[%s165 + $0x118] sm:$0x3]
      %v207 = vld [vmem:[%s165 + $0x120] sm:$0xff]
      %v208 = vld [vmem:[%s165 + $0x128] sm:$0xff]
      %v209 = vld [vmem:[%s165 + $0x130] sm:$0x3]
      %v210 = vld [vmem:[%s165 + $0x138] sm:$0xff]
      %v211 = vld [vmem:[%s165 + $0x140] sm:$0xff]
      %v212 = vld [vmem:[%s165 + $0x148] sm:$0x3]
      %v213 = vld [vmem:[%s165 + $0x150] sm:$0xff]
      %v214 = vld [vmem:[%s165 + $0x158] sm:$0xff]
      %v215 = vld [vmem:[%s165 + $0x160] sm:$0x3]
      %v216 = vld [vmem:[%s165 + $0x168] sm:$0xff]
      %v217 = vld [vmem:[%s165 + $0x170] sm:$0xff]
      %v218 = vld [vmem:[%s165 + $0x178] sm:$0x3]
      %v219 = vld [vmem:[%s165 + $0x180] sm:$0xff]
      %v220 = vld [vmem:[%s165 + $0x188] sm:$0xff]
      %v221 = vld [vmem:[%s165 + $0x190] sm:$0x3]
      %v222 = vld [vmem:[%s165 + $0x198] sm:$0xff]
      %v223 = vld [vmem:[%s165 + $0x1a0] sm:$0xff]
      %v224 = vld [vmem:[%s165 + $0x1a8] sm:$0x3]
      %v225 = vld [vmem:[%s1] sm:$0xf]
      %vm274 = vcmask 1046528
      %v275 = vrot.slane %v171, 1
      %v276 = vrot.slane %v172, 1
      %v277 = vsel %vm274, %v275, %v276
      %v278 = vrot.slane %v173, 1
      %v279 = vsel %vm274, %v276, %v278
      %v280 = vrot.slane %v174, 1
      %v281 = vrot.slane %v175, 1
      %v282 = vsel %vm274, %v280, %v281
      %v283 = vrot.slane %v176, 1
      %v284 = vsel %vm274, %v281, %v283
      %v285 = vrot.slane %v177, 1
      %v286 = vrot.slane %v178, 1
      %v287 = vsel %vm274, %v285, %v286
      %v288 = vrot.slane %v179, 1
      %v289 = vsel %vm274, %v286, %v288
      %v290 = vrot.slane %v180, 1
      %v291 = vrot.slane %v181, 1
      %v292 = vsel %vm274, %v290, %v291
      %v293 = vrot.slane %v182, 1
      %v294 = vsel %vm274, %v291, %v293
      %v295 = vrot.slane %v183, 1
      %v296 = vrot.slane %v184, 1
      %v297 = vsel %vm274, %v295, %v296
      %v298 = vrot.slane %v185, 1
      %v299 = vsel %vm274, %v296, %v298
      %v300 = vrot.slane %v186, 1
      %v301 = vrot.slane %v187, 1
      %v302 = vsel %vm274, %v300, %v301
      %v303 = vrot.slane %v188, 1
      %v304 = vsel %vm274, %v301, %v303
      %v305 = vrot.slane %v189, 1
      %v306 = vrot.slane %v190, 1
      %v307 = vsel %vm274, %v305, %v306
      %v308 = vrot.slane %v191, 1
      %v309 = vsel %vm274, %v306, %v308
      %v310 = vrot.slane %v192, 1
      %v311 = vrot.slane %v193, 1
      %v312 = vsel %vm274, %v310, %v311
      %v313 = vrot.slane %v194, 1
      %v314 = vsel %vm274, %v311, %v313
      %v315 = vrot.slane %v195, 1
      %v316 = vrot.slane %v196, 1
      %v317 = vsel %vm274, %v315, %v316
      %v318 = vrot.slane %v197, 1
      %v319 = vsel %vm274, %v316, %v318
      %v320 = vrot.slane %v198, 1
      %v321 = vrot.slane %v199, 1
      %v322 = vsel %vm274, %v320, %v321
      %v323 = vrot.slane %v200, 1
      %v324 = vsel %vm274, %v321, %v323
      %v325 = vrot.slane %v201, 1
      %v326 = vrot.slane %v202, 1
      %v327 = vsel %vm274, %v325, %v326
      %v328 = vrot.slane %v203, 1
      %v329 = vsel %vm274, %v326, %v328
      %v330 = vrot.slane %v204, 1
      %v331 = vrot.slane %v205, 1
      %v332 = vsel %vm274, %v330, %v331
      %v333 = vrot.slane %v206, 1
      %v334 = vsel %vm274, %v331, %v333
      %v335 = vrot.slane %v207, 1
      %v336 = vrot.slane %v208, 1
      %v337 = vsel %vm274, %v335, %v336
      %v338 = vrot.slane %v209, 1
      %v339 = vsel %vm274, %v336, %v338
      %v340 = vrot.slane %v210, 1
      %v341 = vrot.slane %v211, 1
      %v342 = vsel %vm274, %v340, %v341
      %v343 = vrot.slane %v212, 1
      %v344 = vsel %vm274, %v341, %v343
      %v345 = vrot.slane %v213, 1
      %v346 = vrot.slane %v214, 1
      %v347 = vsel %vm274, %v345, %v346
      %v348 = vrot.slane %v215, 1
      %v349 = vsel %vm274, %v346, %v348
      %v350 = vrot.slane %v216, 1
      %v351 = vrot.slane %v217, 1
      %v352 = vsel %vm274, %v350, %v351
      %v353 = vrot.slane %v218, 1
      %v354 = vsel %vm274, %v351, %v353
      %s355 = scalar_lea.vmem %s1, 4
      %v356 = vld [vmem:[%s355] sm:$0xf]
      %vm357 = vcmask 31744
      %v358 = vsel %vm357, %v277, 0
      %v360 = vsel %vm357, %v279, 0
      %v362 = vsel %vm357, %v282, 0
      %v364 = vsel %vm357, %v284, 0
      %v366 = vsel %vm357, %v287, 0
      %v368 = vsel %vm357, %v289, 0
      %v370 = vsel %vm357, %v292, 0
      %v372 = vsel %vm357, %v294, 0
      %v374 = vsel %vm357, %v297, 0
      %v376 = vsel %vm357, %v299, 0
      %v378 = vsel %vm357, %v302, 0
      %v380 = vsel %vm357, %v304, 0
      %v382 = vsel %vm357, %v307, 0
      %v384 = vsel %vm357, %v309, 0
      %v386 = vsel %vm357, %v312, 0
      %v388 = vsel %vm357, %v314, 0
      %v390 = vsel %vm357, %v317, 0
      %v392 = vsel %vm357, %v319, 0
      %v394 = vsel %vm357, %v322, 0
      %v396 = vsel %vm357, %v324, 0
      %v398 = vsel %vm357, %v327, 0
      %v400 = vsel %vm357, %v329, 0
      %v402 = vsel %vm357, %v332, 0
      %v404 = vsel %vm357, %v334, 0
      %v406 = vsel %vm357, %v337, 0
      %v408 = vsel %vm357, %v339, 0
      %v410 = vsel %vm357, %v342, 0
      %v412 = vsel %vm357, %v344, 0
      %v414 = vsel %vm357, %v347, 0
      %v416 = vsel %vm357, %v349, 0
      %v418 = vsel %vm357, %v352, 0
      %v420 = vsel %vm357, %v354, 0
      %vm422 = vcmask 1043456
      %v424 = vsel %vm422, %v356, 0
      %426 = vmatprep.subr.mxu0 0.0
      %427 = vmatpush1.msra.mxu0 %v424
      %428 = vmatprep.subr.mxu0 0.0
      %429 = vmatpush1.msra.mxu0 0.0
      %430 = vmatprep.subr.mxu0 0.0
      %431 = vmatpush1.msra.mxu0 0.0
      %432 = vmatprep.subr.mxu0 0.0
      %433 = vmatpush1.msra.mxu0 0.0
      %434 = vmatprep.subr.mxu0 0.0
      %435 = vmatpush1.msra.mxu0 0.0
      %436 = vmatprep.subr.mxu0 0.0
      %437 = vmatpush1.msra.mxu0 0.0
      %438 = vmatprep.subr.mxu0 0.0
      %439 = vmatpush1.msra.mxu0 0.0
      %440 = vmatprep.subr.mxu0 0.0
      %441 = vmatpush1.msra.mxu0 0.0
      %442 = vmatprep.subr.mxu0 0.0
      %443 = vmatpush1.msra.mxu0 0.0
      %444 = vmatprep.subr.mxu0 0.0
      %445 = vmatpush1.msra.mxu0 0.0
      %446 = vmatprep.subr.mxu0 0.0
      %447 = vmatpush1.msra.mxu0 0.0
      %448 = vmatprep.subr.mxu0 0.0
      %449 = vmatpush1.msra.mxu0 0.0
      %450 = vmatprep.subr.mxu0 0.0
      %451 = vmatpush1.msra.mxu0 0.0
      %452 = vmatprep.subr.mxu0 0.0
      %453 = vmatpush1.msra.mxu0 0.0
      %454 = vmatprep.subr.mxu0 0.0
      %455 = vmatpush1.msra.mxu0 0.0
      %456 = vmatprep.subr.mxu0 0.0
      %457 = vmatpush1.msra.mxu0 0.0
      %458 = vmatprep.subr.mxu0 0.0
      %459 = vmatpush1.msra.mxu0 0.0
      %460 = vmatprep.subr.mxu0 0.0
      %461 = vmatpush1.msra.mxu0 0.0
      %462 = vmatprep.subr.mxu0 0.0
      %463 = vmatpush1.msra.mxu0 0.0
      %464 = vmatprep.subr.mxu0 0.0
      %465 = vmatpush1.msra.mxu0 0.0
      %466 = vmatprep.subr.mxu0 0.0
      %467 = vmatpush1.msra.mxu0 0.0
      %468 = vmatprep.subr.mxu0 0.0
      %469 = vmatpush1.msra.mxu0 0.0
      %470 = vmatprep.subr.mxu0 0.0
      %471 = vmatpush1.msra.mxu0 0.0
      %472 = vmatprep.subr.mxu0 0.0
      %473 = vmatpush1.msra.mxu0 0.0
      %474 = vmatprep.subr.mxu0 0.0
      %475 = vmatpush1.msra.mxu0 0.0
      %476 = vmatprep.subr.mxu0 0.0
      %477 = vmatpush1.msra.mxu0 0.0
      %478 = vmatprep.subr.mxu0 0.0
      %479 = vmatpush1.msra.mxu0 0.0
      %480 = vmatprep.subr.mxu0 0.0
      %481 = vmatpush1.msra.mxu0 0.0
      %482 = vmatprep.subr.mxu0 0.0
      %483 = vmatpush1.msra.mxu0 0.0
      %484 = vmatprep.subr.mxu0 0.0
      %485 = vmatpush1.msra.mxu0 0.0
      %486 = vmatprep.subr.mxu0 0.0
      %487 = vmatpush1.msra.mxu0 0.0
      %488 = vmatprep.subr.mxu0 0.0
      %489 = vmatpush1.msra.mxu0 0.0
      %490 = vmatprep.mubr.f32.mxu0 0.0
      %491 = vmatmul.mubr.f32.gmra.mrb[0].mxu0 %v358
      %v492 = vpop.f32.mrb[0].mxu0
      %v493 = vadd.f32 0.0, %v492
      %v494 = vpop.f32.mrb[0].mxu0
      %495 = vmatprep.mubr.f32.mxu0 0.0
      %496 = vmatmul.mubr.f32.gmra.mrb[0].mxu0 %v360
      %v497 = vpop.f32.mrb[0].mxu0
      %v498 = vadd.f32 0.0, %v497
      %v499 = vpop.f32.mrb[0].mxu0
      %500 = vmatprep.mubr.f32.mxu0 0.0
      %501 = vmatmul.mubr.f32.gmra.mrb[0].mxu0 %v362
      %v502 = vpop.f32.mrb[0].mxu0
      %v503 = vadd.f32 0.0, %v502
      %v504 = vpop.f32.mrb[0].mxu0
      %505 = vmatprep.mubr.f32.mxu0 0.0
      %506 = vmatmul.mubr.f32.gmra.mrb[0].mxu0 %v364
      %v507 = vpop.f32.mrb[0].mxu0
      %v508 = vadd.f32 0.0, %v507
      %v509 = vpop.f32.mrb[0].mxu0
      %510 = vmatprep.mubr.f32.mxu0 0.0
      %511 = vmatmul.mubr.f32.gmra.mrb[0].mxu0 %v366
      %v512 = vpop.f32.mrb[0].mxu0
      %v513 = vadd.f32 0.0, %v512
      %v514 = vpop.f32.mrb[0].mxu0
      %515 = vmatprep.mubr.f32.mxu0 0.0
      %516 = vmatmul.mubr.f32.gmra.mrb[0].mxu0 %v368
      %v517 = vpop.f32.mrb[0].mxu0
      %v518 = vadd.f32 0.0, %v517
      %v519 = vpop.f32.mrb[0].mxu0
      %520 = vmatprep.mubr.f32.mxu0 0.0
      %521 = vmatmul.mubr.f32.gmra.mrb[0].mxu0 %v370
      %v522 = vpop.f32.mrb[0].mxu0
      %v523 = vadd.f32 0.0, %v522
      %v524 = vpop.f32.mrb[0].mxu0
      %525 = vmatprep.mubr.f32.mxu0 0.0
      %526 = vmatmul.mubr.f32.gmra.mrb[0].mxu0 %v372
      %v527 = vpop.f32.mrb[0].mxu0
      %v528 = vadd.f32 0.0, %v527
      %v529 = vpop.f32.mrb[0].mxu0
      %530 = vmatprep.mubr.f32.mxu0 0.0
      %531 = vmatmul.mubr.f32.gmra.mrb[0].mxu0 %v374
      %v532 = vpop.f32.mrb[0].mxu0
      %v533 = vadd.f32 0.0, %v532
      %v534 = vpop.f32.mrb[0].mxu0
      %535 = vmatprep.mubr.f32.mxu0 0.0
      %536 = vmatmul.mubr.f32.gmra.mrb[0].mxu0 %v376
      %v537 = vpop.f32.mrb[0].mxu0
      %v538 = vadd.f32 0.0, %v537
      %v539 = vpop.f32.mrb[0].mxu0
      %540 = vmatprep.mubr.f32.mxu0 0.0
      %541 = vmatmul.mubr.f32.gmra.mrb[0].mxu0 %v378
      %v542 = vpop.f32.mrb[0].mxu0
      %v543 = vadd.f32 0.0, %v542
      %v544 = vpop.f32.mrb[0].mxu0
      %545 = vmatprep.mubr.f32.mxu0 0.0
      %546 = vmatmul.mubr.f32.gmra.mrb[0].mxu0 %v380
      %v547 = vpop.f32.mrb[0].mxu0
      %v548 = vadd.f32 0.0, %v547
      %v549 = vpop.f32.mrb[0].mxu0
      %550 = vmatprep.mubr.f32.mxu0 0.0
      %551 = vmatmul.mubr.f32.gmra.mrb[0].mxu0 %v382
      %v552 = vpop.f32.mrb[0].mxu0
      %v553 = vadd.f32 0.0, %v552
      %v554 = vpop.f32.mrb[0].mxu0
      %555 = vmatprep.mubr.f32.mxu0 0.0
      %556 = vmatmul.mubr.f32.gmra.mrb[0].mxu0 %v384
      %v557 = vpop.f32.mrb[0].mxu0
      %v558 = vadd.f32 0.0, %v557
      %v559 = vpop.f32.mrb[0].mxu0
      %560 = vmatprep.mubr.f32.mxu0 0.0
      %561 = vmatmul.mubr.f32.gmra.mrb[0].mxu0 %v386
      %v562 = vpop.f32.mrb[0].mxu0
      %v563 = vadd.f32 0.0, %v562
      %v564 = vpop.f32.mrb[0].mxu0
      %565 = vmatprep.mubr.f32.mxu0 0.0
      %566 = vmatmul.mubr.f32.gmra.mrb[0].mxu0 %v388
      %v567 = vpop.f32.mrb[0].mxu0
      %v568 = vadd.f32 0.0, %v567
      %v569 = vpop.f32.mrb[0].mxu0
      %570 = vmatprep.mubr.f32.mxu0 0.0
      %571 = vmatmul.mubr.f32.gmra.mrb[0].mxu0 %v390
      %v572 = vpop.f32.mrb[0].mxu0
      %v573 = vadd.f32 0.0, %v572
      %v574 = vpop.f32.mrb[0].mxu0
      %575 = vmatprep.mubr.f32.mxu0 0.0
      %576 = vmatmul.mubr.f32.gmra.mrb[0].mxu0 %v392
      %v577 = vpop.f32.mrb[0].mxu0
      %v578 = vadd.f32 0.0, %v577
      %v579 = vpop.f32.mrb[0].mxu0
      %580 = vmatprep.mubr.f32.mxu0 0.0
      %581 = vmatmul.mubr.f32.gmra.mrb[0].mxu0 %v394
      %v582 = vpop.f32.mrb[0].mxu0
      %v583 = vadd.f32 0.0, %v582
      %v584 = vpop.f32.mrb[0].mxu0
      %585 = vmatprep.mubr.f32.mxu0 0.0
      %586 = vmatmul.mubr.f32.gmra.mrb[0].mxu0 %v396
      %v587 = vpop.f32.mrb[0].mxu0
      %v588 = vadd.f32 0.0, %v587
      %v589 = vpop.f32.mrb[0].mxu0
      %590 = vmatprep.mubr.f32.mxu0 0.0
      %591 = vmatmul.mubr.f32.gmra.mrb[0].mxu0 %v398
      %v592 = vpop.f32.mrb[0].mxu0
      %v593 = vadd.f32 0.0, %v592
      %v594 = vpop.f32.mrb[0].mxu0
      %595 = vmatprep.mubr.f32.mxu0 0.0
      %596 = vmatmul.mubr.f32.gmra.mrb[0].mxu0 %v400
      %v597 = vpop.f32.mrb[0].mxu0
      %v598 = vadd.f32 0.0, %v597
      %v599 = vpop.f32.mrb[0].mxu0
      %600 = vmatprep.mubr.f32.mxu0 0.0
      %601 = vmatmul.mubr.f32.gmra.mrb[0].mxu0 %v402
      %v602 = vpop.f32.mrb[0].mxu0
      %v603 = vadd.f32 0.0, %v602
      %v604 = vpop.f32.mrb[0].mxu0
      %605 = vmatprep.mubr.f32.mxu0 0.0
      %606 = vmatmul.mubr.f32.gmra.mrb[0].mxu0 %v404
      %v607 = vpop.f32.mrb[0].mxu0
      %v608 = vadd.f32 0.0, %v607
      %v609 = vpop.f32.mrb[0].mxu0
      %610 = vmatprep.mubr.f32.mxu0 0.0
      %611 = vmatmul.mubr.f32.gmra.mrb[0].mxu0 %v406
      %v612 = vpop.f32.mrb[0].mxu0
      %v613 = vadd.f32 0.0, %v612
      %v614 = vpop.f32.mrb[0].mxu0
      %615 = vmatprep.mubr.f32.mxu0 0.0
      %616 = vmatmul.mubr.f32.gmra.mrb[0].mxu0 %v408
      %v617 = vpop.f32.mrb[0].mxu0
      %v618 = vadd.f32 0.0, %v617
      %v619 = vpop.f32.mrb[0].mxu0
      %620 = vmatprep.mubr.f32.mxu0 0.0
      %621 = vmatmul.mubr.f32.gmra.mrb[0].mxu0 %v410
      %v622 = vpop.f32.mrb[0].mxu0
      %v623 = vadd.f32 0.0, %v622
      %v624 = vpop.f32.mrb[0].mxu0
      %625 = vmatprep.mubr.f32.mxu0 0.0
      %626 = vmatmul.mubr.f32.gmra.mrb[0].mxu0 %v412
      %v627 = vpop.f32.mrb[0].mxu0
      %v628 = vadd.f32 0.0, %v627
      %v629 = vpop.f32.mrb[0].mxu0
      %630 = vmatprep.mubr.f32.mxu0 0.0
      %631 = vmatmul.mubr.f32.gmra.mrb[0].mxu0 %v414
      %v632 = vpop.f32.mrb[0].mxu0
      %v633 = vadd.f32 0.0, %v632
      %v634 = vpop.f32.mrb[0].mxu0
      %635 = vmatprep.mubr.f32.mxu0 0.0
      %636 = vmatmul.mubr.f32.gmra.mrb[0].mxu0 %v416
      %v637 = vpop.f32.mrb[0].mxu0
      %v638 = vadd.f32 0.0, %v637
      %v639 = vpop.f32.mrb[0].mxu0
      %640 = vmatprep.mubr.f32.mxu0 0.0
      %641 = vmatmul.mubr.f32.gmra.mrb[0].mxu0 %v418
      %v642 = vpop.f32.mrb[0].mxu0
      %v643 = vadd.f32 0.0, %v642
      %v644 = vpop.f32.mrb[0].mxu0
      %645 = vmatprep.mubr.f32.mxu0 0.0
      %646 = vmatmul.mubr.f32.gmra.mrb[0].mxu0 %v420
      %v647 = vpop.f32.mrb[0].mxu0
      %v648 = vadd.f32 0.0, %v647
      %v649 = vpop.f32.mrb[0].mxu0
      %650 = vdwg.mxu0
      %v651 = vsel %vm357, %v171, 0
      %v653 = vsel %vm357, %v172, 0
      %v655 = vsel %vm357, %v174, 0
      %v657 = vsel %vm357, %v175, 0
      %v659 = vsel %vm357, %v177, 0
      %v661 = vsel %vm357, %v178, 0
      %v663 = vsel %vm357, %v180, 0
      %v665 = vsel %vm357, %v181, 0
      %v667 = vsel %vm357, %v183, 0
      %v669 = vsel %vm357, %v184, 0
      %v671 = vsel %vm357, %v186, 0
      %v673 = vsel %vm357, %v187, 0
      %v675 = vsel %vm357, %v189, 0
      %v677 = vsel %vm357, %v190, 0
      %v679 = vsel %vm357, %v192, 0
      %v681 = vsel %vm357, %v193, 0
      %v683 = vsel %vm357, %v195, 0
      %v685 = vsel %vm357, %v196, 0
      %v687 = vsel %vm357, %v198, 0
      %v689 = vsel %vm357, %v199, 0
      %v691 = vsel %vm357, %v201, 0
      %v693 = vsel %vm357, %v202, 0
      %v695 = vsel %vm357, %v204, 0
      %v697 = vsel %vm357, %v205, 0
      %v699 = vsel %vm357, %v207, 0
      %v701 = vsel %vm357, %v208, 0
      %v703 = vsel %vm357, %v210, 0
      %v705 = vsel %vm357, %v211, 0
      %v707 = vsel %vm357, %v213, 0
      %v709 = vsel %vm357, %v214, 0
      %v711 = vsel %vm357, %v216, 0
      %v713 = vsel %vm357, %v217, 0
      %v716 = vsel %vm422, %v225, 0
      %718 = vmatprep.subr.mxu0 0.0
      %719 = vmatpush1.msra.mxu0 %v716
      %720 = vmatprep.subr.mxu0 0.0
      %721 = vmatpush1.msra.mxu0 0.0
      %722 = vmatprep.subr.mxu0 0.0
      %723 = vmatpush1.msra.mxu0 0.0
      %724 = vmatprep.subr.mxu0 0.0
      %725 = vmatpush1.msra.mxu0 0.0
      %726 = vmatprep.subr.mxu0 0.0
      %727 = vmatpush1.msra.mxu0 0.0
      %728 = vmatprep.subr.mxu0 0.0
      %729 = vmatpush1.msra.mxu0 0.0
      %730 = vmatprep.subr.mxu0 0.0
      %731 = vmatpush1.msra.mxu0 0.0
      %732 = vmatprep.subr.mxu0 0.0
      %733 = vmatpush1.msra.mxu0 0.0
      %734 = vmatprep.subr.mxu0 0.0
      %735 = vmatpush1.msra.mxu0 0.0
      %736 = vmatprep.subr.mxu0 0.0
      %737 = vmatpush1.msra.mxu0 0.0
      %738 = vmatprep.subr.mxu0 0.0
      %739 = vmatpush1.msra.mxu0 0.0
      %740 = vmatprep.subr.mxu0 0.0
      %741 = vmatpush1.msra.mxu0 0.0
      %742 = vmatprep.subr.mxu0 0.0
      %743 = vmatpush1.msra.mxu0 0.0
      %744 = vmatprep.subr.mxu0 0.0
      %745 = vmatpush1.msra.mxu0 0.0
      %746 = vmatprep.subr.mxu0 0.0
      %747 = vmatpush1.msra.mxu0 0.0
      %748 = vmatprep.subr.mxu0 0.0
      %749 = vmatpush1.msra.mxu0 0.0
      %750 = vmatprep.subr.mxu0 0.0
      %751 = vmatpush1.msra.mxu0 0.0
      %752 = vmatprep.subr.mxu0 0.0
      %753 = vmatpush1.msra.mxu0 0.0
      %754 = vmatprep.subr.mxu0 0.0
      %755 = vmatpush1.msra.mxu0 0.0
      %756 = vmatprep.subr.mxu0 0.0
      %757 = vmatpush1.msra.mxu0 0.0
      %758 = vmatprep.subr.mxu0 0.0
      %759 = vmatpush1.msra.mxu0 0.0
      %760 = vmatprep.subr.mxu0 0.0
      %761 = vmatpush1.msra.mxu0 0.0
      %762 = vmatprep.subr.mxu0 0.0
      %763 = vmatpush1.msra.mxu0 0.0
      %764 = vmatprep.subr.mxu0 0.0
      %765 = vmatpush1.msra.mxu0 0.0
      %766 = vmatprep.subr.mxu0 0.0
      %767 = vmatpush1.msra.mxu0 0.0
      %768 = vmatprep.subr.mxu0 0.0
      %769 = vmatpush1.msra.mxu0 0.0
      %770 = vmatprep.subr.mxu0 0.0
      %771 = vmatpush1.msra.mxu0 0.0
      %772 = vmatprep.subr.mxu0 0.0
      %773 = vmatpush1.msra.mxu0 0.0
      %774 = vmatprep.subr.mxu0 0.0
      %775 = vmatpush1.msra.mxu0 0.0
      %776 = vmatprep.subr.mxu0 0.0
      %777 = vmatpush1.msra.mxu0 0.0
      %778 = vmatprep.subr.mxu0 0.0
      %779 = vmatpush1.msra.mxu0 0.0
      %780 = vmatprep.subr.mxu0 0.0
      %781 = vmatpush1.msra.mxu0 0.0
      %782 = vmatprep.mubr.f32.mxu0 0.0
      %783 = vmatmul.mubr.f32.gmra.mrb[0].mxu0 %v651
      %v784 = vpop.f32.mrb[0].mxu0
      %v785 = vadd.f32 %v493, %v784
      %v786 = vpop.f32.mrb[0].mxu0
      %787 = vmatprep.mubr.f32.mxu0 0.0
      %788 = vmatmul.mubr.f32.gmra.mrb[0].mxu0 %v653
      %v789 = vpop.f32.mrb[0].mxu0
      %v790 = vadd.f32 %v498, %v789
      %v791 = vpop.f32.mrb[0].mxu0
      %792 = vmatprep.mubr.f32.mxu0 0.0
      %793 = vmatmul.mubr.f32.gmra.mrb[0].mxu0 %v655
      %v794 = vpop.f32.mrb[0].mxu0
      %v795 = vadd.f32 %v503, %v794
      %v796 = vpop.f32.mrb[0].mxu0
      %797 = vmatprep.mubr.f32.mxu0 0.0
      %798 = vmatmul.mubr.f32.gmra.mrb[0].mxu0 %v657
      %v799 = vpop.f32.mrb[0].mxu0
      %v800 = vadd.f32 %v508, %v799
      %v801 = vpop.f32.mrb[0].mxu0
      %802 = vmatprep.mubr.f32.mxu0 0.0
      %803 = vmatmul.mubr.f32.gmra.mrb[0].mxu0 %v659
      %v804 = vpop.f32.mrb[0].mxu0
      %v805 = vadd.f32 %v513, %v804
      %v806 = vpop.f32.mrb[0].mxu0
      %807 = vmatprep.mubr.f32.mxu0 0.0
      %808 = vmatmul.mubr.f32.gmra.mrb[0].mxu0 %v661
      %v809 = vpop.f32.mrb[0].mxu0
      %v810 = vadd.f32 %v518, %v809
      %v811 = vpop.f32.mrb[0].mxu0
      %812 = vmatprep.mubr.f32.mxu0 0.0
      %813 = vmatmul.mubr.f32.gmra.mrb[0].mxu0 %v663
      %v814 = vpop.f32.mrb[0].mxu0
      %v815 = vadd.f32 %v523, %v814
      %v816 = vpop.f32.mrb[0].mxu0
      %817 = vmatprep.mubr.f32.mxu0 0.0
      %818 = vmatmul.mubr.f32.gmra.mrb[0].mxu0 %v665
      %v819 = vpop.f32.mrb[0].mxu0
      %v820 = vadd.f32 %v528, %v819
      %v821 = vpop.f32.mrb[0].mxu0
      %822 = vmatprep.mubr.f32.mxu0 0.0
      %823 = vmatmul.mubr.f32.gmra.mrb[0].mxu0 %v667
      %v824 = vpop.f32.mrb[0].mxu0
      %v825 = vadd.f32 %v533, %v824
      %v826 = vpop.f32.mrb[0].mxu0
      %827 = vmatprep.mubr.f32.mxu0 0.0
      %828 = vmatmul.mubr.f32.gmra.mrb[0].mxu0 %v669
      %v829 = vpop.f32.mrb[0].mxu0
      %v830 = vadd.f32 %v538, %v829
      %v831 = vpop.f32.mrb[0].mxu0
      %832 = vmatprep.mubr.f32.mxu0 0.0
      %833 = vmatmul.mubr.f32.gmra.mrb[0].mxu0 %v671
      %v834 = vpop.f32.mrb[0].mxu0
      %v835 = vadd.f32 %v543, %v834
      %v836 = vpop.f32.mrb[0].mxu0
      %837 = vmatprep.mubr.f32.mxu0 0.0
      %838 = vmatmul.mubr.f32.gmra.mrb[0].mxu0 %v673
      %v839 = vpop.f32.mrb[0].mxu0
      %v840 = vadd.f32 %v548, %v839
      %v841 = vpop.f32.mrb[0].mxu0
      %842 = vmatprep.mubr.f32.mxu0 0.0
      %843 = vmatmul.mubr.f32.gmra.mrb[0].mxu0 %v675
      %v844 = vpop.f32.mrb[0].mxu0
      %v845 = vadd.f32 %v553, %v844
      %v846 = vpop.f32.mrb[0].mxu0
      %847 = vmatprep.mubr.f32.mxu0 0.0
      %848 = vmatmul.mubr.f32.gmra.mrb[0].mxu0 %v677
      %v849 = vpop.f32.mrb[0].mxu0
      %v850 = vadd.f32 %v558, %v849
      %v851 = vpop.f32.mrb[0].mxu0
      %852 = vmatprep.mubr.f32.mxu0 0.0
      %853 = vmatmul.mubr.f32.gmra.mrb[0].mxu0 %v679
      %v854 = vpop.f32.mrb[0].mxu0
      %v855 = vadd.f32 %v563, %v854
      %v856 = vpop.f32.mrb[0].mxu0
      %857 = vmatprep.mubr.f32.mxu0 0.0
      %858 = vmatmul.mubr.f32.gmra.mrb[0].mxu0 %v681
      %v859 = vpop.f32.mrb[0].mxu0
      %v860 = vadd.f32 %v568, %v859
      %v861 = vpop.f32.mrb[0].mxu0
      %862 = vmatprep.mubr.f32.mxu0 0.0
      %863 = vmatmul.mubr.f32.gmra.mrb[0].mxu0 %v683
      %v864 = vpop.f32.mrb[0].mxu0
      %v865 = vadd.f32 %v573, %v864
      %v866 = vpop.f32.mrb[0].mxu0
      %867 = vmatprep.mubr.f32.mxu0 0.0
      %868 = vmatmul.mubr.f32.gmra.mrb[0].mxu0 %v685
      %v869 = vpop.f32.mrb[0].mxu0
      %v870 = vadd.f32 %v578, %v869
      %v871 = vpop.f32.mrb[0].mxu0
      %872 = vmatprep.mubr.f32.mxu0 0.0
      %873 = vmatmul.mubr.f32.gmra.mrb[0].mxu0 %v687
      %v874 = vpop.f32.mrb[0].mxu0
      %v875 = vadd.f32 %v583, %v874
      %v876 = vpop.f32.mrb[0].mxu0
      %877 = vmatprep.mubr.f32.mxu0 0.0
      %878 = vmatmul.mubr.f32.gmra.mrb[0].mxu0 %v689
      %v879 = vpop.f32.mrb[0].mxu0
      %v880 = vadd.f32 %v588, %v879
      %v881 = vpop.f32.mrb[0].mxu0
      %882 = vmatprep.mubr.f32.mxu0 0.0
      %883 = vmatmul.mubr.f32.gmra.mrb[0].mxu0 %v691
      %v884 = vpop.f32.mrb[0].mxu0
      %v885 = vadd.f32 %v593, %v884
      %v886 = vpop.f32.mrb[0].mxu0
      %887 = vmatprep.mubr.f32.mxu0 0.0
      %888 = vmatmul.mubr.f32.gmra.mrb[0].mxu0 %v693
      %v889 = vpop.f32.mrb[0].mxu0
      %v890 = vadd.f32 %v598, %v889
      %v891 = vpop.f32.mrb[0].mxu0
      %892 = vmatprep.mubr.f32.mxu0 0.0
      %893 = vmatmul.mubr.f32.gmra.mrb[0].mxu0 %v695
      %v894 = vpop.f32.mrb[0].mxu0
      %v895 = vadd.f32 %v603, %v894
      %v896 = vpop.f32.mrb[0].mxu0
      %897 = vmatprep.mubr.f32.mxu0 0.0
      %898 = vmatmul.mubr.f32.gmra.mrb[0].mxu0 %v697
      %v899 = vpop.f32.mrb[0].mxu0
      %v900 = vadd.f32 %v608, %v899
      %v901 = vpop.f32.mrb[0].mxu0
      %902 = vmatprep.mubr.f32.mxu0 0.0
      %903 = vmatmul.mubr.f32.gmra.mrb[0].mxu0 %v699
      %v904 = vpop.f32.mrb[0].mxu0
      %v905 = vadd.f32 %v613, %v904
      %v906 = vpop.f32.mrb[0].mxu0
      %907 = vmatprep.mubr.f32.mxu0 0.0
      %908 = vmatmul.mubr.f32.gmra.mrb[0].mxu0 %v701
      %v909 = vpop.f32.mrb[0].mxu0
      %v910 = vadd.f32 %v618, %v909
      %v911 = vpop.f32.mrb[0].mxu0
      %912 = vmatprep.mubr.f32.mxu0 0.0
      %913 = vmatmul.mubr.f32.gmra.mrb[0].mxu0 %v703
      %v914 = vpop.f32.mrb[0].mxu0
      %v915 = vadd.f32 %v623, %v914
      %v916 = vpop.f32.mrb[0].mxu0
      %917 = vmatprep.mubr.f32.mxu0 0.0
      %918 = vmatmul.mubr.f32.gmra.mrb[0].mxu0 %v705
      %v919 = vpop.f32.mrb[0].mxu0
      %v920 = vadd.f32 %v628, %v919
      %v921 = vpop.f32.mrb[0].mxu0
      %922 = vmatprep.mubr.f32.mxu0 0.0
      %923 = vmatmul.mubr.f32.gmra.mrb[0].mxu0 %v707
      %v924 = vpop.f32.mrb[0].mxu0
      %v925 = vadd.f32 %v633, %v924
      %v926 = vpop.f32.mrb[0].mxu0
      %927 = vmatprep.mubr.f32.mxu0 0.0
      %928 = vmatmul.mubr.f32.gmra.mrb[0].mxu0 %v709
      %v929 = vpop.f32.mrb[0].mxu0
      %v930 = vadd.f32 %v638, %v929
      %v931 = vpop.f32.mrb[0].mxu0
      %932 = vmatprep.mubr.f32.mxu0 0.0
      %933 = vmatmul.mubr.f32.gmra.mrb[0].mxu0 %v711
      %v934 = vpop.f32.mrb[0].mxu0
      %v935 = vadd.f32 %v643, %v934
      %v936 = vpop.f32.mrb[0].mxu0
      %937 = vmatprep.mubr.f32.mxu0 0.0
      %938 = vmatmul.mubr.f32.gmra.mrb[0].mxu0 %v713
      %v939 = vpop.f32.mrb[0].mxu0
      %v940 = vadd.f32 %v648, %v939
      %v941 = vpop.f32.mrb[0].mxu0
      %942 = vdwg.mxu0
      %vm943 = vcmask 1045504
      %v944 = vrot.slane %v171, 2
      %v945 = vrot.slane %v172, 2
      %v946 = vsel %vm943, %v944, %v945
      %v947 = vrot.slane %v173, 2
      %v948 = vsel %vm943, %v945, %v947
      %v949 = vrot.slane %v174, 2
      %v950 = vrot.slane %v175, 2
      %v951 = vsel %vm943, %v949, %v950
      %v952 = vrot.slane %v176, 2
      %v953 = vsel %vm943, %v950, %v952
      %v954 = vrot.slane %v177, 2
      %v955 = vrot.slane %v178, 2
      %v956 = vsel %vm943, %v954, %v955
      %v957 = vrot.slane %v179, 2
      %v958 = vsel %vm943, %v955, %v957
      %v959 = vrot.slane %v180, 2
      %v960 = vrot.slane %v181, 2
      %v961 = vsel %vm943, %v959, %v960
      %v962 = vrot.slane %v182, 2
      %v963 = vsel %vm943, %v960, %v962
      %v964 = vrot.slane %v183, 2
      %v965 = vrot.slane %v184, 2
      %v966 = vsel %vm943, %v964, %v965
      %v967 = vrot.slane %v185, 2
      %v968 = vsel %vm943, %v965, %v967
      %v969 = vrot.slane %v186, 2
      %v970 = vrot.slane %v187, 2
      %v971 = vsel %vm943, %v969, %v970
      %v972 = vrot.slane %v188, 2
      %v973 = vsel %vm943, %v970, %v972
      %v974 = vrot.slane %v189, 2
      %v975 = vrot.slane %v190, 2
      %v976 = vsel %vm943, %v974, %v975
      %v977 = vrot.slane %v191, 2
      %v978 = vsel %vm943, %v975, %v977
      %v979 = vrot.slane %v192, 2
      %v980 = vrot.slane %v193, 2
      %v981 = vsel %vm943, %v979, %v980
      %v982 = vrot.slane %v194, 2
      %v983 = vsel %vm943, %v980, %v982
      %v984 = vrot.slane %v195, 2
      %v985 = vrot.slane %v196, 2
      %v986 = vsel %vm943, %v984, %v985
      %v987 = vrot.slane %v197, 2
      %v988 = vsel %vm943, %v985, %v987
      %v989 = vrot.slane %v198, 2
      %v990 = vrot.slane %v199, 2
      %v991 = vsel %vm943, %v989, %v990
      %v992 = vrot.slane %v200, 2
      %v993 = vsel %vm943, %v990, %v992
      %v994 = vrot.slane %v201, 2
      %v995 = vrot.slane %v202, 2
      %v996 = vsel %vm943, %v994, %v995
      %v997 = vrot.slane %v203, 2
      %v998 = vsel %vm943, %v995, %v997
      %v999 = vrot.slane %v204, 2
      %v1000 = vrot.slane %v205, 2
      %v1001 = vsel %vm943, %v999, %v1000
      %v1002 = vrot.slane %v206, 2
      %v1003 = vsel %vm943, %v1000, %v1002
      %v1004 = vrot.slane %v207, 2
      %v1005 = vrot.slane %v208, 2
      %v1006 = vsel %vm943, %v1004, %v1005
      %v1007 = vrot.slane %v209, 2
      %v1008 = vsel %vm943, %v1005, %v1007
      %v1009 = vrot.slane %v210, 2
      %v1010 = vrot.slane %v211, 2
      %v1011 = vsel %vm943, %v1009, %v1010
      %v1012 = vrot.slane %v212, 2
      %v1013 = vsel %vm943, %v1010, %v1012
      %v1014 = vrot.slane %v213, 2
      %v1015 = vrot.slane %v214, 2
      %v1016 = vsel %vm943, %v1014, %v1015
      %v1017 = vrot.slane %v215, 2
      %v1018 = vsel %vm943, %v1015, %v1017
      %v1019 = vrot.slane %v216, 2
      %v1020 = vrot.slane %v217, 2
      %v1021 = vsel %vm943, %v1019, %v1020
      %v1022 = vrot.slane %v218, 2
      %v1023 = vsel %vm943, %v1020, %v1022
      %s1024 = scalar_lea.vmem %s1, 8
      %v1025 = vld [vmem:[%s1024] sm:$0xf]
      %v1026 = vsel %vm357, %v946, 0
      %v1028 = vsel %vm357, %v948, 0
      %v1030 = vsel %vm357, %v951, 0
      %v1032 = vsel %vm357, %v953, 0
      %v1034 = vsel %vm357, %v956, 0
      %v1036 = vsel %vm357, %v958, 0
      %v1038 = vsel %vm357, %v961, 0
      %v1040 = vsel %vm357, %v963, 0
      %v1042 = vsel %vm357, %v966, 0
      %v1044 = vsel %vm357, %v968, 0
      %v1046 = vsel %vm357, %v971, 0
      %v1048 = vsel %vm357, %v973, 0
      %v1050 = vsel %vm357, %v976, 0
      %v1052 = vsel %vm357, %v978, 0
      %v1054 = vsel %vm357, %v981, 0
      %v1056 = vsel %vm357, %v983, 0
      %v1058 = vsel %vm357, %v986, 0
      %v1060 = vsel %vm357, %v988, 0
      %v1062 = vsel %vm357, %v991, 0
      %v1064 = vsel %vm357, %v993, 0
      %v1066 = vsel %vm357, %v996, 0
      %v1068 = vsel %vm357, %v998, 0
      %v1070 = vsel %vm357, %v1001, 0
      %v1072 = vsel %vm357, %v1003, 0
      %v1074 = vsel %vm357, %v1006, 0
      %v1076 = vsel %vm357, %v1008, 0
      %v1078 = vsel %vm357, %v1011, 0
      %v1080 = vsel %vm357, %v1013, 0
      %v1082 = vsel %vm357, %v1016, 0
      %v1084 = vsel %vm357, %v1018, 0
      %v1086 = vsel %vm357, %v1021, 0
      %v1088 = vsel %vm357, %v1023, 0
      %v1091 = vsel %vm422, %v1025, 0
      %1093 = vmatprep.subr.mxu0 0.0
      %1094 = vmatpush1.msra.mxu0 %v1091
      %1095 = vmatprep.subr.mxu0 0.0
      %1096 = vmatpush1.msra.mxu0 0.0
      %1097 = vmatprep.subr.mxu0 0.0
      %1098 = vmatpush1.msra.mxu0 0.0
      %1099 = vmatprep.subr.mxu0 0.0
      %1100 = vmatpush1.msra.mxu0 0.0
      %1101 = vmatprep.subr.mxu0 0.0
      %1102 = vmatpush1.msra.mxu0 0.0
      %1103 = vmatprep.subr.mxu0 0.0
      %1104 = vmatpush1.msra.mxu0 0.0
      %1105 = vmatprep.subr.mxu0 0.0
      %1106 = vmatpush1.msra.mxu0 0.0
      %1107 = vmatprep.subr.mxu0 0.0
      %1108 = vmatpush1.msra.mxu0 0.0
      %1109 = vmatprep.subr.mxu0 0.0
      %1110 = vmatpush1.msra.mxu0 0.0
      %1111 = vmatprep.subr.mxu0 0.0
      %1112 = vmatpush1.msra.mxu0 0.0
      %1113 = vmatprep.subr.mxu0 0.0
      %1114 = vmatpush1.msra.mxu0 0.0
      %1115 = vmatprep.subr.mxu0 0.0
      %1116 = vmatpush1.msra.mxu0 0.0
      %1117 = vmatprep.subr.mxu0 0.0
      %1118 = vmatpush1.msra.mxu0 0.0
      %1119 = vmatprep.subr.mxu0 0.0
      %1120 = vmatpush1.msra.mxu0 0.0
      %1121 = vmatprep.subr.mxu0 0.0
      %1122 = vmatpush1.msra.mxu0 0.0
      %1123 = vmatprep.subr.mxu0 0.0
      %1124 = vmatpush1.msra.mxu0 0.0
      %1125 = vmatprep.subr.mxu0 0.0
      %1126 = vmatpush1.msra.mxu0 0.0
      %1127 = vmatprep.subr.mxu0 0.0
      %1128 = vmatpush1.msra.mxu0 0.0
      %1129 = vmatprep.subr.mxu0 0.0
      %1130 = vmatpush1.msra.mxu0 0.0
      %1131 = vmatprep.subr.mxu0 0.0
      %1132 = vmatpush1.msra.mxu0 0.0
      %1133 = vmatprep.subr.mxu0 0.0
      %1134 = vmatpush1.msra.mxu0 0.0
      %1135 = vmatprep.subr.mxu0 0.0
      %1136 = vmatpush1.msra.mxu0 0.0
      %1137 = vmatprep.subr.mxu0 0.0
      %1138 = vmatpush1.msra.mxu0 0.0
      %1139 = vmatprep.subr.mxu0 0.0
      %1140 = vmatpush1.msra.mxu0 0.0
      %1141 = vmatprep.subr.mxu0 0.0
      %1142 = vmatpush1.msra.mxu0 0.0
      %1143 = vmatprep.subr.mxu0 0.0
      %1144 = vmatpush1.msra.mxu0 0.0
      %1145 = vmatprep.subr.mxu0 0.0
      %1146 = vmatpush1.msra.mxu0 0.0
      %1147 = vmatprep.subr.mxu0 0.0
      %1148 = vmatpush1.msra.mxu0 0.0
      %1149 = vmatprep.subr.mxu0 0.0
      %1150 = vmatpush1.msra.mxu0 0.0
      %1151 = vmatprep.subr.mxu0 0.0
      %1152 = vmatpush1.msra.mxu0 0.0
      %1153 = vmatprep.subr.mxu0 0.0
      %1154 = vmatpush1.msra.mxu0 0.0
      %1155 = vmatprep.subr.mxu0 0.0
      %1156 = vmatpush1.msra.mxu0 0.0
      %1157 = vmatprep.mubr.f32.mxu0 0.0
      %1158 = vmatmul.mubr.f32.gmra.mrb[0].mxu0 %v1026
      %v1159 = vpop.f32.mrb[0].mxu0
      %v1160 = vadd.f32 0.0, %v1159
      %v1161 = vpop.f32.mrb[0].mxu0
      %1162 = vmatprep.mubr.f32.mxu0 0.0
      %1163 = vmatmul.mubr.f32.gmra.mrb[0].mxu0 %v1028
      %v1164 = vpop.f32.mrb[0].mxu0
      %v1165 = vadd.f32 0.0, %v1164
      %v1166 = vpop.f32.mrb[0].mxu0
      %1167 = vmatprep.mubr.f32.mxu0 0.0
      %1168 = vmatmul.mubr.f32.gmra.mrb[0].mxu0 %v1030
      %v1169 = vpop.f32.mrb[0].mxu0
      %v1170 = vadd.f32 0.0, %v1169
      %v1171 = vpop.f32.mrb[0].mxu0
      %1172 = vmatprep.mubr.f32.mxu0 0.0
      %1173 = vmatmul.mubr.f32.gmra.mrb[0].mxu0 %v1032
      %v1174 = vpop.f32.mrb[0].mxu0
      %v1175 = vadd.f32 0.0, %v1174
      %v1176 = vpop.f32.mrb[0].mxu0
      %1177 = vmatprep.mubr.f32.mxu0 0.0
      %1178 = vmatmul.mubr.f32.gmra.mrb[0].mxu0 %v1034
      %v1179 = vpop.f32.mrb[0].mxu0
      %v1180 = vadd.f32 0.0, %v1179
      %v1181 = vpop.f32.mrb[0].mxu0
      %1182 = vmatprep.mubr.f32.mxu0 0.0
      %1183 = vmatmul.mubr.f32.gmra.mrb[0].mxu0 %v1036
      %v1184 = vpop.f32.mrb[0].mxu0
      %v1185 = vadd.f32 0.0, %v1184
      %v1186 = vpop.f32.mrb[0].mxu0
      %1187 = vmatprep.mubr.f32.mxu0 0.0
      %1188 = vmatmul.mubr.f32.gmra.mrb[0].mxu0 %v1038
      %v1189 = vpop.f32.mrb[0].mxu0
      %v1190 = vadd.f32 0.0, %v1189
      %v1191 = vpop.f32.mrb[0].mxu0
      %1192 = vmatprep.mubr.f32.mxu0 0.0
      %1193 = vmatmul.mubr.f32.gmra.mrb[0].mxu0 %v1040
      %v1194 = vpop.f32.mrb[0].mxu0
      %v1195 = vadd.f32 0.0, %v1194
      %v1196 = vpop.f32.mrb[0].mxu0
      %1197 = vmatprep.mubr.f32.mxu0 0.0
      %1198 = vmatmul.mubr.f32.gmra.mrb[0].mxu0 %v1042
      %v1199 = vpop.f32.mrb[0].mxu0
      %v1200 = vadd.f32 0.0, %v1199
      %v1201 = vpop.f32.mrb[0].mxu0
      %1202 = vmatprep.mubr.f32.mxu0 0.0
      %1203 = vmatmul.mubr.f32.gmra.mrb[0].mxu0 %v1044
      %v1204 = vpop.f32.mrb[0].mxu0
      %v1205 = vadd.f32 0.0, %v1204
      %v1206 = vpop.f32.mrb[0].mxu0
      %1207 = vmatprep.mubr.f32.mxu0 0.0
      %1208 = vmatmul.mubr.f32.gmra.mrb[0].mxu0 %v1046
      %v1209 = vpop.f32.mrb[0].mxu0
      %v1210 = vadd.f32 0.0, %v1209
      %v1211 = vpop.f32.mrb[0].mxu0
      %1212 = vmatprep.mubr.f32.mxu0 0.0
      %1213 = vmatmul.mubr.f32.gmra.mrb[0].mxu0 %v1048
      %v1214 = vpop.f32.mrb[0].mxu0
      %v1215 = vadd.f32 0.0, %v1214
      %v1216 = vpop.f32.mrb[0].mxu0
      %1217 = vmatprep.mubr.f32.mxu0 0.0
      %1218 = vmatmul.mubr.f32.gmra.mrb[0].mxu0 %v1050
      %v1219 = vpop.f32.mrb[0].mxu0
      %v1220 = vadd.f32 0.0, %v1219
      %v1221 = vpop.f32.mrb[0].mxu0
      %1222 = vmatprep.mubr.f32.mxu0 0.0
      %1223 = vmatmul.mubr.f32.gmra.mrb[0].mxu0 %v1052
      %v1224 = vpop.f32.mrb[0].mxu0
      %v1225 = vadd.f32 0.0, %v1224
      %v1226 = vpop.f32.mrb[0].mxu0
      %1227 = vmatprep.mubr.f32.mxu0 0.0
      %1228 = vmatmul.mubr.f32.gmra.mrb[0].mxu0 %v1054
      %v1229 = vpop.f32.mrb[0].mxu0
      %v1230 = vadd.f32 0.0, %v1229
      %v1231 = vpop.f32.mrb[0].mxu0
      %1232 = vmatprep.mubr.f32.mxu0 0.0
      %1233 = vmatmul.mubr.f32.gmra.mrb[0].mxu0 %v1056
      %v1234 = vpop.f32.mrb[0].mxu0
      %v1235 = vadd.f32 0.0, %v1234
      %v1236 = vpop.f32.mrb[0].mxu0
      %1237 = vmatprep.mubr.f32.mxu0 0.0
      %1238 = vmatmul.mubr.f32.gmra.mrb[0].mxu0 %v1058
      %v1239 = vpop.f32.mrb[0].mxu0
      %v1240 = vadd.f32 0.0, %v1239
      %v1241 = vpop.f32.mrb[0].mxu0
      %1242 = vmatprep.mubr.f32.mxu0 0.0
      %1243 = vmatmul.mubr.f32.gmra.mrb[0].mxu0 %v1060
      %v1244 = vpop.f32.mrb[0].mxu0
      %v1245 = vadd.f32 0.0, %v1244
      %v1246 = vpop.f32.mrb[0].mxu0
      %1247 = vmatprep.mubr.f32.mxu0 0.0
      %1248 = vmatmul.mubr.f32.gmra.mrb[0].mxu0 %v1062
      %v1249 = vpop.f32.mrb[0].mxu0
      %v1250 = vadd.f32 0.0, %v1249
      %v1251 = vpop.f32.mrb[0].mxu0
      %1252 = vmatprep.mubr.f32.mxu0 0.0
      %1253 = vmatmul.mubr.f32.gmra.mrb[0].mxu0 %v1064
      %v1254 = vpop.f32.mrb[0].mxu0
      %v1255 = vadd.f32 0.0, %v1254
      %v1256 = vpop.f32.mrb[0].mxu0
      %1257 = vmatprep.mubr.f32.mxu0 0.0
      %1258 = vmatmul.mubr.f32.gmra.mrb[0].mxu0 %v1066
      %v1259 = vpop.f32.mrb[0].mxu0
      %v1260 = vadd.f32 0.0, %v1259
      %v1261 = vpop.f32.mrb[0].mxu0
      %1262 = vmatprep.mubr.f32.mxu0 0.0
      %1263 = vmatmul.mubr.f32.gmra.mrb[0].mxu0 %v1068
      %v1264 = vpop.f32.mrb[0].mxu0
      %v1265 = vadd.f32 0.0, %v1264
      %v1266 = vpop.f32.mrb[0].mxu0
      %1267 = vmatprep.mubr.f32.mxu0 0.0
      %1268 = vmatmul.mubr.f32.gmra.mrb[0].mxu0 %v1070
      %v1269 = vpop.f32.mrb[0].mxu0
      %v1270 = vadd.f32 0.0, %v1269
      %v1271 = vpop.f32.mrb[0].mxu0
      %1272 = vmatprep.mubr.f32.mxu0 0.0
      %1273 = vmatmul.mubr.f32.gmra.mrb[0].mxu0 %v1072
      %v1274 = vpop.f32.mrb[0].mxu0
      %v1275 = vadd.f32 0.0, %v1274
      %v1276 = vpop.f32.mrb[0].mxu0
      %1277 = vmatprep.mubr.f32.mxu0 0.0
      %1278 = vmatmul.mubr.f32.gmra.mrb[0].mxu0 %v1074
      %v1279 = vpop.f32.mrb[0].mxu0
      %v1280 = vadd.f32 0.0, %v1279
      %v1281 = vpop.f32.mrb[0].mxu0
      %1282 = vmatprep.mubr.f32.mxu0 0.0
      %1283 = vmatmul.mubr.f32.gmra.mrb[0].mxu0 %v1076
      %v1284 = vpop.f32.mrb[0].mxu0
      %v1285 = vadd.f32 0.0, %v1284
      %v1286 = vpop.f32.mrb[0].mxu0
      %1287 = vmatprep.mubr.f32.mxu0 0.0
      %1288 = vmatmul.mubr.f32.gmra.mrb[0].mxu0 %v1078
      %v1289 = vpop.f32.mrb[0].mxu0
      %v1290 = vadd.f32 0.0, %v1289
      %v1291 = vpop.f32.mrb[0].mxu0
      %1292 = vmatprep.mubr.f32.mxu0 0.0
      %1293 = vmatmul.mubr.f32.gmra.mrb[0].mxu0 %v1080
      %v1294 = vpop.f32.mrb[0].mxu0
      %v1295 = vadd.f32 0.0, %v1294
      %v1296 = vpop.f32.mrb[0].mxu0
      %1297 = vmatprep.mubr.f32.mxu0 0.0
      %1298 = vmatmul.mubr.f32.gmra.mrb[0].mxu0 %v1082
      %v1299 = vpop.f32.mrb[0].mxu0
      %v1300 = vadd.f32 0.0, %v1299
      %v1301 = vpop.f32.mrb[0].mxu0
      %1302 = vmatprep.mubr.f32.mxu0 0.0
      %1303 = vmatmul.mubr.f32.gmra.mrb[0].mxu0 %v1084
      %v1304 = vpop.f32.mrb[0].mxu0
      %v1305 = vadd.f32 0.0, %v1304
      %v1306 = vpop.f32.mrb[0].mxu0
      %1307 = vmatprep.mubr.f32.mxu0 0.0
      %1308 = vmatmul.mubr.f32.gmra.mrb[0].mxu0 %v1086
      %v1309 = vpop.f32.mrb[0].mxu0
      %v1310 = vadd.f32 0.0, %v1309
      %v1311 = vpop.f32.mrb[0].mxu0
      %1312 = vmatprep.mubr.f32.mxu0 0.0
      %1313 = vmatmul.mubr.f32.gmra.mrb[0].mxu0 %v1088
      %v1314 = vpop.f32.mrb[0].mxu0
      %v1315 = vadd.f32 0.0, %v1314
      %v1316 = vpop.f32.mrb[0].mxu0
      %1317 = vdwg.mxu0
      %v1318 = vadd.f32 %v785, %v1160
      %v1319 = vadd.f32 %v790, %v1165
      %v1320 = vadd.f32 %v795, %v1170
      %v1321 = vadd.f32 %v800, %v1175
      %v1322 = vadd.f32 %v805, %v1180
      %v1323 = vadd.f32 %v810, %v1185
      %v1324 = vadd.f32 %v815, %v1190
      %v1325 = vadd.f32 %v820, %v1195
      %v1326 = vadd.f32 %v825, %v1200
      %v1327 = vadd.f32 %v830, %v1205
      %v1328 = vadd.f32 %v835, %v1210
      %v1329 = vadd.f32 %v840, %v1215
      %v1330 = vadd.f32 %v845, %v1220
      %v1331 = vadd.f32 %v850, %v1225
      %v1332 = vadd.f32 %v855, %v1230
      %v1333 = vadd.f32 %v860, %v1235
      %v1334 = vadd.f32 %v865, %v1240
      %v1335 = vadd.f32 %v870, %v1245
      %v1336 = vadd.f32 %v875, %v1250
      %v1337 = vadd.f32 %v880, %v1255
      %v1338 = vadd.f32 %v885, %v1260
      %v1339 = vadd.f32 %v890, %v1265
      %v1340 = vadd.f32 %v895, %v1270
      %v1341 = vadd.f32 %v900, %v1275
      %v1342 = vadd.f32 %v905, %v1280
      %v1343 = vadd.f32 %v910, %v1285
      %v1344 = vadd.f32 %v915, %v1290
      %v1345 = vadd.f32 %v920, %v1295
      %v1346 = vadd.f32 %v925, %v1300
      %v1347 = vadd.f32 %v930, %v1305
      %v1348 = vadd.f32 %v935, %v1310
      %v1349 = vadd.f32 %v940, %v1315
      %s1350 = scalar_lea.vmem %s1, 12
      %v1351 = vld [vmem:[%s1350] sm:$0xf]
      %v1353 = vsel %vm357, %v219, 0
      %v1356 = vsel %vm357, %v220, 0
      %v1359 = vsel %vm422, %v1351, 0
      %1361 = vmatprep.subr.mxu0 0.0
      %1362 = vmatpush1.msra.mxu0 %v1359
      %1363 = vmatprep.subr.mxu0 0.0
      %1364 = vmatpush1.msra.mxu0 0.0
      %1365 = vmatprep.subr.mxu0 0.0
      %1366 = vmatpush1.msra.mxu0 0.0
      %1367 = vmatprep.subr.mxu0 0.0
      %1368 = vmatpush1.msra.mxu0 0.0
      %1369 = vmatprep.subr.mxu0 0.0
      %1370 = vmatpush1.msra.mxu0 0.0
      %1371 = vmatprep.subr.mxu0 0.0
      %1372 = vmatpush1.msra.mxu0 0.0
      %1373 = vmatprep.subr.mxu0 0.0
      %1374 = vmatpush1.msra.mxu0 0.0
      %1375 = vmatprep.subr.mxu0 0.0
      %1376 = vmatpush1.msra.mxu0 0.0
      %1377 = vmatprep.subr.mxu0 0.0
      %1378 = vmatpush1.msra.mxu0 0.0
      %1379 = vmatprep.subr.mxu0 0.0
      %1380 = vmatpush1.msra.mxu0 0.0
      %1381 = vmatprep.subr.mxu0 0.0
      %1382 = vmatpush1.msra.mxu0 0.0
      %1383 = vmatprep.subr.mxu0 0.0
      %1384 = vmatpush1.msra.mxu0 0.0
      %1385 = vmatprep.subr.mxu0 0.0
      %1386 = vmatpush1.msra.mxu0 0.0
      %1387 = vmatprep.subr.mxu0 0.0
      %1388 = vmatpush1.msra.mxu0 0.0
      %1389 = vmatprep.subr.mxu0 0.0
      %1390 = vmatpush1.msra.mxu0 0.0
      %1391 = vmatprep.subr.mxu0 0.0
      %1392 = vmatpush1.msra.mxu0 0.0
      %1393 = vmatprep.subr.mxu0 0.0
      %1394 = vmatpush1.msra.mxu0 0.0
      %1395 = vmatprep.subr.mxu0 0.0
      %1396 = vmatpush1.msra.mxu0 0.0
      %1397 = vmatprep.subr.mxu0 0.0
      %1398 = vmatpush1.msra.mxu0 0.0
      %1399 = vmatprep.subr.mxu0 0.0
      %1400 = vmatpush1.msra.mxu0 0.0
      %1401 = vmatprep.subr.mxu0 0.0
      %1402 = vmatpush1.msra.mxu0 0.0
      %1403 = vmatprep.subr.mxu0 0.0
      %1404 = vmatpush1.msra.mxu0 0.0
      %1405 = vmatprep.subr.mxu0 0.0
      %1406 = vmatpush1.msra.mxu0 0.0
      %1407 = vmatprep.subr.mxu0 0.0
      %1408 = vmatpush1.msra.mxu0 0.0
      %1409 = vmatprep.subr.mxu0 0.0
      %1410 = vmatpush1.msra.mxu0 0.0
      %1411 = vmatprep.subr.mxu0 0.0
      %1412 = vmatpush1.msra.mxu0 0.0
      %1413 = vmatprep.subr.mxu0 0.0
      %1414 = vmatpush1.msra.mxu0 0.0
      %1415 = vmatprep.subr.mxu0 0.0
      %1416 = vmatpush1.msra.mxu0 0.0
      %1417 = vmatprep.subr.mxu0 0.0
      %1418 = vmatpush1.msra.mxu0 0.0
      %1419 = vmatprep.subr.mxu0 0.0
      %1420 = vmatpush1.msra.mxu0 0.0
      %1421 = vmatprep.subr.mxu0 0.0
      %1422 = vmatpush1.msra.mxu0 0.0
      %1423 = vmatprep.subr.mxu0 0.0
      %1424 = vmatpush1.msra.mxu0 0.0
      %1425 = vmatprep.mubr.f32.mxu0 0.0
      %1426 = vmatmul.mubr.f32.gmra.mrb[0].mxu0 %v655
      %v1427 = vpop.f32.mrb[0].mxu0
      %v1428 = vadd.f32 0.0, %v1427
      %v1429 = vpop.f32.mrb[0].mxu0
      %1430 = vmatprep.mubr.f32.mxu0 0.0
      %1431 = vmatmul.mubr.f32.gmra.mrb[0].mxu0 %v657
      %v1432 = vpop.f32.mrb[0].mxu0
      %v1433 = vadd.f32 0.0, %v1432
      %v1434 = vpop.f32.mrb[0].mxu0
      %1435 = vmatprep.mubr.f32.mxu0 0.0
      %1436 = vmatmul.mubr.f32.gmra.mrb[0].mxu0 %v659
      %v1437 = vpop.f32.mrb[0].mxu0
      %v1438 = vadd.f32 0.0, %v1437
      %v1439 = vpop.f32.mrb[0].mxu0
      %1440 = vmatprep.mubr.f32.mxu0 0.0
      %1441 = vmatmul.mubr.f32.gmra.mrb[0].mxu0 %v661
      %v1442 = vpop.f32.mrb[0].mxu0
      %v1443 = vadd.f32 0.0, %v1442
      %v1444 = vpop.f32.mrb[0].mxu0
      %1445 = vmatprep.mubr.f32.mxu0 0.0
      %1446 = vmatmul.mubr.f32.gmra.mrb[0].mxu0 %v663
      %v1447 = vpop.f32.mrb[0].mxu0
      %v1448 = vadd.f32 0.0, %v1447
      %v1449 = vpop.f32.mrb[0].mxu0
      %1450 = vmatprep.mubr.f32.mxu0 0.0
      %1451 = vmatmul.mubr.f32.gmra.mrb[0].mxu0 %v665
      %v1452 = vpop.f32.mrb[0].mxu0
      %v1453 = vadd.f32 0.0, %v1452
      %v1454 = vpop.f32.mrb[0].mxu0
      %1455 = vmatprep.mubr.f32.mxu0 0.0
      %1456 = vmatmul.mubr.f32.gmra.mrb[0].mxu0 %v667
      %v1457 = vpop.f32.mrb[0].mxu0
      %v1458 = vadd.f32 0.0, %v1457
      %v1459 = vpop.f32.mrb[0].mxu0
      %1460 = vmatprep.mubr.f32.mxu0 0.0
      %1461 = vmatmul.mubr.f32.gmra.mrb[0].mxu0 %v669
      %v1462 = vpop.f32.mrb[0].mxu0
      %v1463 = vadd.f32 0.0, %v1462
      %v1464 = vpop.f32.mrb[0].mxu0
      %1465 = vmatprep.mubr.f32.mxu0 0.0
      %1466 = vmatmul.mubr.f32.gmra.mrb[0].mxu0 %v671
      %v1467 = vpop.f32.mrb[0].mxu0
      %v1468 = vadd.f32 0.0, %v1467
      %v1469 = vpop.f32.mrb[0].mxu0
      %1470 = vmatprep.mubr.f32.mxu0 0.0
      %1471 = vmatmul.mubr.f32.gmra.mrb[0].mxu0 %v673
      %v1472 = vpop.f32.mrb[0].mxu0
      %v1473 = vadd.f32 0.0, %v1472
      %v1474 = vpop.f32.mrb[0].mxu0
      %1475 = vmatprep.mubr.f32.mxu0 0.0
      %1476 = vmatmul.mubr.f32.gmra.mrb[0].mxu0 %v675
      %v1477 = vpop.f32.mrb[0].mxu0
      %v1478 = vadd.f32 0.0, %v1477
      %v1479 = vpop.f32.mrb[0].mxu0
      %1480 = vmatprep.mubr.f32.mxu0 0.0
      %1481 = vmatmul.mubr.f32.gmra.mrb[0].mxu0 %v677
      %v1482 = vpop.f32.mrb[0].mxu0
      %v1483 = vadd.f32 0.0, %v1482
      %v1484 = vpop.f32.mrb[0].mxu0
      %1485 = vmatprep.mubr.f32.mxu0 0.0
      %1486 = vmatmul.mubr.f32.gmra.mrb[0].mxu0 %v679
      %v1487 = vpop.f32.mrb[0].mxu0
      %v1488 = vadd.f32 0.0, %v1487
      %v1489 = vpop.f32.mrb[0].mxu0
      %1490 = vmatprep.mubr.f32.mxu0 0.0
      %1491 = vmatmul.mubr.f32.gmra.mrb[0].mxu0 %v681
      %v1492 = vpop.f32.mrb[0].mxu0
      %v1493 = vadd.f32 0.0, %v1492
      %v1494 = vpop.f32.mrb[0].mxu0
      %1495 = vmatprep.mubr.f32.mxu0 0.0
      %1496 = vmatmul.mubr.f32.gmra.mrb[0].mxu0 %v683
      %v1497 = vpop.f32.mrb[0].mxu0
      %v1498 = vadd.f32 0.0, %v1497
      %v1499 = vpop.f32.mrb[0].mxu0
      %1500 = vmatprep.mubr.f32.mxu0 0.0
      %1501 = vmatmul.mubr.f32.gmra.mrb[0].mxu0 %v685
      %v1502 = vpop.f32.mrb[0].mxu0
      %v1503 = vadd.f32 0.0, %v1502
      %v1504 = vpop.f32.mrb[0].mxu0
      %1505 = vmatprep.mubr.f32.mxu0 0.0
      %1506 = vmatmul.mubr.f32.gmra.mrb[0].mxu0 %v687
      %v1507 = vpop.f32.mrb[0].mxu0
      %v1508 = vadd.f32 0.0, %v1507
      %v1509 = vpop.f32.mrb[0].mxu0
      %1510 = vmatprep.mubr.f32.mxu0 0.0
      %1511 = vmatmul.mubr.f32.gmra.mrb[0].mxu0 %v689
      %v1512 = vpop.f32.mrb[0].mxu0
      %v1513 = vadd.f32 0.0, %v1512
      %v1514 = vpop.f32.mrb[0].mxu0
      %1515 = vmatprep.mubr.f32.mxu0 0.0
      %1516 = vmatmul.mubr.f32.gmra.mrb[0].mxu0 %v691
      %v1517 = vpop.f32.mrb[0].mxu0
      %v1518 = vadd.f32 0.0, %v1517
      %v1519 = vpop.f32.mrb[0].mxu0
      %1520 = vmatprep.mubr.f32.mxu0 0.0
      %1521 = vmatmul.mubr.f32.gmra.mrb[0].mxu0 %v693
      %v1522 = vpop.f32.mrb[0].mxu0
      %v1523 = vadd.f32 0.0, %v1522
      %v1524 = vpop.f32.mrb[0].mxu0
      %1525 = vmatprep.mubr.f32.mxu0 0.0
      %1526 = vmatmul.mubr.f32.gmra.mrb[0].mxu0 %v695
      %v1527 = vpop.f32.mrb[0].mxu0
      %v1528 = vadd.f32 0.0, %v1527
      %v1529 = vpop.f32.mrb[0].mxu0
      %1530 = vmatprep.mubr.f32.mxu0 0.0
      %1531 = vmatmul.mubr.f32.gmra.mrb[0].mxu0 %v697
      %v1532 = vpop.f32.mrb[0].mxu0
      %v1533 = vadd.f32 0.0, %v1532
      %v1534 = vpop.f32.mrb[0].mxu0
      %1535 = vmatprep.mubr.f32.mxu0 0.0
      %1536 = vmatmul.mubr.f32.gmra.mrb[0].mxu0 %v699
      %v1537 = vpop.f32.mrb[0].mxu0
      %v1538 = vadd.f32 0.0, %v1537
      %v1539 = vpop.f32.mrb[0].mxu0
      %1540 = vmatprep.mubr.f32.mxu0 0.0
      %1541 = vmatmul.mubr.f32.gmra.mrb[0].mxu0 %v701
      %v1542 = vpop.f32.mrb[0].mxu0
      %v1543 = vadd.f32 0.0, %v1542
      %v1544 = vpop.f32.mrb[0].mxu0
      %1545 = vmatprep.mubr.f32.mxu0 0.0
      %1546 = vmatmul.mubr.f32.gmra.mrb[0].mxu0 %v703
      %v1547 = vpop.f32.mrb[0].mxu0
      %v1548 = vadd.f32 0.0, %v1547
      %v1549 = vpop.f32.mrb[0].mxu0
      %1550 = vmatprep.mubr.f32.mxu0 0.0
      %1551 = vmatmul.mubr.f32.gmra.mrb[0].mxu0 %v705
      %v1552 = vpop.f32.mrb[0].mxu0
      %v1553 = vadd.f32 0.0, %v1552
      %v1554 = vpop.f32.mrb[0].mxu0
      %1555 = vmatprep.mubr.f32.mxu0 0.0
      %1556 = vmatmul.mubr.f32.gmra.mrb[0].mxu0 %v707
      %v1557 = vpop.f32.mrb[0].mxu0
      %v1558 = vadd.f32 0.0, %v1557
      %v1559 = vpop.f32.mrb[0].mxu0
      %1560 = vmatprep.mubr.f32.mxu0 0.0
      %1561 = vmatmul.mubr.f32.gmra.mrb[0].mxu0 %v709
      %v1562 = vpop.f32.mrb[0].mxu0
      %v1563 = vadd.f32 0.0, %v1562
      %v1564 = vpop.f32.mrb[0].mxu0
      %1565 = vmatprep.mubr.f32.mxu0 0.0
      %1566 = vmatmul.mubr.f32.gmra.mrb[0].mxu0 %v711
      %v1567 = vpop.f32.mrb[0].mxu0
      %v1568 = vadd.f32 0.0, %v1567
      %v1569 = vpop.f32.mrb[0].mxu0
      %1570 = vmatprep.mubr.f32.mxu0 0.0
      %1571 = vmatmul.mubr.f32.gmra.mrb[0].mxu0 %v713
      %v1572 = vpop.f32.mrb[0].mxu0
      %v1573 = vadd.f32 0.0, %v1572
      %v1574 = vpop.f32.mrb[0].mxu0
      %1575 = vmatprep.mubr.f32.mxu0 0.0
      %1576 = vmatmul.mubr.f32.gmra.mrb[0].mxu0 %v1353
      %v1577 = vpop.f32.mrb[0].mxu0
      %v1578 = vadd.f32 0.0, %v1577
      %v1579 = vpop.f32.mrb[0].mxu0
      %1580 = vmatprep.mubr.f32.mxu0 0.0
      %1581 = vmatmul.mubr.f32.gmra.mrb[0].mxu0 %v1356
      %v1582 = vpop.f32.mrb[0].mxu0
      %v1583 = vadd.f32 0.0, %v1582
      %v1584 = vpop.f32.mrb[0].mxu0
      %1585 = vdwg.mxu0
      %v1586 = vadd.f32 %v1318, %v1428
      %v1587 = vadd.f32 %v1319, %v1433
      %v1588 = vadd.f32 %v1320, %v1438
      %v1589 = vadd.f32 %v1321, %v1443
      %v1590 = vadd.f32 %v1322, %v1448
      %v1591 = vadd.f32 %v1323, %v1453
      %v1592 = vadd.f32 %v1324, %v1458
      %v1593 = vadd.f32 %v1325, %v1463
      %v1594 = vadd.f32 %v1326, %v1468
      %v1595 = vadd.f32 %v1327, %v1473
      %v1596 = vadd.f32 %v1328, %v1478
      %v1597 = vadd.f32 %v1329, %v1483
      %v1598 = vadd.f32 %v1330, %v1488
      %v1599 = vadd.f32 %v1331, %v1493
      %v1600 = vadd.f32 %v1332, %v1498
      %v1601 = vadd.f32 %v1333, %v1503
      %v1602 = vadd.f32 %v1334, %v1508
      %v1603 = vadd.f32 %v1335, %v1513
      %v1604 = vadd.f32 %v1336, %v1518
      %v1605 = vadd.f32 %v1337, %v1523
      %v1606 = vadd.f32 %v1338, %v1528
      %v1607 = vadd.f32 %v1339, %v1533
      %v1608 = vadd.f32 %v1340, %v1538
      %v1609 = vadd.f32 %v1341, %v1543
      %v1610 = vadd.f32 %v1342, %v1548
      %v1611 = vadd.f32 %v1343, %v1553
      %v1612 = vadd.f32 %v1344, %v1558
      %v1613 = vadd.f32 %v1345, %v1563
      %v1614 = vadd.f32 %v1346, %v1568
      %v1615 = vadd.f32 %v1347, %v1573
      %v1616 = vadd.f32 %v1348, %v1578
      %v1617 = vadd.f32 %v1349, %v1583
      %v1619 = vrot.slane %v219, 1
      %v1620 = vrot.slane %v220, 1
      %v1621 = vsel %vm274, %v1619, %v1620
      %v1622 = vrot.slane %v221, 1
      %v1623 = vsel %vm274, %v1620, %v1622
      %s1624 = scalar_lea.vmem %s1, 16
      %v1625 = vld [vmem:[%s1624] sm:$0xf]
      %v1626 = vsel %vm357, %v1621, 0
      %v1628 = vsel %vm357, %v1623, 0
      %v1631 = vsel %vm422, %v1625, 0
      %1633 = vmatprep.subr.mxu0 0.0
      %1634 = vmatpush1.msra.mxu0 %v1631
      %1635 = vmatprep.subr.mxu0 0.0
      %1636 = vmatpush1.msra.mxu0 0.0
      %1637 = vmatprep.subr.mxu0 0.0
      %1638 = vmatpush1.msra.mxu0 0.0
      %1639 = vmatprep.subr.mxu0 0.0
      %1640 = vmatpush1.msra.mxu0 0.0
      %1641 = vmatprep.subr.mxu0 0.0
      %1642 = vmatpush1.msra.mxu0 0.0
      %1643 = vmatprep.subr.mxu0 0.0
      %1644 = vmatpush1.msra.mxu0 0.0
      %1645 = vmatprep.subr.mxu0 0.0
      %1646 = vmatpush1.msra.mxu0 0.0
      %1647 = vmatprep.subr.mxu0 0.0
      %1648 = vmatpush1.msra.mxu0 0.0
      %1649 = vmatprep.subr.mxu0 0.0
      %1650 = vmatpush1.msra.mxu0 0.0
      %1651 = vmatprep.subr.mxu0 0.0
      %1652 = vmatpush1.msra.mxu0 0.0
      %1653 = vmatprep.subr.mxu0 0.0
      %1654 = vmatpush1.msra.mxu0 0.0
      %1655 = vmatprep.subr.mxu0 0.0
      %1656 = vmatpush1.msra.mxu0 0.0
      %1657 = vmatprep.subr.mxu0 0.0
      %1658 = vmatpush1.msra.mxu0 0.0
      %1659 = vmatprep.subr.mxu0 0.0
      %1660 = vmatpush1.msra.mxu0 0.0
      %1661 = vmatprep.subr.mxu0 0.0
      %1662 = vmatpush1.msra.mxu0 0.0
      %1663 = vmatprep.subr.mxu0 0.0
      %1664 = vmatpush1.msra.mxu0 0.0
      %1665 = vmatprep.subr.mxu0 0.0
      %1666 = vmatpush1.msra.mxu0 0.0
      %1667 = vmatprep.subr.mxu0 0.0
      %1668 = vmatpush1.msra.mxu0 0.0
      %1669 = vmatprep.subr.mxu0 0.0
      %1670 = vmatpush1.msra.mxu0 0.0
      %1671 = vmatprep.subr.mxu0 0.0
      %1672 = vmatpush1.msra.mxu0 0.0
      %1673 = vmatprep.subr.mxu0 0.0
      %1674 = vmatpush1.msra.mxu0 0.0
      %1675 = vmatprep.subr.mxu0 0.0
      %1676 = vmatpush1.msra.mxu0 0.0
      %1677 = vmatprep.subr.mxu0 0.0
      %1678 = vmatpush1.msra.mxu0 0.0
      %1679 = vmatprep.subr.mxu0 0.0
      %1680 = vmatpush1.msra.mxu0 0.0
      %1681 = vmatprep.subr.mxu0 0.0
      %1682 = vmatpush1.msra.mxu0 0.0
      %1683 = vmatprep.subr.mxu0 0.0
      %1684 = vmatpush1.msra.mxu0 0.0
      %1685 = vmatprep.subr.mxu0 0.0
      %1686 = vmatpush1.msra.mxu0 0.0
      %1687 = vmatprep.subr.mxu0 0.0
      %1688 = vmatpush1.msra.mxu0 0.0
      %1689 = vmatprep.subr.mxu0 0.0
      %1690 = vmatpush1.msra.mxu0 0.0
      %1691 = vmatprep.subr.mxu0 0.0
      %1692 = vmatpush1.msra.mxu0 0.0
      %1693 = vmatprep.subr.mxu0 0.0
      %1694 = vmatpush1.msra.mxu0 0.0
      %1695 = vmatprep.subr.mxu0 0.0
      %1696 = vmatpush1.msra.mxu0 0.0
      %1697 = vmatprep.mubr.f32.mxu0 0.0
      %1698 = vmatmul.mubr.f32.gmra.mrb[0].mxu0 %v362
      %v1699 = vpop.f32.mrb[0].mxu0
      %v1700 = vadd.f32 0.0, %v1699
      %v1701 = vpop.f32.mrb[0].mxu0
      %1702 = vmatprep.mubr.f32.mxu0 0.0
      %1703 = vmatmul.mubr.f32.gmra.mrb[0].mxu0 %v364
      %v1704 = vpop.f32.mrb[0].mxu0
      %v1705 = vadd.f32 0.0, %v1704
      %v1706 = vpop.f32.mrb[0].mxu0
      %1707 = vmatprep.mubr.f32.mxu0 0.0
      %1708 = vmatmul.mubr.f32.gmra.mrb[0].mxu0 %v366
      %v1709 = vpop.f32.mrb[0].mxu0
      %v1710 = vadd.f32 0.0, %v1709
      %v1711 = vpop.f32.mrb[0].mxu0
      %1712 = vmatprep.mubr.f32.mxu0 0.0
      %1713 = vmatmul.mubr.f32.gmra.mrb[0].mxu0 %v368
      %v1714 = vpop.f32.mrb[0].mxu0
      %v1715 = vadd.f32 0.0, %v1714
      %v1716 = vpop.f32.mrb[0].mxu0
      %1717 = vmatprep.mubr.f32.mxu0 0.0
      %1718 = vmatmul.mubr.f32.gmra.mrb[0].mxu0 %v370
      %v1719 = vpop.f32.mrb[0].mxu0
      %v1720 = vadd.f32 0.0, %v1719
      %v1721 = vpop.f32.mrb[0].mxu0
      %1722 = vmatprep.mubr.f32.mxu0 0.0
      %1723 = vmatmul.mubr.f32.gmra.mrb[0].mxu0 %v372
      %v1724 = vpop.f32.mrb[0].mxu0
      %v1725 = vadd.f32 0.0, %v1724
      %v1726 = vpop.f32.mrb[0].mxu0
      %1727 = vmatprep.mubr.f32.mxu0 0.0
      %1728 = vmatmul.mubr.f32.gmra.mrb[0].mxu0 %v374
      %v1729 = vpop.f32.mrb[0].mxu0
      %v1730 = vadd.f32 0.0, %v1729
      %v1731 = vpop.f32.mrb[0].mxu0
      %1732 = vmatprep.mubr.f32.mxu0 0.0
      %1733 = vmatmul.mubr.f32.gmra.mrb[0].mxu0 %v376
      %v1734 = vpop.f32.mrb[0].mxu0
      %v1735 = vadd.f32 0.0, %v1734
      %v1736 = vpop.f32.mrb[0].mxu0
      %1737 = vmatprep.mubr.f32.mxu0 0.0
      %1738 = vmatmul.mubr.f32.gmra.mrb[0].mxu0 %v378
      %v1739 = vpop.f32.mrb[0].mxu0
      %v1740 = vadd.f32 0.0, %v1739
      %v1741 = vpop.f32.mrb[0].mxu0
      %1742 = vmatprep.mubr.f32.mxu0 0.0
      %1743 = vmatmul.mubr.f32.gmra.mrb[0].mxu0 %v380
      %v1744 = vpop.f32.mrb[0].mxu0
      %v1745 = vadd.f32 0.0, %v1744
      %v1746 = vpop.f32.mrb[0].mxu0
      %1747 = vmatprep.mubr.f32.mxu0 0.0
      %1748 = vmatmul.mubr.f32.gmra.mrb[0].mxu0 %v382
      %v1749 = vpop.f32.mrb[0].mxu0
      %v1750 = vadd.f32 0.0, %v1749
      %v1751 = vpop.f32.mrb[0].mxu0
      %1752 = vmatprep.mubr.f32.mxu0 0.0
      %1753 = vmatmul.mubr.f32.gmra.mrb[0].mxu0 %v384
      %v1754 = vpop.f32.mrb[0].mxu0
      %v1755 = vadd.f32 0.0, %v1754
      %v1756 = vpop.f32.mrb[0].mxu0
      %1757 = vmatprep.mubr.f32.mxu0 0.0
      %1758 = vmatmul.mubr.f32.gmra.mrb[0].mxu0 %v386
      %v1759 = vpop.f32.mrb[0].mxu0
      %v1760 = vadd.f32 0.0, %v1759
      %v1761 = vpop.f32.mrb[0].mxu0
      %1762 = vmatprep.mubr.f32.mxu0 0.0
      %1763 = vmatmul.mubr.f32.gmra.mrb[0].mxu0 %v388
      %v1764 = vpop.f32.mrb[0].mxu0
      %v1765 = vadd.f32 0.0, %v1764
      %v1766 = vpop.f32.mrb[0].mxu0
      %1767 = vmatprep.mubr.f32.mxu0 0.0
      %1768 = vmatmul.mubr.f32.gmra.mrb[0].mxu0 %v390
      %v1769 = vpop.f32.mrb[0].mxu0
      %v1770 = vadd.f32 0.0, %v1769
      %v1771 = vpop.f32.mrb[0].mxu0
      %1772 = vmatprep.mubr.f32.mxu0 0.0
      %1773 = vmatmul.mubr.f32.gmra.mrb[0].mxu0 %v392
      %v1774 = vpop.f32.mrb[0].mxu0
      %v1775 = vadd.f32 0.0, %v1774
      %v1776 = vpop.f32.mrb[0].mxu0
      %1777 = vmatprep.mubr.f32.mxu0 0.0
      %1778 = vmatmul.mubr.f32.gmra.mrb[0].mxu0 %v394
      %v1779 = vpop.f32.mrb[0].mxu0
      %v1780 = vadd.f32 0.0, %v1779
      %v1781 = vpop.f32.mrb[0].mxu0
      %1782 = vmatprep.mubr.f32.mxu0 0.0
      %1783 = vmatmul.mubr.f32.gmra.mrb[0].mxu0 %v396
      %v1784 = vpop.f32.mrb[0].mxu0
      %v1785 = vadd.f32 0.0, %v1784
      %v1786 = vpop.f32.mrb[0].mxu0
      %1787 = vmatprep.mubr.f32.mxu0 0.0
      %1788 = vmatmul.mubr.f32.gmra.mrb[0].mxu0 %v398
      %v1789 = vpop.f32.mrb[0].mxu0
      %v1790 = vadd.f32 0.0, %v1789
      %v1791 = vpop.f32.mrb[0].mxu0
      %1792 = vmatprep.mubr.f32.mxu0 0.0
      %1793 = vmatmul.mubr.f32.gmra.mrb[0].mxu0 %v400
      %v1794 = vpop.f32.mrb[0].mxu0
      %v1795 = vadd.f32 0.0, %v1794
      %v1796 = vpop.f32.mrb[0].mxu0
      %1797 = vmatprep.mubr.f32.mxu0 0.0
      %1798 = vmatmul.mubr.f32.gmra.mrb[0].mxu0 %v402
      %v1799 = vpop.f32.mrb[0].mxu0
      %v1800 = vadd.f32 0.0, %v1799
      %v1801 = vpop.f32.mrb[0].mxu0
      %1802 = vmatprep.mubr.f32.mxu0 0.0
      %1803 = vmatmul.mubr.f32.gmra.mrb[0].mxu0 %v404
      %v1804 = vpop.f32.mrb[0].mxu0
      %v1805 = vadd.f32 0.0, %v1804
      %v1806 = vpop.f32.mrb[0].mxu0
      %1807 = vmatprep.mubr.f32.mxu0 0.0
      %1808 = vmatmul.mubr.f32.gmra.mrb[0].mxu0 %v406
      %v1809 = vpop.f32.mrb[0].mxu0
      %v1810 = vadd.f32 0.0, %v1809
      %v1811 = vpop.f32.mrb[0].mxu0
      %1812 = vmatprep.mubr.f32.mxu0 0.0
      %1813 = vmatmul.mubr.f32.gmra.mrb[0].mxu0 %v408
      %v1814 = vpop.f32.mrb[0].mxu0
      %v1815 = vadd.f32 0.0, %v1814
      %v1816 = vpop.f32.mrb[0].mxu0
      %1817 = vmatprep.mubr.f32.mxu0 0.0
      %1818 = vmatmul.mubr.f32.gmra.mrb[0].mxu0 %v410
      %v1819 = vpop.f32.mrb[0].mxu0
      %v1820 = vadd.f32 0.0, %v1819
      %v1821 = vpop.f32.mrb[0].mxu0
      %1822 = vmatprep.mubr.f32.mxu0 0.0
      %1823 = vmatmul.mubr.f32.gmra.mrb[0].mxu0 %v412
      %v1824 = vpop.f32.mrb[0].mxu0
      %v1825 = vadd.f32 0.0, %v1824
      %v1826 = vpop.f32.mrb[0].mxu0
      %1827 = vmatprep.mubr.f32.mxu0 0.0
      %1828 = vmatmul.mubr.f32.gmra.mrb[0].mxu0 %v414
      %v1829 = vpop.f32.mrb[0].mxu0
      %v1830 = vadd.f32 0.0, %v1829
      %v1831 = vpop.f32.mrb[0].mxu0
      %1832 = vmatprep.mubr.f32.mxu0 0.0
      %1833 = vmatmul.mubr.f32.gmra.mrb[0].mxu0 %v416
      %v1834 = vpop.f32.mrb[0].mxu0
      %v1835 = vadd.f32 0.0, %v1834
      %v1836 = vpop.f32.mrb[0].mxu0
      %1837 = vmatprep.mubr.f32.mxu0 0.0
      %1838 = vmatmul.mubr.f32.gmra.mrb[0].mxu0 %v418
      %v1839 = vpop.f32.mrb[0].mxu0
      %v1840 = vadd.f32 0.0, %v1839
      %v1841 = vpop.f32.mrb[0].mxu0
      %1842 = vmatprep.mubr.f32.mxu0 0.0
      %1843 = vmatmul.mubr.f32.gmra.mrb[0].mxu0 %v420
      %v1844 = vpop.f32.mrb[0].mxu0
      %v1845 = vadd.f32 0.0, %v1844
      %v1846 = vpop.f32.mrb[0].mxu0
      %1847 = vmatprep.mubr.f32.mxu0 0.0
      %1848 = vmatmul.mubr.f32.gmra.mrb[0].mxu0 %v1626
      %v1849 = vpop.f32.mrb[0].mxu0
      %v1850 = vadd.f32 0.0, %v1849
      %v1851 = vpop.f32.mrb[0].mxu0
      %1852 = vmatprep.mubr.f32.mxu0 0.0
      %1853 = vmatmul.mubr.f32.gmra.mrb[0].mxu0 %v1628
      %v1854 = vpop.f32.mrb[0].mxu0
      %v1855 = vadd.f32 0.0, %v1854
      %v1856 = vpop.f32.mrb[0].mxu0
      %1857 = vdwg.mxu0
      %v1858 = vadd.f32 %v1586, %v1700
      %v1859 = vadd.f32 %v1587, %v1705
      %v1860 = vadd.f32 %v1588, %v1710
      %v1861 = vadd.f32 %v1589, %v1715
      %v1862 = vadd.f32 %v1590, %v1720
      %v1863 = vadd.f32 %v1591, %v1725
      %v1864 = vadd.f32 %v1592, %v1730
      %v1865 = vadd.f32 %v1593, %v1735
      %v1866 = vadd.f32 %v1594, %v1740
      %v1867 = vadd.f32 %v1595, %v1745
      %v1868 = vadd.f32 %v1596, %v1750
      %v1869 = vadd.f32 %v1597, %v1755
      %v1870 = vadd.f32 %v1598, %v1760
      %v1871 = vadd.f32 %v1599, %v1765
      %v1872 = vadd.f32 %v1600, %v1770
      %v1873 = vadd.f32 %v1601, %v1775
      %v1874 = vadd.f32 %v1602, %v1780
      %v1875 = vadd.f32 %v1603, %v1785
      %v1876 = vadd.f32 %v1604, %v1790
      %v1877 = vadd.f32 %v1605, %v1795
      %v1878 = vadd.f32 %v1606, %v1800
      %v1879 = vadd.f32 %v1607, %v1805
      %v1880 = vadd.f32 %v1608, %v1810
      %v1881 = vadd.f32 %v1609, %v1815
      %v1882 = vadd.f32 %v1610, %v1820
      %v1883 = vadd.f32 %v1611, %v1825
      %v1884 = vadd.f32 %v1612, %v1830
      %v1885 = vadd.f32 %v1613, %v1835
      %v1886 = vadd.f32 %v1614, %v1840
      %v1887 = vadd.f32 %v1615, %v1845
      %v1888 = vadd.f32 %v1616, %v1850
      %v1889 = vadd.f32 %v1617, %v1855
      %v1890 = vrot.slane %v219, 2
      %v1891 = vrot.slane %v220, 2
      %v1892 = vsel %vm943, %v1890, %v1891
      %v1893 = vrot.slane %v221, 2
      %v1894 = vsel %vm943, %v1891, %v1893
      %s1895 = scalar_lea.vmem %s1, 20
      %v1896 = vld [vmem:[%s1895] sm:$0xf]
      %v1897 = vsel %vm357, %v1892, 0
      %v1899 = vsel %vm357, %v1894, 0
      %v1902 = vsel %vm422, %v1896, 0
      %1904 = vmatprep.subr.mxu0 0.0
      %1905 = vmatpush1.msra.mxu0 %v1902
      %1906 = vmatprep.subr.mxu0 0.0
      %1907 = vmatpush1.msra.mxu0 0.0
      %1908 = vmatprep.subr.mxu0 0.0
      %1909 = vmatpush1.msra.mxu0 0.0
      %1910 = vmatprep.subr.mxu0 0.0
      %1911 = vmatpush1.msra.mxu0 0.0
      %1912 = vmatprep.subr.mxu0 0.0
      %1913 = vmatpush1.msra.mxu0 0.0
      %1914 = vmatprep.subr.mxu0 0.0
      %1915 = vmatpush1.msra.mxu0 0.0
      %1916 = vmatprep.subr.mxu0 0.0
      %1917 = vmatpush1.msra.mxu0 0.0
      %1918 = vmatprep.subr.mxu0 0.0
      %1919 = vmatpush1.msra.mxu0 0.0
      %1920 = vmatprep.subr.mxu0 0.0
      %1921 = vmatpush1.msra.mxu0 0.0
      %1922 = vmatprep.subr.mxu0 0.0
      %1923 = vmatpush1.msra.mxu0 0.0
      %1924 = vmatprep.subr.mxu0 0.0
      %1925 = vmatpush1.msra.mxu0 0.0
      %1926 = vmatprep.subr.mxu0 0.0
      %1927 = vmatpush1.msra.mxu0 0.0
      %1928 = vmatprep.subr.mxu0 0.0
      %1929 = vmatpush1.msra.mxu0 0.0
      %1930 = vmatprep.subr.mxu0 0.0
      %1931 = vmatpush1.msra.mxu0 0.0
      %1932 = vmatprep.subr.mxu0 0.0
      %1933 = vmatpush1.msra.mxu0 0.0
      %1934 = vmatprep.subr.mxu0 0.0
      %1935 = vmatpush1.msra.mxu0 0.0
      %1936 = vmatprep.subr.mxu0 0.0
      %1937 = vmatpush1.msra.mxu0 0.0
      %1938 = vmatprep.subr.mxu0 0.0
      %1939 = vmatpush1.msra.mxu0 0.0
      %1940 = vmatprep.subr.mxu0 0.0
      %1941 = vmatpush1.msra.mxu0 0.0
      %1942 = vmatprep.subr.mxu0 0.0
      %1943 = vmatpush1.msra.mxu0 0.0
      %1944 = vmatprep.subr.mxu0 0.0
      %1945 = vmatpush1.msra.mxu0 0.0
      %1946 = vmatprep.subr.mxu0 0.0
      %1947 = vmatpush1.msra.mxu0 0.0
      %1948 = vmatprep.subr.mxu0 0.0
      %1949 = vmatpush1.msra.mxu0 0.0
      %1950 = vmatprep.subr.mxu0 0.0
      %1951 = vmatpush1.msra.mxu0 0.0
      %1952 = vmatprep.subr.mxu0 0.0
      %1953 = vmatpush1.msra.mxu0 0.0
      %1954 = vmatprep.subr.mxu0 0.0
      %1955 = vmatpush1.msra.mxu0 0.0
      %1956 = vmatprep.subr.mxu0 0.0
      %1957 = vmatpush1.msra.mxu0 0.0
      %1958 = vmatprep.subr.mxu0 0.0
      %1959 = vmatpush1.msra.mxu0 0.0
      %1960 = vmatprep.subr.mxu0 0.0
      %1961 = vmatpush1.msra.mxu0 0.0
      %1962 = vmatprep.subr.mxu0 0.0
      %1963 = vmatpush1.msra.mxu0 0.0
      %1964 = vmatprep.subr.mxu0 0.0
      %1965 = vmatpush1.msra.mxu0 0.0
      %1966 = vmatprep.subr.mxu0 0.0
      %1967 = vmatpush1.msra.mxu0 0.0
      %1968 = vmatprep.mubr.f32.mxu0 0.0
      %1969 = vmatmul.mubr.f32.gmra.mrb[0].mxu0 %v1030
      %v1970 = vpop.f32.mrb[0].mxu0
      %v1971 = vadd.f32 0.0, %v1970
      %v1972 = vpop.f32.mrb[0].mxu0
      %1973 = vmatprep.mubr.f32.mxu0 0.0
      %1974 = vmatmul.mubr.f32.gmra.mrb[0].mxu0 %v1032
      %v1975 = vpop.f32.mrb[0].mxu0
      %v1976 = vadd.f32 0.0, %v1975
      %v1977 = vpop.f32.mrb[0].mxu0
      %1978 = vmatprep.mubr.f32.mxu0 0.0
      %1979 = vmatmul.mubr.f32.gmra.mrb[0].mxu0 %v1034
      %v1980 = vpop.f32.mrb[0].mxu0
      %v1981 = vadd.f32 0.0, %v1980
      %v1982 = vpop.f32.mrb[0].mxu0
      %1983 = vmatprep.mubr.f32.mxu0 0.0
      %1984 = vmatmul.mubr.f32.gmra.mrb[0].mxu0 %v1036
      %v1985 = vpop.f32.mrb[0].mxu0
      %v1986 = vadd.f32 0.0, %v1985
      %v1987 = vpop.f32.mrb[0].mxu0
      %1988 = vmatprep.mubr.f32.mxu0 0.0
      %1989 = vmatmul.mubr.f32.gmra.mrb[0].mxu0 %v1038
      %v1990 = vpop.f32.mrb[0].mxu0
      %v1991 = vadd.f32 0.0, %v1990
      %v1992 = vpop.f32.mrb[0].mxu0
      %1993 = vmatprep.mubr.f32.mxu0 0.0
      %1994 = vmatmul.mubr.f32.gmra.mrb[0].mxu0 %v1040
      %v1995 = vpop.f32.mrb[0].mxu0
      %v1996 = vadd.f32 0.0, %v1995
      %v1997 = vpop.f32.mrb[0].mxu0
      %1998 = vmatprep.mubr.f32.mxu0 0.0
      %1999 = vmatmul.mubr.f32.gmra.mrb[0].mxu0 %v1042
      %v2000 = vpop.f32.mrb[0].mxu0
      %v2001 = vadd.f32 0.0, %v2000
      %v2002 = vpop.f32.mrb[0].mxu0
      %2003 = vmatprep.mubr.f32.mxu0 0.0
      %2004 = vmatmul.mubr.f32.gmra.mrb[0].mxu0 %v1044
      %v2005 = vpop.f32.mrb[0].mxu0
      %v2006 = vadd.f32 0.0, %v2005
      %v2007 = vpop.f32.mrb[0].mxu0
      %2008 = vmatprep.mubr.f32.mxu0 0.0
      %2009 = vmatmul.mubr.f32.gmra.mrb[0].mxu0 %v1046
      %v2010 = vpop.f32.mrb[0].mxu0
      %v2011 = vadd.f32 0.0, %v2010
      %v2012 = vpop.f32.mrb[0].mxu0
      %2013 = vmatprep.mubr.f32.mxu0 0.0
      %2014 = vmatmul.mubr.f32.gmra.mrb[0].mxu0 %v1048
      %v2015 = vpop.f32.mrb[0].mxu0
      %v2016 = vadd.f32 0.0, %v2015
      %v2017 = vpop.f32.mrb[0].mxu0
      %2018 = vmatprep.mubr.f32.mxu0 0.0
      %2019 = vmatmul.mubr.f32.gmra.mrb[0].mxu0 %v1050
      %v2020 = vpop.f32.mrb[0].mxu0
      %v2021 = vadd.f32 0.0, %v2020
      %v2022 = vpop.f32.mrb[0].mxu0
      %2023 = vmatprep.mubr.f32.mxu0 0.0
      %2024 = vmatmul.mubr.f32.gmra.mrb[0].mxu0 %v1052
      %v2025 = vpop.f32.mrb[0].mxu0
      %v2026 = vadd.f32 0.0, %v2025
      %v2027 = vpop.f32.mrb[0].mxu0
      %2028 = vmatprep.mubr.f32.mxu0 0.0
      %2029 = vmatmul.mubr.f32.gmra.mrb[0].mxu0 %v1054
      %v2030 = vpop.f32.mrb[0].mxu0
      %v2031 = vadd.f32 0.0, %v2030
      %v2032 = vpop.f32.mrb[0].mxu0
      %2033 = vmatprep.mubr.f32.mxu0 0.0
      %2034 = vmatmul.mubr.f32.gmra.mrb[0].mxu0 %v1056
      %v2035 = vpop.f32.mrb[0].mxu0
      %v2036 = vadd.f32 0.0, %v2035
      %v2037 = vpop.f32.mrb[0].mxu0
      %2038 = vmatprep.mubr.f32.mxu0 0.0
      %2039 = vmatmul.mubr.f32.gmra.mrb[0].mxu0 %v1058
      %v2040 = vpop.f32.mrb[0].mxu0
      %v2041 = vadd.f32 0.0, %v2040
      %v2042 = vpop.f32.mrb[0].mxu0
      %2043 = vmatprep.mubr.f32.mxu0 0.0
      %2044 = vmatmul.mubr.f32.gmra.mrb[0].mxu0 %v1060
      %v2045 = vpop.f32.mrb[0].mxu0
      %v2046 = vadd.f32 0.0, %v2045
      %v2047 = vpop.f32.mrb[0].mxu0
      %2048 = vmatprep.mubr.f32.mxu0 0.0
      %2049 = vmatmul.mubr.f32.gmra.mrb[0].mxu0 %v1062
      %v2050 = vpop.f32.mrb[0].mxu0
      %v2051 = vadd.f32 0.0, %v2050
      %v2052 = vpop.f32.mrb[0].mxu0
      %2053 = vmatprep.mubr.f32.mxu0 0.0
      %2054 = vmatmul.mubr.f32.gmra.mrb[0].mxu0 %v1064
      %v2055 = vpop.f32.mrb[0].mxu0
      %v2056 = vadd.f32 0.0, %v2055
      %v2057 = vpop.f32.mrb[0].mxu0
      %2058 = vmatprep.mubr.f32.mxu0 0.0
      %2059 = vmatmul.mubr.f32.gmra.mrb[0].mxu0 %v1066
      %v2060 = vpop.f32.mrb[0].mxu0
      %v2061 = vadd.f32 0.0, %v2060
      %v2062 = vpop.f32.mrb[0].mxu0
      %2063 = vmatprep.mubr.f32.mxu0 0.0
      %2064 = vmatmul.mubr.f32.gmra.mrb[0].mxu0 %v1068
      %v2065 = vpop.f32.mrb[0].mxu0
      %v2066 = vadd.f32 0.0, %v2065
      %v2067 = vpop.f32.mrb[0].mxu0
      %2068 = vmatprep.mubr.f32.mxu0 0.0
      %2069 = vmatmul.mubr.f32.gmra.mrb[0].mxu0 %v1070
      %v2070 = vpop.f32.mrb[0].mxu0
      %v2071 = vadd.f32 0.0, %v2070
      %v2072 = vpop.f32.mrb[0].mxu0
      %2073 = vmatprep.mubr.f32.mxu0 0.0
      %2074 = vmatmul.mubr.f32.gmra.mrb[0].mxu0 %v1072
      %v2075 = vpop.f32.mrb[0].mxu0
      %v2076 = vadd.f32 0.0, %v2075
      %v2077 = vpop.f32.mrb[0].mxu0
      %2078 = vmatprep.mubr.f32.mxu0 0.0
      %2079 = vmatmul.mubr.f32.gmra.mrb[0].mxu0 %v1074
      %v2080 = vpop.f32.mrb[0].mxu0
      %v2081 = vadd.f32 0.0, %v2080
      %v2082 = vpop.f32.mrb[0].mxu0
      %2083 = vmatprep.mubr.f32.mxu0 0.0
      %2084 = vmatmul.mubr.f32.gmra.mrb[0].mxu0 %v1076
      %v2085 = vpop.f32.mrb[0].mxu0
      %v2086 = vadd.f32 0.0, %v2085
      %v2087 = vpop.f32.mrb[0].mxu0
      %2088 = vmatprep.mubr.f32.mxu0 0.0
      %2089 = vmatmul.mubr.f32.gmra.mrb[0].mxu0 %v1078
      %v2090 = vpop.f32.mrb[0].mxu0
      %v2091 = vadd.f32 0.0, %v2090
      %v2092 = vpop.f32.mrb[0].mxu0
      %2093 = vmatprep.mubr.f32.mxu0 0.0
      %2094 = vmatmul.mubr.f32.gmra.mrb[0].mxu0 %v1080
      %v2095 = vpop.f32.mrb[0].mxu0
      %v2096 = vadd.f32 0.0, %v2095
      %v2097 = vpop.f32.mrb[0].mxu0
      %2098 = vmatprep.mubr.f32.mxu0 0.0
      %2099 = vmatmul.mubr.f32.gmra.mrb[0].mxu0 %v1082
      %v2100 = vpop.f32.mrb[0].mxu0
      %v2101 = vadd.f32 0.0, %v2100
      %v2102 = vpop.f32.mrb[0].mxu0
      %2103 = vmatprep.mubr.f32.mxu0 0.0
      %2104 = vmatmul.mubr.f32.gmra.mrb[0].mxu0 %v1084
      %v2105 = vpop.f32.mrb[0].mxu0
      %v2106 = vadd.f32 0.0, %v2105
      %v2107 = vpop.f32.mrb[0].mxu0
      %2108 = vmatprep.mubr.f32.mxu0 0.0
      %2109 = vmatmul.mubr.f32.gmra.mrb[0].mxu0 %v1086
      %v2110 = vpop.f32.mrb[0].mxu0
      %v2111 = vadd.f32 0.0, %v2110
      %v2112 = vpop.f32.mrb[0].mxu0
      %2113 = vmatprep.mubr.f32.mxu0 0.0
      %2114 = vmatmul.mubr.f32.gmra.mrb[0].mxu0 %v1088
      %v2115 = vpop.f32.mrb[0].mxu0
      %v2116 = vadd.f32 0.0, %v2115
      %v2117 = vpop.f32.mrb[0].mxu0
      %2118 = vmatprep.mubr.f32.mxu0 0.0
      %2119 = vmatmul.mubr.f32.gmra.mrb[0].mxu0 %v1897
      %v2120 = vpop.f32.mrb[0].mxu0
      %v2121 = vadd.f32 0.0, %v2120
      %v2122 = vpop.f32.mrb[0].mxu0
      %2123 = vmatprep.mubr.f32.mxu0 0.0
      %2124 = vmatmul.mubr.f32.gmra.mrb[0].mxu0 %v1899
      %v2125 = vpop.f32.mrb[0].mxu0
      %v2126 = vadd.f32 0.0, %v2125
      %v2127 = vpop.f32.mrb[0].mxu0
      %2128 = vdwg.mxu0
      %v2129 = vadd.f32 %v1858, %v1971
      %v2130 = vadd.f32 %v1859, %v1976
      %v2131 = vadd.f32 %v1860, %v1981
      %v2132 = vadd.f32 %v1861, %v1986
      %v2133 = vadd.f32 %v1862, %v1991
      %v2134 = vadd.f32 %v1863, %v1996
      %v2135 = vadd.f32 %v1864, %v2001
      %v2136 = vadd.f32 %v1865, %v2006
      %v2137 = vadd.f32 %v1866, %v2011
      %v2138 = vadd.f32 %v1867, %v2016
      %v2139 = vadd.f32 %v1868, %v2021
      %v2140 = vadd.f32 %v1869, %v2026
      %v2141 = vadd.f32 %v1870, %v2031
      %v2142 = vadd.f32 %v1871, %v2036
      %v2143 = vadd.f32 %v1872, %v2041
      %v2144 = vadd.f32 %v1873, %v2046
      %v2145 = vadd.f32 %v1874, %v2051
      %v2146 = vadd.f32 %v1875, %v2056
      %v2147 = vadd.f32 %v1876, %v2061
      %v2148 = vadd.f32 %v1877, %v2066
      %v2149 = vadd.f32 %v1878, %v2071
      %v2150 = vadd.f32 %v1879, %v2076
      %v2151 = vadd.f32 %v1880, %v2081
      %v2152 = vadd.f32 %v1881, %v2086
      %v2153 = vadd.f32 %v1882, %v2091
      %v2154 = vadd.f32 %v1883, %v2096
      %v2155 = vadd.f32 %v1884, %v2101
      %v2156 = vadd.f32 %v1885, %v2106
      %v2157 = vadd.f32 %v1886, %v2111
      %v2158 = vadd.f32 %v1887, %v2116
      %v2159 = vadd.f32 %v1888, %v2121
      %v2160 = vadd.f32 %v1889, %v2126
      %s2161 = scalar_lea.vmem %s1, 24
      %v2162 = vld [vmem:[%s2161] sm:$0xf]
      %v2164 = vsel %vm357, %v222, 0
      %v2167 = vsel %vm357, %v223, 0
      %v2170 = vsel %vm422, %v2162, 0
      %2172 = vmatprep.subr.mxu0 0.0
      %2173 = vmatpush1.msra.mxu0 %v2170
      %2174 = vmatprep.subr.mxu0 0.0
      %2175 = vmatpush1.msra.mxu0 0.0
      %2176 = vmatprep.subr.mxu0 0.0
      %2177 = vmatpush1.msra.mxu0 0.0
      %2178 = vmatprep.subr.mxu0 0.0
      %2179 = vmatpush1.msra.mxu0 0.0
      %2180 = vmatprep.subr.mxu0 0.0
      %2181 = vmatpush1.msra.mxu0 0.0
      %2182 = vmatprep.subr.mxu0 0.0
      %2183 = vmatpush1.msra.mxu0 0.0
      %2184 = vmatprep.subr.mxu0 0.0
      %2185 = vmatpush1.msra.mxu0 0.0
      %2186 = vmatprep.subr.mxu0 0.0
      %2187 = vmatpush1.msra.mxu0 0.0
      %2188 = vmatprep.subr.mxu0 0.0
      %2189 = vmatpush1.msra.mxu0 0.0
      %2190 = vmatprep.subr.mxu0 0.0
      %2191 = vmatpush1.msra.mxu0 0.0
      %2192 = vmatprep.subr.mxu0 0.0
      %2193 = vmatpush1.msra.mxu0 0.0
      %2194 = vmatprep.subr.mxu0 0.0
      %2195 = vmatpush1.msra.mxu0 0.0
      %2196 = vmatprep.subr.mxu0 0.0
      %2197 = vmatpush1.msra.mxu0 0.0
      %2198 = vmatprep.subr.mxu0 0.0
      %2199 = vmatpush1.msra.mxu0 0.0
      %2200 = vmatprep.subr.mxu0 0.0
      %2201 = vmatpush1.msra.mxu0 0.0
      %2202 = vmatprep.subr.mxu0 0.0
      %2203 = vmatpush1.msra.mxu0 0.0
      %2204 = vmatprep.subr.mxu0 0.0
      %2205 = vmatpush1.msra.mxu0 0.0
      %2206 = vmatprep.subr.mxu0 0.0
      %2207 = vmatpush1.msra.mxu0 0.0
      %2208 = vmatprep.subr.mxu0 0.0
      %2209 = vmatpush1.msra.mxu0 0.0
      %2210 = vmatprep.subr.mxu0 0.0
      %2211 = vmatpush1.msra.mxu0 0.0
      %2212 = vmatprep.subr.mxu0 0.0
      %2213 = vmatpush1.msra.mxu0 0.0
      %2214 = vmatprep.subr.mxu0 0.0
      %2215 = vmatpush1.msra.mxu0 0.0
      %2216 = vmatprep.subr.mxu0 0.0
      %2217 = vmatpush1.msra.mxu0 0.0
      %2218 = vmatprep.subr.mxu0 0.0
      %2219 = vmatpush1.msra.mxu0 0.0
      %2220 = vmatprep.subr.mxu0 0.0
      %2221 = vmatpush1.msra.mxu0 0.0
      %2222 = vmatprep.subr.mxu0 0.0
      %2223 = vmatpush1.msra.mxu0 0.0
      %2224 = vmatprep.subr.mxu0 0.0
      %2225 = vmatpush1.msra.mxu0 0.0
      %2226 = vmatprep.subr.mxu0 0.0
      %2227 = vmatpush1.msra.mxu0 0.0
      %2228 = vmatprep.subr.mxu0 0.0
      %2229 = vmatpush1.msra.mxu0 0.0
      %2230 = vmatprep.subr.mxu0 0.0
      %2231 = vmatpush1.msra.mxu0 0.0
      %2232 = vmatprep.subr.mxu0 0.0
      %2233 = vmatpush1.msra.mxu0 0.0
      %2234 = vmatprep.subr.mxu0 0.0
      %2235 = vmatpush1.msra.mxu0 0.0
      %2236 = vmatprep.mubr.f32.mxu0 0.0
      %2237 = vmatmul.mubr.f32.gmra.mrb[0].mxu0 %v659
      %v2238 = vpop.f32.mrb[0].mxu0
      %v2239 = vadd.f32 0.0, %v2238
      %v2240 = vpop.f32.mrb[0].mxu0
      %2241 = vmatprep.mubr.f32.mxu0 0.0
      %2242 = vmatmul.mubr.f32.gmra.mrb[0].mxu0 %v661
      %v2243 = vpop.f32.mrb[0].mxu0
      %v2244 = vadd.f32 0.0, %v2243
      %v2245 = vpop.f32.mrb[0].mxu0
      %2246 = vmatprep.mubr.f32.mxu0 0.0
      %2247 = vmatmul.mubr.f32.gmra.mrb[0].mxu0 %v663
      %v2248 = vpop.f32.mrb[0].mxu0
      %v2249 = vadd.f32 0.0, %v2248
      %v2250 = vpop.f32.mrb[0].mxu0
      %2251 = vmatprep.mubr.f32.mxu0 0.0
      %2252 = vmatmul.mubr.f32.gmra.mrb[0].mxu0 %v665
      %v2253 = vpop.f32.mrb[0].mxu0
      %v2254 = vadd.f32 0.0, %v2253
      %v2255 = vpop.f32.mrb[0].mxu0
      %2256 = vmatprep.mubr.f32.mxu0 0.0
      %2257 = vmatmul.mubr.f32.gmra.mrb[0].mxu0 %v667
      %v2258 = vpop.f32.mrb[0].mxu0
      %v2259 = vadd.f32 0.0, %v2258
      %v2260 = vpop.f32.mrb[0].mxu0
      %2261 = vmatprep.mubr.f32.mxu0 0.0
      %2262 = vmatmul.mubr.f32.gmra.mrb[0].mxu0 %v669
      %v2263 = vpop.f32.mrb[0].mxu0
      %v2264 = vadd.f32 0.0, %v2263
      %v2265 = vpop.f32.mrb[0].mxu0
      %2266 = vmatprep.mubr.f32.mxu0 0.0
      %2267 = vmatmul.mubr.f32.gmra.mrb[0].mxu0 %v671
      %v2268 = vpop.f32.mrb[0].mxu0
      %v2269 = vadd.f32 0.0, %v2268
      %v2270 = vpop.f32.mrb[0].mxu0
      %2271 = vmatprep.mubr.f32.mxu0 0.0
      %2272 = vmatmul.mubr.f32.gmra.mrb[0].mxu0 %v673
      %v2273 = vpop.f32.mrb[0].mxu0
      %v2274 = vadd.f32 0.0, %v2273
      %v2275 = vpop.f32.mrb[0].mxu0
      %2276 = vmatprep.mubr.f32.mxu0 0.0
      %2277 = vmatmul.mubr.f32.gmra.mrb[0].mxu0 %v675
      %v2278 = vpop.f32.mrb[0].mxu0
      %v2279 = vadd.f32 0.0, %v2278
      %v2280 = vpop.f32.mrb[0].mxu0
      %2281 = vmatprep.mubr.f32.mxu0 0.0
      %2282 = vmatmul.mubr.f32.gmra.mrb[0].mxu0 %v677
      %v2283 = vpop.f32.mrb[0].mxu0
      %v2284 = vadd.f32 0.0, %v2283
      %v2285 = vpop.f32.mrb[0].mxu0
      %2286 = vmatprep.mubr.f32.mxu0 0.0
      %2287 = vmatmul.mubr.f32.gmra.mrb[0].mxu0 %v679
      %v2288 = vpop.f32.mrb[0].mxu0
      %v2289 = vadd.f32 0.0, %v2288
      %v2290 = vpop.f32.mrb[0].mxu0
      %2291 = vmatprep.mubr.f32.mxu0 0.0
      %2292 = vmatmul.mubr.f32.gmra.mrb[0].mxu0 %v681
      %v2293 = vpop.f32.mrb[0].mxu0
      %v2294 = vadd.f32 0.0, %v2293
      %v2295 = vpop.f32.mrb[0].mxu0
      %2296 = vmatprep.mubr.f32.mxu0 0.0
      %2297 = vmatmul.mubr.f32.gmra.mrb[0].mxu0 %v683
      %v2298 = vpop.f32.mrb[0].mxu0
      %v2299 = vadd.f32 0.0, %v2298
      %v2300 = vpop.f32.mrb[0].mxu0
      %2301 = vmatprep.mubr.f32.mxu0 0.0
      %2302 = vmatmul.mubr.f32.gmra.mrb[0].mxu0 %v685
      %v2303 = vpop.f32.mrb[0].mxu0
      %v2304 = vadd.f32 0.0, %v2303
      %v2305 = vpop.f32.mrb[0].mxu0
      %2306 = vmatprep.mubr.f32.mxu0 0.0
      %2307 = vmatmul.mubr.f32.gmra.mrb[0].mxu0 %v687
      %v2308 = vpop.f32.mrb[0].mxu0
      %v2309 = vadd.f32 0.0, %v2308
      %v2310 = vpop.f32.mrb[0].mxu0
      %2311 = vmatprep.mubr.f32.mxu0 0.0
      %2312 = vmatmul.mubr.f32.gmra.mrb[0].mxu0 %v689
      %v2313 = vpop.f32.mrb[0].mxu0
      %v2314 = vadd.f32 0.0, %v2313
      %v2315 = vpop.f32.mrb[0].mxu0
      %2316 = vmatprep.mubr.f32.mxu0 0.0
      %2317 = vmatmul.mubr.f32.gmra.mrb[0].mxu0 %v691
      %v2318 = vpop.f32.mrb[0].mxu0
      %v2319 = vadd.f32 0.0, %v2318
      %v2320 = vpop.f32.mrb[0].mxu0
      %2321 = vmatprep.mubr.f32.mxu0 0.0
      %2322 = vmatmul.mubr.f32.gmra.mrb[0].mxu0 %v693
      %v2323 = vpop.f32.mrb[0].mxu0
      %v2324 = vadd.f32 0.0, %v2323
      %v2325 = vpop.f32.mrb[0].mxu0
      %2326 = vmatprep.mubr.f32.mxu0 0.0
      %2327 = vmatmul.mubr.f32.gmra.mrb[0].mxu0 %v695
      %v2328 = vpop.f32.mrb[0].mxu0
      %v2329 = vadd.f32 0.0, %v2328
      %v2330 = vpop.f32.mrb[0].mxu0
      %2331 = vmatprep.mubr.f32.mxu0 0.0
      %2332 = vmatmul.mubr.f32.gmra.mrb[0].mxu0 %v697
      %v2333 = vpop.f32.mrb[0].mxu0
      %v2334 = vadd.f32 0.0, %v2333
      %v2335 = vpop.f32.mrb[0].mxu0
      %2336 = vmatprep.mubr.f32.mxu0 0.0
      %2337 = vmatmul.mubr.f32.gmra.mrb[0].mxu0 %v699
      %v2338 = vpop.f32.mrb[0].mxu0
      %v2339 = vadd.f32 0.0, %v2338
      %v2340 = vpop.f32.mrb[0].mxu0
      %2341 = vmatprep.mubr.f32.mxu0 0.0
      %2342 = vmatmul.mubr.f32.gmra.mrb[0].mxu0 %v701
      %v2343 = vpop.f32.mrb[0].mxu0
      %v2344 = vadd.f32 0.0, %v2343
      %v2345 = vpop.f32.mrb[0].mxu0
      %2346 = vmatprep.mubr.f32.mxu0 0.0
      %2347 = vmatmul.mubr.f32.gmra.mrb[0].mxu0 %v703
      %v2348 = vpop.f32.mrb[0].mxu0
      %v2349 = vadd.f32 0.0, %v2348
      %v2350 = vpop.f32.mrb[0].mxu0
      %2351 = vmatprep.mubr.f32.mxu0 0.0
      %2352 = vmatmul.mubr.f32.gmra.mrb[0].mxu0 %v705
      %v2353 = vpop.f32.mrb[0].mxu0
      %v2354 = vadd.f32 0.0, %v2353
      %v2355 = vpop.f32.mrb[0].mxu0
      %2356 = vmatprep.mubr.f32.mxu0 0.0
      %2357 = vmatmul.mubr.f32.gmra.mrb[0].mxu0 %v707
      %v2358 = vpop.f32.mrb[0].mxu0
      %v2359 = vadd.f32 0.0, %v2358
      %v2360 = vpop.f32.mrb[0].mxu0
      %2361 = vmatprep.mubr.f32.mxu0 0.0
      %2362 = vmatmul.mubr.f32.gmra.mrb[0].mxu0 %v709
      %v2363 = vpop.f32.mrb[0].mxu0
      %v2364 = vadd.f32 0.0, %v2363
      %v2365 = vpop.f32.mrb[0].mxu0
      %2366 = vmatprep.mubr.f32.mxu0 0.0
      %2367 = vmatmul.mubr.f32.gmra.mrb[0].mxu0 %v711
      %v2368 = vpop.f32.mrb[0].mxu0
      %v2369 = vadd.f32 0.0, %v2368
      %v2370 = vpop.f32.mrb[0].mxu0
      %2371 = vmatprep.mubr.f32.mxu0 0.0
      %2372 = vmatmul.mubr.f32.gmra.mrb[0].mxu0 %v713
      %v2373 = vpop.f32.mrb[0].mxu0
      %v2374 = vadd.f32 0.0, %v2373
      %v2375 = vpop.f32.mrb[0].mxu0
      %2376 = vmatprep.mubr.f32.mxu0 0.0
      %2377 = vmatmul.mubr.f32.gmra.mrb[0].mxu0 %v1353
      %v2378 = vpop.f32.mrb[0].mxu0
      %v2379 = vadd.f32 0.0, %v2378
      %v2380 = vpop.f32.mrb[0].mxu0
      %2381 = vmatprep.mubr.f32.mxu0 0.0
      %2382 = vmatmul.mubr.f32.gmra.mrb[0].mxu0 %v1356
      %v2383 = vpop.f32.mrb[0].mxu0
      %v2384 = vadd.f32 0.0, %v2383
      %v2385 = vpop.f32.mrb[0].mxu0
      %2386 = vmatprep.mubr.f32.mxu0 0.0
      %2387 = vmatmul.mubr.f32.gmra.mrb[0].mxu0 %v2164
      %v2388 = vpop.f32.mrb[0].mxu0
      %v2389 = vadd.f32 0.0, %v2388
      %v2390 = vpop.f32.mrb[0].mxu0
      %2391 = vmatprep.mubr.f32.mxu0 0.0
      %2392 = vmatmul.mubr.f32.gmra.mrb[0].mxu0 %v2167
      %v2393 = vpop.f32.mrb[0].mxu0
      %v2394 = vadd.f32 0.0, %v2393
      %v2395 = vpop.f32.mrb[0].mxu0
      %2396 = vdwg.mxu0
      %v2397 = vadd.f32 %v2129, %v2239
      %v2398 = vadd.f32 %v2130, %v2244
      %v2399 = vadd.f32 %v2131, %v2249
      %v2400 = vadd.f32 %v2132, %v2254
      %v2401 = vadd.f32 %v2133, %v2259
      %v2402 = vadd.f32 %v2134, %v2264
      %v2403 = vadd.f32 %v2135, %v2269
      %v2404 = vadd.f32 %v2136, %v2274
      %v2405 = vadd.f32 %v2137, %v2279
      %v2406 = vadd.f32 %v2138, %v2284
      %v2407 = vadd.f32 %v2139, %v2289
      %v2408 = vadd.f32 %v2140, %v2294
      %v2409 = vadd.f32 %v2141, %v2299
      %v2410 = vadd.f32 %v2142, %v2304
      %v2411 = vadd.f32 %v2143, %v2309
      %v2412 = vadd.f32 %v2144, %v2314
      %v2413 = vadd.f32 %v2145, %v2319
      %v2414 = vadd.f32 %v2146, %v2324
      %v2415 = vadd.f32 %v2147, %v2329
      %v2416 = vadd.f32 %v2148, %v2334
      %v2417 = vadd.f32 %v2149, %v2339
      %v2418 = vadd.f32 %v2150, %v2344
      %v2419 = vadd.f32 %v2151, %v2349
      %v2420 = vadd.f32 %v2152, %v2354
      %v2421 = vadd.f32 %v2153, %v2359
      %v2422 = vadd.f32 %v2154, %v2364
      %v2423 = vadd.f32 %v2155, %v2369
      %v2424 = vadd.f32 %v2156, %v2374
      %v2425 = vadd.f32 %v2157, %v2379
      %v2426 = vadd.f32 %v2158, %v2384
      %v2427 = vadd.f32 %v2159, %v2389
      %v2428 = vadd.f32 %v2160, %v2394
      %v2430 = vrot.slane %v222, 1
      %v2431 = vrot.slane %v223, 1
      %v2432 = vsel %vm274, %v2430, %v2431
      %v2433 = vrot.slane %v224, 1
      %v2434 = vsel %vm274, %v2431, %v2433
      %s2435 = scalar_lea.vmem %s1, 28
      %v2436 = vld [vmem:[%s2435] sm:$0xf]
      %v2437 = vsel %vm357, %v2432, 0
      %v2439 = vsel %vm357, %v2434, 0
      %v2442 = vsel %vm422, %v2436, 0
      %2444 = vmatprep.subr.mxu0 0.0
      %2445 = vmatpush1.msra.mxu0 %v2442
      %2446 = vmatprep.subr.mxu0 0.0
      %2447 = vmatpush1.msra.mxu0 0.0
      %2448 = vmatprep.subr.mxu0 0.0
      %2449 = vmatpush1.msra.mxu0 0.0
      %2450 = vmatprep.subr.mxu0 0.0
      %2451 = vmatpush1.msra.mxu0 0.0
      %2452 = vmatprep.subr.mxu0 0.0
      %2453 = vmatpush1.msra.mxu0 0.0
      %2454 = vmatprep.subr.mxu0 0.0
      %2455 = vmatpush1.msra.mxu0 0.0
      %2456 = vmatprep.subr.mxu0 0.0
      %2457 = vmatpush1.msra.mxu0 0.0
      %2458 = vmatprep.subr.mxu0 0.0
      %2459 = vmatpush1.msra.mxu0 0.0
      %2460 = vmatprep.subr.mxu0 0.0
      %2461 = vmatpush1.msra.mxu0 0.0
      %2462 = vmatprep.subr.mxu0 0.0
      %2463 = vmatpush1.msra.mxu0 0.0
      %2464 = vmatprep.subr.mxu0 0.0
      %2465 = vmatpush1.msra.mxu0 0.0
      %2466 = vmatprep.subr.mxu0 0.0
      %2467 = vmatpush1.msra.mxu0 0.0
      %2468 = vmatprep.subr.mxu0 0.0
      %2469 = vmatpush1.msra.mxu0 0.0
      %2470 = vmatprep.subr.mxu0 0.0
      %2471 = vmatpush1.msra.mxu0 0.0
      %2472 = vmatprep.subr.mxu0 0.0
      %2473 = vmatpush1.msra.mxu0 0.0
      %2474 = vmatprep.subr.mxu0 0.0
      %2475 = vmatpush1.msra.mxu0 0.0
      %2476 = vmatprep.subr.mxu0 0.0
      %2477 = vmatpush1.msra.mxu0 0.0
      %2478 = vmatprep.subr.mxu0 0.0
      %2479 = vmatpush1.msra.mxu0 0.0
      %2480 = vmatprep.subr.mxu0 0.0
      %2481 = vmatpush1.msra.mxu0 0.0
      %2482 = vmatprep.subr.mxu0 0.0
      %2483 = vmatpush1.msra.mxu0 0.0
      %2484 = vmatprep.subr.mxu0 0.0
      %2485 = vmatpush1.msra.mxu0 0.0
      %2486 = vmatprep.subr.mxu0 0.0
      %2487 = vmatpush1.msra.mxu0 0.0
      %2488 = vmatprep.subr.mxu0 0.0
      %2489 = vmatpush1.msra.mxu0 0.0
      %2490 = vmatprep.subr.mxu0 0.0
      %2491 = vmatpush1.msra.mxu0 0.0
      %2492 = vmatprep.subr.mxu0 0.0
      %2493 = vmatpush1.msra.mxu0 0.0
      %2494 = vmatprep.subr.mxu0 0.0
      %2495 = vmatpush1.msra.mxu0 0.0
      %2496 = vmatprep.subr.mxu0 0.0
      %2497 = vmatpush1.msra.mxu0 0.0
      %2498 = vmatprep.subr.mxu0 0.0
      %2499 = vmatpush1.msra.mxu0 0.0
      %2500 = vmatprep.subr.mxu0 0.0
      %2501 = vmatpush1.msra.mxu0 0.0
      %2502 = vmatprep.subr.mxu0 0.0
      %2503 = vmatpush1.msra.mxu0 0.0
      %2504 = vmatprep.subr.mxu0 0.0
      %2505 = vmatpush1.msra.mxu0 0.0
      %2506 = vmatprep.subr.mxu0 0.0
      %2507 = vmatpush1.msra.mxu0 0.0
      %2508 = vmatprep.mubr.f32.mxu0 0.0
      %2509 = vmatmul.mubr.f32.gmra.mrb[0].mxu0 %v366
      %v2510 = vpop.f32.mrb[0].mxu0
      %v2511 = vadd.f32 0.0, %v2510
      %v2512 = vpop.f32.mrb[0].mxu0
      %2513 = vmatprep.mubr.f32.mxu0 0.0
      %2514 = vmatmul.mubr.f32.gmra.mrb[0].mxu0 %v368
      %v2515 = vpop.f32.mrb[0].mxu0
      %v2516 = vadd.f32 0.0, %v2515
      %v2517 = vpop.f32.mrb[0].mxu0
      %2518 = vmatprep.mubr.f32.mxu0 0.0
      %2519 = vmatmul.mubr.f32.gmra.mrb[0].mxu0 %v370
      %v2520 = vpop.f32.mrb[0].mxu0
      %v2521 = vadd.f32 0.0, %v2520
      %v2522 = vpop.f32.mrb[0].mxu0
      %2523 = vmatprep.mubr.f32.mxu0 0.0
      %2524 = vmatmul.mubr.f32.gmra.mrb[0].mxu0 %v372
      %v2525 = vpop.f32.mrb[0].mxu0
      %v2526 = vadd.f32 0.0, %v2525
      %v2527 = vpop.f32.mrb[0].mxu0
      %2528 = vmatprep.mubr.f32.mxu0 0.0
      %2529 = vmatmul.mubr.f32.gmra.mrb[0].mxu0 %v374
      %v2530 = vpop.f32.mrb[0].mxu0
      %v2531 = vadd.f32 0.0, %v2530
      %v2532 = vpop.f32.mrb[0].mxu0
      %2533 = vmatprep.mubr.f32.mxu0 0.0
      %2534 = vmatmul.mubr.f32.gmra.mrb[0].mxu0 %v376
      %v2535 = vpop.f32.mrb[0].mxu0
      %v2536 = vadd.f32 0.0, %v2535
      %v2537 = vpop.f32.mrb[0].mxu0
      %2538 = vmatprep.mubr.f32.mxu0 0.0
      %2539 = vmatmul.mubr.f32.gmra.mrb[0].mxu0 %v378
      %v2540 = vpop.f32.mrb[0].mxu0
      %v2541 = vadd.f32 0.0, %v2540
      %v2542 = vpop.f32.mrb[0].mxu0
      %2543 = vmatprep.mubr.f32.mxu0 0.0
      %2544 = vmatmul.mubr.f32.gmra.mrb[0].mxu0 %v380
      %v2545 = vpop.f32.mrb[0].mxu0
      %v2546 = vadd.f32 0.0, %v2545
      %v2547 = vpop.f32.mrb[0].mxu0
      %2548 = vmatprep.mubr.f32.mxu0 0.0
      %2549 = vmatmul.mubr.f32.gmra.mrb[0].mxu0 %v382
      %v2550 = vpop.f32.mrb[0].mxu0
      %v2551 = vadd.f32 0.0, %v2550
      %v2552 = vpop.f32.mrb[0].mxu0
      %2553 = vmatprep.mubr.f32.mxu0 0.0
      %2554 = vmatmul.mubr.f32.gmra.mrb[0].mxu0 %v384
      %v2555 = vpop.f32.mrb[0].mxu0
      %v2556 = vadd.f32 0.0, %v2555
      %v2557 = vpop.f32.mrb[0].mxu0
      %2558 = vmatprep.mubr.f32.mxu0 0.0
      %2559 = vmatmul.mubr.f32.gmra.mrb[0].mxu0 %v386
      %v2560 = vpop.f32.mrb[0].mxu0
      %v2561 = vadd.f32 0.0, %v2560
      %v2562 = vpop.f32.mrb[0].mxu0
      %2563 = vmatprep.mubr.f32.mxu0 0.0
      %2564 = vmatmul.mubr.f32.gmra.mrb[0].mxu0 %v388
      %v2565 = vpop.f32.mrb[0].mxu0
      %v2566 = vadd.f32 0.0, %v2565
      %v2567 = vpop.f32.mrb[0].mxu0
      %2568 = vmatprep.mubr.f32.mxu0 0.0
      %2569 = vmatmul.mubr.f32.gmra.mrb[0].mxu0 %v390
      %v2570 = vpop.f32.mrb[0].mxu0
      %v2571 = vadd.f32 0.0, %v2570
      %v2572 = vpop.f32.mrb[0].mxu0
      %2573 = vmatprep.mubr.f32.mxu0 0.0
      %2574 = vmatmul.mubr.f32.gmra.mrb[0].mxu0 %v392
      %v2575 = vpop.f32.mrb[0].mxu0
      %v2576 = vadd.f32 0.0, %v2575
      %v2577 = vpop.f32.mrb[0].mxu0
      %2578 = vmatprep.mubr.f32.mxu0 0.0
      %2579 = vmatmul.mubr.f32.gmra.mrb[0].mxu0 %v394
      %v2580 = vpop.f32.mrb[0].mxu0
      %v2581 = vadd.f32 0.0, %v2580
      %v2582 = vpop.f32.mrb[0].mxu0
      %2583 = vmatprep.mubr.f32.mxu0 0.0
      %2584 = vmatmul.mubr.f32.gmra.mrb[0].mxu0 %v396
      %v2585 = vpop.f32.mrb[0].mxu0
      %v2586 = vadd.f32 0.0, %v2585
      %v2587 = vpop.f32.mrb[0].mxu0
      %2588 = vmatprep.mubr.f32.mxu0 0.0
      %2589 = vmatmul.mubr.f32.gmra.mrb[0].mxu0 %v398
      %v2590 = vpop.f32.mrb[0].mxu0
      %v2591 = vadd.f32 0.0, %v2590
      %v2592 = vpop.f32.mrb[0].mxu0
      %2593 = vmatprep.mubr.f32.mxu0 0.0
      %2594 = vmatmul.mubr.f32.gmra.mrb[0].mxu0 %v400
      %v2595 = vpop.f32.mrb[0].mxu0
      %v2596 = vadd.f32 0.0, %v2595
      %v2597 = vpop.f32.mrb[0].mxu0
      %2598 = vmatprep.mubr.f32.mxu0 0.0
      %2599 = vmatmul.mubr.f32.gmra.mrb[0].mxu0 %v402
      %v2600 = vpop.f32.mrb[0].mxu0
      %v2601 = vadd.f32 0.0, %v2600
      %v2602 = vpop.f32.mrb[0].mxu0
      %2603 = vmatprep.mubr.f32.mxu0 0.0
      %2604 = vmatmul.mubr.f32.gmra.mrb[0].mxu0 %v404
      %v2605 = vpop.f32.mrb[0].mxu0
      %v2606 = vadd.f32 0.0, %v2605
      %v2607 = vpop.f32.mrb[0].mxu0
      %2608 = vmatprep.mubr.f32.mxu0 0.0
      %2609 = vmatmul.mubr.f32.gmra.mrb[0].mxu0 %v406
      %v2610 = vpop.f32.mrb[0].mxu0
      %v2611 = vadd.f32 0.0, %v2610
      %v2612 = vpop.f32.mrb[0].mxu0
      %2613 = vmatprep.mubr.f32.mxu0 0.0
      %2614 = vmatmul.mubr.f32.gmra.mrb[0].mxu0 %v408
      %v2615 = vpop.f32.mrb[0].mxu0
      %v2616 = vadd.f32 0.0, %v2615
      %v2617 = vpop.f32.mrb[0].mxu0
      %2618 = vmatprep.mubr.f32.mxu0 0.0
      %2619 = vmatmul.mubr.f32.gmra.mrb[0].mxu0 %v410
      %v2620 = vpop.f32.mrb[0].mxu0
      %v2621 = vadd.f32 0.0, %v2620
      %v2622 = vpop.f32.mrb[0].mxu0
      %2623 = vmatprep.mubr.f32.mxu0 0.0
      %2624 = vmatmul.mubr.f32.gmra.mrb[0].mxu0 %v412
      %v2625 = vpop.f32.mrb[0].mxu0
      %v2626 = vadd.f32 0.0, %v2625
      %v2627 = vpop.f32.mrb[0].mxu0
      %2628 = vmatprep.mubr.f32.mxu0 0.0
      %2629 = vmatmul.mubr.f32.gmra.mrb[0].mxu0 %v414
      %v2630 = vpop.f32.mrb[0].mxu0
      %v2631 = vadd.f32 0.0, %v2630
      %v2632 = vpop.f32.mrb[0].mxu0
      %2633 = vmatprep.mubr.f32.mxu0 0.0
      %2634 = vmatmul.mubr.f32.gmra.mrb[0].mxu0 %v416
      %v2635 = vpop.f32.mrb[0].mxu0
      %v2636 = vadd.f32 0.0, %v2635
      %v2637 = vpop.f32.mrb[0].mxu0
      %2638 = vmatprep.mubr.f32.mxu0 0.0
      %2639 = vmatmul.mubr.f32.gmra.mrb[0].mxu0 %v418
      %v2640 = vpop.f32.mrb[0].mxu0
      %v2641 = vadd.f32 0.0, %v2640
      %v2642 = vpop.f32.mrb[0].mxu0
      %2643 = vmatprep.mubr.f32.mxu0 0.0
      %2644 = vmatmul.mubr.f32.gmra.mrb[0].mxu0 %v420
      %v2645 = vpop.f32.mrb[0].mxu0
      %v2646 = vadd.f32 0.0, %v2645
      %v2647 = vpop.f32.mrb[0].mxu0
      %2648 = vmatprep.mubr.f32.mxu0 0.0
      %2649 = vmatmul.mubr.f32.gmra.mrb[0].mxu0 %v1626
      %v2650 = vpop.f32.mrb[0].mxu0
      %v2651 = vadd.f32 0.0, %v2650
      %v2652 = vpop.f32.mrb[0].mxu0
      %2653 = vmatprep.mubr.f32.mxu0 0.0
      %2654 = vmatmul.mubr.f32.gmra.mrb[0].mxu0 %v1628
      %v2655 = vpop.f32.mrb[0].mxu0
      %v2656 = vadd.f32 0.0, %v2655
      %v2657 = vpop.f32.mrb[0].mxu0
      %2658 = vmatprep.mubr.f32.mxu0 0.0
      %2659 = vmatmul.mubr.f32.gmra.mrb[0].mxu0 %v2437
      %v2660 = vpop.f32.mrb[0].mxu0
      %v2661 = vadd.f32 0.0, %v2660
      %v2662 = vpop.f32.mrb[0].mxu0
      %2663 = vmatprep.mubr.f32.mxu0 0.0
      %2664 = vmatmul.mubr.f32.gmra.mrb[0].mxu0 %v2439
      %v2665 = vpop.f32.mrb[0].mxu0
      %v2666 = vadd.f32 0.0, %v2665
      %v2667 = vpop.f32.mrb[0].mxu0
      %2668 = vdwg.mxu0
      %v2669 = vadd.f32 %v2397, %v2511
      %v2670 = vadd.f32 %v2398, %v2516
      %v2671 = vadd.f32 %v2399, %v2521
      %v2672 = vadd.f32 %v2400, %v2526
      %v2673 = vadd.f32 %v2401, %v2531
      %v2674 = vadd.f32 %v2402, %v2536
      %v2675 = vadd.f32 %v2403, %v2541
      %v2676 = vadd.f32 %v2404, %v2546
      %v2677 = vadd.f32 %v2405, %v2551
      %v2678 = vadd.f32 %v2406, %v2556
      %v2679 = vadd.f32 %v2407, %v2561
      %v2680 = vadd.f32 %v2408, %v2566
      %v2681 = vadd.f32 %v2409, %v2571
      %v2682 = vadd.f32 %v2410, %v2576
      %v2683 = vadd.f32 %v2411, %v2581
      %v2684 = vadd.f32 %v2412, %v2586
      %v2685 = vadd.f32 %v2413, %v2591
      %v2686 = vadd.f32 %v2414, %v2596
      %v2687 = vadd.f32 %v2415, %v2601
      %v2688 = vadd.f32 %v2416, %v2606
      %v2689 = vadd.f32 %v2417, %v2611
      %v2690 = vadd.f32 %v2418, %v2616
      %v2691 = vadd.f32 %v2419, %v2621
      %v2692 = vadd.f32 %v2420, %v2626
      %v2693 = vadd.f32 %v2421, %v2631
      %v2694 = vadd.f32 %v2422, %v2636
      %v2695 = vadd.f32 %v2423, %v2641
      %v2696 = vadd.f32 %v2424, %v2646
      %v2697 = vadd.f32 %v2425, %v2651
      %v2698 = vadd.f32 %v2426, %v2656
      %v2699 = vadd.f32 %v2427, %v2661
      %v2700 = vadd.f32 %v2428, %v2666
      %v2701 = vrot.slane %v222, 2
      %v2702 = vrot.slane %v223, 2
      %v2703 = vsel %vm943, %v2701, %v2702
      %v2704 = vrot.slane %v224, 2
      %v2705 = vsel %vm943, %v2702, %v2704
      %s2706 = scalar_lea.vmem %s1, 32
      %v2707 = vld [vmem:[%s2706] sm:$0xf]
      %v2708 = vsel %vm357, %v2703, 0
      %v2710 = vsel %vm357, %v2705, 0
      %v2713 = vsel %vm422, %v2707, 0
      %2715 = vmatprep.subr.mxu0 0.0
      %2716 = vmatpush1.msra.mxu0 %v2713
      %2717 = vmatprep.subr.mxu0 0.0
      %2718 = vmatpush1.msra.mxu0 0.0
      %2719 = vmatprep.subr.mxu0 0.0
      %2720 = vmatpush1.msra.mxu0 0.0
      %2721 = vmatprep.subr.mxu0 0.0
      %2722 = vmatpush1.msra.mxu0 0.0
      %2723 = vmatprep.subr.mxu0 0.0
      %2724 = vmatpush1.msra.mxu0 0.0
      %2725 = vmatprep.subr.mxu0 0.0
      %2726 = vmatpush1.msra.mxu0 0.0
      %2727 = vmatprep.subr.mxu0 0.0
      %2728 = vmatpush1.msra.mxu0 0.0
      %2729 = vmatprep.subr.mxu0 0.0
      %2730 = vmatpush1.msra.mxu0 0.0
      %2731 = vmatprep.subr.mxu0 0.0
      %2732 = vmatpush1.msra.mxu0 0.0
      %2733 = vmatprep.subr.mxu0 0.0
      %2734 = vmatpush1.msra.mxu0 0.0
      %2735 = vmatprep.subr.mxu0 0.0
      %2736 = vmatpush1.msra.mxu0 0.0
      %2737 = vmatprep.subr.mxu0 0.0
      %2738 = vmatpush1.msra.mxu0 0.0
      %2739 = vmatprep.subr.mxu0 0.0
      %2740 = vmatpush1.msra.mxu0 0.0
      %2741 = vmatprep.subr.mxu0 0.0
      %2742 = vmatpush1.msra.mxu0 0.0
      %2743 = vmatprep.subr.mxu0 0.0
      %2744 = vmatpush1.msra.mxu0 0.0
      %2745 = vmatprep.subr.mxu0 0.0
      %2746 = vmatpush1.msra.mxu0 0.0
      %2747 = vmatprep.subr.mxu0 0.0
      %2748 = vmatpush1.msra.mxu0 0.0
      %2749 = vmatprep.subr.mxu0 0.0
      %2750 = vmatpush1.msra.mxu0 0.0
      %2751 = vmatprep.subr.mxu0 0.0
      %2752 = vmatpush1.msra.mxu0 0.0
      %2753 = vmatprep.subr.mxu0 0.0
      %2754 = vmatpush1.msra.mxu0 0.0
      %2755 = vmatprep.subr.mxu0 0.0
      %2756 = vmatpush1.msra.mxu0 0.0
      %2757 = vmatprep.subr.mxu0 0.0
      %2758 = vmatpush1.msra.mxu0 0.0
      %2759 = vmatprep.subr.mxu0 0.0
      %2760 = vmatpush1.msra.mxu0 0.0
      %2761 = vmatprep.subr.mxu0 0.0
      %2762 = vmatpush1.msra.mxu0 0.0
      %2763 = vmatprep.subr.mxu0 0.0
      %2764 = vmatpush1.msra.mxu0 0.0
      %2765 = vmatprep.subr.mxu0 0.0
      %2766 = vmatpush1.msra.mxu0 0.0
      %2767 = vmatprep.subr.mxu0 0.0
      %2768 = vmatpush1.msra.mxu0 0.0
      %2769 = vmatprep.subr.mxu0 0.0
      %2770 = vmatpush1.msra.mxu0 0.0
      %2771 = vmatprep.subr.mxu0 0.0
      %2772 = vmatpush1.msra.mxu0 0.0
      %2773 = vmatprep.subr.mxu0 0.0
      %2774 = vmatpush1.msra.mxu0 0.0
      %2775 = vmatprep.subr.mxu0 0.0
      %2776 = vmatpush1.msra.mxu0 0.0
      %2777 = vmatprep.subr.mxu0 0.0
      %2778 = vmatpush1.msra.mxu0 0.0
      %2779 = vmatprep.mubr.f32.mxu0 0.0
      %2780 = vmatmul.mubr.f32.gmra.mrb[0].mxu0 %v1034
      %v2781 = vpop.f32.mrb[0].mxu0
      %v2782 = vadd.f32 0.0, %v2781
      %v2783 = vpop.f32.mrb[0].mxu0
      %2784 = vmatprep.mubr.f32.mxu0 0.0
      %2785 = vmatmul.mubr.f32.gmra.mrb[0].mxu0 %v1036
      %v2786 = vpop.f32.mrb[0].mxu0
      %v2787 = vadd.f32 0.0, %v2786
      %v2788 = vpop.f32.mrb[0].mxu0
      %2789 = vmatprep.mubr.f32.mxu0 0.0
      %2790 = vmatmul.mubr.f32.gmra.mrb[0].mxu0 %v1038
      %v2791 = vpop.f32.mrb[0].mxu0
      %v2792 = vadd.f32 0.0, %v2791
      %v2793 = vpop.f32.mrb[0].mxu0
      %2794 = vmatprep.mubr.f32.mxu0 0.0
      %2795 = vmatmul.mubr.f32.gmra.mrb[0].mxu0 %v1040
      %v2796 = vpop.f32.mrb[0].mxu0
      %v2797 = vadd.f32 0.0, %v2796
      %v2798 = vpop.f32.mrb[0].mxu0
      %2799 = vmatprep.mubr.f32.mxu0 0.0
      %2800 = vmatmul.mubr.f32.gmra.mrb[0].mxu0 %v1042
      %v2801 = vpop.f32.mrb[0].mxu0
      %v2802 = vadd.f32 0.0, %v2801
      %v2803 = vpop.f32.mrb[0].mxu0
      %2804 = vmatprep.mubr.f32.mxu0 0.0
      %2805 = vmatmul.mubr.f32.gmra.mrb[0].mxu0 %v1044
      %v2806 = vpop.f32.mrb[0].mxu0
      %v2807 = vadd.f32 0.0, %v2806
      %v2808 = vpop.f32.mrb[0].mxu0
      %2809 = vmatprep.mubr.f32.mxu0 0.0
      %2810 = vmatmul.mubr.f32.gmra.mrb[0].mxu0 %v1046
      %v2811 = vpop.f32.mrb[0].mxu0
      %v2812 = vadd.f32 0.0, %v2811
      %v2813 = vpop.f32.mrb[0].mxu0
      %2814 = vmatprep.mubr.f32.mxu0 0.0
      %2815 = vmatmul.mubr.f32.gmra.mrb[0].mxu0 %v1048
      %v2816 = vpop.f32.mrb[0].mxu0
      %v2817 = vadd.f32 0.0, %v2816
      %v2818 = vpop.f32.mrb[0].mxu0
      %2819 = vmatprep.mubr.f32.mxu0 0.0
      %2820 = vmatmul.mubr.f32.gmra.mrb[0].mxu0 %v1050
      %v2821 = vpop.f32.mrb[0].mxu0
      %v2822 = vadd.f32 0.0, %v2821
      %v2823 = vpop.f32.mrb[0].mxu0
      %2824 = vmatprep.mubr.f32.mxu0 0.0
      %2825 = vmatmul.mubr.f32.gmra.mrb[0].mxu0 %v1052
      %v2826 = vpop.f32.mrb[0].mxu0
      %v2827 = vadd.f32 0.0, %v2826
      %v2828 = vpop.f32.mrb[0].mxu0
      %2829 = vmatprep.mubr.f32.mxu0 0.0
      %2830 = vmatmul.mubr.f32.gmra.mrb[0].mxu0 %v1054
      %v2831 = vpop.f32.mrb[0].mxu0
      %v2832 = vadd.f32 0.0, %v2831
      %v2833 = vpop.f32.mrb[0].mxu0
      %2834 = vmatprep.mubr.f32.mxu0 0.0
      %2835 = vmatmul.mubr.f32.gmra.mrb[0].mxu0 %v1056
      %v2836 = vpop.f32.mrb[0].mxu0
      %v2837 = vadd.f32 0.0, %v2836
      %v2838 = vpop.f32.mrb[0].mxu0
      %2839 = vmatprep.mubr.f32.mxu0 0.0
      %2840 = vmatmul.mubr.f32.gmra.mrb[0].mxu0 %v1058
      %v2841 = vpop.f32.mrb[0].mxu0
      %v2842 = vadd.f32 0.0, %v2841
      %v2843 = vpop.f32.mrb[0].mxu0
      %2844 = vmatprep.mubr.f32.mxu0 0.0
      %2845 = vmatmul.mubr.f32.gmra.mrb[0].mxu0 %v1060
      %v2846 = vpop.f32.mrb[0].mxu0
      %v2847 = vadd.f32 0.0, %v2846
      %v2848 = vpop.f32.mrb[0].mxu0
      %2849 = vmatprep.mubr.f32.mxu0 0.0
      %2850 = vmatmul.mubr.f32.gmra.mrb[0].mxu0 %v1062
      %v2851 = vpop.f32.mrb[0].mxu0
      %v2852 = vadd.f32 0.0, %v2851
      %v2853 = vpop.f32.mrb[0].mxu0
      %2854 = vmatprep.mubr.f32.mxu0 0.0
      %2855 = vmatmul.mubr.f32.gmra.mrb[0].mxu0 %v1064
      %v2856 = vpop.f32.mrb[0].mxu0
      %v2857 = vadd.f32 0.0, %v2856
      %v2858 = vpop.f32.mrb[0].mxu0
      %2859 = vmatprep.mubr.f32.mxu0 0.0
      %2860 = vmatmul.mubr.f32.gmra.mrb[0].mxu0 %v1066
      %v2861 = vpop.f32.mrb[0].mxu0
      %v2862 = vadd.f32 0.0, %v2861
      %v2863 = vpop.f32.mrb[0].mxu0
      %2864 = vmatprep.mubr.f32.mxu0 0.0
      %2865 = vmatmul.mubr.f32.gmra.mrb[0].mxu0 %v1068
      %v2866 = vpop.f32.mrb[0].mxu0
      %v2867 = vadd.f32 0.0, %v2866
      %v2868 = vpop.f32.mrb[0].mxu0
      %2869 = vmatprep.mubr.f32.mxu0 0.0
      %2870 = vmatmul.mubr.f32.gmra.mrb[0].mxu0 %v1070
      %v2871 = vpop.f32.mrb[0].mxu0
      %v2872 = vadd.f32 0.0, %v2871
      %v2873 = vpop.f32.mrb[0].mxu0
      %2874 = vmatprep.mubr.f32.mxu0 0.0
      %2875 = vmatmul.mubr.f32.gmra.mrb[0].mxu0 %v1072
      %v2876 = vpop.f32.mrb[0].mxu0
      %v2877 = vadd.f32 0.0, %v2876
      %v2878 = vpop.f32.mrb[0].mxu0
      %2879 = vmatprep.mubr.f32.mxu0 0.0
      %2880 = vmatmul.mubr.f32.gmra.mrb[0].mxu0 %v1074
      %v2881 = vpop.f32.mrb[0].mxu0
      %v2882 = vadd.f32 0.0, %v2881
      %v2883 = vpop.f32.mrb[0].mxu0
      %2884 = vmatprep.mubr.f32.mxu0 0.0
      %2885 = vmatmul.mubr.f32.gmra.mrb[0].mxu0 %v1076
      %v2886 = vpop.f32.mrb[0].mxu0
      %v2887 = vadd.f32 0.0, %v2886
      %v2888 = vpop.f32.mrb[0].mxu0
      %2889 = vmatprep.mubr.f32.mxu0 0.0
      %2890 = vmatmul.mubr.f32.gmra.mrb[0].mxu0 %v1078
      %v2891 = vpop.f32.mrb[0].mxu0
      %v2892 = vadd.f32 0.0, %v2891
      %v2893 = vpop.f32.mrb[0].mxu0
      %2894 = vmatprep.mubr.f32.mxu0 0.0
      %2895 = vmatmul.mubr.f32.gmra.mrb[0].mxu0 %v1080
      %v2896 = vpop.f32.mrb[0].mxu0
      %v2897 = vadd.f32 0.0, %v2896
      %v2898 = vpop.f32.mrb[0].mxu0
      %2899 = vmatprep.mubr.f32.mxu0 0.0
      %2900 = vmatmul.mubr.f32.gmra.mrb[0].mxu0 %v1082
      %v2901 = vpop.f32.mrb[0].mxu0
      %v2902 = vadd.f32 0.0, %v2901
      %v2903 = vpop.f32.mrb[0].mxu0
      %2904 = vmatprep.mubr.f32.mxu0 0.0
      %2905 = vmatmul.mubr.f32.gmra.mrb[0].mxu0 %v1084
      %v2906 = vpop.f32.mrb[0].mxu0
      %v2907 = vadd.f32 0.0, %v2906
      %v2908 = vpop.f32.mrb[0].mxu0
      %2909 = vmatprep.mubr.f32.mxu0 0.0
      %2910 = vmatmul.mubr.f32.gmra.mrb[0].mxu0 %v1086
      %v2911 = vpop.f32.mrb[0].mxu0
      %v2912 = vadd.f32 0.0, %v2911
      %v2913 = vpop.f32.mrb[0].mxu0
      %2914 = vmatprep.mubr.f32.mxu0 0.0
      %2915 = vmatmul.mubr.f32.gmra.mrb[0].mxu0 %v1088
      %v2916 = vpop.f32.mrb[0].mxu0
      %v2917 = vadd.f32 0.0, %v2916
      %v2918 = vpop.f32.mrb[0].mxu0
      %2919 = vmatprep.mubr.f32.mxu0 0.0
      %2920 = vmatmul.mubr.f32.gmra.mrb[0].mxu0 %v1897
      %v2921 = vpop.f32.mrb[0].mxu0
      %v2922 = vadd.f32 0.0, %v2921
      %v2923 = vpop.f32.mrb[0].mxu0
      %2924 = vmatprep.mubr.f32.mxu0 0.0
      %2925 = vmatmul.mubr.f32.gmra.mrb[0].mxu0 %v1899
      %v2926 = vpop.f32.mrb[0].mxu0
      %v2927 = vadd.f32 0.0, %v2926
      %v2928 = vpop.f32.mrb[0].mxu0
      %2929 = vmatprep.mubr.f32.mxu0 0.0
      %2930 = vmatmul.mubr.f32.gmra.mrb[0].mxu0 %v2708
      %v2931 = vpop.f32.mrb[0].mxu0
      %v2932 = vadd.f32 0.0, %v2931
      %v2933 = vpop.f32.mrb[0].mxu0
      %2934 = vmatprep.mubr.f32.mxu0 0.0
      %2935 = vmatmul.mubr.f32.gmra.mrb[0].mxu0 %v2710
      %v2936 = vpop.f32.mrb[0].mxu0
      %v2937 = vadd.f32 0.0, %v2936
      %v2938 = vpop.f32.mrb[0].mxu0
      %2939 = vdwg.mxu0
      %v2940 = vadd.f32 %v2669, %v2782
      %v2941 = vadd.f32 %v2670, %v2787
      %v2942 = vadd.f32 %v2671, %v2792
      %v2943 = vadd.f32 %v2672, %v2797
      %v2944 = vadd.f32 %v2673, %v2802
      %v2945 = vadd.f32 %v2674, %v2807
      %v2946 = vadd.f32 %v2675, %v2812
      %v2947 = vadd.f32 %v2676, %v2817
      %v2948 = vadd.f32 %v2677, %v2822
      %v2949 = vadd.f32 %v2678, %v2827
      %v2950 = vadd.f32 %v2679, %v2832
      %v2951 = vadd.f32 %v2680, %v2837
      %v2952 = vadd.f32 %v2681, %v2842
      %v2953 = vadd.f32 %v2682, %v2847
      %v2954 = vadd.f32 %v2683, %v2852
      %v2955 = vadd.f32 %v2684, %v2857
      %v2956 = vadd.f32 %v2685, %v2862
      %v2957 = vadd.f32 %v2686, %v2867
      %v2958 = vadd.f32 %v2687, %v2872
      %v2959 = vadd.f32 %v2688, %v2877
      %v2960 = vadd.f32 %v2689, %v2882
      %v2961 = vadd.f32 %v2690, %v2887
      %v2962 = vadd.f32 %v2691, %v2892
      %v2963 = vadd.f32 %v2692, %v2897
      %v2964 = vadd.f32 %v2693, %v2902
      %v2965 = vadd.f32 %v2694, %v2907
      %v2966 = vadd.f32 %v2695, %v2912
      %v2967 = vadd.f32 %v2696, %v2917
      %v2968 = vadd.f32 %v2697, %v2922
      %v2969 = vadd.f32 %v2698, %v2927
      %v2970 = vadd.f32 %v2699, %v2932
      %v2971 = vadd.f32 %v2700, %v2937
      %v2972 = vld [vmem:[%s2] sm:$0x1]
      %v2974 = vlaneseq
      %v2975 = vshrl.u32 %v2974, 7
      %v2976 = vsub.s32 0, %v2975
      %v2977 = vrot.slane %v2972, %v2976
      %v2979 = vadd.f32 %v2940, %v2977
      %v2980 = vadd.f32 %v2941, %v2977
      %v2981 = vadd.f32 %v2942, %v2977
      %v2982 = vadd.f32 %v2943, %v2977
      %v2983 = vadd.f32 %v2944, %v2977
      %v2984 = vadd.f32 %v2945, %v2977
      %v2985 = vadd.f32 %v2946, %v2977
      %v2986 = vadd.f32 %v2947, %v2977
      %v2987 = vadd.f32 %v2948, %v2977
      %v2988 = vadd.f32 %v2949, %v2977
      %v2989 = vadd.f32 %v2950, %v2977
      %v2990 = vadd.f32 %v2951, %v2977
      %v2991 = vadd.f32 %v2952, %v2977
      %v2992 = vadd.f32 %v2953, %v2977
      %v2993 = vadd.f32 %v2954, %v2977
      %v2994 = vadd.f32 %v2955, %v2977
      %v2995 = vadd.f32 %v2956, %v2977
      %v2996 = vadd.f32 %v2957, %v2977
      %v2997 = vadd.f32 %v2958, %v2977
      %v2998 = vadd.f32 %v2959, %v2977
      %v2999 = vadd.f32 %v2960, %v2977
      %v3000 = vadd.f32 %v2961, %v2977
      %v3001 = vadd.f32 %v2962, %v2977
      %v3002 = vadd.f32 %v2963, %v2977
      %v3003 = vadd.f32 %v2964, %v2977
      %v3004 = vadd.f32 %v2965, %v2977
      %v3005 = vadd.f32 %v2966, %v2977
      %v3006 = vadd.f32 %v2967, %v2977
      %v3007 = vadd.f32 %v2968, %v2977
      %v3008 = vadd.f32 %v2969, %v2977
      %v3009 = vadd.f32 %v2970, %v2977
      %v3010 = vadd.f32 %v2971, %v2977
      %vm3011 = vcmp.ge.f32.partialorder %v2979, 0.0
      %vm3012 = vcmp.ge.f32.partialorder %v2980, 0.0
      %vm3013 = vcmp.ge.f32.partialorder %v2981, 0.0
      %vm3014 = vcmp.ge.f32.partialorder %v2982, 0.0
      %vm3015 = vcmp.ge.f32.partialorder %v2983, 0.0
      %vm3016 = vcmp.ge.f32.partialorder %v2984, 0.0
      %vm3017 = vcmp.ge.f32.partialorder %v2985, 0.0
      %vm3018 = vcmp.ge.f32.partialorder %v2986, 0.0
      %vm3019 = vcmp.ge.f32.partialorder %v2987, 0.0
      %vm3020 = vcmp.ge.f32.partialorder %v2988, 0.0
      %vm3021 = vcmp.ge.f32.partialorder %v2989, 0.0
      %vm3022 = vcmp.ge.f32.partialorder %v2990, 0.0
      %vm3023 = vcmp.ge.f32.partialorder %v2991, 0.0
      %vm3024 = vcmp.ge.f32.partialorder %v2992, 0.0
      %vm3025 = vcmp.ge.f32.partialorder %v2993, 0.0
      %vm3026 = vcmp.ge.f32.partialorder %v2994, 0.0
      %vm3027 = vcmp.ge.f32.partialorder %v2995, 0.0
      %vm3028 = vcmp.ge.f32.partialorder %v2996, 0.0
      %vm3029 = vcmp.ge.f32.partialorder %v2997, 0.0
      %vm3030 = vcmp.ge.f32.partialorder %v2998, 0.0
      %vm3031 = vcmp.ge.f32.partialorder %v2999, 0.0
      %vm3032 = vcmp.ge.f32.partialorder %v3000, 0.0
      %vm3033 = vcmp.ge.f32.partialorder %v3001, 0.0
      %vm3034 = vcmp.ge.f32.partialorder %v3002, 0.0
      %vm3035 = vcmp.ge.f32.partialorder %v3003, 0.0
      %vm3036 = vcmp.ge.f32.partialorder %v3004, 0.0
      %vm3037 = vcmp.ge.f32.partialorder %v3005, 0.0
      %vm3038 = vcmp.ge.f32.partialorder %v3006, 0.0
      %vm3039 = vcmp.ge.f32.partialorder %v3007, 0.0
      %vm3040 = vcmp.ge.f32.partialorder %v3008, 0.0
      %vm3041 = vcmp.ge.f32.partialorder %v3009, 0.0
      %vm3042 = vcmp.ge.f32.partialorder %v3010, 0.0
      %v3043 = vmul.f32 %v2979, 0.01
      %v3044 = vmul.f32 %v2980, 0.01
      %v3045 = vmul.f32 %v2981, 0.01
      %v3046 = vmul.f32 %v2982, 0.01
      %v3047 = vmul.f32 %v2983, 0.01
      %v3048 = vmul.f32 %v2984, 0.01
      %v3049 = vmul.f32 %v2985, 0.01
      %v3050 = vmul.f32 %v2986, 0.01
      %v3051 = vmul.f32 %v2987, 0.01
      %v3052 = vmul.f32 %v2988, 0.01
      %v3053 = vmul.f32 %v2989, 0.01
      %v3054 = vmul.f32 %v2990, 0.01
      %v3055 = vmul.f32 %v2991, 0.01
      %v3056 = vmul.f32 %v2992, 0.01
      %v3057 = vmul.f32 %v2993, 0.01
      %v3058 = vmul.f32 %v2994, 0.01
      %v3059 = vmul.f32 %v2995, 0.01
      %v3060 = vmul.f32 %v2996, 0.01
      %v3061 = vmul.f32 %v2997, 0.01
      %v3062 = vmul.f32 %v2998, 0.01
      %v3063 = vmul.f32 %v2999, 0.01
      %v3064 = vmul.f32 %v3000, 0.01
      %v3065 = vmul.f32 %v3001, 0.01
      %v3066 = vmul.f32 %v3002, 0.01
      %v3067 = vmul.f32 %v3003, 0.01
      %v3068 = vmul.f32 %v3004, 0.01
      %v3069 = vmul.f32 %v3005, 0.01
      %v3070 = vmul.f32 %v3006, 0.01
      %v3071 = vmul.f32 %v3007, 0.01
      %v3072 = vmul.f32 %v3008, 0.01
      %v3073 = vmul.f32 %v3009, 0.01
      %v3074 = vmul.f32 %v3010, 0.01
      %v3075 = vsel %vm3011, %v2979, %v3043
      %v3076 = vsel %vm3012, %v2980, %v3044
      %v3077 = vsel %vm3013, %v2981, %v3045
      %v3078 = vsel %vm3014, %v2982, %v3046
      %v3079 = vsel %vm3015, %v2983, %v3047
      %v3080 = vsel %vm3016, %v2984, %v3048
      %v3081 = vsel %vm3017, %v2985, %v3049
      %v3082 = vsel %vm3018, %v2986, %v3050
      %v3083 = vsel %vm3019, %v2987, %v3051
      %v3084 = vsel %vm3020, %v2988, %v3052
      %v3085 = vsel %vm3021, %v2989, %v3053
      %v3086 = vsel %vm3022, %v2990, %v3054
      %v3087 = vsel %vm3023, %v2991, %v3055
      %v3088 = vsel %vm3024, %v2992, %v3056
      %v3089 = vsel %vm3025, %v2993, %v3057
      %v3090 = vsel %vm3026, %v2994, %v3058
      %v3091 = vsel %vm3027, %v2995, %v3059
      %v3092 = vsel %vm3028, %v2996, %v3060
      %v3093 = vsel %vm3029, %v2997, %v3061
      %v3094 = vsel %vm3030, %v2998, %v3062
      %v3095 = vsel %vm3031, %v2999, %v3063
      %v3096 = vsel %vm3032, %v3000, %v3064
      %v3097 = vsel %vm3033, %v3001, %v3065
      %v3098 = vsel %vm3034, %v3002, %v3066
      %v3099 = vsel %vm3035, %v3003, %v3067
      %v3100 = vsel %vm3036, %v3004, %v3068
      %v3101 = vsel %vm3037, %v3005, %v3069
      %v3102 = vsel %vm3038, %v3006, %v3070
      %v3103 = vsel %vm3039, %v3007, %v3071
      %v3104 = vsel %vm3040, %v3008, %v3072
      %v3105 = vsel %vm3041, %v3009, %v3073
      %v3106 = vsel %vm3042, %v3010, %v3074
      %vm3107 = vcmask 64512
      %3108 = vst.msk [vmem:[%s170] sm:$0xff] %vm3107, %v3075
      %3109 = vst.msk [vmem:[%s170 + $0x8] sm:$0xff] %vm3107, %v3076
      %3110 = vst.msk [vmem:[%s170 + $0x10] sm:$0xff] %vm3107, %v3077
      %3111 = vst.msk [vmem:[%s170 + $0x18] sm:$0xff] %vm3107, %v3078
      %3112 = vst.msk [vmem:[%s170 + $0x20] sm:$0xff] %vm3107, %v3079
      %3113 = vst.msk [vmem:[%s170 + $0x28] sm:$0xff] %vm3107, %v3080
      %3114 = vst.msk [vmem:[%s170 + $0x30] sm:$0xff] %vm3107, %v3081
      %3115 = vst.msk [vmem:[%s170 + $0x38] sm:$0xff] %vm3107, %v3082
      %3116 = vst.msk [vmem:[%s170 + $0x40] sm:$0xff] %vm3107, %v3083
      %3117 = vst.msk [vmem:[%s170 + $0x48] sm:$0xff] %vm3107, %v3084
      %3118 = vst.msk [vmem:[%s170 + $0x50] sm:$0xff] %vm3107, %v3085
      %3119 = vst.msk [vmem:[%s170 + $0x58] sm:$0xff] %vm3107, %v3086
      %3120 = vst.msk [vmem:[%s170 + $0x60] sm:$0xff] %vm3107, %v3087
      %3121 = vst.msk [vmem:[%s170 + $0x68] sm:$0xff] %vm3107, %v3088
      %3122 = vst.msk [vmem:[%s170 + $0x70] sm:$0xff] %vm3107, %v3089
      %3123 = vst.msk [vmem:[%s170 + $0x78] sm:$0xff] %vm3107, %v3090
      %3124 = vst.msk [vmem:[%s170 + $0x80] sm:$0xff] %vm3107, %v3091
      %3125 = vst.msk [vmem:[%s170 + $0x88] sm:$0xff] %vm3107, %v3092
      %3126 = vst.msk [vmem:[%s170 + $0x90] sm:$0xff] %vm3107, %v3093
      %3127 = vst.msk [vmem:[%s170 + $0x98] sm:$0xff] %vm3107, %v3094
      %3128 = vst.msk [vmem:[%s170 + $0xa0] sm:$0xff] %vm3107, %v3095
      %3129 = vst.msk [vmem:[%s170 + $0xa8] sm:$0xff] %vm3107, %v3096
      %3130 = vst.msk [vmem:[%s170 + $0xb0] sm:$0xff] %vm3107, %v3097
      %3131 = vst.msk [vmem:[%s170 + $0xb8] sm:$0xff] %vm3107, %v3098
      %3132 = vst.msk [vmem:[%s170 + $0xc0] sm:$0xff] %vm3107, %v3099
      %3133 = vst.msk [vmem:[%s170 + $0xc8] sm:$0xff] %vm3107, %v3100
      %3134 = vst.msk [vmem:[%s170 + $0xd0] sm:$0xff] %vm3107, %v3101
      %3135 = vst.msk [vmem:[%s170 + $0xd8] sm:$0xff] %vm3107, %v3102
      %3136 = vst.msk [vmem:[%s170 + $0xe0] sm:$0xff] %vm3107, %v3103
      %3137 = vst.msk [vmem:[%s170 + $0xe8] sm:$0xff] %vm3107, %v3104
      %3138 = vst.msk [vmem:[%s170 + $0xf0] sm:$0xff] %vm3107, %v3105
      %3139 = vst.msk [vmem:[%s170 + $0xf8] sm:$0xff] %vm3107, %v3106
      %p3140 = scmp.lt.s32.totalorder %s14, 1
      %s3141 = scalar_select %p3140, %s14, 1
      %s3142 = smul.addr %s3141, 32
      %s3143 = smul.addr %s3142, 8
      %s3144 = scalar_lea.vmem %s3, %s3143
      // Predicated region
      $region33: #{conv_res_block_forward.5} parent=31 // pred_check
        %p3145 = pneg %p100
      $region34: #{conv_res_block_forward.5} parent=31 // pred_check_branch
        %3147 = sbr.rel (%p3145) target = $region36
      $region35: #{conv_res_block_forward.5} parent=31 // pred_region
        _
      $region36: #{conv_res_block_forward.5} parent=31 // pred_fallthru
        _
    $region32: #{conv_res_block_forward.5} parent=5 // pred_fallthru
      _
    %p3148 = scmp.le.s32.totalorder 2, %s9
    // Predicated region
    $region37: #{conv_res_block_forward.5} parent=5 // pred_check
      %p3149 = pneg %p3148
    $region38: #{conv_res_block_forward.5} parent=5 // pred_check_branch
      %3151 = sbr.rel (%p3149) target = $region40
    $region39: #{conv_res_block_forward.5} parent=5 // pred_region
      %s3152 = ssub.s32 %s9, 2
      // Predicated region
      $region41: #{conv_res_block_forward.5} parent=39 // pred_check
        %p3153 = pneg %p106
      $region42: #{conv_res_block_forward.5} parent=39 // pred_check_branch
        %3155 = sbr.rel (%p3153) target = $region44
      $region43: #{conv_res_block_forward.5} parent=39 // pred_region
        %p3156 = scmp.lt.s32.totalorder %s15, 1
        %s3157 = scalar_select %p3156, %s15, 1
        %s3158 = smul.addr %s3157, 32
        %s3159 = smul.addr %s3158, 8
        %s3160 = scalar_lea.vmem %s3, %s3159
      $region44: #{conv_res_block_forward.5} parent=39 // pred_fallthru
        _
    $region40: #{conv_res_block_forward.5} parent=5 // pred_fallthru
      _
  $region6: #{conv_res_block_forward.5} parent=0 // loop_footer
    %s13 = sadd.s32 1, %s9
  $region7: #{conv_res_block_forward.5} parent=0 // loop_footer_branch
    %8 = sbr.rel target = $region3
  $region8: #{conv_res_block_forward.5} parent=0 // loop_exit
    _

// kernel: conv_res_block_forward.7
$region0: #{conv_res_block_forward.7}
  #allocation0 [shape = 'u32[]', space=smem, size = 0x4, offset = 0x4, fixed_abs, tag = 'smem constant byte address 0x4 - core index']
  #allocation1 [shape = 'u32[144,128]{1,0:T(1,128)}', space=vmem, size = 0x12000, scoped, tag = 'internal scratch']
  %s0 = inlined_call_operand.vmem [shape: f32[2,18,18,8], index: 0, kind: input, shape index: {}]
  %s1 = inlined_call_operand.vmem [shape: f32[9,8,8], index: 1, kind: input, shape index: {}]
  %s2 = inlined_call_operand.vmem [shape: f32[1,8], index: 2, kind: input, shape index: {}]
  %s3 = inlined_call_operand.vmem [shape: f32[2,256,4], index: 3, kind: input, shape index: {}]
  %s4 = inlined_call_operand.vmem [shape: f32[4,8], index: 4, kind: input, shape index: {}]
  %s5 = inlined_call_operand.vmem [shape: f32[1,8], index: 5, kind: input, shape index: {}]
  %s6 = inlined_call_operand.vmem [shape: f32[2,256,8], index: 6, kind: output, shape index: {}]
  %s7 = sld [smem:[#allocation0]]
  $region57: #{conv_res_block_forward.7} parent=0
    _
  %s9 = ssub.s32 1, %s7
  %s10 = scalar_select 0, %s9, %s7
  loop: start=0, step=1, limit=4
  $region2: #{conv_res_block_forward.7} parent=0 // loop_pre_header
    _
  $region3: #{conv_res_block_forward.7} parent=0 // loop_header
    %s12 = sphi 0, %s16
    %p13 = scmp.ge.s32.totalorder %s12, 4
    %s22 = sphi 0, %s24
    %s25 = sphi 0, %s22
    %s26 = sphi 0, %s25
    %s42 = sphi 0, %s26
    %s46 = sphi 0, %s46
    %s48 = sphi 0, %s46
    %s49 = sphi 0, %s48
    %s63 = sphi 0, %s49
    %s67 = sphi 0, %s67
    %s69 = sphi 0, %s67
    %s70 = sphi 0, %s69
    %s84 = sphi 0, %s70
    %s90 = sphi 0, %s92
    %s93 = sphi 0, %s90
    %s94 = sphi 0, %s93
    %s110 = sphi 0, %s94
    %s114 = sphi 0, %s114
    %s116 = sphi 0, %s114
    %s117 = sphi 0, %s116
    %s131 = sphi 0, %s117
    %s135 = sphi 0, %s135
    %s137 = sphi 0, %s135
    %s138 = sphi 0, %s137
    %s152 = sphi 0, %s138
    %s158 = sphi 0, %s160
    %s161 = sphi 0, %s158
    %s162 = sphi 0, %s161
    %s178 = sphi 0, %s162
  $region4: #{conv_res_block_forward.7} parent=0 // loop_header_branch
    %15 = sbr.rel (%p13) target = $region8
  $region5: #{conv_res_block_forward.7} parent=0 // loop_body
    %s17 = ssub.s32 %s12, 1
    %s18 = ssub.s32 %s12, 2
    %s19 = sadd.s32 %s12, 1
    %s20 = ssub.s32 %s12, %s19
    %p21 = scmp.eq.s32.totalorder %s20, 0
    %s23 = sadd.s32 %s22, 1
    %s24 = scalar_select %p21, %s22, %s23
    %p27 = pneg %p21
    %p28 = scmp.eq.s32.totalorder %s12, 1
    %p29 = por %p27, %p28
    %p30 = scmp.ne.s32.totalorder %s22, %s25
    %p31 = scmp.eq.s32.totalorder %s12, 0
    %p32 = por %p30, %p31
    %p33 = scmp.ne.s32.totalorder %s22, %s25
    %p34 = scmp.eq.s32.totalorder %s17, 1
    %p35 = por %p33, %p34
    %p36 = scmp.ne.s32.totalorder %s25, %s26
    %p37 = scmp.eq.s32.totalorder %s17, 0
    %p38 = por %p36, %p37
    %p39 = scmp.ne.s32.totalorder %s25, %s26
    %p40 = scmp.eq.s32.totalorder %s18, 1
    %p41 = por %p39, %p40
    %p43 = scmp.ne.s32.totalorder %s26, %s42
    %p44 = scmp.eq.s32.totalorder %s18, 0
    %p45 = por %p43, %p44
    %s47 = sadd.s32 %s46, 1
    %p50 = scmp.eq.s32.totalorder %s12, 1
    %p51 = scmp.ne.s32.totalorder %s46, %s48
    %p52 = scmp.eq.s32.totalorder %s12, 0
    %p53 = por %p51, %p52
    %p54 = scmp.ne.s32.totalorder %s46, %s48
    %p55 = scmp.eq.s32.totalorder %s17, 1
    %p56 = por %p54, %p55
    %p57 = scmp.ne.s32.totalorder %s48, %s49
    %p58 = scmp.eq.s32.totalorder %s17, 0
    %p59 = por %p57, %p58
    %p60 = scmp.ne.s32.totalorder %s48, %s49
    %p61 = scmp.eq.s32.totalorder %s18, 1
    %p62 = por %p60, %p61
    %p64 = scmp.ne.s32.totalorder %s49, %s63
    %p65 = scmp.eq.s32.totalorder %s18, 0
    %p66 = por %p64, %p65
    %s68 = sadd.s32 %s67, 1
    %p71 = scmp.eq.s32.totalorder %s12, 1
    %p72 = scmp.ne.s32.totalorder %s67, %s69
    %p73 = scmp.eq.s32.totalorder %s12, 0
    %p74 = por %p72, %p73
    %p75 = scmp.ne.s32.totalorder %s67, %s69
    %p76 = scmp.eq.s32.totalorder %s17, 1
    %p77 = por %p75, %p76
    %p78 = scmp.ne.s32.totalorder %s69, %s70
    %p79 = scmp.eq.s32.totalorder %s17, 0
    %p80 = por %p78, %p79
    %p81 = scmp.ne.s32.totalorder %s69, %s70
    %p82 = scmp.eq.s32.totalorder %s18, 1
    %p83 = por %p81, %p82
    %p85 = scmp.ne.s32.totalorder %s70, %s84
    %p86 = scmp.eq.s32.totalorder %s18, 0
    %p87 = por %p85, %p86
    %s88 = ssub.s32 %s12, %s19
    %p89 = scmp.eq.s32.totalorder %s88, 0
    %s91 = sadd.s32 %s90, 1
    %s92 = scalar_select %p89, %s90, %s91
    %p95 = pneg %p89
    %p96 = scmp.eq.s32.totalorder %s12, 1
    %p97 = por %p95, %p96
    %p98 = scmp.ne.s32.totalorder %s90, %s93
    %p99 = scmp.eq.s32.totalorder %s12, 0
    %p100 = por %p98, %p99
    %p101 = scmp.ne.s32.totalorder %s90, %s93
    %p102 = scmp.eq.s32.totalorder %s17, 1
    %p103 = por %p101, %p102
    %p104 = scmp.ne.s32.totalorder %s93, %s94
    %p105 = scmp.eq.s32.totalorder %s17, 0
    %p106 = por %p104, %p105
    %p107 = scmp.ne.s32.totalorder %s93, %s94
    %p108 = scmp.eq.s32.totalorder %s18, 1
    %p109 = por %p107, %p108
    %p111 = scmp.ne.s32.totalorder %s94, %s110
    %p112 = scmp.eq.s32.totalorder %s18, 0
    %p113 = por %p111, %p112
    %s115 = sadd.s32 %s114, 1
    %p118 = scmp.eq.s32.totalorder %s12, 1
    %p119 = scmp.ne.s32.totalorder %s114, %s116
    %p120 = scmp.eq.s32.totalorder %s12, 0
    %p121 = por %p119, %p120
    %p122 = scmp.ne.s32.totalorder %s114, %s116
    %p123 = scmp.eq.s32.totalorder %s17, 1
    %p124 = por %p122, %p123
    %p125 = scmp.ne.s32.totalorder %s116, %s117
    %p126 = scmp.eq.s32.totalorder %s17, 0
    %p127 = por %p125, %p126
    %p128 = scmp.ne.s32.totalorder %s116, %s117
    %p129 = scmp.eq.s32.totalorder %s18, 1
    %p130 = por %p128, %p129
    %p132 = scmp.ne.s32.totalorder %s117, %s131
    %p133 = scmp.eq.s32.totalorder %s18, 0
    %p134 = por %p132, %p133
    %s136 = sadd.s32 %s135, 1
    %p139 = scmp.eq.s32.totalorder %s12, 1
    %p140 = scmp.ne.s32.totalorder %s135, %s137
    %p141 = scmp.eq.s32.totalorder %s12, 0
    %p142 = por %p140, %p141
    %p143 = scmp.ne.s32.totalorder %s135, %s137
    %p144 = scmp.eq.s32.totalorder %s17, 1
    %p145 = por %p143, %p144
    %p146 = scmp.ne.s32.totalorder %s137, %s138
    %p147 = scmp.eq.s32.totalorder %s17, 0
    %p148 = por %p146, %p147
    %p149 = scmp.ne.s32.totalorder %s137, %s138
    %p150 = scmp.eq.s32.totalorder %s18, 1
    %p151 = por %p149, %p150
    %p153 = scmp.ne.s32.totalorder %s138, %s152
    %p154 = scmp.eq.s32.totalorder %s18, 0
    %p155 = por %p153, %p154
    %s156 = ssub.s32 %s12, %s19
    %p157 = scmp.eq.s32.totalorder %s156, 0
    %s159 = sadd.s32 %s158, 1
    %s160 = scalar_select %p157, %s158, %s159
    %p163 = pneg %p157
    %p164 = scmp.eq.s32.totalorder %s12, 1
    %p165 = por %p163, %p164
    %p166 = scmp.ne.s32.totalorder %s158, %s161
    %p167 = scmp.eq.s32.totalorder %s12, 0
    %p168 = por %p166, %p167
    %p169 = scmp.ne.s32.totalorder %s158, %s161
    %p170 = scmp.eq.s32.totalorder %s17, 1
    %p171 = por %p169, %p170
    %p172 = scmp.ne.s32.totalorder %s161, %s162
    %p173 = scmp.eq.s32.totalorder %s17, 0
    %p174 = por %p172, %p173
    %p175 = scmp.ne.s32.totalorder %s161, %s162
    %p176 = scmp.eq.s32.totalorder %s18, 1
    %p177 = por %p175, %p176
    %p179 = scmp.ne.s32.totalorder %s162, %s178
    %p180 = scmp.eq.s32.totalorder %s18, 0
    %p181 = por %p179, %p180
    %p182 = scmp.le.s32.totalorder 1, %s12
    %p183 = scmp.lt.s32.totalorder %s12, 3
    %p184 = pnand %p182, %p183
    %p185 = pneg %p184
    // Predicated region
    $region9: #{conv_res_block_forward.7} parent=5 // pred_check
      _
    $region10: #{conv_res_block_forward.7} parent=5 // pred_check_branch
      %187 = sbr.rel (%p184) target = $region12
    $region11: #{conv_res_block_forward.7} parent=5 // pred_region
      %s188 = ssub.s32 %s12, 1
      // Predicated region
      $region13: #{conv_res_block_forward.7} parent=11 // pred_check
        %p189 = pneg %p59
      $region14: #{conv_res_block_forward.7} parent=11 // pred_check_branch
        %191 = sbr.rel (%p189) target = $region16
      $region15: #{conv_res_block_forward.7} parent=11 // pred_region
        _
      $region16: #{conv_res_block_forward.7} parent=11 // pred_fallthru
        _
      // Predicated region
      $region17: #{conv_res_block_forward.7} parent=11 // pred_check
        %p192 = pneg %p80
      $region18: #{conv_res_block_forward.7} parent=11 // pred_check_branch
        %194 = sbr.rel (%p192) target = $region20
      $region19: #{conv_res_block_forward.7} parent=11 // pred_region
        _
      $region20: #{conv_res_block_forward.7} parent=11 // pred_fallthru
        _
      // Predicated region
      $region21: #{conv_res_block_forward.7} parent=11 // pred_check
        %p195 = pneg %p127
      $region22: #{conv_res_block_forward.7} parent=11 // pred_check_branch
        %197 = sbr.rel (%p195) target = $region24
      $region23: #{conv_res_block_forward.7} parent=11 // pred_region
        _
      $region24: #{conv_res_block_forward.7} parent=11 // pred_fallthru
        _
      // Predicated region
      $region25: #{conv_res_block_forward.7} parent=11 // pred_check
        %p198 = pneg %p148
      $region26: #{conv_res_block_forward.7} parent=11 // pred_check_branch
        %200 = sbr.rel (%p198) target = $region28
      $region27: #{conv_res_block_forward.7} parent=11 // pred_region
        _
      $region28: #{conv_res_block_forward.7} parent=11 // pred_fallthru
        _
    $region12: #{conv_res_block_forward.7} parent=5 // pred_fallthru
      _
    %p201 = scmp.lt.s32.totalorder %s12, 2
    // Predicated region
    $region29: #{conv_res_block_forward.7} parent=5 // pred_check
      %p202 = pneg %p201
    $region30: #{conv_res_block_forward.7} parent=5 // pred_check_branch
      %204 = sbr.rel (%p202) target = $region32
    $region31: #{conv_res_block_forward.7} parent=5 // pred_region
      // Predicated region
      $region33: #{conv_res_block_forward.7} parent=31 // pred_check
        %p205 = pneg %p32
      $region34: #{conv_res_block_forward.7} parent=31 // pred_check_branch
        %207 = sbr.rel (%p205) target = $region36
      $region35: #{conv_res_block_forward.7} parent=31 // pred_region
        %p208 = scmp.lt.s32.totalorder %s12, 1
        %s209 = scalar_select %p208, %s12, 1
        %s210 = smul.addr %s209, 54
        %s211 = smul.addr %s210, 8
        %s212 = scalar_lea.vmem %s0, %s211
      $region36: #{conv_res_block_forward.7} parent=31 // pred_fallthru
        _
      // Predicated region
      $region37: #{conv_res_block_forward.7} parent=31 // pred_check
        %p213 = pneg %p100
      $region38: #{conv_res_block_forward.7} parent=31 // pred_check_branch
        %215 = sbr.rel (%p213) target = $region40
      $region39: #{conv_res_block_forward.7} parent=31 // pred_region
        %p216 = scmp.lt.s32.totalorder %s12, 1
        %s217 = scalar_select %p216, %s12, 1
        %s218 = smul.addr %s217, 32
        %s219 = smul.addr %s218, 8
        %s220 = scalar_lea.vmem %s3, %s219
      $region40: #{conv_res_block_forward.7} parent=31 // pred_fallthru
        _
    $region32: #{conv_res_block_forward.7} parent=5 // pred_fallthru
      _
    %p221 = scmp.le.s32.totalorder 1, %s12
    %p222 = scmp.lt.s32.totalorder %s12, 3
    %p223 = pnand %p221, %p222
    %p224 = pneg %p223
    // Predicated region
    $region41: #{conv_res_block_forward.7} parent=5 // pred_check
      _
    $region42: #{conv_res_block_forward.7} parent=5 // pred_check_branch
      %226 = sbr.rel (%p223) target = $region44
    $region43: #{conv_res_block_forward.7} parent=5 // pred_region
      %s227 = ssub.s32 %s12, 1
      %p228 = scmp.lt.s32.totalorder %s17, 1
      %s229 = scalar_select %p228, %s17, 1
      %s230 = smul.addr %s229, 54
      %s231 = smul.addr %s230, 8
      %s232 = scalar_lea.vmem %s0, %s231
      %p233 = pneg %p38
      %p234 = pneg %p35
      %p235 = pneg %p59
      %p236 = pneg %p56
      %p237 = pneg %p80
      %p238 = pneg %p77
      %p239 = scmp.lt.s32.totalorder %s17, 1
      %s240 = scalar_select %p239, %s17, 1
      %s241 = smul.addr %s240, 32
      %s242 = smul.addr %s241, 8
      %s243 = scalar_lea.vmem %s3, %s242
      %p244 = pneg %p106
      %p245 = pneg %p103
      %p246 = pneg %p127
      %p247 = pneg %p124
      %p248 = pneg %p148
      %p249 = pneg %p145
      %p250 = pneg %p174
      %p251 = pneg %p171
      %p252 = scmp.lt.s32.totalorder %s17, 1
      %s253 = scalar_select %p252, %s17, 1
      %s254 = smul.addr %s253, 32
      %s255 = smul.addr %s254, 8
      %s256 = scalar_lea.vmem %s6, %s255
      %p257 = scmp.lt.s32.totalorder %s17, 1
      %s258 = scalar_select %p257, %s17, 1
      %s259 = smul.addr %s258, 54
      %s260 = smul.addr %s259, 8
      %s261 = scalar_lea.vmem %s0, %s260
      %p262 = scmp.lt.s32.totalorder %s17, 1
      %s263 = scalar_select %p262, %s17, 1
      %s264 = smul.addr %s263, 32
      %s265 = smul.addr %s264, 8
      %s266 = scalar_lea.vmem %s3, %s265
      %p267 = scmp.lt.s32.totalorder %s17, 1
      %s268 = scalar_select %p267, %s17, 1
      %s269 = smul.addr %s268, 32
      %s270 = smul.addr %s269, 8
      %s271 = scalar_lea.vmem %s6, %s270
      %v272 = vld [vmem:[%s261] sm:$0xff]
      %v273 = vld [vmem:[%s261 + $0x8] sm:$0xff]
      %v274 = vld [vmem:[%s261 + $0x10] sm:$0x3]
      %v275 = vld [vmem:[%s261 + $0x18] sm:$0xff]
      %v276 = vld [vmem:[%s261 + $0x20] sm:$0xff]
      %v277 = vld [vmem:[%s261 + $0x28] sm:$0x3]
      %v278 = vld [vmem:[%s261 + $0x30] sm:$0xff]
      %v279 = vld [vmem:[%s261 + $0x38] sm:$0xff]
      %v280 = vld [vmem:[%s261 + $0x40] sm:$0x3]
      %v281 = vld [vmem:[%s261 + $0x48] sm:$0xff]
      %v282 = vld [vmem:[%s261 + $0x50] sm:$0xff]
      %v283 = vld [vmem:[%s261 + $0x58] sm:$0x3]
      %v284 = vld [vmem:[%s261 + $0x60] sm:$0xff]
      %v285 = vld [vmem:[%s261 + $0x68] sm:$0xff]
      %v286 = vld [vmem:[%s261 + $0x70] sm:$0x3]
      %v287 = vld [vmem:[%s261 + $0x78] sm:$0xff]
      %v288 = vld [vmem:[%s261 + $0x80] sm:$0xff]
      %v289 = vld [vmem:[%s261 + $0x88] sm:$0x3]
      %v290 = vld [vmem:[%s261 + $0x90] sm:$0xff]
      %v291 = vld [vmem:[%s261 + $0x98] sm:$0xff]
      %v292 = vld [vmem:[%s261 + $0xa0] sm:$0x3]
      %v293 = vld [vmem:[%s261 + $0xa8] sm:$0xff]
      %v294 = vld [vmem:[%s261 + $0xb0] sm:$0xff]
      %v295 = vld [vmem:[%s261 + $0xb8] sm:$0x3]
      %v296 = vld [vmem:[%s261 + $0xc0] sm:$0xff]
      %v297 = vld [vmem:[%s261 + $0xc8] sm:$0xff]
      %v298 = vld [vmem:[%s261 + $0xd0] sm:$0x3]
      %v299 = vld [vmem:[%s261 + $0xd8] sm:$0xff]
      %v300 = vld [vmem:[%s261 + $0xe0] sm:$0xff]
      %v301 = vld [vmem:[%s261 + $0xe8] sm:$0x3]
      %v302 = vld [vmem:[%s261 + $0xf0] sm:$0xff]
      %v303 = vld [vmem:[%s261 + $0xf8] sm:$0xff]
      %v304 = vld [vmem:[%s261 + $0x100] sm:$0x3]
      %v305 = vld [vmem:[%s261 + $0x108] sm:$0xff]
      %v306 = vld [vmem:[%s261 + $0x110] sm:$0xff]
      %v307 = vld [vmem:[%s261 + $0x118] sm:$0x3]
      %v308 = vld [vmem:[%s261 + $0x120] sm:$0xff]
      %v309 = vld [vmem:[%s261 + $0x128] sm:$0xff]
      %v310 = vld [vmem:[%s261 + $0x130] sm:$0x3]
      %v311 = vld [vmem:[%s261 + $0x138] sm:$0xff]
      %v312 = vld [vmem:[%s261 + $0x140] sm:$0xff]
      %v313 = vld [vmem:[%s261 + $0x148] sm:$0x3]
      %v314 = vld [vmem:[%s261 + $0x150] sm:$0xff]
      %v315 = vld [vmem:[%s261 + $0x158] sm:$0xff]
      %v316 = vld [vmem:[%s261 + $0x160] sm:$0x3]
      %v317 = vld [vmem:[%s261 + $0x168] sm:$0xff]
      %v318 = vld [vmem:[%s261 + $0x170] sm:$0xff]
      %v319 = vld [vmem:[%s261 + $0x178] sm:$0x3]
      %v320 = vld [vmem:[%s261 + $0x180] sm:$0xff]
      %v321 = vld [vmem:[%s261 + $0x188] sm:$0xff]
      %v322 = vld [vmem:[%s261 + $0x190] sm:$0x3]
      %v323 = vld [vmem:[%s261 + $0x198] sm:$0xff]
      %v324 = vld [vmem:[%s261 + $0x1a0] sm:$0xff]
      %v325 = vld [vmem:[%s261 + $0x1a8] sm:$0x3]
      %v326 = vld [vmem:[%s1] sm:$0xff]
      %vm375 = vcmask 1046528
      %v376 = vrot.slane %v272, 1
      %v377 = vrot.slane %v273, 1
      %v378 = vsel %vm375, %v376, %v377
      %v379 = vrot.slane %v274, 1
      %v380 = vsel %vm375, %v377, %v379
      %v381 = vrot.slane %v275, 1
      %v382 = vrot.slane %v276, 1
      %v383 = vsel %vm375, %v381, %v382
      %v384 = vrot.slane %v277, 1
      %v385 = vsel %vm375, %v382, %v384
      %v386 = vrot.slane %v278, 1
      %v387 = vrot.slane %v279, 1
      %v388 = vsel %vm375, %v386, %v387
      %v389 = vrot.slane %v280, 1
      %v390 = vsel %vm375, %v387, %v389
      %v391 = vrot.slane %v281, 1
      %v392 = vrot.slane %v282, 1
      %v393 = vsel %vm375, %v391, %v392
      %v394 = vrot.slane %v283, 1
      %v395 = vsel %vm375, %v392, %v394
      %v396 = vrot.slane %v284, 1
      %v397 = vrot.slane %v285, 1
      %v398 = vsel %vm375, %v396, %v397
      %v399 = vrot.slane %v286, 1
      %v400 = vsel %vm375, %v397, %v399
      %v401 = vrot.slane %v287, 1
      %v402 = vrot.slane %v288, 1
      %v403 = vsel %vm375, %v401, %v402
      %v404 = vrot.slane %v289, 1
      %v405 = vsel %vm375, %v402, %v404
      %v406 = vrot.slane %v290, 1
      %v407 = vrot.slane %v291, 1
      %v408 = vsel %vm375, %v406, %v407
      %v409 = vrot.slane %v292, 1
      %v410 = vsel %vm375, %v407, %v409
      %v411 = vrot.slane %v293, 1
      %v412 = vrot.slane %v294, 1
      %v413 = vsel %vm375, %v411, %v412
      %v414 = vrot.slane %v295, 1
      %v415 = vsel %vm375, %v412, %v414
      %v416 = vrot.slane %v296, 1
      %v417 = vrot.slane %v297, 1
      %v418 = vsel %vm375, %v416, %v417
      %v419 = vrot.slane %v298, 1
      %v420 = vsel %vm375, %v417, %v419
      %v421 = vrot.slane %v299, 1
      %v422 = vrot.slane %v300, 1
      %v423 = vsel %vm375, %v421, %v422
      %v424 = vrot.slane %v301, 1
      %v425 = vsel %vm375, %v422, %v424
      %v426 = vrot.slane %v302, 1
      %v427 = vrot.slane %v303, 1
      %v428 = vsel %vm375, %v426, %v427
      %v429 = vrot.slane %v304, 1
      %v430 = vsel %vm375, %v427, %v429
      %v431 = vrot.slane %v305, 1
      %v432 = vrot.slane %v306, 1
      %v433 = vsel %vm375, %v431, %v432
      %v434 = vrot.slane %v307, 1
      %v435 = vsel %vm375, %v432, %v434
      %v436 = vrot.slane %v308, 1
      %v437 = vrot.slane %v309, 1
      %v438 = vsel %vm375, %v436, %v437
      %v439 = vrot.slane %v310, 1
      %v440 = vsel %vm375, %v437, %v439
      %v441 = vrot.slane %v311, 1
      %v442 = vrot.slane %v312, 1
      %v443 = vsel %vm375, %v441, %v442
      %v444 = vrot.slane %v313, 1
      %v445 = vsel %vm375, %v442, %v444
      %v446 = vrot.slane %v314, 1
      %v447 = vrot.slane %v315, 1
      %v448 = vsel %vm375, %v446, %v447
      %v449 = vrot.slane %v316, 1
      %v450 = vsel %vm375, %v447, %v449
      %v451 = vrot.slane %v317, 1
      %v452 = vrot.slane %v318, 1
      %v453 = vsel %vm375, %v451, %v452
      %v454 = vrot.slane %v319, 1
      %v455 = vsel %vm375, %v452, %v454
      %s456 = scalar_lea.vmem %s1, 8
      %v457 = vld [vmem:[%s456] sm:$0xff]
      %vm458 = vcmask 64512
      %v459 = vsel %vm458, %v378, 0
      %v461 = vsel %vm458, %v380, 0
      %v463 = vsel %vm458, %v383, 0
      %v465 = vsel %vm458, %v385, 0
      %v467 = vsel %vm458, %v388, 0
      %v469 = vsel %vm458, %v390, 0
      %v471 = vsel %vm458, %v393, 0
      %v473 = vsel %vm458, %v395, 0
      %v475 = vsel %vm458, %v398, 0
      %v477 = vsel %vm458, %v400, 0
      %v479 = vsel %vm458, %v403, 0
      %v481 = vsel %vm458, %v405, 0
      %v483 = vsel %vm458, %v408, 0
      %v485 = vsel %vm458, %v410, 0
      %v487 = vsel %vm458, %v413, 0
      %v489 = vsel %vm458, %v415, 0
      %v491 = vsel %vm458, %v418, 0
      %v493 = vsel %vm458, %v420, 0
      %v495 = vsel %vm458, %v423, 0
      %v497 = vsel %vm458, %v425, 0
      %v499 = vsel %vm458, %v428, 0
      %v501 = vsel %vm458, %v430, 0
      %v503 = vsel %vm458, %v433, 0
      %v505 = vsel %vm458, %v435, 0
      %v507 = vsel %vm458, %v438, 0
      %v509 = vsel %vm458, %v440, 0
      %v511 = vsel %vm458, %v443, 0
      %v513 = vsel %vm458, %v445, 0
      %v515 = vsel %vm458, %v448, 0
      %v517 = vsel %vm458, %v450, 0
      %v519 = vsel %vm458, %v453, 0
      %v521 = vsel %vm458, %v455, 0
      %523 = vmatprep.subr.mxu0 0.0
      %524 = vmatpush1.msra.mxu0 %v457
      %525 = vmatprep.subr.mxu0 0.0
      %526 = vmatpush1.msra.mxu0 0.0
      %527 = vmatprep.subr.mxu0 0.0
      %528 = vmatpush1.msra.mxu0 0.0
      %529 = vmatprep.subr.mxu0 0.0
      %530 = vmatpush1.msra.mxu0 0.0
      %531 = vmatprep.subr.mxu0 0.0
      %532 = vmatpush1.msra.mxu0 0.0
      %533 = vmatprep.subr.mxu0 0.0
      %534 = vmatpush1.msra.mxu0 0.0
      %535 = vmatprep.subr.mxu0 0.0
      %536 = vmatpush1.msra.mxu0 0.0
      %537 = vmatprep.subr.mxu0 0.0
      %538 = vmatpush1.msra.mxu0 0.0
      %539 = vmatprep.subr.mxu0 0.0
      %540 = vmatpush1.msra.mxu0 0.0
      %541 = vmatprep.subr.mxu0 0.0
      %542 = vmatpush1.msra.mxu0 0.0
      %543 = vmatprep.subr.mxu0 0.0
      %544 = vmatpush1.msra.mxu0 0.0
      %545 = vmatprep.subr.mxu0 0.0
      %546 = vmatpush1.msra.mxu0 0.0
      %547 = vmatprep.subr.mxu0 0.0
      %548 = vmatpush1.msra.mxu0 0.0
      %549 = vmatprep.subr.mxu0 0.0
      %550 = vmatpush1.msra.mxu0 0.0
      %551 = vmatprep.subr.mxu0 0.0
      %552 = vmatpush1.msra.mxu0 0.0
      %553 = vmatprep.subr.mxu0 0.0
      %554 = vmatpush1.msra.mxu0 0.0
      %555 = vmatprep.subr.mxu0 0.0
      %556 = vmatpush1.msra.mxu0 0.0
      %557 = vmatprep.subr.mxu0 0.0
      %558 = vmatpush1.msra.mxu0 0.0
      %559 = vmatprep.subr.mxu0 0.0
      %560 = vmatpush1.msra.mxu0 0.0
      %561 = vmatprep.subr.mxu0 0.0
      %562 = vmatpush1.msra.mxu0 0.0
      %563 = vmatprep.subr.mxu0 0.0
      %564 = vmatpush1.msra.mxu0 0.0
      %565 = vmatprep.subr.mxu0 0.0
      %566 = vmatpush1.msra.mxu0 0.0
      %567 = vmatprep.subr.mxu0 0.0
      %568 = vmatpush1.msra.mxu0 0.0
      %569 = vmatprep.subr.mxu0 0.0
      %570 = vmatpush1.msra.mxu0 0.0
      %571 = vmatprep.subr.mxu0 0.0
      %572 = vmatpush1.msra.mxu0 0.0
      %573 = vmatprep.subr.mxu0 0.0
      %574 = vmatpush1.msra.mxu0 0.0
      %575 = vmatprep.subr.mxu0 0.0
      %576 = vmatpush1.msra.mxu0 0.0
      %577 = vmatprep.subr.mxu0 0.0
      %578 = vmatpush1.msra.mxu0 0.0
      %579 = vmatprep.subr.mxu0 0.0
      %580 = vmatpush1.msra.mxu0 0.0
      %581 = vmatprep.subr.mxu0 0.0
      %582 = vmatpush1.msra.mxu0 0.0
      %583 = vmatprep.subr.mxu0 0.0
      %584 = vmatpush1.msra.mxu0 0.0
      %585 = vmatprep.subr.mxu0 0.0
      %586 = vmatpush1.msra.mxu0 0.0
      %587 = vmatprep.mubr.f32.mxu0 0.0
      %588 = vmatmul.mubr.f32.gmra.mrb[0].mxu0 %v459
      %v589 = vpop.f32.mrb[0].mxu0
      %v590 = vadd.f32 0.0, %v589
      %v591 = vpop.f32.mrb[0].mxu0
      %592 = vmatprep.mubr.f32.mxu0 0.0
      %593 = vmatmul.mubr.f32.gmra.mrb[0].mxu0 %v461
      %v594 = vpop.f32.mrb[0].mxu0
      %v595 = vadd.f32 0.0, %v594
      %v596 = vpop.f32.mrb[0].mxu0
      %597 = vmatprep.mubr.f32.mxu0 0.0
      %598 = vmatmul.mubr.f32.gmra.mrb[0].mxu0 %v463
      %v599 = vpop.f32.mrb[0].mxu0
      %v600 = vadd.f32 0.0, %v599
      %v601 = vpop.f32.mrb[0].mxu0
      %602 = vmatprep.mubr.f32.mxu0 0.0
      %603 = vmatmul.mubr.f32.gmra.mrb[0].mxu0 %v465
      %v604 = vpop.f32.mrb[0].mxu0
      %v605 = vadd.f32 0.0, %v604
      %v606 = vpop.f32.mrb[0].mxu0
      %607 = vmatprep.mubr.f32.mxu0 0.0
      %608 = vmatmul.mubr.f32.gmra.mrb[0].mxu0 %v467
      %v609 = vpop.f32.mrb[0].mxu0
      %v610 = vadd.f32 0.0, %v609
      %v611 = vpop.f32.mrb[0].mxu0
      %612 = vmatprep.mubr.f32.mxu0 0.0
      %613 = vmatmul.mubr.f32.gmra.mrb[0].mxu0 %v469
      %v614 = vpop.f32.mrb[0].mxu0
      %v615 = vadd.f32 0.0, %v614
      %v616 = vpop.f32.mrb[0].mxu0
      %617 = vmatprep.mubr.f32.mxu0 0.0
      %618 = vmatmul.mubr.f32.gmra.mrb[0].mxu0 %v471
      %v619 = vpop.f32.mrb[0].mxu0
      %v620 = vadd.f32 0.0, %v619
      %v621 = vpop.f32.mrb[0].mxu0
      %622 = vmatprep.mubr.f32.mxu0 0.0
      %623 = vmatmul.mubr.f32.gmra.mrb[0].mxu0 %v473
      %v624 = vpop.f32.mrb[0].mxu0
      %v625 = vadd.f32 0.0, %v624
      %v626 = vpop.f32.mrb[0].mxu0
      %627 = vmatprep.mubr.f32.mxu0 0.0
      %628 = vmatmul.mubr.f32.gmra.mrb[0].mxu0 %v475
      %v629 = vpop.f32.mrb[0].mxu0
      %v630 = vadd.f32 0.0, %v629
      %v631 = vpop.f32.mrb[0].mxu0
      %632 = vmatprep.mubr.f32.mxu0 0.0
      %633 = vmatmul.mubr.f32.gmra.mrb[0].mxu0 %v477
      %v634 = vpop.f32.mrb[0].mxu0
      %v635 = vadd.f32 0.0, %v634
      %v636 = vpop.f32.mrb[0].mxu0
      %637 = vmatprep.mubr.f32.mxu0 0.0
      %638 = vmatmul.mubr.f32.gmra.mrb[0].mxu0 %v479
      %v639 = vpop.f32.mrb[0].mxu0
      %v640 = vadd.f32 0.0, %v639
      %v641 = vpop.f32.mrb[0].mxu0
      %642 = vmatprep.mubr.f32.mxu0 0.0
      %643 = vmatmul.mubr.f32.gmra.mrb[0].mxu0 %v481
      %v644 = vpop.f32.mrb[0].mxu0
      %v645 = vadd.f32 0.0, %v644
      %v646 = vpop.f32.mrb[0].mxu0
      %647 = vmatprep.mubr.f32.mxu0 0.0
      %648 = vmatmul.mubr.f32.gmra.mrb[0].mxu0 %v483
      %v649 = vpop.f32.mrb[0].mxu0
      %v650 = vadd.f32 0.0, %v649
      %v651 = vpop.f32.mrb[0].mxu0
      %652 = vmatprep.mubr.f32.mxu0 0.0
      %653 = vmatmul.mubr.f32.gmra.mrb[0].mxu0 %v485
      %v654 = vpop.f32.mrb[0].mxu0
      %v655 = vadd.f32 0.0, %v654
      %v656 = vpop.f32.mrb[0].mxu0
      %657 = vmatprep.mubr.f32.mxu0 0.0
      %658 = vmatmul.mubr.f32.gmra.mrb[0].mxu0 %v487
      %v659 = vpop.f32.mrb[0].mxu0
      %v660 = vadd.f32 0.0, %v659
      %v661 = vpop.f32.mrb[0].mxu0
      %662 = vmatprep.mubr.f32.mxu0 0.0
      %663 = vmatmul.mubr.f32.gmra.mrb[0].mxu0 %v489
      %v664 = vpop.f32.mrb[0].mxu0
      %v665 = vadd.f32 0.0, %v664
      %v666 = vpop.f32.mrb[0].mxu0
      %667 = vmatprep.mubr.f32.mxu0 0.0
      %668 = vmatmul.mubr.f32.gmra.mrb[0].mxu0 %v491
      %v669 = vpop.f32.mrb[0].mxu0
      %v670 = vadd.f32 0.0, %v669
      %v671 = vpop.f32.mrb[0].mxu0
      %672 = vmatprep.mubr.f32.mxu0 0.0
      %673 = vmatmul.mubr.f32.gmra.mrb[0].mxu0 %v493
      %v674 = vpop.f32.mrb[0].mxu0
      %v675 = vadd.f32 0.0, %v674
      %v676 = vpop.f32.mrb[0].mxu0
      %677 = vmatprep.mubr.f32.mxu0 0.0
      %678 = vmatmul.mubr.f32.gmra.mrb[0].mxu0 %v495
      %v679 = vpop.f32.mrb[0].mxu0
      %v680 = vadd.f32 0.0, %v679
      %v681 = vpop.f32.mrb[0].mxu0
      %682 = vmatprep.mubr.f32.mxu0 0.0
      %683 = vmatmul.mubr.f32.gmra.mrb[0].mxu0 %v497
      %v684 = vpop.f32.mrb[0].mxu0
      %v685 = vadd.f32 0.0, %v684
      %v686 = vpop.f32.mrb[0].mxu0
      %687 = vmatprep.mubr.f32.mxu0 0.0
      %688 = vmatmul.mubr.f32.gmra.mrb[0].mxu0 %v499
      %v689 = vpop.f32.mrb[0].mxu0
      %v690 = vadd.f32 0.0, %v689
      %v691 = vpop.f32.mrb[0].mxu0
      %692 = vmatprep.mubr.f32.mxu0 0.0
      %693 = vmatmul.mubr.f32.gmra.mrb[0].mxu0 %v501
      %v694 = vpop.f32.mrb[0].mxu0
      %v695 = vadd.f32 0.0, %v694
      %v696 = vpop.f32.mrb[0].mxu0
      %697 = vmatprep.mubr.f32.mxu0 0.0
      %698 = vmatmul.mubr.f32.gmra.mrb[0].mxu0 %v503
      %v699 = vpop.f32.mrb[0].mxu0
      %v700 = vadd.f32 0.0, %v699
      %v701 = vpop.f32.mrb[0].mxu0
      %702 = vmatprep.mubr.f32.mxu0 0.0
      %703 = vmatmul.mubr.f32.gmra.mrb[0].mxu0 %v505
      %v704 = vpop.f32.mrb[0].mxu0
      %v705 = vadd.f32 0.0, %v704
      %v706 = vpop.f32.mrb[0].mxu0
      %707 = vmatprep.mubr.f32.mxu0 0.0
      %708 = vmatmul.mubr.f32.gmra.mrb[0].mxu0 %v507
      %v709 = vpop.f32.mrb[0].mxu0
      %v710 = vadd.f32 0.0, %v709
      %v711 = vpop.f32.mrb[0].mxu0
      %712 = vmatprep.mubr.f32.mxu0 0.0
      %713 = vmatmul.mubr.f32.gmra.mrb[0].mxu0 %v509
      %v714 = vpop.f32.mrb[0].mxu0
      %v715 = vadd.f32 0.0, %v714
      %v716 = vpop.f32.mrb[0].mxu0
      %717 = vmatprep.mubr.f32.mxu0 0.0
      %718 = vmatmul.mubr.f32.gmra.mrb[0].mxu0 %v511
      %v719 = vpop.f32.mrb[0].mxu0
      %v720 = vadd.f32 0.0, %v719
      %v721 = vpop.f32.mrb[0].mxu0
      %722 = vmatprep.mubr.f32.mxu0 0.0
      %723 = vmatmul.mubr.f32.gmra.mrb[0].mxu0 %v513
      %v724 = vpop.f32.mrb[0].mxu0
      %v725 = vadd.f32 0.0, %v724
      %v726 = vpop.f32.mrb[0].mxu0
      %727 = vmatprep.mubr.f32.mxu0 0.0
      %728 = vmatmul.mubr.f32.gmra.mrb[0].mxu0 %v515
      %v729 = vpop.f32.mrb[0].mxu0
      %v730 = vadd.f32 0.0, %v729
      %v731 = vpop.f32.mrb[0].mxu0
      %732 = vmatprep.mubr.f32.mxu0 0.0
      %733 = vmatmul.mubr.f32.gmra.mrb[0].mxu0 %v517
      %v734 = vpop.f32.mrb[0].mxu0
      %v735 = vadd.f32 0.0, %v734
      %v736 = vpop.f32.mrb[0].mxu0
      %737 = vmatprep.mubr.f32.mxu0 0.0
      %738 = vmatmul.mubr.f32.gmra.mrb[0].mxu0 %v519
      %v739 = vpop.f32.mrb[0].mxu0
      %v740 = vadd.f32 0.0, %v739
      %v741 = vpop.f32.mrb[0].mxu0
      %742 = vmatprep.mubr.f32.mxu0 0.0
      %743 = vmatmul.mubr.f32.gmra.mrb[0].mxu0 %v521
      %v744 = vpop.f32.mrb[0].mxu0
      %v745 = vadd.f32 0.0, %v744
      %v746 = vpop.f32.mrb[0].mxu0
      %747 = vdwg.mxu0
      %v748 = vsel %vm458, %v272, 0
      %v750 = vsel %vm458, %v273, 0
      %v752 = vsel %vm458, %v275, 0
      %v754 = vsel %vm458, %v276, 0
      %v756 = vsel %vm458, %v278, 0
      %v758 = vsel %vm458, %v279, 0
      %v760 = vsel %vm458, %v281, 0
      %v762 = vsel %vm458, %v282, 0
      %v764 = vsel %vm458, %v284, 0
      %v766 = vsel %vm458, %v285, 0
      %v768 = vsel %vm458, %v287, 0
      %v770 = vsel %vm458, %v288, 0
      %v772 = vsel %vm458, %v290, 0
      %v774 = vsel %vm458, %v291, 0
      %v776 = vsel %vm458, %v293, 0
      %v778 = vsel %vm458, %v294, 0
      %v780 = vsel %vm458, %v296, 0
      %v782 = vsel %vm458, %v297, 0
      %v784 = vsel %vm458, %v299, 0
      %v786 = vsel %vm458, %v300, 0
      %v788 = vsel %vm458, %v302, 0
      %v790 = vsel %vm458, %v303, 0
      %v792 = vsel %vm458, %v305, 0
      %v794 = vsel %vm458, %v306, 0
      %v796 = vsel %vm458, %v308, 0
      %v798 = vsel %vm458, %v309, 0
      %v800 = vsel %vm458, %v311, 0
      %v802 = vsel %vm458, %v312, 0
      %v804 = vsel %vm458, %v314, 0
      %v806 = vsel %vm458, %v315, 0
      %v808 = vsel %vm458, %v317, 0
      %v810 = vsel %vm458, %v318, 0
      %812 = vmatprep.subr.mxu0 0.0
      %813 = vmatpush1.msra.mxu0 %v326
      %814 = vmatprep.subr.mxu0 0.0
      %815 = vmatpush1.msra.mxu0 0.0
      %816 = vmatprep.subr.mxu0 0.0
      %817 = vmatpush1.msra.mxu0 0.0
      %818 = vmatprep.subr.mxu0 0.0
      %819 = vmatpush1.msra.mxu0 0.0
      %820 = vmatprep.subr.mxu0 0.0
      %821 = vmatpush1.msra.mxu0 0.0
      %822 = vmatprep.subr.mxu0 0.0
      %823 = vmatpush1.msra.mxu0 0.0
      %824 = vmatprep.subr.mxu0 0.0
      %825 = vmatpush1.msra.mxu0 0.0
      %826 = vmatprep.subr.mxu0 0.0
      %827 = vmatpush1.msra.mxu0 0.0
      %828 = vmatprep.subr.mxu0 0.0
      %829 = vmatpush1.msra.mxu0 0.0
      %830 = vmatprep.subr.mxu0 0.0
      %831 = vmatpush1.msra.mxu0 0.0
      %832 = vmatprep.subr.mxu0 0.0
      %833 = vmatpush1.msra.mxu0 0.0
      %834 = vmatprep.subr.mxu0 0.0
      %835 = vmatpush1.msra.mxu0 0.0
      %836 = vmatprep.subr.mxu0 0.0
      %837 = vmatpush1.msra.mxu0 0.0
      %838 = vmatprep.subr.mxu0 0.0
      %839 = vmatpush1.msra.mxu0 0.0
      %840 = vmatprep.subr.mxu0 0.0
      %841 = vmatpush1.msra.mxu0 0.0
      %842 = vmatprep.subr.mxu0 0.0
      %843 = vmatpush1.msra.mxu0 0.0
      %844 = vmatprep.subr.mxu0 0.0
      %845 = vmatpush1.msra.mxu0 0.0
      %846 = vmatprep.subr.mxu0 0.0
      %847 = vmatpush1.msra.mxu0 0.0
      %848 = vmatprep.subr.mxu0 0.0
      %849 = vmatpush1.msra.mxu0 0.0
      %850 = vmatprep.subr.mxu0 0.0
      %851 = vmatpush1.msra.mxu0 0.0
      %852 = vmatprep.subr.mxu0 0.0
      %853 = vmatpush1.msra.mxu0 0.0
      %854 = vmatprep.subr.mxu0 0.0
      %855 = vmatpush1.msra.mxu0 0.0
      %856 = vmatprep.subr.mxu0 0.0
      %857 = vmatpush1.msra.mxu0 0.0
      %858 = vmatprep.subr.mxu0 0.0
      %859 = vmatpush1.msra.mxu0 0.0
      %860 = vmatprep.subr.mxu0 0.0
      %861 = vmatpush1.msra.mxu0 0.0
      %862 = vmatprep.subr.mxu0 0.0
      %863 = vmatpush1.msra.mxu0 0.0
      %864 = vmatprep.subr.mxu0 0.0
      %865 = vmatpush1.msra.mxu0 0.0
      %866 = vmatprep.subr.mxu0 0.0
      %867 = vmatpush1.msra.mxu0 0.0
      %868 = vmatprep.subr.mxu0 0.0
      %869 = vmatpush1.msra.mxu0 0.0
      %870 = vmatprep.subr.mxu0 0.0
      %871 = vmatpush1.msra.mxu0 0.0
      %872 = vmatprep.subr.mxu0 0.0
      %873 = vmatpush1.msra.mxu0 0.0
      %874 = vmatprep.subr.mxu0 0.0
      %875 = vmatpush1.msra.mxu0 0.0
      %876 = vmatprep.mubr.f32.mxu0 0.0
      %877 = vmatmul.mubr.f32.gmra.mrb[0].mxu0 %v748
      %v878 = vpop.f32.mrb[0].mxu0
      %v879 = vadd.f32 %v590, %v878
      %v880 = vpop.f32.mrb[0].mxu0
      %881 = vmatprep.mubr.f32.mxu0 0.0
      %882 = vmatmul.mubr.f32.gmra.mrb[0].mxu0 %v750
      %v883 = vpop.f32.mrb[0].mxu0
      %v884 = vadd.f32 %v595, %v883
      %v885 = vpop.f32.mrb[0].mxu0
      %886 = vmatprep.mubr.f32.mxu0 0.0
      %887 = vmatmul.mubr.f32.gmra.mrb[0].mxu0 %v752
      %v888 = vpop.f32.mrb[0].mxu0
      %v889 = vadd.f32 %v600, %v888
      %v890 = vpop.f32.mrb[0].mxu0
      %891 = vmatprep.mubr.f32.mxu0 0.0
      %892 = vmatmul.mubr.f32.gmra.mrb[0].mxu0 %v754
      %v893 = vpop.f32.mrb[0].mxu0
      %v894 = vadd.f32 %v605, %v893
      %v895 = vpop.f32.mrb[0].mxu0
      %896 = vmatprep.mubr.f32.mxu0 0.0
      %897 = vmatmul.mubr.f32.gmra.mrb[0].mxu0 %v756
      %v898 = vpop.f32.mrb[0].mxu0
      %v899 = vadd.f32 %v610, %v898
      %v900 = vpop.f32.mrb[0].mxu0
      %901 = vmatprep.mubr.f32.mxu0 0.0
      %902 = vmatmul.mubr.f32.gmra.mrb[0].mxu0 %v758
      %v903 = vpop.f32.mrb[0].mxu0
      %v904 = vadd.f32 %v615, %v903
      %v905 = vpop.f32.mrb[0].mxu0
      %906 = vmatprep.mubr.f32.mxu0 0.0
      %907 = vmatmul.mubr.f32.gmra.mrb[0].mxu0 %v760
      %v908 = vpop.f32.mrb[0].mxu0
      %v909 = vadd.f32 %v620, %v908
      %v910 = vpop.f32.mrb[0].mxu0
      %911 = vmatprep.mubr.f32.mxu0 0.0
      %912 = vmatmul.mubr.f32.gmra.mrb[0].mxu0 %v762
      %v913 = vpop.f32.mrb[0].mxu0
      %v914 = vadd.f32 %v625, %v913
      %v915 = vpop.f32.mrb[0].mxu0
      %916 = vmatprep.mubr.f32.mxu0 0.0
      %917 = vmatmul.mubr.f32.gmra.mrb[0].mxu0 %v764
      %v918 = vpop.f32.mrb[0].mxu0
      %v919 = vadd.f32 %v630, %v918
      %v920 = vpop.f32.mrb[0].mxu0
      %921 = vmatprep.mubr.f32.mxu0 0.0
      %922 = vmatmul.mubr.f32.gmra.mrb[0].mxu0 %v766
      %v923 = vpop.f32.mrb[0].mxu0
      %v924 = vadd.f32 %v635, %v923
      %v925 = vpop.f32.mrb[0].mxu0
      %926 = vmatprep.mubr.f32.mxu0 0.0
      %927 = vmatmul.mubr.f32.gmra.mrb[0].mxu0 %v768
      %v928 = vpop.f32.mrb[0].mxu0
      %v929 = vadd.f32 %v640, %v928
      %v930 = vpop.f32.mrb[0].mxu0
      %931 = vmatprep.mubr.f32.mxu0 0.0
      %932 = vmatmul.mubr.f32.gmra.mrb[0].mxu0 %v770
      %v933 = vpop.f32.mrb[0].mxu0
      %v934 = vadd.f32 %v645, %v933
      %v935 = vpop.f32.mrb[0].mxu0
      %936 = vmatprep.mubr.f32.mxu0 0.0
      %937 = vmatmul.mubr.f32.gmra.mrb[0].mxu0 %v772
      %v938 = vpop.f32.mrb[0].mxu0
      %v939 = vadd.f32 %v650, %v938
      %v940 = vpop.f32.mrb[0].mxu0
      %941 = vmatprep.mubr.f32.mxu0 0.0
      %942 = vmatmul.mubr.f32.gmra.mrb[0].mxu0 %v774
      %v943 = vpop.f32.mrb[0].mxu0
      %v944 = vadd.f32 %v655, %v943
      %v945 = vpop.f32.mrb[0].mxu0
      %946 = vmatprep.mubr.f32.mxu0 0.0
      %947 = vmatmul.mubr.f32.gmra.mrb[0].mxu0 %v776
      %v948 = vpop.f32.mrb[0].mxu0
      %v949 = vadd.f32 %v660, %v948
      %v950 = vpop.f32.mrb[0].mxu0
      %951 = vmatprep.mubr.f32.mxu0 0.0
      %952 = vmatmul.mubr.f32.gmra.mrb[0].mxu0 %v778
      %v953 = vpop.f32.mrb[0].mxu0
      %v954 = vadd.f32 %v665, %v953
      %v955 = vpop.f32.mrb[0].mxu0
      %956 = vmatprep.mubr.f32.mxu0 0.0
      %957 = vmatmul.mubr.f32.gmra.mrb[0].mxu0 %v780
      %v958 = vpop.f32.mrb[0].mxu0
      %v959 = vadd.f32 %v670, %v958
      %v960 = vpop.f32.mrb[0].mxu0
      %961 = vmatprep.mubr.f32.mxu0 0.0
      %962 = vmatmul.mubr.f32.gmra.mrb[0].mxu0 %v782
      %v963 = vpop.f32.mrb[0].mxu0
      %v964 = vadd.f32 %v675, %v963
      %v965 = vpop.f32.mrb[0].mxu0
      %966 = vmatprep.mubr.f32.mxu0 0.0
      %967 = vmatmul.mubr.f32.gmra.mrb[0].mxu0 %v784
      %v968 = vpop.f32.mrb[0].mxu0
      %v969 = vadd.f32 %v680, %v968
      %v970 = vpop.f32.mrb[0].mxu0
      %971 = vmatprep.mubr.f32.mxu0 0.0
      %972 = vmatmul.mubr.f32.gmra.mrb[0].mxu0 %v786
      %v973 = vpop.f32.mrb[0].mxu0
      %v974 = vadd.f32 %v685, %v973
      %v975 = vpop.f32.mrb[0].mxu0
      %976 = vmatprep.mubr.f32.mxu0 0.0
      %977 = vmatmul.mubr.f32.gmra.mrb[0].mxu0 %v788
      %v978 = vpop.f32.mrb[0].mxu0
      %v979 = vadd.f32 %v690, %v978
      %v980 = vpop.f32.mrb[0].mxu0
      %981 = vmatprep.mubr.f32.mxu0 0.0
      %982 = vmatmul.mubr.f32.gmra.mrb[0].mxu0 %v790
      %v983 = vpop.f32.mrb[0].mxu0
      %v984 = vadd.f32 %v695, %v983
      %v985 = vpop.f32.mrb[0].mxu0
      %986 = vmatprep.mubr.f32.mxu0 0.0
      %987 = vmatmul.mubr.f32.gmra.mrb[0].mxu0 %v792
      %v988 = vpop.f32.mrb[0].mxu0
      %v989 = vadd.f32 %v700, %v988
      %v990 = vpop.f32.mrb[0].mxu0
      %991 = vmatprep.mubr.f32.mxu0 0.0
      %992 = vmatmul.mubr.f32.gmra.mrb[0].mxu0 %v794
      %v993 = vpop.f32.mrb[0].mxu0
      %v994 = vadd.f32 %v705, %v993
      %v995 = vpop.f32.mrb[0].mxu0
      %996 = vmatprep.mubr.f32.mxu0 0.0
      %997 = vmatmul.mubr.f32.gmra.mrb[0].mxu0 %v796
      %v998 = vpop.f32.mrb[0].mxu0
      %v999 = vadd.f32 %v710, %v998
      %v1000 = vpop.f32.mrb[0].mxu0
      %1001 = vmatprep.mubr.f32.mxu0 0.0
      %1002 = vmatmul.mubr.f32.gmra.mrb[0].mxu0 %v798
      %v1003 = vpop.f32.mrb[0].mxu0
      %v1004 = vadd.f32 %v715, %v1003
      %v1005 = vpop.f32.mrb[0].mxu0
      %1006 = vmatprep.mubr.f32.mxu0 0.0
      %1007 = vmatmul.mubr.f32.gmra.mrb[0].mxu0 %v800
      %v1008 = vpop.f32.mrb[0].mxu0
      %v1009 = vadd.f32 %v720, %v1008
      %v1010 = vpop.f32.mrb[0].mxu0
      %1011 = vmatprep.mubr.f32.mxu0 0.0
      %1012 = vmatmul.mubr.f32.gmra.mrb[0].mxu0 %v802
      %v1013 = vpop.f32.mrb[0].mxu0
      %v1014 = vadd.f32 %v725, %v1013
      %v1015 = vpop.f32.mrb[0].mxu0
      %1016 = vmatprep.mubr.f32.mxu0 0.0
      %1017 = vmatmul.mubr.f32.gmra.mrb[0].mxu0 %v804
      %v1018 = vpop.f32.mrb[0].mxu0
      %v1019 = vadd.f32 %v730, %v1018
      %v1020 = vpop.f32.mrb[0].mxu0
      %1021 = vmatprep.mubr.f32.mxu0 0.0
      %1022 = vmatmul.mubr.f32.gmra.mrb[0].mxu0 %v806
      %v1023 = vpop.f32.mrb[0].mxu0
      %v1024 = vadd.f32 %v735, %v1023
      %v1025 = vpop.f32.mrb[0].mxu0
      %1026 = vmatprep.mubr.f32.mxu0 0.0
      %1027 = vmatmul.mubr.f32.gmra.mrb[0].mxu0 %v808
      %v1028 = vpop.f32.mrb[0].mxu0
      %v1029 = vadd.f32 %v740, %v1028
      %v1030 = vpop.f32.mrb[0].mxu0
      %1031 = vmatprep.mubr.f32.mxu0 0.0
      %1032 = vmatmul.mubr.f32.gmra.mrb[0].mxu0 %v810
      %v1033 = vpop.f32.mrb[0].mxu0
      %v1034 = vadd.f32 %v745, %v1033
      %v1035 = vpop.f32.mrb[0].mxu0
      %1036 = vdwg.mxu0
      %vm1037 = vcmask 1045504
      %v1038 = vrot.slane %v272, 2
      %v1039 = vrot.slane %v273, 2
      %v1040 = vsel %vm1037, %v1038, %v1039
      %v1041 = vrot.slane %v274, 2
      %v1042 = vsel %vm1037, %v1039, %v1041
      %v1043 = vrot.slane %v275, 2
      %v1044 = vrot.slane %v276, 2
      %v1045 = vsel %vm1037, %v1043, %v1044
      %v1046 = vrot.slane %v277, 2
      %v1047 = vsel %vm1037, %v1044, %v1046
      %v1048 = vrot.slane %v278, 2
      %v1049 = vrot.slane %v279, 2
      %v1050 = vsel %vm1037, %v1048, %v1049
      %v1051 = vrot.slane %v280, 2
      %v1052 = vsel %vm1037, %v1049, %v1051
      %v1053 = vrot.slane %v281, 2
      %v1054 = vrot.slane %v282, 2
      %v1055 = vsel %vm1037, %v1053, %v1054
      %v1056 = vrot.slane %v283, 2
      %v1057 = vsel %vm1037, %v1054, %v1056
      %v1058 = vrot.slane %v284, 2
      %v1059 = vrot.slane %v285, 2
      %v1060 = vsel %vm1037, %v1058, %v1059
      %v1061 = vrot.slane %v286, 2
      %v1062 = vsel %vm1037, %v1059, %v1061
      %v1063 = vrot.slane %v287, 2
      %v1064 = vrot.slane %v288, 2
      %v1065 = vsel %vm1037, %v1063, %v1064
      %v1066 = vrot.slane %v289, 2
      %v1067 = vsel %vm1037, %v1064, %v1066
      %v1068 = vrot.slane %v290, 2
      %v1069 = vrot.slane %v291, 2
      %v1070 = vsel %vm1037, %v1068, %v1069
      %v1071 = vrot.slane %v292, 2
      %v1072 = vsel %vm1037, %v1069, %v1071
      %v1073 = vrot.slane %v293, 2
      %v1074 = vrot.slane %v294, 2
      %v1075 = vsel %vm1037, %v1073, %v1074
      %v1076 = vrot.slane %v295, 2
      %v1077 = vsel %vm1037, %v1074, %v1076
      %v1078 = vrot.slane %v296, 2
      %v1079 = vrot.slane %v297, 2
      %v1080 = vsel %vm1037, %v1078, %v1079
      %v1081 = vrot.slane %v298, 2
      %v1082 = vsel %vm1037, %v1079, %v1081
      %v1083 = vrot.slane %v299, 2
      %v1084 = vrot.slane %v300, 2
      %v1085 = vsel %vm1037, %v1083, %v1084
      %v1086 = vrot.slane %v301, 2
      %v1087 = vsel %vm1037, %v1084, %v1086
      %v1088 = vrot.slane %v302, 2
      %v1089 = vrot.slane %v303, 2
      %v1090 = vsel %vm1037, %v1088, %v1089
      %v1091 = vrot.slane %v304, 2
      %v1092 = vsel %vm1037, %v1089, %v1091
      %v1093 = vrot.slane %v305, 2
      %v1094 = vrot.slane %v306, 2
      %v1095 = vsel %vm1037, %v1093, %v1094
      %v1096 = vrot.slane %v307, 2
      %v1097 = vsel %vm1037, %v1094, %v1096
      %v1098 = vrot.slane %v308, 2
      %v1099 = vrot.slane %v309, 2
      %v1100 = vsel %vm1037, %v1098, %v1099
      %v1101 = vrot.slane %v310, 2
      %v1102 = vsel %vm1037, %v1099, %v1101
      %v1103 = vrot.slane %v311, 2
      %v1104 = vrot.slane %v312, 2
      %v1105 = vsel %vm1037, %v1103, %v1104
      %v1106 = vrot.slane %v313, 2
      %v1107 = vsel %vm1037, %v1104, %v1106
      %v1108 = vrot.slane %v314, 2
      %v1109 = vrot.slane %v315, 2
      %v1110 = vsel %vm1037, %v1108, %v1109
      %v1111 = vrot.slane %v316, 2
      %v1112 = vsel %vm1037, %v1109, %v1111
      %v1113 = vrot.slane %v317, 2
      %v1114 = vrot.slane %v318, 2
      %v1115 = vsel %vm1037, %v1113, %v1114
      %v1116 = vrot.slane %v319, 2
      %v1117 = vsel %vm1037, %v1114, %v1116
      %s1118 = scalar_lea.vmem %s1, 16
      %v1119 = vld [vmem:[%s1118] sm:$0xff]
      %v1120 = vsel %vm458, %v1040, 0
      %v1122 = vsel %vm458, %v1042, 0
      %v1124 = vsel %vm458, %v1045, 0
      %v1126 = vsel %vm458, %v1047, 0
      %v1128 = vsel %vm458, %v1050, 0
      %v1130 = vsel %vm458, %v1052, 0
      %v1132 = vsel %vm458, %v1055, 0
      %v1134 = vsel %vm458, %v1057, 0
      %v1136 = vsel %vm458, %v1060, 0
      %v1138 = vsel %vm458, %v1062, 0
      %v1140 = vsel %vm458, %v1065, 0
      %v1142 = vsel %vm458, %v1067, 0
      %v1144 = vsel %vm458, %v1070, 0
      %v1146 = vsel %vm458, %v1072, 0
      %v1148 = vsel %vm458, %v1075, 0
      %v1150 = vsel %vm458, %v1077, 0
      %v1152 = vsel %vm458, %v1080, 0
      %v1154 = vsel %vm458, %v1082, 0
      %v1156 = vsel %vm458, %v1085, 0
      %v1158 = vsel %vm458, %v1087, 0
      %v1160 = vsel %vm458, %v1090, 0
      %v1162 = vsel %vm458, %v1092, 0
      %v1164 = vsel %vm458, %v1095, 0
      %v1166 = vsel %vm458, %v1097, 0
      %v1168 = vsel %vm458, %v1100, 0
      %v1170 = vsel %vm458, %v1102, 0
      %v1172 = vsel %vm458, %v1105, 0
      %v1174 = vsel %vm458, %v1107, 0
      %v1176 = vsel %vm458, %v1110, 0
      %v1178 = vsel %vm458, %v1112, 0
      %v1180 = vsel %vm458, %v1115, 0
      %v1182 = vsel %vm458, %v1117, 0
      %1184 = vmatprep.subr.mxu0 0.0
      %1185 = vmatpush1.msra.mxu0 %v1119
      %1186 = vmatprep.subr.mxu0 0.0
      %1187 = vmatpush1.msra.mxu0 0.0
      %1188 = vmatprep.subr.mxu0 0.0
      %1189 = vmatpush1.msra.mxu0 0.0
      %1190 = vmatprep.subr.mxu0 0.0
      %1191 = vmatpush1.msra.mxu0 0.0
      %1192 = vmatprep.subr.mxu0 0.0
      %1193 = vmatpush1.msra.mxu0 0.0
      %1194 = vmatprep.subr.mxu0 0.0
      %1195 = vmatpush1.msra.mxu0 0.0
      %1196 = vmatprep.subr.mxu0 0.0
      %1197 = vmatpush1.msra.mxu0 0.0
      %1198 = vmatprep.subr.mxu0 0.0
      %1199 = vmatpush1.msra.mxu0 0.0
      %1200 = vmatprep.subr.mxu0 0.0
      %1201 = vmatpush1.msra.mxu0 0.0
      %1202 = vmatprep.subr.mxu0 0.0
      %1203 = vmatpush1.msra.mxu0 0.0
      %1204 = vmatprep.subr.mxu0 0.0
      %1205 = vmatpush1.msra.mxu0 0.0
      %1206 = vmatprep.subr.mxu0 0.0
      %1207 = vmatpush1.msra.mxu0 0.0
      %1208 = vmatprep.subr.mxu0 0.0
      %1209 = vmatpush1.msra.mxu0 0.0
      %1210 = vmatprep.subr.mxu0 0.0
      %1211 = vmatpush1.msra.mxu0 0.0
      %1212 = vmatprep.subr.mxu0 0.0
      %1213 = vmatpush1.msra.mxu0 0.0
      %1214 = vmatprep.subr.mxu0 0.0
      %1215 = vmatpush1.msra.mxu0 0.0
      %1216 = vmatprep.subr.mxu0 0.0
      %1217 = vmatpush1.msra.mxu0 0.0
      %1218 = vmatprep.subr.mxu0 0.0
      %1219 = vmatpush1.msra.mxu0 0.0
      %1220 = vmatprep.subr.mxu0 0.0
      %1221 = vmatpush1.msra.mxu0 0.0
      %1222 = vmatprep.subr.mxu0 0.0
      %1223 = vmatpush1.msra.mxu0 0.0
      %1224 = vmatprep.subr.mxu0 0.0
      %1225 = vmatpush1.msra.mxu0 0.0
      %1226 = vmatprep.subr.mxu0 0.0
      %1227 = vmatpush1.msra.mxu0 0.0
      %1228 = vmatprep.subr.mxu0 0.0
      %1229 = vmatpush1.msra.mxu0 0.0
      %1230 = vmatprep.subr.mxu0 0.0
      %1231 = vmatpush1.msra.mxu0 0.0
      %1232 = vmatprep.subr.mxu0 0.0
      %1233 = vmatpush1.msra.mxu0 0.0
      %1234 = vmatprep.subr.mxu0 0.0
      %1235 = vmatpush1.msra.mxu0 0.0
      %1236 = vmatprep.subr.mxu0 0.0
      %1237 = vmatpush1.msra.mxu0 0.0
      %1238 = vmatprep.subr.mxu0 0.0
      %1239 = vmatpush1.msra.mxu0 0.0
      %1240 = vmatprep.subr.mxu0 0.0
      %1241 = vmatpush1.msra.mxu0 0.0
      %1242 = vmatprep.subr.mxu0 0.0
      %1243 = vmatpush1.msra.mxu0 0.0
      %1244 = vmatprep.subr.mxu0 0.0
      %1245 = vmatpush1.msra.mxu0 0.0
      %1246 = vmatprep.subr.mxu0 0.0
      %1247 = vmatpush1.msra.mxu0 0.0
      %1248 = vmatprep.mubr.f32.mxu0 0.0
      %1249 = vmatmul.mubr.f32.gmra.mrb[0].mxu0 %v1120
      %v1250 = vpop.f32.mrb[0].mxu0
      %v1251 = vadd.f32 0.0, %v1250
      %v1252 = vpop.f32.mrb[0].mxu0
      %1253 = vmatprep.mubr.f32.mxu0 0.0
      %1254 = vmatmul.mubr.f32.gmra.mrb[0].mxu0 %v1122
      %v1255 = vpop.f32.mrb[0].mxu0
      %v1256 = vadd.f32 0.0, %v1255
      %v1257 = vpop.f32.mrb[0].mxu0
      %1258 = vmatprep.mubr.f32.mxu0 0.0
      %1259 = vmatmul.mubr.f32.gmra.mrb[0].mxu0 %v1124
      %v1260 = vpop.f32.mrb[0].mxu0
      %v1261 = vadd.f32 0.0, %v1260
      %v1262 = vpop.f32.mrb[0].mxu0
      %1263 = vmatprep.mubr.f32.mxu0 0.0
      %1264 = vmatmul.mubr.f32.gmra.mrb[0].mxu0 %v1126
      %v1265 = vpop.f32.mrb[0].mxu0
      %v1266 = vadd.f32 0.0, %v1265
      %v1267 = vpop.f32.mrb[0].mxu0
      %1268 = vmatprep.mubr.f32.mxu0 0.0
      %1269 = vmatmul.mubr.f32.gmra.mrb[0].mxu0 %v1128
      %v1270 = vpop.f32.mrb[0].mxu0
      %v1271 = vadd.f32 0.0, %v1270
      %v1272 = vpop.f32.mrb[0].mxu0
      %1273 = vmatprep.mubr.f32.mxu0 0.0
      %1274 = vmatmul.mubr.f32.gmra.mrb[0].mxu0 %v1130
      %v1275 = vpop.f32.mrb[0].mxu0
      %v1276 = vadd.f32 0.0, %v1275
      %v1277 = vpop.f32.mrb[0].mxu0
      %1278 = vmatprep.mubr.f32.mxu0 0.0
      %1279 = vmatmul.mubr.f32.gmra.mrb[0].mxu0 %v1132
      %v1280 = vpop.f32.mrb[0].mxu0
      %v1281 = vadd.f32 0.0, %v1280
      %v1282 = vpop.f32.mrb[0].mxu0
      %1283 = vmatprep.mubr.f32.mxu0 0.0
      %1284 = vmatmul.mubr.f32.gmra.mrb[0].mxu0 %v1134
      %v1285 = vpop.f32.mrb[0].mxu0
      %v1286 = vadd.f32 0.0, %v1285
      %v1287 = vpop.f32.mrb[0].mxu0
      %1288 = vmatprep.mubr.f32.mxu0 0.0
      %1289 = vmatmul.mubr.f32.gmra.mrb[0].mxu0 %v1136
      %v1290 = vpop.f32.mrb[0].mxu0
      %v1291 = vadd.f32 0.0, %v1290
      %v1292 = vpop.f32.mrb[0].mxu0
      %1293 = vmatprep.mubr.f32.mxu0 0.0
      %1294 = vmatmul.mubr.f32.gmra.mrb[0].mxu0 %v1138
      %v1295 = vpop.f32.mrb[0].mxu0
      %v1296 = vadd.f32 0.0, %v1295
      %v1297 = vpop.f32.mrb[0].mxu0
      %1298 = vmatprep.mubr.f32.mxu0 0.0
      %1299 = vmatmul.mubr.f32.gmra.mrb[0].mxu0 %v1140
      %v1300 = vpop.f32.mrb[0].mxu0
      %v1301 = vadd.f32 0.0, %v1300
      %v1302 = vpop.f32.mrb[0].mxu0
      %1303 = vmatprep.mubr.f32.mxu0 0.0
      %1304 = vmatmul.mubr.f32.gmra.mrb[0].mxu0 %v1142
      %v1305 = vpop.f32.mrb[0].mxu0
      %v1306 = vadd.f32 0.0, %v1305
      %v1307 = vpop.f32.mrb[0].mxu0
      %1308 = vmatprep.mubr.f32.mxu0 0.0
      %1309 = vmatmul.mubr.f32.gmra.mrb[0].mxu0 %v1144
      %v1310 = vpop.f32.mrb[0].mxu0
      %v1311 = vadd.f32 0.0, %v1310
      %v1312 = vpop.f32.mrb[0].mxu0
      %1313 = vmatprep.mubr.f32.mxu0 0.0
      %1314 = vmatmul.mubr.f32.gmra.mrb[0].mxu0 %v1146
      %v1315 = vpop.f32.mrb[0].mxu0
      %v1316 = vadd.f32 0.0, %v1315
      %v1317 = vpop.f32.mrb[0].mxu0
      %1318 = vmatprep.mubr.f32.mxu0 0.0
      %1319 = vmatmul.mubr.f32.gmra.mrb[0].mxu0 %v1148
      %v1320 = vpop.f32.mrb[0].mxu0
      %v1321 = vadd.f32 0.0, %v1320
      %v1322 = vpop.f32.mrb[0].mxu0
      %1323 = vmatprep.mubr.f32.mxu0 0.0
      %1324 = vmatmul.mubr.f32.gmra.mrb[0].mxu0 %v1150
      %v1325 = vpop.f32.mrb[0].mxu0
      %v1326 = vadd.f32 0.0, %v1325
      %v1327 = vpop.f32.mrb[0].mxu0
      %1328 = vmatprep.mubr.f32.mxu0 0.0
      %1329 = vmatmul.mubr.f32.gmra.mrb[0].mxu0 %v1152
      %v1330 = vpop.f32.mrb[0].mxu0
      %v1331 = vadd.f32 0.0, %v1330
      %v1332 = vpop.f32.mrb[0].mxu0
      %1333 = vmatprep.mubr.f32.mxu0 0.0
      %1334 = vmatmul.mubr.f32.gmra.mrb[0].mxu0 %v1154
      %v1335 = vpop.f32.mrb[0].mxu0
      %v1336 = vadd.f32 0.0, %v1335
      %v1337 = vpop.f32.mrb[0].mxu0
      %1338 = vmatprep.mubr.f32.mxu0 0.0
      %1339 = vmatmul.mubr.f32.gmra.mrb[0].mxu0 %v1156
      %v1340 = vpop.f32.mrb[0].mxu0
      %v1341 = vadd.f32 0.0, %v1340
      %v1342 = vpop.f32.mrb[0].mxu0
      %1343 = vmatprep.mubr.f32.mxu0 0.0
      %1344 = vmatmul.mubr.f32.gmra.mrb[0].mxu0 %v1158
      %v1345 = vpop.f32.mrb[0].mxu0
      %v1346 = vadd.f32 0.0, %v1345
      %v1347 = vpop.f32.mrb[0].mxu0
      %1348 = vmatprep.mubr.f32.mxu0 0.0
      %1349 = vmatmul.mubr.f32.gmra.mrb[0].mxu0 %v1160
      %v1350 = vpop.f32.mrb[0].mxu0
      %v1351 = vadd.f32 0.0, %v1350
      %v1352 = vpop.f32.mrb[0].mxu0
      %1353 = vmatprep.mubr.f32.mxu0 0.0
      %1354 = vmatmul.mubr.f32.gmra.mrb[0].mxu0 %v1162
      %v1355 = vpop.f32.mrb[0].mxu0
      %v1356 = vadd.f32 0.0, %v1355
      %v1357 = vpop.f32.mrb[0].mxu0
      %1358 = vmatprep.mubr.f32.mxu0 0.0
      %1359 = vmatmul.mubr.f32.gmra.mrb[0].mxu0 %v1164
      %v1360 = vpop.f32.mrb[0].mxu0
      %v1361 = vadd.f32 0.0, %v1360
      %v1362 = vpop.f32.mrb[0].mxu0
      %1363 = vmatprep.mubr.f32.mxu0 0.0
      %1364 = vmatmul.mubr.f32.gmra.mrb[0].mxu0 %v1166
      %v1365 = vpop.f32.mrb[0].mxu0
      %v1366 = vadd.f32 0.0, %v1365
      %v1367 = vpop.f32.mrb[0].mxu0
      %1368 = vmatprep.mubr.f32.mxu0 0.0
      %1369 = vmatmul.mubr.f32.gmra.mrb[0].mxu0 %v1168
      %v1370 = vpop.f32.mrb[0].mxu0
      %v1371 = vadd.f32 0.0, %v1370
      %v1372 = vpop.f32.mrb[0].mxu0
      %1373 = vmatprep.mubr.f32.mxu0 0.0
      %1374 = vmatmul.mubr.f32.gmra.mrb[0].mxu0 %v1170
      %v1375 = vpop.f32.mrb[0].mxu0
      %v1376 = vadd.f32 0.0, %v1375
      %v1377 = vpop.f32.mrb[0].mxu0
      %1378 = vmatprep.mubr.f32.mxu0 0.0
      %1379 = vmatmul.mubr.f32.gmra.mrb[0].mxu0 %v1172
      %v1380 = vpop.f32.mrb[0].mxu0
      %v1381 = vadd.f32 0.0, %v1380
      %v1382 = vpop.f32.mrb[0].mxu0
      %1383 = vmatprep.mubr.f32.mxu0 0.0
      %1384 = vmatmul.mubr.f32.gmra.mrb[0].mxu0 %v1174
      %v1385 = vpop.f32.mrb[0].mxu0
      %v1386 = vadd.f32 0.0, %v1385
      %v1387 = vpop.f32.mrb[0].mxu0
      %1388 = vmatprep.mubr.f32.mxu0 0.0
      %1389 = vmatmul.mubr.f32.gmra.mrb[0].mxu0 %v1176
      %v1390 = vpop.f32.mrb[0].mxu0
      %v1391 = vadd.f32 0.0, %v1390
      %v1392 = vpop.f32.mrb[0].mxu0
      %1393 = vmatprep.mubr.f32.mxu0 0.0
      %1394 = vmatmul.mubr.f32.gmra.mrb[0].mxu0 %v1178
      %v1395 = vpop.f32.mrb[0].mxu0
      %v1396 = vadd.f32 0.0, %v1395
      %v1397 = vpop.f32.mrb[0].mxu0
      %1398 = vmatprep.mubr.f32.mxu0 0.0
      %1399 = vmatmul.mubr.f32.gmra.mrb[0].mxu0 %v1180
      %v1400 = vpop.f32.mrb[0].mxu0
      %v1401 = vadd.f32 0.0, %v1400
      %v1402 = vpop.f32.mrb[0].mxu0
      %1403 = vmatprep.mubr.f32.mxu0 0.0
      %1404 = vmatmul.mubr.f32.gmra.mrb[0].mxu0 %v1182
      %v1405 = vpop.f32.mrb[0].mxu0
      %v1406 = vadd.f32 0.0, %v1405
      %v1407 = vpop.f32.mrb[0].mxu0
      %1408 = vdwg.mxu0
      %v1409 = vadd.f32 %v879, %v1251
      %v1410 = vadd.f32 %v884, %v1256
      %v1411 = vadd.f32 %v889, %v1261
      %v1412 = vadd.f32 %v894, %v1266
      %v1413 = vadd.f32 %v899, %v1271
      %v1414 = vadd.f32 %v904, %v1276
      %v1415 = vadd.f32 %v909, %v1281
      %v1416 = vadd.f32 %v914, %v1286
      %v1417 = vadd.f32 %v919, %v1291
      %v1418 = vadd.f32 %v924, %v1296
      %v1419 = vadd.f32 %v929, %v1301
      %v1420 = vadd.f32 %v934, %v1306
      %v1421 = vadd.f32 %v939, %v1311
      %v1422 = vadd.f32 %v944, %v1316
      %v1423 = vadd.f32 %v949, %v1321
      %v1424 = vadd.f32 %v954, %v1326
      %v1425 = vadd.f32 %v959, %v1331
      %v1426 = vadd.f32 %v964, %v1336
      %v1427 = vadd.f32 %v969, %v1341
      %v1428 = vadd.f32 %v974, %v1346
      %v1429 = vadd.f32 %v979, %v1351
      %v1430 = vadd.f32 %v984, %v1356
      %v1431 = vadd.f32 %v989, %v1361
      %v1432 = vadd.f32 %v994, %v1366
      %v1433 = vadd.f32 %v999, %v1371
      %v1434 = vadd.f32 %v1004, %v1376
      %v1435 = vadd.f32 %v1009, %v1381
      %v1436 = vadd.f32 %v1014, %v1386
      %v1437 = vadd.f32 %v1019, %v1391
      %v1438 = vadd.f32 %v1024, %v1396
      %v1439 = vadd.f32 %v1029, %v1401
      %v1440 = vadd.f32 %v1034, %v1406
      %s1441 = scalar_lea.vmem %s1, 24
      %v1442 = vld [vmem:[%s1441] sm:$0xff]
      %v1444 = vsel %vm458, %v320, 0
      %v1447 = vsel %vm458, %v321, 0
      %1449 = vmatprep.subr.mxu0 0.0
      %1450 = vmatpush1.msra.mxu0 %v1442
      %1451 = vmatprep.subr.mxu0 0.0
      %1452 = vmatpush1.msra.mxu0 0.0
      %1453 = vmatprep.subr.mxu0 0.0
      %1454 = vmatpush1.msra.mxu0 0.0
      %1455 = vmatprep.subr.mxu0 0.0
      %1456 = vmatpush1.msra.mxu0 0.0
      %1457 = vmatprep.subr.mxu0 0.0
      %1458 = vmatpush1.msra.mxu0 0.0
      %1459 = vmatprep.subr.mxu0 0.0
      %1460 = vmatpush1.msra.mxu0 0.0
      %1461 = vmatprep.subr.mxu0 0.0
      %1462 = vmatpush1.msra.mxu0 0.0
      %1463 = vmatprep.subr.mxu0 0.0
      %1464 = vmatpush1.msra.mxu0 0.0
      %1465 = vmatprep.subr.mxu0 0.0
      %1466 = vmatpush1.msra.mxu0 0.0
      %1467 = vmatprep.subr.mxu0 0.0
      %1468 = vmatpush1.msra.mxu0 0.0
      %1469 = vmatprep.subr.mxu0 0.0
      %1470 = vmatpush1.msra.mxu0 0.0
      %1471 = vmatprep.subr.mxu0 0.0
      %1472 = vmatpush1.msra.mxu0 0.0
      %1473 = vmatprep.subr.mxu0 0.0
      %1474 = vmatpush1.msra.mxu0 0.0
      %1475 = vmatprep.subr.mxu0 0.0
      %1476 = vmatpush1.msra.mxu0 0.0
      %1477 = vmatprep.subr.mxu0 0.0
      %1478 = vmatpush1.msra.mxu0 0.0
      %1479 = vmatprep.subr.mxu0 0.0
      %1480 = vmatpush1.msra.mxu0 0.0
      %1481 = vmatprep.subr.mxu0 0.0
      %1482 = vmatpush1.msra.mxu0 0.0
      %1483 = vmatprep.subr.mxu0 0.0
      %1484 = vmatpush1.msra.mxu0 0.0
      %1485 = vmatprep.subr.mxu0 0.0
      %1486 = vmatpush1.msra.mxu0 0.0
      %1487 = vmatprep.subr.mxu0 0.0
      %1488 = vmatpush1.msra.mxu0 0.0
      %1489 = vmatprep.subr.mxu0 0.0
      %1490 = vmatpush1.msra.mxu0 0.0
      %1491 = vmatprep.subr.mxu0 0.0
      %1492 = vmatpush1.msra.mxu0 0.0
      %1493 = vmatprep.subr.mxu0 0.0
      %1494 = vmatpush1.msra.mxu0 0.0
      %1495 = vmatprep.subr.mxu0 0.0
      %1496 = vmatpush1.msra.mxu0 0.0
      %1497 = vmatprep.subr.mxu0 0.0
      %1498 = vmatpush1.msra.mxu0 0.0
      %1499 = vmatprep.subr.mxu0 0.0
      %1500 = vmatpush1.msra.mxu0 0.0
      %1501 = vmatprep.subr.mxu0 0.0
      %1502 = vmatpush1.msra.mxu0 0.0
      %1503 = vmatprep.subr.mxu0 0.0
      %1504 = vmatpush1.msra.mxu0 0.0
      %1505 = vmatprep.subr.mxu0 0.0
      %1506 = vmatpush1.msra.mxu0 0.0
      %1507 = vmatprep.subr.mxu0 0.0
      %1508 = vmatpush1.msra.mxu0 0.0
      %1509 = vmatprep.subr.mxu0 0.0
      %1510 = vmatpush1.msra.mxu0 0.0
      %1511 = vmatprep.subr.mxu0 0.0
      %1512 = vmatpush1.msra.mxu0 0.0
      %1513 = vmatprep.mubr.f32.mxu0 0.0
      %1514 = vmatmul.mubr.f32.gmra.mrb[0].mxu0 %v752
      %v1515 = vpop.f32.mrb[0].mxu0
      %v1516 = vadd.f32 0.0, %v1515
      %v1517 = vpop.f32.mrb[0].mxu0
      %1518 = vmatprep.mubr.f32.mxu0 0.0
      %1519 = vmatmul.mubr.f32.gmra.mrb[0].mxu0 %v754
      %v1520 = vpop.f32.mrb[0].mxu0
      %v1521 = vadd.f32 0.0, %v1520
      %v1522 = vpop.f32.mrb[0].mxu0
      %1523 = vmatprep.mubr.f32.mxu0 0.0
      %1524 = vmatmul.mubr.f32.gmra.mrb[0].mxu0 %v756
      %v1525 = vpop.f32.mrb[0].mxu0
      %v1526 = vadd.f32 0.0, %v1525
      %v1527 = vpop.f32.mrb[0].mxu0
      %1528 = vmatprep.mubr.f32.mxu0 0.0
      %1529 = vmatmul.mubr.f32.gmra.mrb[0].mxu0 %v758
      %v1530 = vpop.f32.mrb[0].mxu0
      %v1531 = vadd.f32 0.0, %v1530
      %v1532 = vpop.f32.mrb[0].mxu0
      %1533 = vmatprep.mubr.f32.mxu0 0.0
      %1534 = vmatmul.mubr.f32.gmra.mrb[0].mxu0 %v760
      %v1535 = vpop.f32.mrb[0].mxu0
      %v1536 = vadd.f32 0.0, %v1535
      %v1537 = vpop.f32.mrb[0].mxu0
      %1538 = vmatprep.mubr.f32.mxu0 0.0
      %1539 = vmatmul.mubr.f32.gmra.mrb[0].mxu0 %v762
      %v1540 = vpop.f32.mrb[0].mxu0
      %v1541 = vadd.f32 0.0, %v1540
      %v1542 = vpop.f32.mrb[0].mxu0
      %1543 = vmatprep.mubr.f32.mxu0 0.0
      %1544 = vmatmul.mubr.f32.gmra.mrb[0].mxu0 %v764
      %v1545 = vpop.f32.mrb[0].mxu0
      %v1546 = vadd.f32 0.0, %v1545
      %v1547 = vpop.f32.mrb[0].mxu0
      %1548 = vmatprep.mubr.f32.mxu0 0.0
      %1549 = vmatmul.mubr.f32.gmra.mrb[0].mxu0 %v766
      %v1550 = vpop.f32.mrb[0].mxu0
      %v1551 = vadd.f32 0.0, %v1550
      %v1552 = vpop.f32.mrb[0].mxu0
      %1553 = vmatprep.mubr.f32.mxu0 0.0
      %1554 = vmatmul.mubr.f32.gmra.mrb[0].mxu0 %v768
      %v1555 = vpop.f32.mrb[0].mxu0
      %v1556 = vadd.f32 0.0, %v1555
      %v1557 = vpop.f32.mrb[0].mxu0
      %1558 = vmatprep.mubr.f32.mxu0 0.0
      %1559 = vmatmul.mubr.f32.gmra.mrb[0].mxu0 %v770
      %v1560 = vpop.f32.mrb[0].mxu0
      %v1561 = vadd.f32 0.0, %v1560
      %v1562 = vpop.f32.mrb[0].mxu0
      %1563 = vmatprep.mubr.f32.mxu0 0.0
      %1564 = vmatmul.mubr.f32.gmra.mrb[0].mxu0 %v772
      %v1565 = vpop.f32.mrb[0].mxu0
      %v1566 = vadd.f32 0.0, %v1565
      %v1567 = vpop.f32.mrb[0].mxu0
      %1568 = vmatprep.mubr.f32.mxu0 0.0
      %1569 = vmatmul.mubr.f32.gmra.mrb[0].mxu0 %v774
      %v1570 = vpop.f32.mrb[0].mxu0
      %v1571 = vadd.f32 0.0, %v1570
      %v1572 = vpop.f32.mrb[0].mxu0
      %1573 = vmatprep.mubr.f32.mxu0 0.0
      %1574 = vmatmul.mubr.f32.gmra.mrb[0].mxu0 %v776
      %v1575 = vpop.f32.mrb[0].mxu0
      %v1576 = vadd.f32 0.0, %v1575
      %v1577 = vpop.f32.mrb[0].mxu0
      %1578 = vmatprep.mubr.f32.mxu0 0.0
      %1579 = vmatmul.mubr.f32.gmra.mrb[0].mxu0 %v778
      %v1580 = vpop.f32.mrb[0].mxu0
      %v1581 = vadd.f32 0.0, %v1580
      %v1582 = vpop.f32.mrb[0].mxu0
      %1583 = vmatprep.mubr.f32.mxu0 0.0
      %1584 = vmatmul.mubr.f32.gmra.mrb[0].mxu0 %v780
      %v1585 = vpop.f32.mrb[0].mxu0
      %v1586 = vadd.f32 0.0, %v1585
      %v1587 = vpop.f32.mrb[0].mxu0
      %1588 = vmatprep.mubr.f32.mxu0 0.0
      %1589 = vmatmul.mubr.f32.gmra.mrb[0].mxu0 %v782
      %v1590 = vpop.f32.mrb[0].mxu0
      %v1591 = vadd.f32 0.0, %v1590
      %v1592 = vpop.f32.mrb[0].mxu0
      %1593 = vmatprep.mubr.f32.mxu0 0.0
      %1594 = vmatmul.mubr.f32.gmra.mrb[0].mxu0 %v784
      %v1595 = vpop.f32.mrb[0].mxu0
      %v1596 = vadd.f32 0.0, %v1595
      %v1597 = vpop.f32.mrb[0].mxu0
      %1598 = vmatprep.mubr.f32.mxu0 0.0
      %1599 = vmatmul.mubr.f32.gmra.mrb[0].mxu0 %v786
      %v1600 = vpop.f32.mrb[0].mxu0
      %v1601 = vadd.f32 0.0, %v1600
      %v1602 = vpop.f32.mrb[0].mxu0
      %1603 = vmatprep.mubr.f32.mxu0 0.0
      %1604 = vmatmul.mubr.f32.gmra.mrb[0].mxu0 %v788
      %v1605 = vpop.f32.mrb[0].mxu0
      %v1606 = vadd.f32 0.0, %v1605
      %v1607 = vpop.f32.mrb[0].mxu0
      %1608 = vmatprep.mubr.f32.mxu0 0.0
      %1609 = vmatmul.mubr.f32.gmra.mrb[0].mxu0 %v790
      %v1610 = vpop.f32.mrb[0].mxu0
      %v1611 = vadd.f32 0.0, %v1610
      %v1612 = vpop.f32.mrb[0].mxu0
      %1613 = vmatprep.mubr.f32.mxu0 0.0
      %1614 = vmatmul.mubr.f32.gmra.mrb[0].mxu0 %v792
      %v1615 = vpop.f32.mrb[0].mxu0
      %v1616 = vadd.f32 0.0, %v1615
      %v1617 = vpop.f32.mrb[0].mxu0
      %1618 = vmatprep.mubr.f32.mxu0 0.0
      %1619 = vmatmul.mubr.f32.gmra.mrb[0].mxu0 %v794
      %v1620 = vpop.f32.mrb[0].mxu0
      %v1621 = vadd.f32 0.0, %v1620
      %v1622 = vpop.f32.mrb[0].mxu0
      %1623 = vmatprep.mubr.f32.mxu0 0.0
      %1624 = vmatmul.mubr.f32.gmra.mrb[0].mxu0 %v796
      %v1625 = vpop.f32.mrb[0].mxu0
      %v1626 = vadd.f32 0.0, %v1625
      %v1627 = vpop.f32.mrb[0].mxu0
      %1628 = vmatprep.mubr.f32.mxu0 0.0
      %1629 = vmatmul.mubr.f32.gmra.mrb[0].mxu0 %v798
      %v1630 = vpop.f32.mrb[0].mxu0
      %v1631 = vadd.f32 0.0, %v1630
      %v1632 = vpop.f32.mrb[0].mxu0
      %1633 = vmatprep.mubr.f32.mxu0 0.0
      %1634 = vmatmul.mubr.f32.gmra.mrb[0].mxu0 %v800
      %v1635 = vpop.f32.mrb[0].mxu0
      %v1636 = vadd.f32 0.0, %v1635
      %v1637 = vpop.f32.mrb[0].mxu0
      %1638 = vmatprep.mubr.f32.mxu0 0.0
      %1639 = vmatmul.mubr.f32.gmra.mrb[0].mxu0 %v802
      %v1640 = vpop.f32.mrb[0].mxu0
      %v1641 = vadd.f32 0.0, %v1640
      %v1642 = vpop.f32.mrb[0].mxu0
      %1643 = vmatprep.mubr.f32.mxu0 0.0
      %1644 = vmatmul.mubr.f32.gmra.mrb[0].mxu0 %v804
      %v1645 = vpop.f32.mrb[0].mxu0
      %v1646 = vadd.f32 0.0, %v1645
      %v1647 = vpop.f32.mrb[0].mxu0
      %1648 = vmatprep.mubr.f32.mxu0 0.0
      %1649 = vmatmul.mubr.f32.gmra.mrb[0].mxu0 %v806
      %v1650 = vpop.f32.mrb[0].mxu0
      %v1651 = vadd.f32 0.0, %v1650
      %v1652 = vpop.f32.mrb[0].mxu0
      %1653 = vmatprep.mubr.f32.mxu0 0.0
      %1654 = vmatmul.mubr.f32.gmra.mrb[0].mxu0 %v808
      %v1655 = vpop.f32.mrb[0].mxu0
      %v1656 = vadd.f32 0.0, %v1655
      %v1657 = vpop.f32.mrb[0].mxu0
      %1658 = vmatprep.mubr.f32.mxu0 0.0
      %1659 = vmatmul.mubr.f32.gmra.mrb[0].mxu0 %v810
      %v1660 = vpop.f32.mrb[0].mxu0
      %v1661 = vadd.f32 0.0, %v1660
      %v1662 = vpop.f32.mrb[0].mxu0
      %1663 = vmatprep.mubr.f32.mxu0 0.0
      %1664 = vmatmul.mubr.f32.gmra.mrb[0].mxu0 %v1444
      %v1665 = vpop.f32.mrb[0].mxu0
      %v1666 = vadd.f32 0.0, %v1665
      %v1667 = vpop.f32.mrb[0].mxu0
      %1668 = vmatprep.mubr.f32.mxu0 0.0
      %1669 = vmatmul.mubr.f32.gmra.mrb[0].mxu0 %v1447
      %v1670 = vpop.f32.mrb[0].mxu0
      %v1671 = vadd.f32 0.0, %v1670
      %v1672 = vpop.f32.mrb[0].mxu0
      %1673 = vdwg.mxu0
      %v1674 = vadd.f32 %v1409, %v1516
      %v1675 = vadd.f32 %v1410, %v1521
      %v1676 = vadd.f32 %v1411, %v1526
      %v1677 = vadd.f32 %v1412, %v1531
      %v1678 = vadd.f32 %v1413, %v1536
      %v1679 = vadd.f32 %v1414, %v1541
      %v1680 = vadd.f32 %v1415, %v1546
      %v1681 = vadd.f32 %v1416, %v1551
      %v1682 = vadd.f32 %v1417, %v1556
      %v1683 = vadd.f32 %v1418, %v1561
      %v1684 = vadd.f32 %v1419, %v1566
      %v1685 = vadd.f32 %v1420, %v1571
      %v1686 = vadd.f32 %v1421, %v1576
      %v1687 = vadd.f32 %v1422, %v1581
      %v1688 = vadd.f32 %v1423, %v1586
      %v1689 = vadd.f32 %v1424, %v1591
      %v1690 = vadd.f32 %v1425, %v1596
      %v1691 = vadd.f32 %v1426, %v1601
      %v1692 = vadd.f32 %v1427, %v1606
      %v1693 = vadd.f32 %v1428, %v1611
      %v1694 = vadd.f32 %v1429, %v1616
      %v1695 = vadd.f32 %v1430, %v1621
      %v1696 = vadd.f32 %v1431, %v1626
      %v1697 = vadd.f32 %v1432, %v1631
      %v1698 = vadd.f32 %v1433, %v1636
      %v1699 = vadd.f32 %v1434, %v1641
      %v1700 = vadd.f32 %v1435, %v1646
      %v1701 = vadd.f32 %v1436, %v1651
      %v1702 = vadd.f32 %v1437, %v1656
      %v1703 = vadd.f32 %v1438, %v1661
      %v1704 = vadd.f32 %v1439, %v1666
      %v1705 = vadd.f32 %v1440, %v1671
      %v1707 = vrot.slane %v320, 1
      %v1708 = vrot.slane %v321, 1
      %v1709 = vsel %vm375, %v1707, %v1708
      %v1710 = vrot.slane %v322, 1
      %v1711 = vsel %vm375, %v1708, %v1710
      %s1712 = scalar_lea.vmem %s1, 32
      %v1713 = vld [vmem:[%s1712] sm:$0xff]
      %v1714 = vsel %vm458, %v1709, 0
      %v1716 = vsel %vm458, %v1711, 0
      %1718 = vmatprep.subr.mxu0 0.0
      %1719 = vmatpush1.msra.mxu0 %v1713
      %1720 = vmatprep.subr.mxu0 0.0
      %1721 = vmatpush1.msra.mxu0 0.0
      %1722 = vmatprep.subr.mxu0 0.0
      %1723 = vmatpush1.msra.mxu0 0.0
      %1724 = vmatprep.subr.mxu0 0.0
      %1725 = vmatpush1.msra.mxu0 0.0
      %1726 = vmatprep.subr.mxu0 0.0
      %1727 = vmatpush1.msra.mxu0 0.0
      %1728 = vmatprep.subr.mxu0 0.0
      %1729 = vmatpush1.msra.mxu0 0.0
      %1730 = vmatprep.subr.mxu0 0.0
      %1731 = vmatpush1.msra.mxu0 0.0
      %1732 = vmatprep.subr.mxu0 0.0
      %1733 = vmatpush1.msra.mxu0 0.0
      %1734 = vmatprep.subr.mxu0 0.0
      %1735 = vmatpush1.msra.mxu0 0.0
      %1736 = vmatprep.subr.mxu0 0.0
      %1737 = vmatpush1.msra.mxu0 0.0
      %1738 = vmatprep.subr.mxu0 0.0
      %1739 = vmatpush1.msra.mxu0 0.0
      %1740 = vmatprep.subr.mxu0 0.0
      %1741 = vmatpush1.msra.mxu0 0.0
      %1742 = vmatprep.subr.mxu0 0.0
      %1743 = vmatpush1.msra.mxu0 0.0
      %1744 = vmatprep.subr.mxu0 0.0
      %1745 = vmatpush1.msra.mxu0 0.0
      %1746 = vmatprep.subr.mxu0 0.0
      %1747 = vmatpush1.msra.mxu0 0.0
      %1748 = vmatprep.subr.mxu0 0.0
      %1749 = vmatpush1.msra.mxu0 0.0
      %1750 = vmatprep.subr.mxu0 0.0
      %1751 = vmatpush1.msra.mxu0 0.0
      %1752 = vmatprep.subr.mxu0 0.0
      %1753 = vmatpush1.msra.mxu0 0.0
      %1754 = vmatprep.subr.mxu0 0.0
      %1755 = vmatpush1.msra.mxu0 0.0
      %1756 = vmatprep.subr.mxu0 0.0
      %1757 = vmatpush1.msra.mxu0 0.0
      %1758 = vmatprep.subr.mxu0 0.0
      %1759 = vmatpush1.msra.mxu0 0.0
      %1760 = vmatprep.subr.mxu0 0.0
      %1761 = vmatpush1.msra.mxu0 0.0
      %1762 = vmatprep.subr.mxu0 0.0
      %1763 = vmatpush1.msra.mxu0 0.0
      %1764 = vmatprep.subr.mxu0 0.0
      %1765 = vmatpush1.msra.mxu0 0.0
      %1766 = vmatprep.subr.mxu0 0.0
      %1767 = vmatpush1.msra.mxu0 0.0
      %1768 = vmatprep.subr.mxu0 0.0
      %1769 = vmatpush1.msra.mxu0 0.0
      %1770 = vmatprep.subr.mxu0 0.0
      %1771 = vmatpush1.msra.mxu0 0.0
      %1772 = vmatprep.subr.mxu0 0.0
      %1773 = vmatpush1.msra.mxu0 0.0
      %1774 = vmatprep.subr.mxu0 0.0
      %1775 = vmatpush1.msra.mxu0 0.0
      %1776 = vmatprep.subr.mxu0 0.0
      %1777 = vmatpush1.msra.mxu0 0.0
      %1778 = vmatprep.subr.mxu0 0.0
      %1779 = vmatpush1.msra.mxu0 0.0
      %1780 = vmatprep.subr.mxu0 0.0
      %1781 = vmatpush1.msra.mxu0 0.0
      %1782 = vmatprep.mubr.f32.mxu0 0.0
      %1783 = vmatmul.mubr.f32.gmra.mrb[0].mxu0 %v463
      %v1784 = vpop.f32.mrb[0].mxu0
      %v1785 = vadd.f32 0.0, %v1784
      %v1786 = vpop.f32.mrb[0].mxu0
      %1787 = vmatprep.mubr.f32.mxu0 0.0
      %1788 = vmatmul.mubr.f32.gmra.mrb[0].mxu0 %v465
      %v1789 = vpop.f32.mrb[0].mxu0
      %v1790 = vadd.f32 0.0, %v1789
      %v1791 = vpop.f32.mrb[0].mxu0
      %1792 = vmatprep.mubr.f32.mxu0 0.0
      %1793 = vmatmul.mubr.f32.gmra.mrb[0].mxu0 %v467
      %v1794 = vpop.f32.mrb[0].mxu0
      %v1795 = vadd.f32 0.0, %v1794
      %v1796 = vpop.f32.mrb[0].mxu0
      %1797 = vmatprep.mubr.f32.mxu0 0.0
      %1798 = vmatmul.mubr.f32.gmra.mrb[0].mxu0 %v469
      %v1799 = vpop.f32.mrb[0].mxu0
      %v1800 = vadd.f32 0.0, %v1799
      %v1801 = vpop.f32.mrb[0].mxu0
      %1802 = vmatprep.mubr.f32.mxu0 0.0
      %1803 = vmatmul.mubr.f32.gmra.mrb[0].mxu0 %v471
      %v1804 = vpop.f32.mrb[0].mxu0
      %v1805 = vadd.f32 0.0, %v1804
      %v1806 = vpop.f32.mrb[0].mxu0
      %1807 = vmatprep.mubr.f32.mxu0 0.0
      %1808 = vmatmul.mubr.f32.gmra.mrb[0].mxu0 %v473
      %v1809 = vpop.f32.mrb[0].mxu0
      %v1810 = vadd.f32 0.0, %v1809
      %v1811 = vpop.f32.mrb[0].mxu0
      %1812 = vmatprep.mubr.f32.mxu0 0.0
      %1813 = vmatmul.mubr.f32.gmra.mrb[0].mxu0 %v475
      %v1814 = vpop.f32.mrb[0].mxu0
      %v1815 = vadd.f32 0.0, %v1814
      %v1816 = vpop.f32.mrb[0].mxu0
      %1817 = vmatprep.mubr.f32.mxu0 0.0
      %1818 = vmatmul.mubr.f32.gmra.mrb[0].mxu0 %v477
      %v1819 = vpop.f32.mrb[0].mxu0
      %v1820 = vadd.f32 0.0, %v1819
      %v1821 = vpop.f32.mrb[0].mxu0
      %1822 = vmatprep.mubr.f32.mxu0 0.0
      %1823 = vmatmul.mubr.f32.gmra.mrb[0].mxu0 %v479
      %v1824 = vpop.f32.mrb[0].mxu0
      %v1825 = vadd.f32 0.0, %v1824
      %v1826 = vpop.f32.mrb[0].mxu0
      %1827 = vmatprep.mubr.f32.mxu0 0.0
      %1828 = vmatmul.mubr.f32.gmra.mrb[0].mxu0 %v481
      %v1829 = vpop.f32.mrb[0].mxu0
      %v1830 = vadd.f32 0.0, %v1829
      %v1831 = vpop.f32.mrb[0].mxu0
      %1832 = vmatprep.mubr.f32.mxu0 0.0
      %1833 = vmatmul.mubr.f32.gmra.mrb[0].mxu0 %v483
      %v1834 = vpop.f32.mrb[0].mxu0
      %v1835 = vadd.f32 0.0, %v1834
      %v1836 = vpop.f32.mrb[0].mxu0
      %1837 = vmatprep.mubr.f32.mxu0 0.0
      %1838 = vmatmul.mubr.f32.gmra.mrb[0].mxu0 %v485
      %v1839 = vpop.f32.mrb[0].mxu0
      %v1840 = vadd.f32 0.0, %v1839
      %v1841 = vpop.f32.mrb[0].mxu0
      %1842 = vmatprep.mubr.f32.mxu0 0.0
      %1843 = vmatmul.mubr.f32.gmra.mrb[0].mxu0 %v487
      %v1844 = vpop.f32.mrb[0].mxu0
      %v1845 = vadd.f32 0.0, %v1844
      %v1846 = vpop.f32.mrb[0].mxu0
      %1847 = vmatprep.mubr.f32.mxu0 0.0
      %1848 = vmatmul.mubr.f32.gmra.mrb[0].mxu0 %v489
      %v1849 = vpop.f32.mrb[0].mxu0
      %v1850 = vadd.f32 0.0, %v1849
      %v1851 = vpop.f32.mrb[0].mxu0
      %1852 = vmatprep.mubr.f32.mxu0 0.0
      %1853 = vmatmul.mubr.f32.gmra.mrb[0].mxu0 %v491
      %v1854 = vpop.f32.mrb[0].mxu0
      %v1855 = vadd.f32 0.0, %v1854
      %v1856 = vpop.f32.mrb[0].mxu0
      %1857 = vmatprep.mubr.f32.mxu0 0.0
      %1858 = vmatmul.mubr.f32.gmra.mrb[0].mxu0 %v493
      %v1859 = vpop.f32.mrb[0].mxu0
      %v1860 = vadd.f32 0.0, %v1859
      %v1861 = vpop.f32.mrb[0].mxu0
      %1862 = vmatprep.mubr.f32.mxu0 0.0
      %1863 = vmatmul.mubr.f32.gmra.mrb[0].mxu0 %v495
      %v1864 = vpop.f32.mrb[0].mxu0
      %v1865 = vadd.f32 0.0, %v1864
      %v1866 = vpop.f32.mrb[0].mxu0
      %1867 = vmatprep.mubr.f32.mxu0 0.0
      %1868 = vmatmul.mubr.f32.gmra.mrb[0].mxu0 %v497
      %v1869 = vpop.f32.mrb[0].mxu0
      %v1870 = vadd.f32 0.0, %v1869
      %v1871 = vpop.f32.mrb[0].mxu0
      %1872 = vmatprep.mubr.f32.mxu0 0.0
      %1873 = vmatmul.mubr.f32.gmra.mrb[0].mxu0 %v499
      %v1874 = vpop.f32.mrb[0].mxu0
      %v1875 = vadd.f32 0.0, %v1874
      %v1876 = vpop.f32.mrb[0].mxu0
      %1877 = vmatprep.mubr.f32.mxu0 0.0
      %1878 = vmatmul.mubr.f32.gmra.mrb[0].mxu0 %v501
      %v1879 = vpop.f32.mrb[0].mxu0
      %v1880 = vadd.f32 0.0, %v1879
      %v1881 = vpop.f32.mrb[0].mxu0
      %1882 = vmatprep.mubr.f32.mxu0 0.0
      %1883 = vmatmul.mubr.f32.gmra.mrb[0].mxu0 %v503
      %v1884 = vpop.f32.mrb[0].mxu0
      %v1885 = vadd.f32 0.0, %v1884
      %v1886 = vpop.f32.mrb[0].mxu0
      %1887 = vmatprep.mubr.f32.mxu0 0.0
      %1888 = vmatmul.mubr.f32.gmra.mrb[0].mxu0 %v505
      %v1889 = vpop.f32.mrb[0].mxu0
      %v1890 = vadd.f32 0.0, %v1889
      %v1891 = vpop.f32.mrb[0].mxu0
      %1892 = vmatprep.mubr.f32.mxu0 0.0
      %1893 = vmatmul.mubr.f32.gmra.mrb[0].mxu0 %v507
      %v1894 = vpop.f32.mrb[0].mxu0
      %v1895 = vadd.f32 0.0, %v1894
      %v1896 = vpop.f32.mrb[0].mxu0
      %1897 = vmatprep.mubr.f32.mxu0 0.0
      %1898 = vmatmul.mubr.f32.gmra.mrb[0].mxu0 %v509
      %v1899 = vpop.f32.mrb[0].mxu0
      %v1900 = vadd.f32 0.0, %v1899
      %v1901 = vpop.f32.mrb[0].mxu0
      %1902 = vmatprep.mubr.f32.mxu0 0.0
      %1903 = vmatmul.mubr.f32.gmra.mrb[0].mxu0 %v511
      %v1904 = vpop.f32.mrb[0].mxu0
      %v1905 = vadd.f32 0.0, %v1904
      %v1906 = vpop.f32.mrb[0].mxu0
      %1907 = vmatprep.mubr.f32.mxu0 0.0
      %1908 = vmatmul.mubr.f32.gmra.mrb[0].mxu0 %v513
      %v1909 = vpop.f32.mrb[0].mxu0
      %v1910 = vadd.f32 0.0, %v1909
      %v1911 = vpop.f32.mrb[0].mxu0
      %1912 = vmatprep.mubr.f32.mxu0 0.0
      %1913 = vmatmul.mubr.f32.gmra.mrb[0].mxu0 %v515
      %v1914 = vpop.f32.mrb[0].mxu0
      %v1915 = vadd.f32 0.0, %v1914
      %v1916 = vpop.f32.mrb[0].mxu0
      %1917 = vmatprep.mubr.f32.mxu0 0.0
      %1918 = vmatmul.mubr.f32.gmra.mrb[0].mxu0 %v517
      %v1919 = vpop.f32.mrb[0].mxu0
      %v1920 = vadd.f32 0.0, %v1919
      %v1921 = vpop.f32.mrb[0].mxu0
      %1922 = vmatprep.mubr.f32.mxu0 0.0
      %1923 = vmatmul.mubr.f32.gmra.mrb[0].mxu0 %v519
      %v1924 = vpop.f32.mrb[0].mxu0
      %v1925 = vadd.f32 0.0, %v1924
      %v1926 = vpop.f32.mrb[0].mxu0
      %1927 = vmatprep.mubr.f32.mxu0 0.0
      %1928 = vmatmul.mubr.f32.gmra.mrb[0].mxu0 %v521
      %v1929 = vpop.f32.mrb[0].mxu0
      %v1930 = vadd.f32 0.0, %v1929
      %v1931 = vpop.f32.mrb[0].mxu0
      %1932 = vmatprep.mubr.f32.mxu0 0.0
      %1933 = vmatmul.mubr.f32.gmra.mrb[0].mxu0 %v1714
      %v1934 = vpop.f32.mrb[0].mxu0
      %v1935 = vadd.f32 0.0, %v1934
      %v1936 = vpop.f32.mrb[0].mxu0
      %1937 = vmatprep.mubr.f32.mxu0 0.0
      %1938 = vmatmul.mubr.f32.gmra.mrb[0].mxu0 %v1716
      %v1939 = vpop.f32.mrb[0].mxu0
      %v1940 = vadd.f32 0.0, %v1939
      %v1941 = vpop.f32.mrb[0].mxu0
      %1942 = vdwg.mxu0
      %v1943 = vadd.f32 %v1674, %v1785
      %v1944 = vadd.f32 %v1675, %v1790
      %v1945 = vadd.f32 %v1676, %v1795
      %v1946 = vadd.f32 %v1677, %v1800
      %v1947 = vadd.f32 %v1678, %v1805
      %v1948 = vadd.f32 %v1679, %v1810
      %v1949 = vadd.f32 %v1680, %v1815
      %v1950 = vadd.f32 %v1681, %v1820
      %v1951 = vadd.f32 %v1682, %v1825
      %v1952 = vadd.f32 %v1683, %v1830
      %v1953 = vadd.f32 %v1684, %v1835
      %v1954 = vadd.f32 %v1685, %v1840
      %v1955 = vadd.f32 %v1686, %v1845
      %v1956 = vadd.f32 %v1687, %v1850
      %v1957 = vadd.f32 %v1688, %v1855
      %v1958 = vadd.f32 %v1689, %v1860
      %v1959 = vadd.f32 %v1690, %v1865
      %v1960 = vadd.f32 %v1691, %v1870
      %v1961 = vadd.f32 %v1692, %v1875
      %v1962 = vadd.f32 %v1693, %v1880
      %v1963 = vadd.f32 %v1694, %v1885
      %v1964 = vadd.f32 %v1695, %v1890
      %v1965 = vadd.f32 %v1696, %v1895
      %v1966 = vadd.f32 %v1697, %v1900
      %v1967 = vadd.f32 %v1698, %v1905
      %v1968 = vadd.f32 %v1699, %v1910
      %v1969 = vadd.f32 %v1700, %v1915
      %v1970 = vadd.f32 %v1701, %v1920
      %v1971 = vadd.f32 %v1702, %v1925
      %v1972 = vadd.f32 %v1703, %v1930
      %v1973 = vadd.f32 %v1704, %v1935
      %v1974 = vadd.f32 %v1705, %v1940
      %v1975 = vrot.slane %v320, 2
      %v1976 = vrot.slane %v321, 2
      %v1977 = vsel %vm1037, %v1975, %v1976
      %v1978 = vrot.slane %v322, 2
      %v1979 = vsel %vm1037, %v1976, %v1978
      %s1980 = scalar_lea.vmem %s1, 40
      %v1981 = vld [vmem:[%s1980] sm:$0xff]
      %v1982 = vsel %vm458, %v1977, 0
      %v1984 = vsel %vm458, %v1979, 0
      %1986 = vmatprep.subr.mxu0 0.0
      %1987 = vmatpush1.msra.mxu0 %v1981
      %1988 = vmatprep.subr.mxu0 0.0
      %1989 = vmatpush1.msra.mxu0 0.0
      %1990 = vmatprep.subr.mxu0 0.0
      %1991 = vmatpush1.msra.mxu0 0.0
      %1992 = vmatprep.subr.mxu0 0.0
      %1993 = vmatpush1.msra.mxu0 0.0
      %1994 = vmatprep.subr.mxu0 0.0
      %1995 = vmatpush1.msra.mxu0 0.0
      %1996 = vmatprep.subr.mxu0 0.0
      %1997 = vmatpush1.msra.mxu0 0.0
      %1998 = vmatprep.subr.mxu0 0.0
      %1999 = vmatpush1.msra.mxu0 0.0
      %2000 = vmatprep.subr.mxu0 0.0
      %2001 = vmatpush1.msra.mxu0 0.0
      %2002 = vmatprep.subr.mxu0 0.0
      %2003 = vmatpush1.msra.mxu0 0.0
      %2004 = vmatprep.subr.mxu0 0.0
      %2005 = vmatpush1.msra.mxu0 0.0
      %2006 = vmatprep.subr.mxu0 0.0
      %2007 = vmatpush1.msra.mxu0 0.0
      %2008 = vmatprep.subr.mxu0 0.0
      %2009 = vmatpush1.msra.mxu0 0.0
      %2010 = vmatprep.subr.mxu0 0.0
      %2011 = vmatpush1.msra.mxu0 0.0
      %2012 = vmatprep.subr.mxu0 0.0
      %2013 = vmatpush1.msra.mxu0 0.0
      %2014 = vmatprep.subr.mxu0 0.0
      %2015 = vmatpush1.msra.mxu0 0.0
      %2016 = vmatprep.subr.mxu0 0.0
      %2017 = vmatpush1.msra.mxu0 0.0
      %2018 = vmatprep.subr.mxu0 0.0
      %2019 = vmatpush1.msra.mxu0 0.0
      %2020 = vmatprep.subr.mxu0 0.0
      %2021 = vmatpush1.msra.mxu0 0.0
      %2022 = vmatprep.subr.mxu0 0.0
      %2023 = vmatpush1.msra.mxu0 0.0
      %2024 = vmatprep.subr.mxu0 0.0
      %2025 = vmatpush1.msra.mxu0 0.0
      %2026 = vmatprep.subr.mxu0 0.0
      %2027 = vmatpush1.msra.mxu0 0.0
      %2028 = vmatprep.subr.mxu0 0.0
      %2029 = vmatpush1.msra.mxu0 0.0
      %2030 = vmatprep.subr.mxu0 0.0
      %2031 = vmatpush1.msra.mxu0 0.0
      %2032 = vmatprep.subr.mxu0 0.0
      %2033 = vmatpush1.msra.mxu0 0.0
      %2034 = vmatprep.subr.mxu0 0.0
      %2035 = vmatpush1.msra.mxu0 0.0
      %2036 = vmatprep.subr.mxu0 0.0
      %2037 = vmatpush1.msra.mxu0 0.0
      %2038 = vmatprep.subr.mxu0 0.0
      %2039 = vmatpush1.msra.mxu0 0.0
      %2040 = vmatprep.subr.mxu0 0.0
      %2041 = vmatpush1.msra.mxu0 0.0
      %2042 = vmatprep.subr.mxu0 0.0
      %2043 = vmatpush1.msra.mxu0 0.0
      %2044 = vmatprep.subr.mxu0 0.0
      %2045 = vmatpush1.msra.mxu0 0.0
      %2046 = vmatprep.subr.mxu0 0.0
      %2047 = vmatpush1.msra.mxu0 0.0
      %2048 = vmatprep.subr.mxu0 0.0
      %2049 = vmatpush1.msra.mxu0 0.0
      %2050 = vmatprep.mubr.f32.mxu0 0.0
      %2051 = vmatmul.mubr.f32.gmra.mrb[0].mxu0 %v1124
      %v2052 = vpop.f32.mrb[0].mxu0
      %v2053 = vadd.f32 0.0, %v2052
      %v2054 = vpop.f32.mrb[0].mxu0
      %2055 = vmatprep.mubr.f32.mxu0 0.0
      %2056 = vmatmul.mubr.f32.gmra.mrb[0].mxu0 %v1126
      %v2057 = vpop.f32.mrb[0].mxu0
      %v2058 = vadd.f32 0.0, %v2057
      %v2059 = vpop.f32.mrb[0].mxu0
      %2060 = vmatprep.mubr.f32.mxu0 0.0
      %2061 = vmatmul.mubr.f32.gmra.mrb[0].mxu0 %v1128
      %v2062 = vpop.f32.mrb[0].mxu0
      %v2063 = vadd.f32 0.0, %v2062
      %v2064 = vpop.f32.mrb[0].mxu0
      %2065 = vmatprep.mubr.f32.mxu0 0.0
      %2066 = vmatmul.mubr.f32.gmra.mrb[0].mxu0 %v1130
      %v2067 = vpop.f32.mrb[0].mxu0
      %v2068 = vadd.f32 0.0, %v2067
      %v2069 = vpop.f32.mrb[0].mxu0
      %2070 = vmatprep.mubr.f32.mxu0 0.0
      %2071 = vmatmul.mubr.f32.gmra.mrb[0].mxu0 %v1132
      %v2072 = vpop.f32.mrb[0].mxu0
      %v2073 = vadd.f32 0.0, %v2072
      %v2074 = vpop.f32.mrb[0].mxu0
      %2075 = vmatprep.mubr.f32.mxu0 0.0
      %2076 = vmatmul.mubr.f32.gmra.mrb[0].mxu0 %v1134
      %v2077 = vpop.f32.mrb[0].mxu0
      %v2078 = vadd.f32 0.0, %v2077
      %v2079 = vpop.f32.mrb[0].mxu0
      %2080 = vmatprep.mubr.f32.mxu0 0.0
      %2081 = vmatmul.mubr.f32.gmra.mrb[0].mxu0 %v1136
      %v2082 = vpop.f32.mrb[0].mxu0
      %v2083 = vadd.f32 0.0, %v2082
      %v2084 = vpop.f32.mrb[0].mxu0
      %2085 = vmatprep.mubr.f32.mxu0 0.0
      %2086 = vmatmul.mubr.f32.gmra.mrb[0].mxu0 %v1138
      %v2087 = vpop.f32.mrb[0].mxu0
      %v2088 = vadd.f32 0.0, %v2087
      %v2089 = vpop.f32.mrb[0].mxu0
      %2090 = vmatprep.mubr.f32.mxu0 0.0
      %2091 = vmatmul.mubr.f32.gmra.mrb[0].mxu0 %v1140
      %v2092 = vpop.f32.mrb[0].mxu0
      %v2093 = vadd.f32 0.0, %v2092
      %v2094 = vpop.f32.mrb[0].mxu0
      %2095 = vmatprep.mubr.f32.mxu0 0.0
      %2096 = vmatmul.mubr.f32.gmra.mrb[0].mxu0 %v1142
      %v2097 = vpop.f32.mrb[0].mxu0
      %v2098 = vadd.f32 0.0, %v2097
      %v2099 = vpop.f32.mrb[0].mxu0
      %2100 = vmatprep.mubr.f32.mxu0 0.0
      %2101 = vmatmul.mubr.f32.gmra.mrb[0].mxu0 %v1144
      %v2102 = vpop.f32.mrb[0].mxu0
      %v2103 = vadd.f32 0.0, %v2102
      %v2104 = vpop.f32.mrb[0].mxu0
      %2105 = vmatprep.mubr.f32.mxu0 0.0
      %2106 = vmatmul.mubr.f32.gmra.mrb[0].mxu0 %v1146
      %v2107 = vpop.f32.mrb[0].mxu0
      %v2108 = vadd.f32 0.0, %v2107
      %v2109 = vpop.f32.mrb[0].mxu0
      %2110 = vmatprep.mubr.f32.mxu0 0.0
      %2111 = vmatmul.mubr.f32.gmra.mrb[0].mxu0 %v1148
      %v2112 = vpop.f32.mrb[0].mxu0
      %v2113 = vadd.f32 0.0, %v2112
      %v2114 = vpop.f32.mrb[0].mxu0
      %2115 = vmatprep.mubr.f32.mxu0 0.0
      %2116 = vmatmul.mubr.f32.gmra.mrb[0].mxu0 %v1150
      %v2117 = vpop.f32.mrb[0].mxu0
      %v2118 = vadd.f32 0.0, %v2117
      %v2119 = vpop.f32.mrb[0].mxu0
      %2120 = vmatprep.mubr.f32.mxu0 0.0
      %2121 = vmatmul.mubr.f32.gmra.mrb[0].mxu0 %v1152
      %v2122 = vpop.f32.mrb[0].mxu0
      %v2123 = vadd.f32 0.0, %v2122
      %v2124 = vpop.f32.mrb[0].mxu0
      %2125 = vmatprep.mubr.f32.mxu0 0.0
      %2126 = vmatmul.mubr.f32.gmra.mrb[0].mxu0 %v1154
      %v2127 = vpop.f32.mrb[0].mxu0
      %v2128 = vadd.f32 0.0, %v2127
      %v2129 = vpop.f32.mrb[0].mxu0
      %2130 = vmatprep.mubr.f32.mxu0 0.0
      %2131 = vmatmul.mubr.f32.gmra.mrb[0].mxu0 %v1156
      %v2132 = vpop.f32.mrb[0].mxu0
      %v2133 = vadd.f32 0.0, %v2132
      %v2134 = vpop.f32.mrb[0].mxu0
      %2135 = vmatprep.mubr.f32.mxu0 0.0
      %2136 = vmatmul.mubr.f32.gmra.mrb[0].mxu0 %v1158
      %v2137 = vpop.f32.mrb[0].mxu0
      %v2138 = vadd.f32 0.0, %v2137
      %v2139 = vpop.f32.mrb[0].mxu0
      %2140 = vmatprep.mubr.f32.mxu0 0.0
      %2141 = vmatmul.mubr.f32.gmra.mrb[0].mxu0 %v1160
      %v2142 = vpop.f32.mrb[0].mxu0
      %v2143 = vadd.f32 0.0, %v2142
      %v2144 = vpop.f32.mrb[0].mxu0
      %2145 = vmatprep.mubr.f32.mxu0 0.0
      %2146 = vmatmul.mubr.f32.gmra.mrb[0].mxu0 %v1162
      %v2147 = vpop.f32.mrb[0].mxu0
      %v2148 = vadd.f32 0.0, %v2147
      %v2149 = vpop.f32.mrb[0].mxu0
      %2150 = vmatprep.mubr.f32.mxu0 0.0
      %2151 = vmatmul.mubr.f32.gmra.mrb[0].mxu0 %v1164
      %v2152 = vpop.f32.mrb[0].mxu0
      %v2153 = vadd.f32 0.0, %v2152
      %v2154 = vpop.f32.mrb[0].mxu0
      %2155 = vmatprep.mubr.f32.mxu0 0.0
      %2156 = vmatmul.mubr.f32.gmra.mrb[0].mxu0 %v1166
      %v2157 = vpop.f32.mrb[0].mxu0
      %v2158 = vadd.f32 0.0, %v2157
      %v2159 = vpop.f32.mrb[0].mxu0
      %2160 = vmatprep.mubr.f32.mxu0 0.0
      %2161 = vmatmul.mubr.f32.gmra.mrb[0].mxu0 %v1168
      %v2162 = vpop.f32.mrb[0].mxu0
      %v2163 = vadd.f32 0.0, %v2162
      %v2164 = vpop.f32.mrb[0].mxu0
      %2165 = vmatprep.mubr.f32.mxu0 0.0
      %2166 = vmatmul.mubr.f32.gmra.mrb[0].mxu0 %v1170
      %v2167 = vpop.f32.mrb[0].mxu0
      %v2168 = vadd.f32 0.0, %v2167
      %v2169 = vpop.f32.mrb[0].mxu0
      %2170 = vmatprep.mubr.f32.mxu0 0.0
      %2171 = vmatmul.mubr.f32.gmra.mrb[0].mxu0 %v1172
      %v2172 = vpop.f32.mrb[0].mxu0
      %v2173 = vadd.f32 0.0, %v2172
      %v2174 = vpop.f32.mrb[0].mxu0
      %2175 = vmatprep.mubr.f32.mxu0 0.0
      %2176 = vmatmul.mubr.f32.gmra.mrb[0].mxu0 %v1174
      %v2177 = vpop.f32.mrb[0].mxu0
      %v2178 = vadd.f32 0.0, %v2177
      %v2179 = vpop.f32.mrb[0].mxu0
      %2180 = vmatprep.mubr.f32.mxu0 0.0
      %2181 = vmatmul.mubr.f32.gmra.mrb[0].mxu0 %v1176
      %v2182 = vpop.f32.mrb[0].mxu0
      %v2183 = vadd.f32 0.0, %v2182
      %v2184 = vpop.f32.mrb[0].mxu0
      %2185 = vmatprep.mubr.f32.mxu0 0.0
      %2186 = vmatmul.mubr.f32.gmra.mrb[0].mxu0 %v1178
      %v2187 = vpop.f32.mrb[0].mxu0
      %v2188 = vadd.f32 0.0, %v2187
      %v2189 = vpop.f32.mrb[0].mxu0
      %2190 = vmatprep.mubr.f32.mxu0 0.0
      %2191 = vmatmul.mubr.f32.gmra.mrb[0].mxu0 %v1180
      %v2192 = vpop.f32.mrb[0].mxu0
      %v2193 = vadd.f32 0.0, %v2192
      %v2194 = vpop.f32.mrb[0].mxu0
      %2195 = vmatprep.mubr.f32.mxu0 0.0
      %2196 = vmatmul.mubr.f32.gmra.mrb[0].mxu0 %v1182
      %v2197 = vpop.f32.mrb[0].mxu0
      %v2198 = vadd.f32 0.0, %v2197
      %v2199 = vpop.f32.mrb[0].mxu0
      %2200 = vmatprep.mubr.f32.mxu0 0.0
      %2201 = vmatmul.mubr.f32.gmra.mrb[0].mxu0 %v1982
      %v2202 = vpop.f32.mrb[0].mxu0
      %v2203 = vadd.f32 0.0, %v2202
      %v2204 = vpop.f32.mrb[0].mxu0
      %2205 = vmatprep.mubr.f32.mxu0 0.0
      %2206 = vmatmul.mubr.f32.gmra.mrb[0].mxu0 %v1984
      %v2207 = vpop.f32.mrb[0].mxu0
      %v2208 = vadd.f32 0.0, %v2207
      %v2209 = vpop.f32.mrb[0].mxu0
      %2210 = vdwg.mxu0
      %v2211 = vadd.f32 %v1943, %v2053
      %v2212 = vadd.f32 %v1944, %v2058
      %v2213 = vadd.f32 %v1945, %v2063
      %v2214 = vadd.f32 %v1946, %v2068
      %v2215 = vadd.f32 %v1947, %v2073
      %v2216 = vadd.f32 %v1948, %v2078
      %v2217 = vadd.f32 %v1949, %v2083
      %v2218 = vadd.f32 %v1950, %v2088
      %v2219 = vadd.f32 %v1951, %v2093
      %v2220 = vadd.f32 %v1952, %v2098
      %v2221 = vadd.f32 %v1953, %v2103
      %v2222 = vadd.f32 %v1954, %v2108
      %v2223 = vadd.f32 %v1955, %v2113
      %v2224 = vadd.f32 %v1956, %v2118
      %v2225 = vadd.f32 %v1957, %v2123
      %v2226 = vadd.f32 %v1958, %v2128
      %v2227 = vadd.f32 %v1959, %v2133
      %v2228 = vadd.f32 %v1960, %v2138
      %v2229 = vadd.f32 %v1961, %v2143
      %v2230 = vadd.f32 %v1962, %v2148
      %v2231 = vadd.f32 %v1963, %v2153
      %v2232 = vadd.f32 %v1964, %v2158
      %v2233 = vadd.f32 %v1965, %v2163
      %v2234 = vadd.f32 %v1966, %v2168
      %v2235 = vadd.f32 %v1967, %v2173
      %v2236 = vadd.f32 %v1968, %v2178
      %v2237 = vadd.f32 %v1969, %v2183
      %v2238 = vadd.f32 %v1970, %v2188
      %v2239 = vadd.f32 %v1971, %v2193
      %v2240 = vadd.f32 %v1972, %v2198
      %v2241 = vadd.f32 %v1973, %v2203
      %v2242 = vadd.f32 %v1974, %v2208
      %s2243 = scalar_lea.vmem %s1, 48
      %v2244 = vld [vmem:[%s2243] sm:$0xff]
      %v2246 = vsel %vm458, %v323, 0
      %v2249 = vsel %vm458, %v324, 0
      %2251 = vmatprep.subr.mxu0 0.0
      %2252 = vmatpush1.msra.mxu0 %v2244
      %2253 = vmatprep.subr.mxu0 0.0
      %2254 = vmatpush1.msra.mxu0 0.0
      %2255 = vmatprep.subr.mxu0 0.0
      %2256 = vmatpush1.msra.mxu0 0.0
      %2257 = vmatprep.subr.mxu0 0.0
      %2258 = vmatpush1.msra.mxu0 0.0
      %2259 = vmatprep.subr.mxu0 0.0
      %2260 = vmatpush1.msra.mxu0 0.0
      %2261 = vmatprep.subr.mxu0 0.0
      %2262 = vmatpush1.msra.mxu0 0.0
      %2263 = vmatprep.subr.mxu0 0.0
      %2264 = vmatpush1.msra.mxu0 0.0
      %2265 = vmatprep.subr.mxu0 0.0
      %2266 = vmatpush1.msra.mxu0 0.0
      %2267 = vmatprep.subr.mxu0 0.0
      %2268 = vmatpush1.msra.mxu0 0.0
      %2269 = vmatprep.subr.mxu0 0.0
      %2270 = vmatpush1.msra.mxu0 0.0
      %2271 = vmatprep.subr.mxu0 0.0
      %2272 = vmatpush1.msra.mxu0 0.0
      %2273 = vmatprep.subr.mxu0 0.0
      %2274 = vmatpush1.msra.mxu0 0.0
      %2275 = vmatprep.subr.mxu0 0.0
      %2276 = vmatpush1.msra.mxu0 0.0
      %2277 = vmatprep.subr.mxu0 0.0
      %2278 = vmatpush1.msra.mxu0 0.0
      %2279 = vmatprep.subr.mxu0 0.0
      %2280 = vmatpush1.msra.mxu0 0.0
      %2281 = vmatprep.subr.mxu0 0.0
      %2282 = vmatpush1.msra.mxu0 0.0
      %2283 = vmatprep.subr.mxu0 0.0
      %2284 = vmatpush1.msra.mxu0 0.0
      %2285 = vmatprep.subr.mxu0 0.0
      %2286 = vmatpush1.msra.mxu0 0.0
      %2287 = vmatprep.subr.mxu0 0.0
      %2288 = vmatpush1.msra.mxu0 0.0
      %2289 = vmatprep.subr.mxu0 0.0
      %2290 = vmatpush1.msra.mxu0 0.0
      %2291 = vmatprep.subr.mxu0 0.0
      %2292 = vmatpush1.msra.mxu0 0.0
      %2293 = vmatprep.subr.mxu0 0.0
      %2294 = vmatpush1.msra.mxu0 0.0
      %2295 = vmatprep.subr.mxu0 0.0
      %2296 = vmatpush1.msra.mxu0 0.0
      %2297 = vmatprep.subr.mxu0 0.0
      %2298 = vmatpush1.msra.mxu0 0.0
      %2299 = vmatprep.subr.mxu0 0.0
      %2300 = vmatpush1.msra.mxu0 0.0
      %2301 = vmatprep.subr.mxu0 0.0
      %2302 = vmatpush1.msra.mxu0 0.0
      %2303 = vmatprep.subr.mxu0 0.0
      %2304 = vmatpush1.msra.mxu0 0.0
      %2305 = vmatprep.subr.mxu0 0.0
      %2306 = vmatpush1.msra.mxu0 0.0
      %2307 = vmatprep.subr.mxu0 0.0
      %2308 = vmatpush1.msra.mxu0 0.0
      %2309 = vmatprep.subr.mxu0 0.0
      %2310 = vmatpush1.msra.mxu0 0.0
      %2311 = vmatprep.subr.mxu0 0.0
      %2312 = vmatpush1.msra.mxu0 0.0
      %2313 = vmatprep.subr.mxu0 0.0
      %2314 = vmatpush1.msra.mxu0 0.0
      %2315 = vmatprep.mubr.f32.mxu0 0.0
      %2316 = vmatmul.mubr.f32.gmra.mrb[0].mxu0 %v756
      %v2317 = vpop.f32.mrb[0].mxu0
      %v2318 = vadd.f32 0.0, %v2317
      %v2319 = vpop.f32.mrb[0].mxu0
      %2320 = vmatprep.mubr.f32.mxu0 0.0
      %2321 = vmatmul.mubr.f32.gmra.mrb[0].mxu0 %v758
      %v2322 = vpop.f32.mrb[0].mxu0
      %v2323 = vadd.f32 0.0, %v2322
      %v2324 = vpop.f32.mrb[0].mxu0
      %2325 = vmatprep.mubr.f32.mxu0 0.0
      %2326 = vmatmul.mubr.f32.gmra.mrb[0].mxu0 %v760
      %v2327 = vpop.f32.mrb[0].mxu0
      %v2328 = vadd.f32 0.0, %v2327
      %v2329 = vpop.f32.mrb[0].mxu0
      %2330 = vmatprep.mubr.f32.mxu0 0.0
      %2331 = vmatmul.mubr.f32.gmra.mrb[0].mxu0 %v762
      %v2332 = vpop.f32.mrb[0].mxu0
      %v2333 = vadd.f32 0.0, %v2332
      %v2334 = vpop.f32.mrb[0].mxu0
      %2335 = vmatprep.mubr.f32.mxu0 0.0
      %2336 = vmatmul.mubr.f32.gmra.mrb[0].mxu0 %v764
      %v2337 = vpop.f32.mrb[0].mxu0
      %v2338 = vadd.f32 0.0, %v2337
      %v2339 = vpop.f32.mrb[0].mxu0
      %2340 = vmatprep.mubr.f32.mxu0 0.0
      %2341 = vmatmul.mubr.f32.gmra.mrb[0].mxu0 %v766
      %v2342 = vpop.f32.mrb[0].mxu0
      %v2343 = vadd.f32 0.0, %v2342
      %v2344 = vpop.f32.mrb[0].mxu0
      %2345 = vmatprep.mubr.f32.mxu0 0.0
      %2346 = vmatmul.mubr.f32.gmra.mrb[0].mxu0 %v768
      %v2347 = vpop.f32.mrb[0].mxu0
      %v2348 = vadd.f32 0.0, %v2347
      %v2349 = vpop.f32.mrb[0].mxu0
      %2350 = vmatprep.mubr.f32.mxu0 0.0
      %2351 = vmatmul.mubr.f32.gmra.mrb[0].mxu0 %v770
      %v2352 = vpop.f32.mrb[0].mxu0
      %v2353 = vadd.f32 0.0, %v2352
      %v2354 = vpop.f32.mrb[0].mxu0
      %2355 = vmatprep.mubr.f32.mxu0 0.0
      %2356 = vmatmul.mubr.f32.gmra.mrb[0].mxu0 %v772
      %v2357 = vpop.f32.mrb[0].mxu0
      %v2358 = vadd.f32 0.0, %v2357
      %v2359 = vpop.f32.mrb[0].mxu0
      %2360 = vmatprep.mubr.f32.mxu0 0.0
      %2361 = vmatmul.mubr.f32.gmra.mrb[0].mxu0 %v774
      %v2362 = vpop.f32.mrb[0].mxu0
      %v2363 = vadd.f32 0.0, %v2362
      %v2364 = vpop.f32.mrb[0].mxu0
      %2365 = vmatprep.mubr.f32.mxu0 0.0
      %2366 = vmatmul.mubr.f32.gmra.mrb[0].mxu0 %v776
      %v2367 = vpop.f32.mrb[0].mxu0
      %v2368 = vadd.f32 0.0, %v2367
      %v2369 = vpop.f32.mrb[0].mxu0
      %2370 = vmatprep.mubr.f32.mxu0 0.0
      %2371 = vmatmul.mubr.f32.gmra.mrb[0].mxu0 %v778
      %v2372 = vpop.f32.mrb[0].mxu0
      %v2373 = vadd.f32 0.0, %v2372
      %v2374 = vpop.f32.mrb[0].mxu0
      %2375 = vmatprep.mubr.f32.mxu0 0.0
      %2376 = vmatmul.mubr.f32.gmra.mrb[0].mxu0 %v780
      %v2377 = vpop.f32.mrb[0].mxu0
      %v2378 = vadd.f32 0.0, %v2377
      %v2379 = vpop.f32.mrb[0].mxu0
      %2380 = vmatprep.mubr.f32.mxu0 0.0
      %2381 = vmatmul.mubr.f32.gmra.mrb[0].mxu0 %v782
      %v2382 = vpop.f32.mrb[0].mxu0
      %v2383 = vadd.f32 0.0, %v2382
      %v2384 = vpop.f32.mrb[0].mxu0
      %2385 = vmatprep.mubr.f32.mxu0 0.0
      %2386 = vmatmul.mubr.f32.gmra.mrb[0].mxu0 %v784
      %v2387 = vpop.f32.mrb[0].mxu0
      %v2388 = vadd.f32 0.0, %v2387
      %v2389 = vpop.f32.mrb[0].mxu0
      %2390 = vmatprep.mubr.f32.mxu0 0.0
      %2391 = vmatmul.mubr.f32.gmra.mrb[0].mxu0 %v786
      %v2392 = vpop.f32.mrb[0].mxu0
      %v2393 = vadd.f32 0.0, %v2392
      %v2394 = vpop.f32.mrb[0].mxu0
      %2395 = vmatprep.mubr.f32.mxu0 0.0
      %2396 = vmatmul.mubr.f32.gmra.mrb[0].mxu0 %v788
      %v2397 = vpop.f32.mrb[0].mxu0
      %v2398 = vadd.f32 0.0, %v2397
      %v2399 = vpop.f32.mrb[0].mxu0
      %2400 = vmatprep.mubr.f32.mxu0 0.0
      %2401 = vmatmul.mubr.f32.gmra.mrb[0].mxu0 %v790
      %v2402 = vpop.f32.mrb[0].mxu0
      %v2403 = vadd.f32 0.0, %v2402
      %v2404 = vpop.f32.mrb[0].mxu0
      %2405 = vmatprep.mubr.f32.mxu0 0.0
      %2406 = vmatmul.mubr.f32.gmra.mrb[0].mxu0 %v792
      %v2407 = vpop.f32.mrb[0].mxu0
      %v2408 = vadd.f32 0.0, %v2407
      %v2409 = vpop.f32.mrb[0].mxu0
      %2410 = vmatprep.mubr.f32.mxu0 0.0
      %2411 = vmatmul.mubr.f32.gmra.mrb[0].mxu0 %v794
      %v2412 = vpop.f32.mrb[0].mxu0
      %v2413 = vadd.f32 0.0, %v2412
      %v2414 = vpop.f32.mrb[0].mxu0
      %2415 = vmatprep.mubr.f32.mxu0 0.0
      %2416 = vmatmul.mubr.f32.gmra.mrb[0].mxu0 %v796
      %v2417 = vpop.f32.mrb[0].mxu0
      %v2418 = vadd.f32 0.0, %v2417
      %v2419 = vpop.f32.mrb[0].mxu0
      %2420 = vmatprep.mubr.f32.mxu0 0.0
      %2421 = vmatmul.mubr.f32.gmra.mrb[0].mxu0 %v798
      %v2422 = vpop.f32.mrb[0].mxu0
      %v2423 = vadd.f32 0.0, %v2422
      %v2424 = vpop.f32.mrb[0].mxu0
      %2425 = vmatprep.mubr.f32.mxu0 0.0
      %2426 = vmatmul.mubr.f32.gmra.mrb[0].mxu0 %v800
      %v2427 = vpop.f32.mrb[0].mxu0
      %v2428 = vadd.f32 0.0, %v2427
      %v2429 = vpop.f32.mrb[0].mxu0
      %2430 = vmatprep.mubr.f32.mxu0 0.0
      %2431 = vmatmul.mubr.f32.gmra.mrb[0].mxu0 %v802
      %v2432 = vpop.f32.mrb[0].mxu0
      %v2433 = vadd.f32 0.0, %v2432
      %v2434 = vpop.f32.mrb[0].mxu0
      %2435 = vmatprep.mubr.f32.mxu0 0.0
      %2436 = vmatmul.mubr.f32.gmra.mrb[0].mxu0 %v804
      %v2437 = vpop.f32.mrb[0].mxu0
      %v2438 = vadd.f32 0.0, %v2437
      %v2439 = vpop.f32.mrb[0].mxu0
      %2440 = vmatprep.mubr.f32.mxu0 0.0
      %2441 = vmatmul.mubr.f32.gmra.mrb[0].mxu0 %v806
      %v2442 = vpop.f32.mrb[0].mxu0
      %v2443 = vadd.f32 0.0, %v2442
      %v2444 = vpop.f32.mrb[0].mxu0
      %2445 = vmatprep.mubr.f32.mxu0 0.0
      %2446 = vmatmul.mubr.f32.gmra.mrb[0].mxu0 %v808
      %v2447 = vpop.f32.mrb[0].mxu0
      %v2448 = vadd.f32 0.0, %v2447
      %v2449 = vpop.f32.mrb[0].mxu0
      %2450 = vmatprep.mubr.f32.mxu0 0.0
      %2451 = vmatmul.mubr.f32.gmra.mrb[0].mxu0 %v810
      %v2452 = vpop.f32.mrb[0].mxu0
      %v2453 = vadd.f32 0.0, %v2452
      %v2454 = vpop.f32.mrb[0].mxu0
      %2455 = vmatprep.mubr.f32.mxu0 0.0
      %2456 = vmatmul.mubr.f32.gmra.mrb[0].mxu0 %v1444
      %v2457 = vpop.f32.mrb[0].mxu0
      %v2458 = vadd.f32 0.0, %v2457
      %v2459 = vpop.f32.mrb[0].mxu0
      %2460 = vmatprep.mubr.f32.mxu0 0.0
      %2461 = vmatmul.mubr.f32.gmra.mrb[0].mxu0 %v1447
      %v2462 = vpop.f32.mrb[0].mxu0
      %v2463 = vadd.f32 0.0, %v2462
      %v2464 = vpop.f32.mrb[0].mxu0
      %2465 = vmatprep.mubr.f32.mxu0 0.0
      %2466 = vmatmul.mubr.f32.gmra.mrb[0].mxu0 %v2246
      %v2467 = vpop.f32.mrb[0].mxu0
      %v2468 = vadd.f32 0.0, %v2467
      %v2469 = vpop.f32.mrb[0].mxu0
      %2470 = vmatprep.mubr.f32.mxu0 0.0
      %2471 = vmatmul.mubr.f32.gmra.mrb[0].mxu0 %v2249
      %v2472 = vpop.f32.mrb[0].mxu0
      %v2473 = vadd.f32 0.0, %v2472
      %v2474 = vpop.f32.mrb[0].mxu0
      %2475 = vdwg.mxu0
      %v2476 = vadd.f32 %v2211, %v2318
      %v2477 = vadd.f32 %v2212, %v2323
      %v2478 = vadd.f32 %v2213, %v2328
      %v2479 = vadd.f32 %v2214, %v2333
      %v2480 = vadd.f32 %v2215, %v2338
      %v2481 = vadd.f32 %v2216, %v2343
      %v2482 = vadd.f32 %v2217, %v2348
      %v2483 = vadd.f32 %v2218, %v2353
      %v2484 = vadd.f32 %v2219, %v2358
      %v2485 = vadd.f32 %v2220, %v2363
      %v2486 = vadd.f32 %v2221, %v2368
      %v2487 = vadd.f32 %v2222, %v2373
      %v2488 = vadd.f32 %v2223, %v2378
      %v2489 = vadd.f32 %v2224, %v2383
      %v2490 = vadd.f32 %v2225, %v2388
      %v2491 = vadd.f32 %v2226, %v2393
      %v2492 = vadd.f32 %v2227, %v2398
      %v2493 = vadd.f32 %v2228, %v2403
      %v2494 = vadd.f32 %v2229, %v2408
      %v2495 = vadd.f32 %v2230, %v2413
      %v2496 = vadd.f32 %v2231, %v2418
      %v2497 = vadd.f32 %v2232, %v2423
      %v2498 = vadd.f32 %v2233, %v2428
      %v2499 = vadd.f32 %v2234, %v2433
      %v2500 = vadd.f32 %v2235, %v2438
      %v2501 = vadd.f32 %v2236, %v2443
      %v2502 = vadd.f32 %v2237, %v2448
      %v2503 = vadd.f32 %v2238, %v2453
      %v2504 = vadd.f32 %v2239, %v2458
      %v2505 = vadd.f32 %v2240, %v2463
      %v2506 = vadd.f32 %v2241, %v2468
      %v2507 = vadd.f32 %v2242, %v2473
      %v2509 = vrot.slane %v323, 1
      %v2510 = vrot.slane %v324, 1
      %v2511 = vsel %vm375, %v2509, %v2510
      %v2512 = vrot.slane %v325, 1
      %v2513 = vsel %vm375, %v2510, %v2512
      %s2514 = scalar_lea.vmem %s1, 56
      %v2515 = vld [vmem:[%s2514] sm:$0xff]
      %v2516 = vsel %vm458, %v2511, 0
      %v2518 = vsel %vm458, %v2513, 0
      %2520 = vmatprep.subr.mxu0 0.0
      %2521 = vmatpush1.msra.mxu0 %v2515
      %2522 = vmatprep.subr.mxu0 0.0
      %2523 = vmatpush1.msra.mxu0 0.0
      %2524 = vmatprep.subr.mxu0 0.0
      %2525 = vmatpush1.msra.mxu0 0.0
      %2526 = vmatprep.subr.mxu0 0.0
      %2527 = vmatpush1.msra.mxu0 0.0
      %2528 = vmatprep.subr.mxu0 0.0
      %2529 = vmatpush1.msra.mxu0 0.0
      %2530 = vmatprep.subr.mxu0 0.0
      %2531 = vmatpush1.msra.mxu0 0.0
      %2532 = vmatprep.subr.mxu0 0.0
      %2533 = vmatpush1.msra.mxu0 0.0
      %2534 = vmatprep.subr.mxu0 0.0
      %2535 = vmatpush1.msra.mxu0 0.0
      %2536 = vmatprep.subr.mxu0 0.0
      %2537 = vmatpush1.msra.mxu0 0.0
      %2538 = vmatprep.subr.mxu0 0.0
      %2539 = vmatpush1.msra.mxu0 0.0
      %2540 = vmatprep.subr.mxu0 0.0
      %2541 = vmatpush1.msra.mxu0 0.0
      %2542 = vmatprep.subr.mxu0 0.0
      %2543 = vmatpush1.msra.mxu0 0.0
      %2544 = vmatprep.subr.mxu0 0.0
      %2545 = vmatpush1.msra.mxu0 0.0
      %2546 = vmatprep.subr.mxu0 0.0
      %2547 = vmatpush1.msra.mxu0 0.0
      %2548 = vmatprep.subr.mxu0 0.0
      %2549 = vmatpush1.msra.mxu0 0.0
      %2550 = vmatprep.subr.mxu0 0.0
      %2551 = vmatpush1.msra.mxu0 0.0
      %2552 = vmatprep.subr.mxu0 0.0
      %2553 = vmatpush1.msra.mxu0 0.0
      %2554 = vmatprep.subr.mxu0 0.0
      %2555 = vmatpush1.msra.mxu0 0.0
      %2556 = vmatprep.subr.mxu0 0.0
      %2557 = vmatpush1.msra.mxu0 0.0
      %2558 = vmatprep.subr.mxu0 0.0
      %2559 = vmatpush1.msra.mxu0 0.0
      %2560 = vmatprep.subr.mxu0 0.0
      %2561 = vmatpush1.msra.mxu0 0.0
      %2562 = vmatprep.subr.mxu0 0.0
      %2563 = vmatpush1.msra.mxu0 0.0
      %2564 = vmatprep.subr.mxu0 0.0
      %2565 = vmatpush1.msra.mxu0 0.0
      %2566 = vmatprep.subr.mxu0 0.0
      %2567 = vmatpush1.msra.mxu0 0.0
      %2568 = vmatprep.subr.mxu0 0.0
      %2569 = vmatpush1.msra.mxu0 0.0
      %2570 = vmatprep.subr.mxu0 0.0
      %2571 = vmatpush1.msra.mxu0 0.0
      %2572 = vmatprep.subr.mxu0 0.0
      %2573 = vmatpush1.msra.mxu0 0.0
      %2574 = vmatprep.subr.mxu0 0.0
      %2575 = vmatpush1.msra.mxu0 0.0
      %2576 = vmatprep.subr.mxu0 0.0
      %2577 = vmatpush1.msra.mxu0 0.0
      %2578 = vmatprep.subr.mxu0 0.0
      %2579 = vmatpush1.msra.mxu0 0.0
      %2580 = vmatprep.subr.mxu0 0.0
      %2581 = vmatpush1.msra.mxu0 0.0
      %2582 = vmatprep.subr.mxu0 0.0
      %2583 = vmatpush1.msra.mxu0 0.0
      %2584 = vmatprep.mubr.f32.mxu0 0.0
      %2585 = vmatmul.mubr.f32.gmra.mrb[0].mxu0 %v467
      %v2586 = vpop.f32.mrb[0].mxu0
      %v2587 = vadd.f32 0.0, %v2586
      %v2588 = vpop.f32.mrb[0].mxu0
      %2589 = vmatprep.mubr.f32.mxu0 0.0
      %2590 = vmatmul.mubr.f32.gmra.mrb[0].mxu0 %v469
      %v2591 = vpop.f32.mrb[0].mxu0
      %v2592 = vadd.f32 0.0, %v2591
      %v2593 = vpop.f32.mrb[0].mxu0
      %2594 = vmatprep.mubr.f32.mxu0 0.0
      %2595 = vmatmul.mubr.f32.gmra.mrb[0].mxu0 %v471
      %v2596 = vpop.f32.mrb[0].mxu0
      %v2597 = vadd.f32 0.0, %v2596
      %v2598 = vpop.f32.mrb[0].mxu0
      %2599 = vmatprep.mubr.f32.mxu0 0.0
      %2600 = vmatmul.mubr.f32.gmra.mrb[0].mxu0 %v473
      %v2601 = vpop.f32.mrb[0].mxu0
      %v2602 = vadd.f32 0.0, %v2601
      %v2603 = vpop.f32.mrb[0].mxu0
      %2604 = vmatprep.mubr.f32.mxu0 0.0
      %2605 = vmatmul.mubr.f32.gmra.mrb[0].mxu0 %v475
      %v2606 = vpop.f32.mrb[0].mxu0
      %v2607 = vadd.f32 0.0, %v2606
      %v2608 = vpop.f32.mrb[0].mxu0
      %2609 = vmatprep.mubr.f32.mxu0 0.0
      %2610 = vmatmul.mubr.f32.gmra.mrb[0].mxu0 %v477
      %v2611 = vpop.f32.mrb[0].mxu0
      %v2612 = vadd.f32 0.0, %v2611
      %v2613 = vpop.f32.mrb[0].mxu0
      %2614 = vmatprep.mubr.f32.mxu0 0.0
      %2615 = vmatmul.mubr.f32.gmra.mrb[0].mxu0 %v479
      %v2616 = vpop.f32.mrb[0].mxu0
      %v2617 = vadd.f32 0.0, %v2616
      %v2618 = vpop.f32.mrb[0].mxu0
      %2619 = vmatprep.mubr.f32.mxu0 0.0
      %2620 = vmatmul.mubr.f32.gmra.mrb[0].mxu0 %v481
      %v2621 = vpop.f32.mrb[0].mxu0
      %v2622 = vadd.f32 0.0, %v2621
      %v2623 = vpop.f32.mrb[0].mxu0
      %2624 = vmatprep.mubr.f32.mxu0 0.0
      %2625 = vmatmul.mubr.f32.gmra.mrb[0].mxu0 %v483
      %v2626 = vpop.f32.mrb[0].mxu0
      %v2627 = vadd.f32 0.0, %v2626
      %v2628 = vpop.f32.mrb[0].mxu0
      %2629 = vmatprep.mubr.f32.mxu0 0.0
      %2630 = vmatmul.mubr.f32.gmra.mrb[0].mxu0 %v485
      %v2631 = vpop.f32.mrb[0].mxu0
      %v2632 = vadd.f32 0.0, %v2631
      %v2633 = vpop.f32.mrb[0].mxu0
      %2634 = vmatprep.mubr.f32.mxu0 0.0
      %2635 = vmatmul.mubr.f32.gmra.mrb[0].mxu0 %v487
      %v2636 = vpop.f32.mrb[0].mxu0
      %v2637 = vadd.f32 0.0, %v2636
      %v2638 = vpop.f32.mrb[0].mxu0
      %2639 = vmatprep.mubr.f32.mxu0 0.0
      %2640 = vmatmul.mubr.f32.gmra.mrb[0].mxu0 %v489
      %v2641 = vpop.f32.mrb[0].mxu0
      %v2642 = vadd.f32 0.0, %v2641
      %v2643 = vpop.f32.mrb[0].mxu0
      %2644 = vmatprep.mubr.f32.mxu0 0.0
      %2645 = vmatmul.mubr.f32.gmra.mrb[0].mxu0 %v491
      %v2646 = vpop.f32.mrb[0].mxu0
      %v2647 = vadd.f32 0.0, %v2646
      %v2648 = vpop.f32.mrb[0].mxu0
      %2649 = vmatprep.mubr.f32.mxu0 0.0
      %2650 = vmatmul.mubr.f32.gmra.mrb[0].mxu0 %v493
      %v2651 = vpop.f32.mrb[0].mxu0
      %v2652 = vadd.f32 0.0, %v2651
      %v2653 = vpop.f32.mrb[0].mxu0
      %2654 = vmatprep.mubr.f32.mxu0 0.0
      %2655 = vmatmul.mubr.f32.gmra.mrb[0].mxu0 %v495
      %v2656 = vpop.f32.mrb[0].mxu0
      %v2657 = vadd.f32 0.0, %v2656
      %v2658 = vpop.f32.mrb[0].mxu0
      %2659 = vmatprep.mubr.f32.mxu0 0.0
      %2660 = vmatmul.mubr.f32.gmra.mrb[0].mxu0 %v497
      %v2661 = vpop.f32.mrb[0].mxu0
      %v2662 = vadd.f32 0.0, %v2661
      %v2663 = vpop.f32.mrb[0].mxu0
      %2664 = vmatprep.mubr.f32.mxu0 0.0
      %2665 = vmatmul.mubr.f32.gmra.mrb[0].mxu0 %v499
      %v2666 = vpop.f32.mrb[0].mxu0
      %v2667 = vadd.f32 0.0, %v2666
      %v2668 = vpop.f32.mrb[0].mxu0
      %2669 = vmatprep.mubr.f32.mxu0 0.0
      %2670 = vmatmul.mubr.f32.gmra.mrb[0].mxu0 %v501
      %v2671 = vpop.f32.mrb[0].mxu0
      %v2672 = vadd.f32 0.0, %v2671
      %v2673 = vpop.f32.mrb[0].mxu0
      %2674 = vmatprep.mubr.f32.mxu0 0.0
      %2675 = vmatmul.mubr.f32.gmra.mrb[0].mxu0 %v503
      %v2676 = vpop.f32.mrb[0].mxu0
      %v2677 = vadd.f32 0.0, %v2676
      %v2678 = vpop.f32.mrb[0].mxu0
      %2679 = vmatprep.mubr.f32.mxu0 0.0
      %2680 = vmatmul.mubr.f32.gmra.mrb[0].mxu0 %v505
      %v2681 = vpop.f32.mrb[0].mxu0
      %v2682 = vadd.f32 0.0, %v2681
      %v2683 = vpop.f32.mrb[0].mxu0
      %2684 = vmatprep.mubr.f32.mxu0 0.0
      %2685 = vmatmul.mubr.f32.gmra.mrb[0].mxu0 %v507
      %v2686 = vpop.f32.mrb[0].mxu0
      %v2687 = vadd.f32 0.0, %v2686
      %v2688 = vpop.f32.mrb[0].mxu0
      %2689 = vmatprep.mubr.f32.mxu0 0.0
      %2690 = vmatmul.mubr.f32.gmra.mrb[0].mxu0 %v509
      %v2691 = vpop.f32.mrb[0].mxu0
      %v2692 = vadd.f32 0.0, %v2691
      %v2693 = vpop.f32.mrb[0].mxu0
      %2694 = vmatprep.mubr.f32.mxu0 0.0
      %2695 = vmatmul.mubr.f32.gmra.mrb[0].mxu0 %v511
      %v2696 = vpop.f32.mrb[0].mxu0
      %v2697 = vadd.f32 0.0, %v2696
      %v2698 = vpop.f32.mrb[0].mxu0
      %2699 = vmatprep.mubr.f32.mxu0 0.0
      %2700 = vmatmul.mubr.f32.gmra.mrb[0].mxu0 %v513
      %v2701 = vpop.f32.mrb[0].mxu0
      %v2702 = vadd.f32 0.0, %v2701
      %v2703 = vpop.f32.mrb[0].mxu0
      %2704 = vmatprep.mubr.f32.mxu0 0.0
      %2705 = vmatmul.mubr.f32.gmra.mrb[0].mxu0 %v515
      %v2706 = vpop.f32.mrb[0].mxu0
      %v2707 = vadd.f32 0.0, %v2706
      %v2708 = vpop.f32.mrb[0].mxu0
      %2709 = vmatprep.mubr.f32.mxu0 0.0
      %2710 = vmatmul.mubr.f32.gmra.mrb[0].mxu0 %v517
      %v2711 = vpop.f32.mrb[0].mxu0
      %v2712 = vadd.f32 0.0, %v2711
      %v2713 = vpop.f32.mrb[0].mxu0
      %2714 = vmatprep.mubr.f32.mxu0 0.0
      %2715 = vmatmul.mubr.f32.gmra.mrb[0].mxu0 %v519
      %v2716 = vpop.f32.mrb[0].mxu0
      %v2717 = vadd.f32 0.0, %v2716
      %v2718 = vpop.f32.mrb[0].mxu0
      %2719 = vmatprep.mubr.f32.mxu0 0.0
      %2720 = vmatmul.mubr.f32.gmra.mrb[0].mxu0 %v521
      %v2721 = vpop.f32.mrb[0].mxu0
      %v2722 = vadd.f32 0.0, %v2721
      %v2723 = vpop.f32.mrb[0].mxu0
      %2724 = vmatprep.mubr.f32.mxu0 0.0
      %2725 = vmatmul.mubr.f32.gmra.mrb[0].mxu0 %v1714
      %v2726 = vpop.f32.mrb[0].mxu0
      %v2727 = vadd.f32 0.0, %v2726
      %v2728 = vpop.f32.mrb[0].mxu0
      %2729 = vmatprep.mubr.f32.mxu0 0.0
      %2730 = vmatmul.mubr.f32.gmra.mrb[0].mxu0 %v1716
      %v2731 = vpop.f32.mrb[0].mxu0
      %v2732 = vadd.f32 0.0, %v2731
      %v2733 = vpop.f32.mrb[0].mxu0
      %2734 = vmatprep.mubr.f32.mxu0 0.0
      %2735 = vmatmul.mubr.f32.gmra.mrb[0].mxu0 %v2516
      %v2736 = vpop.f32.mrb[0].mxu0
      %v2737 = vadd.f32 0.0, %v2736
      %v2738 = vpop.f32.mrb[0].mxu0
      %2739 = vmatprep.mubr.f32.mxu0 0.0
      %2740 = vmatmul.mubr.f32.gmra.mrb[0].mxu0 %v2518
      %v2741 = vpop.f32.mrb[0].mxu0
      %v2742 = vadd.f32 0.0, %v2741
      %v2743 = vpop.f32.mrb[0].mxu0
      %2744 = vdwg.mxu0
      %v2745 = vadd.f32 %v2476, %v2587
      %v2746 = vadd.f32 %v2477, %v2592
      %v2747 = vadd.f32 %v2478, %v2597
      %v2748 = vadd.f32 %v2479, %v2602
      %v2749 = vadd.f32 %v2480, %v2607
      %v2750 = vadd.f32 %v2481, %v2612
      %v2751 = vadd.f32 %v2482, %v2617
      %v2752 = vadd.f32 %v2483, %v2622
      %v2753 = vadd.f32 %v2484, %v2627
      %v2754 = vadd.f32 %v2485, %v2632
      %v2755 = vadd.f32 %v2486, %v2637
      %v2756 = vadd.f32 %v2487, %v2642
      %v2757 = vadd.f32 %v2488, %v2647
      %v2758 = vadd.f32 %v2489, %v2652
      %v2759 = vadd.f32 %v2490, %v2657
      %v2760 = vadd.f32 %v2491, %v2662
      %v2761 = vadd.f32 %v2492, %v2667
      %v2762 = vadd.f32 %v2493, %v2672
      %v2763 = vadd.f32 %v2494, %v2677
      %v2764 = vadd.f32 %v2495, %v2682
      %v2765 = vadd.f32 %v2496, %v2687
      %v2766 = vadd.f32 %v2497, %v2692
      %v2767 = vadd.f32 %v2498, %v2697
      %v2768 = vadd.f32 %v2499, %v2702
      %v2769 = vadd.f32 %v2500, %v2707
      %v2770 = vadd.f32 %v2501, %v2712
      %v2771 = vadd.f32 %v2502, %v2717
      %v2772 = vadd.f32 %v2503, %v2722
      %v2773 = vadd.f32 %v2504, %v2727
      %v2774 = vadd.f32 %v2505, %v2732
      %v2775 = vadd.f32 %v2506, %v2737
      %v2776 = vadd.f32 %v2507, %v2742
      %v2777 = vrot.slane %v323, 2
      %v2778 = vrot.slane %v324, 2
      %v2779 = vsel %vm1037, %v2777, %v2778
      %v2780 = vrot.slane %v325, 2
      %v2781 = vsel %vm1037, %v2778, %v2780
      %s2782 = scalar_lea.vmem %s1, 64
      %v2783 = vld [vmem:[%s2782] sm:$0xff]
      %v2784 = vsel %vm458, %v2779, 0
      %v2786 = vsel %vm458, %v2781, 0
      %2788 = vmatprep.subr.mxu0 0.0
      %2789 = vmatpush1.msra.mxu0 %v2783
      %2790 = vmatprep.subr.mxu0 0.0
      %2791 = vmatpush1.msra.mxu0 0.0
      %2792 = vmatprep.subr.mxu0 0.0
      %2793 = vmatpush1.msra.mxu0 0.0
      %2794 = vmatprep.subr.mxu0 0.0
      %2795 = vmatpush1.msra.mxu0 0.0
      %2796 = vmatprep.subr.mxu0 0.0
      %2797 = vmatpush1.msra.mxu0 0.0
      %2798 = vmatprep.subr.mxu0 0.0
      %2799 = vmatpush1.msra.mxu0 0.0
      %2800 = vmatprep.subr.mxu0 0.0
      %2801 = vmatpush1.msra.mxu0 0.0
      %2802 = vmatprep.subr.mxu0 0.0
      %2803 = vmatpush1.msra.mxu0 0.0
      %2804 = vmatprep.subr.mxu0 0.0
      %2805 = vmatpush1.msra.mxu0 0.0
      %2806 = vmatprep.subr.mxu0 0.0
      %2807 = vmatpush1.msra.mxu0 0.0
      %2808 = vmatprep.subr.mxu0 0.0
      %2809 = vmatpush1.msra.mxu0 0.0
      %2810 = vmatprep.subr.mxu0 0.0
      %2811 = vmatpush1.msra.mxu0 0.0
      %2812 = vmatprep.subr.mxu0 0.0
      %2813 = vmatpush1.msra.mxu0 0.0
      %2814 = vmatprep.subr.mxu0 0.0
      %2815 = vmatpush1.msra.mxu0 0.0
      %2816 = vmatprep.subr.mxu0 0.0
      %2817 = vmatpush1.msra.mxu0 0.0
      %2818 = vmatprep.subr.mxu0 0.0
      %2819 = vmatpush1.msra.mxu0 0.0
      %2820 = vmatprep.subr.mxu0 0.0
      %2821 = vmatpush1.msra.mxu0 0.0
      %2822 = vmatprep.subr.mxu0 0.0
      %2823 = vmatpush1.msra.mxu0 0.0
      %2824 = vmatprep.subr.mxu0 0.0
      %2825 = vmatpush1.msra.mxu0 0.0
      %2826 = vmatprep.subr.mxu0 0.0
      %2827 = vmatpush1.msra.mxu0 0.0
      %2828 = vmatprep.subr.mxu0 0.0
      %2829 = vmatpush1.msra.mxu0 0.0
      %2830 = vmatprep.subr.mxu0 0.0
      %2831 = vmatpush1.msra.mxu0 0.0
      %2832 = vmatprep.subr.mxu0 0.0
      %2833 = vmatpush1.msra.mxu0 0.0
      %2834 = vmatprep.subr.mxu0 0.0
      %2835 = vmatpush1.msra.mxu0 0.0
      %2836 = vmatprep.subr.mxu0 0.0
      %2837 = vmatpush1.msra.mxu0 0.0
      %2838 = vmatprep.subr.mxu0 0.0
      %2839 = vmatpush1.msra.mxu0 0.0
      %2840 = vmatprep.subr.mxu0 0.0
      %2841 = vmatpush1.msra.mxu0 0.0
      %2842 = vmatprep.subr.mxu0 0.0
      %2843 = vmatpush1.msra.mxu0 0.0
      %2844 = vmatprep.subr.mxu0 0.0
      %2845 = vmatpush1.msra.mxu0 0.0
      %2846 = vmatprep.subr.mxu0 0.0
      %2847 = vmatpush1.msra.mxu0 0.0
      %2848 = vmatprep.subr.mxu0 0.0
      %2849 = vmatpush1.msra.mxu0 0.0
      %2850 = vmatprep.subr.mxu0 0.0
      %2851 = vmatpush1.msra.mxu0 0.0
      %2852 = vmatprep.mubr.f32.mxu0 0.0
      %2853 = vmatmul.mubr.f32.gmra.mrb[0].mxu0 %v1128
      %v2854 = vpop.f32.mrb[0].mxu0
      %v2855 = vadd.f32 0.0, %v2854
      %v2856 = vpop.f32.mrb[0].mxu0
      %2857 = vmatprep.mubr.f32.mxu0 0.0
      %2858 = vmatmul.mubr.f32.gmra.mrb[0].mxu0 %v1130
      %v2859 = vpop.f32.mrb[0].mxu0
      %v2860 = vadd.f32 0.0, %v2859
      %v2861 = vpop.f32.mrb[0].mxu0
      %2862 = vmatprep.mubr.f32.mxu0 0.0
      %2863 = vmatmul.mubr.f32.gmra.mrb[0].mxu0 %v1132
      %v2864 = vpop.f32.mrb[0].mxu0
      %v2865 = vadd.f32 0.0, %v2864
      %v2866 = vpop.f32.mrb[0].mxu0
      %2867 = vmatprep.mubr.f32.mxu0 0.0
      %2868 = vmatmul.mubr.f32.gmra.mrb[0].mxu0 %v1134
      %v2869 = vpop.f32.mrb[0].mxu0
      %v2870 = vadd.f32 0.0, %v2869
      %v2871 = vpop.f32.mrb[0].mxu0
      %2872 = vmatprep.mubr.f32.mxu0 0.0
      %2873 = vmatmul.mubr.f32.gmra.mrb[0].mxu0 %v1136
      %v2874 = vpop.f32.mrb[0].mxu0
      %v2875 = vadd.f32 0.0, %v2874
      %v2876 = vpop.f32.mrb[0].mxu0
      %2877 = vmatprep.mubr.f32.mxu0 0.0
      %2878 = vmatmul.mubr.f32.gmra.mrb[0].mxu0 %v1138
      %v2879 = vpop.f32.mrb[0].mxu0
      %v2880 = vadd.f32 0.0, %v2879
      %v2881 = vpop.f32.mrb[0].mxu0
      %2882 = vmatprep.mubr.f32.mxu0 0.0
      %2883 = vmatmul.mubr.f32.gmra.mrb[0].mxu0 %v1140
      %v2884 = vpop.f32.mrb[0].mxu0
      %v2885 = vadd.f32 0.0, %v2884
      %v2886 = vpop.f32.mrb[0].mxu0
      %2887 = vmatprep.mubr.f32.mxu0 0.0
      %2888 = vmatmul.mubr.f32.gmra.mrb[0].mxu0 %v1142
      %v2889 = vpop.f32.mrb[0].mxu0
      %v2890 = vadd.f32 0.0, %v2889
      %v2891 = vpop.f32.mrb[0].mxu0
      %2892 = vmatprep.mubr.f32.mxu0 0.0
      %2893 = vmatmul.mubr.f32.gmra.mrb[0].mxu0 %v1144
      %v2894 = vpop.f32.mrb[0].mxu0
      %v2895 = vadd.f32 0.0, %v2894
      %v2896 = vpop.f32.mrb[0].mxu0
      %2897 = vmatprep.mubr.f32.mxu0 0.0
      %2898 = vmatmul.mubr.f32.gmra.mrb[0].mxu0 %v1146
      %v2899 = vpop.f32.mrb[0].mxu0
      %v2900 = vadd.f32 0.0, %v2899
      %v2901 = vpop.f32.mrb[0].mxu0
      %2902 = vmatprep.mubr.f32.mxu0 0.0
      %2903 = vmatmul.mubr.f32.gmra.mrb[0].mxu0 %v1148
      %v2904 = vpop.f32.mrb[0].mxu0
      %v2905 = vadd.f32 0.0, %v2904
      %v2906 = vpop.f32.mrb[0].mxu0
      %2907 = vmatprep.mubr.f32.mxu0 0.0
      %2908 = vmatmul.mubr.f32.gmra.mrb[0].mxu0 %v1150
      %v2909 = vpop.f32.mrb[0].mxu0
      %v2910 = vadd.f32 0.0, %v2909
      %v2911 = vpop.f32.mrb[0].mxu0
      %2912 = vmatprep.mubr.f32.mxu0 0.0
      %2913 = vmatmul.mubr.f32.gmra.mrb[0].mxu0 %v1152
      %v2914 = vpop.f32.mrb[0].mxu0
      %v2915 = vadd.f32 0.0, %v2914
      %v2916 = vpop.f32.mrb[0].mxu0
      %2917 = vmatprep.mubr.f32.mxu0 0.0
      %2918 = vmatmul.mubr.f32.gmra.mrb[0].mxu0 %v1154
      %v2919 = vpop.f32.mrb[0].mxu0
      %v2920 = vadd.f32 0.0, %v2919
      %v2921 = vpop.f32.mrb[0].mxu0
      %2922 = vmatprep.mubr.f32.mxu0 0.0
      %2923 = vmatmul.mubr.f32.gmra.mrb[0].mxu0 %v1156
      %v2924 = vpop.f32.mrb[0].mxu0
      %v2925 = vadd.f32 0.0, %v2924
      %v2926 = vpop.f32.mrb[0].mxu0
      %2927 = vmatprep.mubr.f32.mxu0 0.0
      %2928 = vmatmul.mubr.f32.gmra.mrb[0].mxu0 %v1158
      %v2929 = vpop.f32.mrb[0].mxu0
      %v2930 = vadd.f32 0.0, %v2929
      %v2931 = vpop.f32.mrb[0].mxu0
      %2932 = vmatprep.mubr.f32.mxu0 0.0
      %2933 = vmatmul.mubr.f32.gmra.mrb[0].mxu0 %v1160
      %v2934 = vpop.f32.mrb[0].mxu0
      %v2935 = vadd.f32 0.0, %v2934
      %v2936 = vpop.f32.mrb[0].mxu0
      %2937 = vmatprep.mubr.f32.mxu0 0.0
      %2938 = vmatmul.mubr.f32.gmra.mrb[0].mxu0 %v1162
      %v2939 = vpop.f32.mrb[0].mxu0
      %v2940 = vadd.f32 0.0, %v2939
      %v2941 = vpop.f32.mrb[0].mxu0
      %2942 = vmatprep.mubr.f32.mxu0 0.0
      %2943 = vmatmul.mubr.f32.gmra.mrb[0].mxu0 %v1164
      %v2944 = vpop.f32.mrb[0].mxu0
      %v2945 = vadd.f32 0.0, %v2944
      %v2946 = vpop.f32.mrb[0].mxu0
      %2947 = vmatprep.mubr.f32.mxu0 0.0
      %2948 = vmatmul.mubr.f32.gmra.mrb[0].mxu0 %v1166
      %v2949 = vpop.f32.mrb[0].mxu0
      %v2950 = vadd.f32 0.0, %v2949
      %v2951 = vpop.f32.mrb[0].mxu0
      %2952 = vmatprep.mubr.f32.mxu0 0.0
      %2953 = vmatmul.mubr.f32.gmra.mrb[0].mxu0 %v1168
      %v2954 = vpop.f32.mrb[0].mxu0
      %v2955 = vadd.f32 0.0, %v2954
      %v2956 = vpop.f32.mrb[0].mxu0
      %2957 = vmatprep.mubr.f32.mxu0 0.0
      %2958 = vmatmul.mubr.f32.gmra.mrb[0].mxu0 %v1170
      %v2959 = vpop.f32.mrb[0].mxu0
      %v2960 = vadd.f32 0.0, %v2959
      %v2961 = vpop.f32.mrb[0].mxu0
      %2962 = vmatprep.mubr.f32.mxu0 0.0
      %2963 = vmatmul.mubr.f32.gmra.mrb[0].mxu0 %v1172
      %v2964 = vpop.f32.mrb[0].mxu0
      %v2965 = vadd.f32 0.0, %v2964
      %v2966 = vpop.f32.mrb[0].mxu0
      %2967 = vmatprep.mubr.f32.mxu0 0.0
      %2968 = vmatmul.mubr.f32.gmra.mrb[0].mxu0 %v1174
      %v2969 = vpop.f32.mrb[0].mxu0
      %v2970 = vadd.f32 0.0, %v2969
      %v2971 = vpop.f32.mrb[0].mxu0
      %2972 = vmatprep.mubr.f32.mxu0 0.0
      %2973 = vmatmul.mubr.f32.gmra.mrb[0].mxu0 %v1176
      %v2974 = vpop.f32.mrb[0].mxu0
      %v2975 = vadd.f32 0.0, %v2974
      %v2976 = vpop.f32.mrb[0].mxu0
      %2977 = vmatprep.mubr.f32.mxu0 0.0
      %2978 = vmatmul.mubr.f32.gmra.mrb[0].mxu0 %v1178
      %v2979 = vpop.f32.mrb[0].mxu0
      %v2980 = vadd.f32 0.0, %v2979
      %v2981 = vpop.f32.mrb[0].mxu0
      %2982 = vmatprep.mubr.f32.mxu0 0.0
      %2983 = vmatmul.mubr.f32.gmra.mrb[0].mxu0 %v1180
      %v2984 = vpop.f32.mrb[0].mxu0
      %v2985 = vadd.f32 0.0, %v2984
      %v2986 = vpop.f32.mrb[0].mxu0
      %2987 = vmatprep.mubr.f32.mxu0 0.0
      %2988 = vmatmul.mubr.f32.gmra.mrb[0].mxu0 %v1182
      %v2989 = vpop.f32.mrb[0].mxu0
      %v2990 = vadd.f32 0.0, %v2989
      %v2991 = vpop.f32.mrb[0].mxu0
      %2992 = vmatprep.mubr.f32.mxu0 0.0
      %2993 = vmatmul.mubr.f32.gmra.mrb[0].mxu0 %v1982
      %v2994 = vpop.f32.mrb[0].mxu0
      %v2995 = vadd.f32 0.0, %v2994
      %v2996 = vpop.f32.mrb[0].mxu0
      %2997 = vmatprep.mubr.f32.mxu0 0.0
      %2998 = vmatmul.mubr.f32.gmra.mrb[0].mxu0 %v1984
      %v2999 = vpop.f32.mrb[0].mxu0
      %v3000 = vadd.f32 0.0, %v2999
      %v3001 = vpop.f32.mrb[0].mxu0
      %3002 = vmatprep.mubr.f32.mxu0 0.0
      %3003 = vmatmul.mubr.f32.gmra.mrb[0].mxu0 %v2784
      %v3004 = vpop.f32.mrb[0].mxu0
      %v3005 = vadd.f32 0.0, %v3004
      %v3006 = vpop.f32.mrb[0].mxu0
      %3007 = vmatprep.mubr.f32.mxu0 0.0
      %3008 = vmatmul.mubr.f32.gmra.mrb[0].mxu0 %v2786
      %v3009 = vpop.f32.mrb[0].mxu0
      %v3010 = vadd.f32 0.0, %v3009
      %v3011 = vpop.f32.mrb[0].mxu0
      %3012 = vdwg.mxu0
      %v3013 = vadd.f32 %v2745, %v2855
      %v3014 = vadd.f32 %v2746, %v2860
      %v3015 = vadd.f32 %v2747, %v2865
      %v3016 = vadd.f32 %v2748, %v2870
      %v3017 = vadd.f32 %v2749, %v2875
      %v3018 = vadd.f32 %v2750, %v2880
      %v3019 = vadd.f32 %v2751, %v2885
      %v3020 = vadd.f32 %v2752, %v2890
      %v3021 = vadd.f32 %v2753, %v2895
      %v3022 = vadd.f32 %v2754, %v2900
      %v3023 = vadd.f32 %v2755, %v2905
      %v3024 = vadd.f32 %v2756, %v2910
      %v3025 = vadd.f32 %v2757, %v2915
      %v3026 = vadd.f32 %v2758, %v2920
      %v3027 = vadd.f32 %v2759, %v2925
      %v3028 = vadd.f32 %v2760, %v2930
      %v3029 = vadd.f32 %v2761, %v2935
      %v3030 = vadd.f32 %v2762, %v2940
      %v3031 = vadd.f32 %v2763, %v2945
      %v3032 = vadd.f32 %v2764, %v2950
      %v3033 = vadd.f32 %v2765, %v2955
      %v3034 = vadd.f32 %v2766, %v2960
      %v3035 = vadd.f32 %v2767, %v2965
      %v3036 = vadd.f32 %v2768, %v2970
      %v3037 = vadd.f32 %v2769, %v2975
      %v3038 = vadd.f32 %v2770, %v2980
      %v3039 = vadd.f32 %v2771, %v2985
      %v3040 = vadd.f32 %v2772, %v2990
      %v3041 = vadd.f32 %v2773, %v2995
      %v3042 = vadd.f32 %v2774, %v3000
      %v3043 = vadd.f32 %v2775, %v3005
      %v3044 = vadd.f32 %v2776, %v3010
      %v3045 = vld [vmem:[%s2] sm:$0x1]
      %v3047 = vlaneseq
      %v3048 = vshrl.u32 %v3047, 7
      %v3049 = vsub.s32 0, %v3048
      %v3050 = vrot.slane %v3045, %v3049
      %v3052 = vadd.f32 %v3013, %v3050
      %v3053 = vadd.f32 %v3014, %v3050
      %v3054 = vadd.f32 %v3015, %v3050
      %v3055 = vadd.f32 %v3016, %v3050
      %v3056 = vadd.f32 %v3017, %v3050
      %v3057 = vadd.f32 %v3018, %v3050
      %v3058 = vadd.f32 %v3019, %v3050
      %v3059 = vadd.f32 %v3020, %v3050
      %v3060 = vadd.f32 %v3021, %v3050
      %v3061 = vadd.f32 %v3022, %v3050
      %v3062 = vadd.f32 %v3023, %v3050
      %v3063 = vadd.f32 %v3024, %v3050
      %v3064 = vadd.f32 %v3025, %v3050
      %v3065 = vadd.f32 %v3026, %v3050
      %v3066 = vadd.f32 %v3027, %v3050
      %v3067 = vadd.f32 %v3028, %v3050
      %v3068 = vadd.f32 %v3029, %v3050
      %v3069 = vadd.f32 %v3030, %v3050
      %v3070 = vadd.f32 %v3031, %v3050
      %v3071 = vadd.f32 %v3032, %v3050
      %v3072 = vadd.f32 %v3033, %v3050
      %v3073 = vadd.f32 %v3034, %v3050
      %v3074 = vadd.f32 %v3035, %v3050
      %v3075 = vadd.f32 %v3036, %v3050
      %v3076 = vadd.f32 %v3037, %v3050
      %v3077 = vadd.f32 %v3038, %v3050
      %v3078 = vadd.f32 %v3039, %v3050
      %v3079 = vadd.f32 %v3040, %v3050
      %v3080 = vadd.f32 %v3041, %v3050
      %v3081 = vadd.f32 %v3042, %v3050
      %v3082 = vadd.f32 %v3043, %v3050
      %v3083 = vadd.f32 %v3044, %v3050
      %vm3084 = vcmp.ge.f32.partialorder %v3052, 0.0
      %vm3085 = vcmp.ge.f32.partialorder %v3053, 0.0
      %vm3086 = vcmp.ge.f32.partialorder %v3054, 0.0
      %vm3087 = vcmp.ge.f32.partialorder %v3055, 0.0
      %vm3088 = vcmp.ge.f32.partialorder %v3056, 0.0
      %vm3089 = vcmp.ge.f32.partialorder %v3057, 0.0
      %vm3090 = vcmp.ge.f32.partialorder %v3058, 0.0
      %vm3091 = vcmp.ge.f32.partialorder %v3059, 0.0
      %vm3092 = vcmp.ge.f32.partialorder %v3060, 0.0
      %vm3093 = vcmp.ge.f32.partialorder %v3061, 0.0
      %vm3094 = vcmp.ge.f32.partialorder %v3062, 0.0
      %vm3095 = vcmp.ge.f32.partialorder %v3063, 0.0
      %vm3096 = vcmp.ge.f32.partialorder %v3064, 0.0
      %vm3097 = vcmp.ge.f32.partialorder %v3065, 0.0
      %vm3098 = vcmp.ge.f32.partialorder %v3066, 0.0
      %vm3099 = vcmp.ge.f32.partialorder %v3067, 0.0
      %vm3100 = vcmp.ge.f32.partialorder %v3068, 0.0
      %vm3101 = vcmp.ge.f32.partialorder %v3069, 0.0
      %vm3102 = vcmp.ge.f32.partialorder %v3070, 0.0
      %vm3103 = vcmp.ge.f32.partialorder %v3071, 0.0
      %vm3104 = vcmp.ge.f32.partialorder %v3072, 0.0
      %vm3105 = vcmp.ge.f32.partialorder %v3073, 0.0
      %vm3106 = vcmp.ge.f32.partialorder %v3074, 0.0
      %vm3107 = vcmp.ge.f32.partialorder %v3075, 0.0
      %vm3108 = vcmp.ge.f32.partialorder %v3076, 0.0
      %vm3109 = vcmp.ge.f32.partialorder %v3077, 0.0
      %vm3110 = vcmp.ge.f32.partialorder %v3078, 0.0
      %vm3111 = vcmp.ge.f32.partialorder %v3079, 0.0
      %vm3112 = vcmp.ge.f32.partialorder %v3080, 0.0
      %vm3113 = vcmp.ge.f32.partialorder %v3081, 0.0
      %vm3114 = vcmp.ge.f32.partialorder %v3082, 0.0
      %vm3115 = vcmp.ge.f32.partialorder %v3083, 0.0
      %v3116 = vmul.f32 %v3052, 0.01
      %v3117 = vmul.f32 %v3053, 0.01
      %v3118 = vmul.f32 %v3054, 0.01
      %v3119 = vmul.f32 %v3055, 0.01
      %v3120 = vmul.f32 %v3056, 0.01
      %v3121 = vmul.f32 %v3057, 0.01
      %v3122 = vmul.f32 %v3058, 0.01
      %v3123 = vmul.f32 %v3059, 0.01
      %v3124 = vmul.f32 %v3060, 0.01
      %v3125 = vmul.f32 %v3061, 0.01
      %v3126 = vmul.f32 %v3062, 0.01
      %v3127 = vmul.f32 %v3063, 0.01
      %v3128 = vmul.f32 %v3064, 0.01
      %v3129 = vmul.f32 %v3065, 0.01
      %v3130 = vmul.f32 %v3066, 0.01
      %v3131 = vmul.f32 %v3067, 0.01
      %v3132 = vmul.f32 %v3068, 0.01
      %v3133 = vmul.f32 %v3069, 0.01
      %v3134 = vmul.f32 %v3070, 0.01
      %v3135 = vmul.f32 %v3071, 0.01
      %v3136 = vmul.f32 %v3072, 0.01
      %v3137 = vmul.f32 %v3073, 0.01
      %v3138 = vmul.f32 %v3074, 0.01
      %v3139 = vmul.f32 %v3075, 0.01
      %v3140 = vmul.f32 %v3076, 0.01
      %v3141 = vmul.f32 %v3077, 0.01
      %v3142 = vmul.f32 %v3078, 0.01
      %v3143 = vmul.f32 %v3079, 0.01
      %v3144 = vmul.f32 %v3080, 0.01
      %v3145 = vmul.f32 %v3081, 0.01
      %v3146 = vmul.f32 %v3082, 0.01
      %v3147 = vmul.f32 %v3083, 0.01
      %v3148 = vsel %vm3084, %v3052, %v3116
      %v3149 = vsel %vm3085, %v3053, %v3117
      %v3150 = vsel %vm3086, %v3054, %v3118
      %v3151 = vsel %vm3087, %v3055, %v3119
      %v3152 = vsel %vm3088, %v3056, %v3120
      %v3153 = vsel %vm3089, %v3057, %v3121
      %v3154 = vsel %vm3090, %v3058, %v3122
      %v3155 = vsel %vm3091, %v3059, %v3123
      %v3156 = vsel %vm3092, %v3060, %v3124
      %v3157 = vsel %vm3093, %v3061, %v3125
      %v3158 = vsel %vm3094, %v3062, %v3126
      %v3159 = vsel %vm3095, %v3063, %v3127
      %v3160 = vsel %vm3096, %v3064, %v3128
      %v3161 = vsel %vm3097, %v3065, %v3129
      %v3162 = vsel %vm3098, %v3066, %v3130
      %v3163 = vsel %vm3099, %v3067, %v3131
      %v3164 = vsel %vm3100, %v3068, %v3132
      %v3165 = vsel %vm3101, %v3069, %v3133
      %v3166 = vsel %vm3102, %v3070, %v3134
      %v3167 = vsel %vm3103, %v3071, %v3135
      %v3168 = vsel %vm3104, %v3072, %v3136
      %v3169 = vsel %vm3105, %v3073, %v3137
      %v3170 = vsel %vm3106, %v3074, %v3138
      %v3171 = vsel %vm3107, %v3075, %v3139
      %v3172 = vsel %vm3108, %v3076, %v3140
      %v3173 = vsel %vm3109, %v3077, %v3141
      %v3174 = vsel %vm3110, %v3078, %v3142
      %v3175 = vsel %vm3111, %v3079, %v3143
      %v3176 = vsel %vm3112, %v3080, %v3144
      %v3177 = vsel %vm3113, %v3081, %v3145
      %v3178 = vsel %vm3114, %v3082, %v3146
      %v3179 = vsel %vm3115, %v3083, %v3147
      %v3180 = vld [vmem:[%s266] sm:$0xff]
      %v3181 = vld [vmem:[%s266 + $0x8] sm:$0xff]
      %v3182 = vld [vmem:[%s266 + $0x10] sm:$0xff]
      %v3183 = vld [vmem:[%s266 + $0x18] sm:$0xff]
      %v3184 = vld [vmem:[%s266 + $0x20] sm:$0xff]
      %v3185 = vld [vmem:[%s266 + $0x28] sm:$0xff]
      %v3186 = vld [vmem:[%s266 + $0x30] sm:$0xff]
      %v3187 = vld [vmem:[%s266 + $0x38] sm:$0xff]
      %v3188 = vld [vmem:[%s266 + $0x40] sm:$0xff]
      %v3189 = vld [vmem:[%s266 + $0x48] sm:$0xff]
      %v3190 = vld [vmem:[%s266 + $0x50] sm:$0xff]
      %v3191 = vld [vmem:[%s266 + $0x58] sm:$0xff]
      %v3192 = vld [vmem:[%s266 + $0x60] sm:$0xff]
      %v3193 = vld [vmem:[%s266 + $0x68] sm:$0xff]
      %v3194 = vld [vmem:[%s266 + $0x70] sm:$0xff]
      %v3195 = vld [vmem:[%s266 + $0x78] sm:$0xff]
      %v3196 = vld [vmem:[%s266 + $0x80] sm:$0xff]
      %v3197 = vld [vmem:[%s266 + $0x88] sm:$0xff]
      %v3198 = vld [vmem:[%s266 + $0x90] sm:$0xff]
      %v3199 = vld [vmem:[%s266 + $0x98] sm:$0xff]
      %v3200 = vld [vmem:[%s266 + $0xa0] sm:$0xff]
      %v3201 = vld [vmem:[%s266 + $0xa8] sm:$0xff]
      %v3202 = vld [vmem:[%s266 + $0xb0] sm:$0xff]
      %v3203 = vld [vmem:[%s266 + $0xb8] sm:$0xff]
      %v3204 = vld [vmem:[%s266 + $0xc0] sm:$0xff]
      %v3205 = vld [vmem:[%s266 + $0xc8] sm:$0xff]
      %v3206 = vld [vmem:[%s266 + $0xd0] sm:$0xff]
      %v3207 = vld [vmem:[%s266 + $0xd8] sm:$0xff]
      %v3208 = vld [vmem:[%s266 + $0xe0] sm:$0xff]
      %v3209 = vld [vmem:[%s266 + $0xe8] sm:$0xff]
      %v3210 = vld [vmem:[%s266 + $0xf0] sm:$0xff]
      %v3211 = vld [vmem:[%s266 + $0xf8] sm:$0xff]
      %v3212 = vld [vmem:[%s4] sm:$0xf]
      %vm3213 = vcmask 31744
      %v3215 = vsel %vm3213, %v3180, 0
      %v3218 = vsel %vm3213, %v3181, 0
      %v3221 = vsel %vm3213, %v3182, 0
      %v3224 = vsel %vm3213, %v3183, 0
      %v3227 = vsel %vm3213, %v3184, 0
      %v3230 = vsel %vm3213, %v3185, 0
      %v3233 = vsel %vm3213, %v3186, 0
      %v3236 = vsel %vm3213, %v3187, 0
      %v3239 = vsel %vm3213, %v3188, 0
      %v3242 = vsel %vm3213, %v3189, 0
      %v3245 = vsel %vm3213, %v3190, 0
      %v3248 = vsel %vm3213, %v3191, 0
      %v3251 = vsel %vm3213, %v3192, 0
      %v3254 = vsel %vm3213, %v3193, 0
      %v3257 = vsel %vm3213, %v3194, 0
      %v3260 = vsel %vm3213, %v3195, 0
      %v3263 = vsel %vm3213, %v3196, 0
      %v3266 = vsel %vm3213, %v3197, 0
      %v3269 = vsel %vm3213, %v3198, 0
      %v3272 = vsel %vm3213, %v3199, 0
      %v3275 = vsel %vm3213, %v3200, 0
      %v3278 = vsel %vm3213, %v3201, 0
      %v3281 = vsel %vm3213, %v3202, 0
      %v3284 = vsel %vm3213, %v3203, 0
      %v3287 = vsel %vm3213, %v3204, 0
      %v3290 = vsel %vm3213, %v3205, 0
      %v3293 = vsel %vm3213, %v3206, 0
      %v3296 = vsel %vm3213, %v3207, 0
      %v3299 = vsel %vm3213, %v3208, 0
      %v3302 = vsel %vm3213, %v3209, 0
      %v3305 = vsel %vm3213, %v3210, 0
      %v3308 = vsel %vm3213, %v3211, 0
      %vm3310 = vcmask 1043456
      %v3312 = vsel %vm3310, %v3212, 0
      %3314 = vmatprep.subr.mxu0 0.0
      %3315 = vmatpush1.msra.mxu0 %v3312
      %3316 = vmatprep.subr.mxu0 0.0
      %3317 = vmatpush1.msra.mxu0 0.0
      %3318 = vmatprep.subr.mxu0 0.0
      %3319 = vmatpush1.msra.mxu0 0.0
      %3320 = vmatprep.subr.mxu0 0.0
      %3321 = vmatpush1.msra.mxu0 0.0
      %3322 = vmatprep.subr.mxu0 0.0
      %3323 = vmatpush1.msra.mxu0 0.0
      %3324 = vmatprep.subr.mxu0 0.0
      %3325 = vmatpush1.msra.mxu0 0.0
      %3326 = vmatprep.subr.mxu0 0.0
      %3327 = vmatpush1.msra.mxu0 0.0
      %3328 = vmatprep.subr.mxu0 0.0
      %3329 = vmatpush1.msra.mxu0 0.0
      %3330 = vmatprep.subr.mxu0 0.0
      %3331 = vmatpush1.msra.mxu0 0.0
      %3332 = vmatprep.subr.mxu0 0.0
      %3333 = vmatpush1.msra.mxu0 0.0
      %3334 = vmatprep.subr.mxu0 0.0
      %3335 = vmatpush1.msra.mxu0 0.0
      %3336 = vmatprep.subr.mxu0 0.0
      %3337 = vmatpush1.msra.mxu0 0.0
      %3338 = vmatprep.subr.mxu0 0.0
      %3339 = vmatpush1.msra.mxu0 0.0
      %3340 = vmatprep.subr.mxu0 0.0
      %3341 = vmatpush1.msra.mxu0 0.0
      %3342 = vmatprep.subr.mxu0 0.0
      %3343 = vmatpush1.msra.mxu0 0.0
      %3344 = vmatprep.subr.mxu0 0.0
      %3345 = vmatpush1.msra.mxu0 0.0
      %3346 = vmatprep.subr.mxu0 0.0
      %3347 = vmatpush1.msra.mxu0 0.0
      %3348 = vmatprep.subr.mxu0 0.0
      %3349 = vmatpush1.msra.mxu0 0.0
      %3350 = vmatprep.subr.mxu0 0.0
      %3351 = vmatpush1.msra.mxu0 0.0
      %3352 = vmatprep.subr.mxu0 0.0
      %3353 = vmatpush1.msra.mxu0 0.0
      %3354 = vmatprep.subr.mxu0 0.0
      %3355 = vmatpush1.msra.mxu0 0.0
      %3356 = vmatprep.subr.mxu0 0.0
      %3357 = vmatpush1.msra.mxu0 0.0
      %3358 = vmatprep.subr.mxu0 0.0
      %3359 = vmatpush1.msra.mxu0 0.0
      %3360 = vmatprep.subr.mxu0 0.0
      %3361 = vmatpush1.msra.mxu0 0.0
      %3362 = vmatprep.subr.mxu0 0.0
      %3363 = vmatpush1.msra.mxu0 0.0
      %3364 = vmatprep.subr.mxu0 0.0
      %3365 = vmatpush1.msra.mxu0 0.0
      %3366 = vmatprep.subr.mxu0 0.0
      %3367 = vmatpush1.msra.mxu0 0.0
      %3368 = vmatprep.subr.mxu0 0.0
      %3369 = vmatpush1.msra.mxu0 0.0
      %3370 = vmatprep.subr.mxu0 0.0
      %3371 = vmatpush1.msra.mxu0 0.0
      %3372 = vmatprep.subr.mxu0 0.0
      %3373 = vmatpush1.msra.mxu0 0.0
      %3374 = vmatprep.subr.mxu0 0.0
      %3375 = vmatpush1.msra.mxu0 0.0
      %3376 = vmatprep.subr.mxu0 0.0
      %3377 = vmatpush1.msra.mxu0 0.0
      %3378 = vmatprep.mubr.f32.mxu0 0.0
      %3379 = vmatmul.mubr.f32.gmra.mrb[0].mxu0 %v3215
      %v3380 = vpop.f32.mrb[0].mxu0
      %v3381 = vadd.f32 0.0, %v3380
      %v3382 = vpop.f32.mrb[0].mxu0
      %3383 = vmatprep.mubr.f32.mxu0 0.0
      %3384 = vmatmul.mubr.f32.gmra.mrb[0].mxu0 %v3218
      %v3385 = vpop.f32.mrb[0].mxu0
      %v3386 = vadd.f32 0.0, %v3385
      %v3387 = vpop.f32.mrb[0].mxu0
      %3388 = vmatprep.mubr.f32.mxu0 0.0
      %3389 = vmatmul.mubr.f32.gmra.mrb[0].mxu0 %v3221
      %v3390 = vpop.f32.mrb[0].mxu0
      %v3391 = vadd.f32 0.0, %v3390
      %v3392 = vpop.f32.mrb[0].mxu0
      %3393 = vmatprep.mubr.f32.mxu0 0.0
      %3394 = vmatmul.mubr.f32.gmra.mrb[0].mxu0 %v3224
      %v3395 = vpop.f32.mrb[0].mxu0
      %v3396 = vadd.f32 0.0, %v3395
      %v3397 = vpop.f32.mrb[0].mxu0
      %3398 = vmatprep.mubr.f32.mxu0 0.0
      %3399 = vmatmul.mubr.f32.gmra.mrb[0].mxu0 %v3227
      %v3400 = vpop.f32.mrb[0].mxu0
      %v3401 = vadd.f32 0.0, %v3400
      %v3402 = vpop.f32.mrb[0].mxu0
      %3403 = vmatprep.mubr.f32.mxu0 0.0
      %3404 = vmatmul.mubr.f32.gmra.mrb[0].mxu0 %v3230
      %v3405 = vpop.f32.mrb[0].mxu0
      %v3406 = vadd.f32 0.0, %v3405
      %v3407 = vpop.f32.mrb[0].mxu0
      %3408 = vmatprep.mubr.f32.mxu0 0.0
      %3409 = vmatmul.mubr.f32.gmra.mrb[0].mxu0 %v3233
      %v3410 = vpop.f32.mrb[0].mxu0
      %v3411 = vadd.f32 0.0, %v3410
      %v3412 = vpop.f32.mrb[0].mxu0
      %3413 = vmatprep.mubr.f32.mxu0 0.0
      %3414 = vmatmul.mubr.f32.gmra.mrb[0].mxu0 %v3236
      %v3415 = vpop.f32.mrb[0].mxu0
      %v3416 = vadd.f32 0.0, %v3415
      %v3417 = vpop.f32.mrb[0].mxu0
      %3418 = vmatprep.mubr.f32.mxu0 0.0
      %3419 = vmatmul.mubr.f32.gmra.mrb[0].mxu0 %v3239
      %v3420 = vpop.f32.mrb[0].mxu0
      %v3421 = vadd.f32 0.0, %v3420
      %v3422 = vpop.f32.mrb[0].mxu0
      %3423 = vmatprep.mubr.f32.mxu0 0.0
      %3424 = vmatmul.mubr.f32.gmra.mrb[0].mxu0 %v3242
      %v3425 = vpop.f32.mrb[0].mxu0
      %v3426 = vadd.f32 0.0, %v3425
      %v3427 = vpop.f32.mrb[0].mxu0
      %3428 = vmatprep.mubr.f32.mxu0 0.0
      %3429 = vmatmul.mubr.f32.gmra.mrb[0].mxu0 %v3245
      %v3430 = vpop.f32.mrb[0].mxu0
      %v3431 = vadd.f32 0.0, %v3430
      %v3432 = vpop.f32.mrb[0].mxu0
      %3433 = vmatprep.mubr.f32.mxu0 0.0
      %3434 = vmatmul.mubr.f32.gmra.mrb[0].mxu0 %v3248
      %v3435 = vpop.f32.mrb[0].mxu0
      %v3436 = vadd.f32 0.0, %v3435
      %v3437 = vpop.f32.mrb[0].mxu0
      %3438 = vmatprep.mubr.f32.mxu0 0.0
      %3439 = vmatmul.mubr.f32.gmra.mrb[0].mxu0 %v3251
      %v3440 = vpop.f32.mrb[0].mxu0
      %v3441 = vadd.f32 0.0, %v3440
      %v3442 = vpop.f32.mrb[0].mxu0
      %3443 = vmatprep.mubr.f32.mxu0 0.0
      %3444 = vmatmul.mubr.f32.gmra.mrb[0].mxu0 %v3254
      %v3445 = vpop.f32.mrb[0].mxu0
      %v3446 = vadd.f32 0.0, %v3445
      %v3447 = vpop.f32.mrb[0].mxu0
      %3448 = vmatprep.mubr.f32.mxu0 0.0
      %3449 = vmatmul.mubr.f32.gmra.mrb[0].mxu0 %v3257
      %v3450 = vpop.f32.mrb[0].mxu0
      %v3451 = vadd.f32 0.0, %v3450
      %v3452 = vpop.f32.mrb[0].mxu0
      %3453 = vmatprep.mubr.f32.mxu0 0.0
      %3454 = vmatmul.mubr.f32.gmra.mrb[0].mxu0 %v3260
      %v3455 = vpop.f32.mrb[0].mxu0
      %v3456 = vadd.f32 0.0, %v3455
      %v3457 = vpop.f32.mrb[0].mxu0
      %3458 = vmatprep.mubr.f32.mxu0 0.0
      %3459 = vmatmul.mubr.f32.gmra.mrb[0].mxu0 %v3263
      %v3460 = vpop.f32.mrb[0].mxu0
      %v3461 = vadd.f32 0.0, %v3460
      %v3462 = vpop.f32.mrb[0].mxu0
      %3463 = vmatprep.mubr.f32.mxu0 0.0
      %3464 = vmatmul.mubr.f32.gmra.mrb[0].mxu0 %v3266
      %v3465 = vpop.f32.mrb[0].mxu0
      %v3466 = vadd.f32 0.0, %v3465
      %v3467 = vpop.f32.mrb[0].mxu0
      %3468 = vmatprep.mubr.f32.mxu0 0.0
      %3469 = vmatmul.mubr.f32.gmra.mrb[0].mxu0 %v3269
      %v3470 = vpop.f32.mrb[0].mxu0
      %v3471 = vadd.f32 0.0, %v3470
      %v3472 = vpop.f32.mrb[0].mxu0
      %3473 = vmatprep.mubr.f32.mxu0 0.0
      %3474 = vmatmul.mubr.f32.gmra.mrb[0].mxu0 %v3272
      %v3475 = vpop.f32.mrb[0].mxu0
      %v3476 = vadd.f32 0.0, %v3475
      %v3477 = vpop.f32.mrb[0].mxu0
      %3478 = vmatprep.mubr.f32.mxu0 0.0
      %3479 = vmatmul.mubr.f32.gmra.mrb[0].mxu0 %v3275
      %v3480 = vpop.f32.mrb[0].mxu0
      %v3481 = vadd.f32 0.0, %v3480
      %v3482 = vpop.f32.mrb[0].mxu0
      %3483 = vmatprep.mubr.f32.mxu0 0.0
      %3484 = vmatmul.mubr.f32.gmra.mrb[0].mxu0 %v3278
      %v3485 = vpop.f32.mrb[0].mxu0
      %v3486 = vadd.f32 0.0, %v3485
      %v3487 = vpop.f32.mrb[0].mxu0
      %3488 = vmatprep.mubr.f32.mxu0 0.0
      %3489 = vmatmul.mubr.f32.gmra.mrb[0].mxu0 %v3281
      %v3490 = vpop.f32.mrb[0].mxu0
      %v3491 = vadd.f32 0.0, %v3490
      %v3492 = vpop.f32.mrb[0].mxu0
      %3493 = vmatprep.mubr.f32.mxu0 0.0
      %3494 = vmatmul.mubr.f32.gmra.mrb[0].mxu0 %v3284
      %v3495 = vpop.f32.mrb[0].mxu0
      %v3496 = vadd.f32 0.0, %v3495
      %v3497 = vpop.f32.mrb[0].mxu0
      %3498 = vmatprep.mubr.f32.mxu0 0.0
      %3499 = vmatmul.mubr.f32.gmra.mrb[0].mxu0 %v3287
      %v3500 = vpop.f32.mrb[0].mxu0
      %v3501 = vadd.f32 0.0, %v3500
      %v3502 = vpop.f32.mrb[0].mxu0
      %3503 = vmatprep.mubr.f32.mxu0 0.0
      %3504 = vmatmul.mubr.f32.gmra.mrb[0].mxu0 %v3290
      %v3505 = vpop.f32.mrb[0].mxu0
      %v3506 = vadd.f32 0.0, %v3505
      %v3507 = vpop.f32.mrb[0].mxu0
      %3508 = vmatprep.mubr.f32.mxu0 0.0
      %3509 = vmatmul.mubr.f32.gmra.mrb[0].mxu0 %v3293
      %v3510 = vpop.f32.mrb[0].mxu0
      %v3511 = vadd.f32 0.0, %v3510
      %v3512 = vpop.f32.mrb[0].mxu0
      %3513 = vmatprep.mubr.f32.mxu0 0.0
      %3514 = vmatmul.mubr.f32.gmra.mrb[0].mxu0 %v3296
      %v3515 = vpop.f32.mrb[0].mxu0
      %v3516 = vadd.f32 0.0, %v3515
      %v3517 = vpop.f32.mrb[0].mxu0
      %3518 = vmatprep.mubr.f32.mxu0 0.0
      %3519 = vmatmul.mubr.f32.gmra.mrb[0].mxu0 %v3299
      %v3520 = vpop.f32.mrb[0].mxu0
      %v3521 = vadd.f32 0.0, %v3520
      %v3522 = vpop.f32.mrb[0].mxu0
      %3523 = vmatprep.mubr.f32.mxu0 0.0
      %3524 = vmatmul.mubr.f32.gmra.mrb[0].mxu0 %v3302
      %v3525 = vpop.f32.mrb[0].mxu0
      %v3526 = vadd.f32 0.0, %v3525
      %v3527 = vpop.f32.mrb[0].mxu0
      %3528 = vmatprep.mubr.f32.mxu0 0.0
      %3529 = vmatmul.mubr.f32.gmra.mrb[0].mxu0 %v3305
      %v3530 = vpop.f32.mrb[0].mxu0
      %v3531 = vadd.f32 0.0, %v3530
      %v3532 = vpop.f32.mrb[0].mxu0
      %3533 = vmatprep.mubr.f32.mxu0 0.0
      %3534 = vmatmul.mubr.f32.gmra.mrb[0].mxu0 %v3308
      %v3535 = vpop.f32.mrb[0].mxu0
      %v3536 = vadd.f32 0.0, %v3535
      %v3537 = vpop.f32.mrb[0].mxu0
      %3538 = vdwg.mxu0
      %v3539 = vadd.f32 %v3148, %v3381
      %v3540 = vadd.f32 %v3149, %v3386
      %v3541 = vadd.f32 %v3150, %v3391
      %v3542 = vadd.f32 %v3151, %v3396
      %v3543 = vadd.f32 %v3152, %v3401
      %v3544 = vadd.f32 %v3153, %v3406
      %v3545 = vadd.f32 %v3154, %v3411
      %v3546 = vadd.f32 %v3155, %v3416
      %v3547 = vadd.f32 %v3156, %v3421
      %v3548 = vadd.f32 %v3157, %v3426
      %v3549 = vadd.f32 %v3158, %v3431
      %v3550 = vadd.f32 %v3159, %v3436
      %v3551 = vadd.f32 %v3160, %v3441
      %v3552 = vadd.f32 %v3161, %v3446
      %v3553 = vadd.f32 %v3162, %v3451
      %v3554 = vadd.f32 %v3163, %v3456
      %v3555 = vadd.f32 %v3164, %v3461
      %v3556 = vadd.f32 %v3165, %v3466
      %v3557 = vadd.f32 %v3166, %v3471
      %v3558 = vadd.f32 %v3167, %v3476
      %v3559 = vadd.f32 %v3168, %v3481
      %v3560 = vadd.f32 %v3169, %v3486
      %v3561 = vadd.f32 %v3170, %v3491
      %v3562 = vadd.f32 %v3171, %v3496
      %v3563 = vadd.f32 %v3172, %v3501
      %v3564 = vadd.f32 %v3173, %v3506
      %v3565 = vadd.f32 %v3174, %v3511
      %v3566 = vadd.f32 %v3175, %v3516
      %v3567 = vadd.f32 %v3176, %v3521
      %v3568 = vadd.f32 %v3177, %v3526
      %v3569 = vadd.f32 %v3178, %v3531
      %v3570 = vadd.f32 %v3179, %v3536
      %v3571 = vld [vmem:[%s5] sm:$0x1]
      %v3573 = vlaneseq
      %v3574 = vshrl.u32 %v3573, 7
      %v3575 = vsub.s32 0, %v3574
      %v3576 = vrot.slane %v3571, %v3575
      %v3578 = vadd.f32 %v3539, %v3576
      %v3579 = vadd.f32 %v3540, %v3576
      %v3580 = vadd.f32 %v3541, %v3576
      %v3581 = vadd.f32 %v3542, %v3576
      %v3582 = vadd.f32 %v3543, %v3576
      %v3583 = vadd.f32 %v3544, %v3576
      %v3584 = vadd.f32 %v3545, %v3576
      %v3585 = vadd.f32 %v3546, %v3576
      %v3586 = vadd.f32 %v3547, %v3576
      %v3587 = vadd.f32 %v3548, %v3576
      %v3588 = vadd.f32 %v3549, %v3576
      %v3589 = vadd.f32 %v3550, %v3576
      %v3590 = vadd.f32 %v3551, %v3576
      %v3591 = vadd.f32 %v3552, %v3576
      %v3592 = vadd.f32 %v3553, %v3576
      %v3593 = vadd.f32 %v3554, %v3576
      %v3594 = vadd.f32 %v3555, %v3576
      %v3595 = vadd.f32 %v3556, %v3576
      %v3596 = vadd.f32 %v3557, %v3576
      %v3597 = vadd.f32 %v3558, %v3576
      %v3598 = vadd.f32 %v3559, %v3576
      %v3599 = vadd.f32 %v3560, %v3576
      %v3600 = vadd.f32 %v3561, %v3576
      %v3601 = vadd.f32 %v3562, %v3576
      %v3602 = vadd.f32 %v3563, %v3576
      %v3603 = vadd.f32 %v3564, %v3576
      %v3604 = vadd.f32 %v3565, %v3576
      %v3605 = vadd.f32 %v3566, %v3576
      %v3606 = vadd.f32 %v3567, %v3576
      %v3607 = vadd.f32 %v3568, %v3576
      %v3608 = vadd.f32 %v3569, %v3576
      %v3609 = vadd.f32 %v3570, %v3576
      %3610 = vst.msk [vmem:[%s271] sm:$0xff] %vm458, %v3578
      %3611 = vst.msk [vmem:[%s271 + $0x8] sm:$0xff] %vm458, %v3579
      %3612 = vst.msk [vmem:[%s271 + $0x10] sm:$0xff] %vm458, %v3580
      %3613 = vst.msk [vmem:[%s271 + $0x18] sm:$0xff] %vm458, %v3581
      %3614 = vst.msk [vmem:[%s271 + $0x20] sm:$0xff] %vm458, %v3582
      %3615 = vst.msk [vmem:[%s271 + $0x28] sm:$0xff] %vm458, %v3583
      %3616 = vst.msk [vmem:[%s271 + $0x30] sm:$0xff] %vm458, %v3584
      %3617 = vst.msk [vmem:[%s271 + $0x38] sm:$0xff] %vm458, %v3585
      %3618 = vst.msk [vmem:[%s271 + $0x40] sm:$0xff] %vm458, %v3586
      %3619 = vst.msk [vmem:[%s271 + $0x48] sm:$0xff] %vm458, %v3587
      %3620 = vst.msk [vmem:[%s271 + $0x50] sm:$0xff] %vm458, %v3588
      %3621 = vst.msk [vmem:[%s271 + $0x58] sm:$0xff] %vm458, %v3589
      %3622 = vst.msk [vmem:[%s271 + $0x60] sm:$0xff] %vm458, %v3590
      %3623 = vst.msk [vmem:[%s271 + $0x68] sm:$0xff] %vm458, %v3591
      %3624 = vst.msk [vmem:[%s271 + $0x70] sm:$0xff] %vm458, %v3592
      %3625 = vst.msk [vmem:[%s271 + $0x78] sm:$0xff] %vm458, %v3593
      %3626 = vst.msk [vmem:[%s271 + $0x80] sm:$0xff] %vm458, %v3594
      %3627 = vst.msk [vmem:[%s271 + $0x88] sm:$0xff] %vm458, %v3595
      %3628 = vst.msk [vmem:[%s271 + $0x90] sm:$0xff] %vm458, %v3596
      %3629 = vst.msk [vmem:[%s271 + $0x98] sm:$0xff] %vm458, %v3597
      %3630 = vst.msk [vmem:[%s271 + $0xa0] sm:$0xff] %vm458, %v3598
      %3631 = vst.msk [vmem:[%s271 + $0xa8] sm:$0xff] %vm458, %v3599
      %3632 = vst.msk [vmem:[%s271 + $0xb0] sm:$0xff] %vm458, %v3600
      %3633 = vst.msk [vmem:[%s271 + $0xb8] sm:$0xff] %vm458, %v3601
      %3634 = vst.msk [vmem:[%s271 + $0xc0] sm:$0xff] %vm458, %v3602
      %3635 = vst.msk [vmem:[%s271 + $0xc8] sm:$0xff] %vm458, %v3603
      %3636 = vst.msk [vmem:[%s271 + $0xd0] sm:$0xff] %vm458, %v3604
      %3637 = vst.msk [vmem:[%s271 + $0xd8] sm:$0xff] %vm458, %v3605
      %3638 = vst.msk [vmem:[%s271 + $0xe0] sm:$0xff] %vm458, %v3606
      %3639 = vst.msk [vmem:[%s271 + $0xe8] sm:$0xff] %vm458, %v3607
      %3640 = vst.msk [vmem:[%s271 + $0xf0] sm:$0xff] %vm458, %v3608
      %3641 = vst.msk [vmem:[%s271 + $0xf8] sm:$0xff] %vm458, %v3609
      %p3642 = scmp.lt.s32.totalorder %s17, 1
      %s3643 = scalar_select %p3642, %s17, 1
      %s3644 = smul.addr %s3643, 32
      %s3645 = smul.addr %s3644, 8
      %s3646 = scalar_lea.vmem %s6, %s3645
      // Predicated region
      $region45: #{conv_res_block_forward.7} parent=43 // pred_check
        %p3647 = pneg %p171
      $region46: #{conv_res_block_forward.7} parent=43 // pred_check_branch
        %3649 = sbr.rel (%p3647) target = $region48
      $region47: #{conv_res_block_forward.7} parent=43 // pred_region
        _
      $region48: #{conv_res_block_forward.7} parent=43 // pred_fallthru
        _
    $region44: #{conv_res_block_forward.7} parent=5 // pred_fallthru
      _
    %p3650 = scmp.le.s32.totalorder 2, %s12
    // Predicated region
    $region49: #{conv_res_block_forward.7} parent=5 // pred_check
      %p3651 = pneg %p3650
    $region50: #{conv_res_block_forward.7} parent=5 // pred_check_branch
      %3653 = sbr.rel (%p3651) target = $region52
    $region51: #{conv_res_block_forward.7} parent=5 // pred_region
      %s3654 = ssub.s32 %s12, 2
      // Predicated region
      $region53: #{conv_res_block_forward.7} parent=51 // pred_check
        %p3655 = pneg %p177
      $region54: #{conv_res_block_forward.7} parent=51 // pred_check_branch
        %3657 = sbr.rel (%p3655) target = $region56
      $region55: #{conv_res_block_forward.7} parent=51 // pred_region
        %p3658 = scmp.lt.s32.totalorder %s18, 1
        %s3659 = scalar_select %p3658, %s18, 1
        %s3660 = smul.addr %s3659, 32
        %s3661 = smul.addr %s3660, 8
        %s3662 = scalar_lea.vmem %s6, %s3661
      $region56: #{conv_res_block_forward.7} parent=51 // pred_fallthru
        _
    $region52: #{conv_res_block_forward.7} parent=5 // pred_fallthru
      _
  $region6: #{conv_res_block_forward.7} parent=0 // loop_footer
    %s16 = sadd.s32 1, %s12
  $region7: #{conv_res_block_forward.7} parent=0 // loop_footer_branch
    %11 = sbr.rel target = $region3
  $region8: #{conv_res_block_forward.7} parent=0 // loop_exit
    _

</llo_original>
